<compile_context>
chip_gen: v7x
topology: tpu7x:2x2x1
jax: 0.10.0
libtpu: 0.0.40
codegen_flags: <defaults>
</compile_context>

<pallas_src>
import math
from functools import partial

import jax
import jax.numpy as jnp
from jax.experimental import pallas as pl
from jax.experimental.pallas import tpu as pltpu


# MXU operand dtype. jnp.bfloat16 recommended on v6e/v7x (relax tolerances).
COMPUTE_DTYPE = jnp.float32


# ----------------------------- fused decoder-layer kernel -----------------------------

def _decoder_layer_pallas(lp, x, memory, la_add, pad_add, num_heads):
    """One fused Pallas kernel per decoder layer; grid over batch."""
    B, T, D = x.shape
    S = memory.shape[1]
    dk = D // num_heads
    scale = 1.0 / math.sqrt(dk)
    cdt = COMPUTE_DTYPE

    weights = [
        lp["self_wqkv"], lp["self_bqkv"], lp["self_wo"], lp["self_bo"],
        lp["ln1_g"], lp["ln1_b"],
        lp["src_wq"], lp["src_bq"], lp["src_wkv"], lp["src_bkv"],
        lp["src_wo"], lp["src_bo"], lp["ln2_g"], lp["ln2_b"],
        lp["ffn_w1"], lp["ffn_b1"], lp["ffn_w2"], lp["ffn_b2"],
        lp["ln3_g"], lp["ln3_b"],
    ]

    def kernel(x_ref, mem_ref, la_ref, pad_ref,
               s_wqkv, s_bqkv, s_wo, s_bo, ln1_g, ln1_b,
               c_wq, c_bq, c_wkv, c_bkv, c_wo, c_bo, ln2_g, ln2_b,
               f_w1, f_b1, f_w2, f_b2, ln3_g, ln3_b,
               o_ref):

        def mm(a, b):
            # MXU matmul; operands in COMPUTE_DTYPE, f32 accumulation.
            return jnp.dot(a.astype(cdt), b.astype(cdt),
                           preferred_element_type=jnp.float32)

        def attn_heads(q, k, v, mask_add, wo, bo):
            # q: (T, D), k/v: (S_kv, D), mask_add: (T, S_kv) additive (already *-1e9)
            # Returns (T, D): per-head attention folded straight into the output
            # projection as a sum of (T,dk)@(dk,D) blocks (lane-dense output,
            # no transpose / concatenate needed).
            out = bo  # (1, D) broadcasts
            for h in range(num_heads):
                sl = slice(h * dk, (h + 1) * dk)
                qh = q[:, sl] * scale                      # (T, dk)
                # scores = qh @ kh^T without materializing a transpose
                s = jax.lax.dot_general(
                    qh.astype(cdt), k[:, sl].astype(cdt),
                    dimension_numbers=(((1,), (1,)), ((), ())),
                    preferred_element_type=jnp.float32)    # (T, S_kv)
                s = s + mask_add
                s = s - jnp.max(s, axis=-1, keepdims=True)
                p = jnp.exp(s)
                p = p * pl.reciprocal(jnp.sum(p, axis=-1, keepdims=True),
                                      approx=True)
                ctx = mm(p, v[:, sl])                      # (T, dk)
                out = out + mm(ctx, wo[sl, :])             # (T, D)
            return out

        def add_ln(a, b, g, beta):
            # residual add + LayerNorm (biased variance, eps=1e-6), f32 stats.
            z = a + b
            mu = jnp.mean(z, axis=-1, keepdims=True)
            var = jnp.mean((z - mu) ** 2, axis=-1, keepdims=True)
            return (z - mu) * jax.lax.rsqrt(var + 1e-6) * g + beta

        x0 = x_ref[...].astype(jnp.float32)      # (T, D)
        mem = mem_ref[...].astype(jnp.float32)   # (S, D)

        # ---- self attention (fused QKV projection) + add & norm ----
        qkv = mm(x0, s_wqkv[...]) + s_bqkv[...]                  # (T, 3D)
        attn = attn_heads(qkv[:, :D], qkv[:, D:2 * D], qkv[:, 2 * D:],
                          la_ref[...], s_wo[...], s_bo[...])
        x1 = add_ln(x0, attn, ln1_g[...], ln1_b[...])

        # ---- src attention (fused KV projection) + add & norm ----
        q = mm(x1, c_wq[...]) + c_bq[...]                        # (T, D)
        kv = mm(mem, c_wkv[...]) + c_bkv[...]                    # (S, 2D)
        attn = attn_heads(q, kv[:, :D], kv[:, D:], pad_ref[...],
                          c_wo[...], c_bo[...])
        x2 = add_ln(x1, attn, ln2_g[...], ln2_b[...])

        # ---- fused FFN (hidden stays in VMEM) + add & norm ----
        h = jnp.maximum(mm(x2, f_w1[...]) + f_b1[...], 0.0)      # (T, dff)
        h2 = mm(h, f_w2[...]) + f_b2[...]                        # (T, D)
        x3 = add_ln(x2, h2, ln3_g[...], ln3_b[...])

        o_ref[...] = x3.astype(o_ref.dtype)

    in_specs = [
        pl.BlockSpec((None, T, D), lambda b: (b, 0, 0)),   # x
        pl.BlockSpec((None, S, D), lambda b: (b, 0, 0)),   # memory
        pl.BlockSpec((None, T, T), lambda b: (b, 0, 0)),   # additive look-ahead mask
        pl.BlockSpec((None, T, S), lambda b: (b, 0, 0)),   # additive padding mask
    ] + [pl.BlockSpec(w.shape, lambda b: (0, 0)) for w in weights]

    return pl.pallas_call(
        kernel,
        out_shape=jax.ShapeDtypeStruct((B, T, D), x.dtype),
        grid=(B,),
        in_specs=in_specs,
        out_specs=pl.BlockSpec((None, T, D), lambda b: (b, 0, 0)),
        compiler_params=pltpu.CompilerParams(
            dimension_semantics=("parallel",)),   # v7x: shard batch across 2 TCs
    )(x, memory, la_add, pad_add, *weights)


# ----------------------------- decoder forward (glue) -----------------------------

@partial(jax.jit, static_argnames=("d_model", "num_heads"))
def decoder_forward(prepared, tokens, memory, look_ahead_mask, trg_padding_mask,
                    d_model, num_heads):
    B, T = tokens.shape
    S = memory.shape[1]

    # TODO(synk): embedding gather + positional-encoding add left as XLA glue
    # (a dynamic row gather has no cheap Pallas TPU equivalent at this size).
    x = prepared["emb"][tokens] * math.sqrt(d_model)
    x = x + prepared["pe"][:, :T, :]

    # Precompute additive masks (scores += mask * -1e9) once; shared by every layer.
    if look_ahead_mask is None:
        la_add = jnp.zeros((B, T, T), jnp.float32)
    else:
        la_add = jnp.broadcast_to(look_ahead_mask, (B, T, T)).astype(jnp.float32) * (-1e9)
    if trg_padding_mask is None:
        pad_add = jnp.zeros((B, T, S), jnp.float32)
    else:
        pad_add = jnp.broadcast_to(trg_padding_mask, (B, T, S)).astype(jnp.float32) * (-1e9)

    for lp in prepared["layers"]:
        x = _decoder_layer_pallas(lp, x, memory, la_add, pad_add, num_heads)
    return x


# ----------------------------- parameter init / prep -----------------------------

def _init_linear(key, din, dout):
    kw, kb = jax.random.split(key)
    w = jax.random.normal(kw, (din, dout), jnp.float32) * 0.05
    b = jax.random.normal(kb, (dout,), jnp.float32) * 0.05
    return w, b


def _init_mha(key, d_model):
    ks = jax.random.split(key, 4)
    p = {}
    p["wq_w"], p["wq_b"] = _init_linear(ks[0], d_model, d_model)
    p["wk_w"], p["wk_b"] = _init_linear(ks[1], d_model, d_model)
    p["wv_w"], p["wv_b"] = _init_linear(ks[2], d_model, d_model)
    p["dense_w"], p["dense_b"] = _init_linear(ks[3], d_model, d_model)
    return p


def _make_pe(max_len, d_model):
    position = jnp.arange(max_len, dtype=jnp.float32)[:, None]
    div_term = jnp.exp(
        jnp.arange(0, d_model, 2, dtype=jnp.float32) * (-math.log(10000.0) / d_model)
    )
    pe = jnp.zeros((max_len, d_model), jnp.float32)
    pe = pe.at[:, 0::2].set(jnp.sin(position * div_term))
    pe = pe.at[:, 1::2].set(jnp.cos(position * div_term))
    return pe[None]  # (1, max_len, d_model)


def init_decoder_params(key, num_layers, trg_vocab_size, max_len, d_model, dff):
    keys = jax.random.split(key, num_layers + 1)
    params = {
        "emb": jax.random.normal(keys[0], (trg_vocab_size, d_model), jnp.float32) * 0.05,
        "pe": _make_pe(max_len, d_model),
        "layers": [],
    }
    for li in range(num_layers):
        ks = jax.random.split(keys[li + 1], 4)
        lp = {
            "self": _init_mha(ks[0], d_model),
            "src": _init_mha(ks[1], d_model),
            "ln1_g": jnp.ones((d_model,), jnp.float32),
            "ln1_b": jnp.zeros((d_model,), jnp.float32),
            "ln2_g": jnp.ones((d_model,), jnp.float32),
            "ln2_b": jnp.zeros((d_model,), jnp.float32),
            "ln3_g": jnp.ones((d_model,), jnp.float32),
            "ln3_b": jnp.zeros((d_model,), jnp.float32),
        }
        lp["ffn_w1"], lp["ffn_b1"] = _init_linear(ks[2], d_model, dff)
        lp["ffn_w2"], lp["ffn_b2"] = _init_linear(ks[3], dff, d_model)
        params["layers"].append(lp)
    return params


def prepare_decoder_params(params):
    """One-time re-layout of the raw params into the fused kernel layout."""
    prepared = {"emb": params["emb"], "pe": params["pe"], "layers": []}
    for p in params["layers"]:
        sp, cp = p["self"], p["src"]
        lp = {
            # self attention: Wq|Wk|Wv fused -> single (D, 3D) matmul
            "self_wqkv": jnp.concatenate([sp["wq_w"], sp["wk_w"], sp["wv_w"]], axis=1),
            "self_bqkv": jnp.concatenate([sp["wq_b"], sp["wk_b"], sp["wv_b"]])[None, :],
            "self_wo": sp["dense_w"], "self_bo": sp["dense_b"][None, :],
            "ln1_g": p["ln1_g"][None, :], "ln1_b": p["ln1_b"][None, :],
            # src attention: Wq separate (query is x), Wk|Wv fused over memory
            "src_wq": cp["wq_w"], "src_bq": cp["wq_b"][None, :],
            "src_wkv": jnp.concatenate([cp["wk_w"], cp["wv_w"]], axis=1),
            "src_bkv": jnp.concatenate([cp["wk_b"], cp["wv_b"]])[None, :],
            "src_wo": cp["dense_w"], "src_bo": cp["dense_b"][None, :],
            "ln2_g": p["ln2_g"][None, :], "ln2_b": p["ln2_b"][None, :],
            "ffn_w1": p["ffn_w1"], "ffn_b1": p["ffn_b1"][None, :],
            "ffn_w2": p["ffn_w2"], "ffn_b2": p["ffn_b2"][None, :],
            "ln3_g": p["ln3_g"][None, :], "ln3_b": p["ln3_b"][None, :],
        }
        prepared["layers"].append(lp)
    return prepared


# ----------------------------- pure-JAX reference -----------------------------

def _ref_mha(p, q_in, k_in, v_in, mask, num_heads):
    B, Tq, D = q_in.shape
    Tk = k_in.shape[1]
    dk = D // num_heads
    q = (q_in @ p["wq_w"] + p["wq_b"]).reshape(B, Tq, num_heads, dk).transpose(0, 2, 1, 3)
    k = (k_in @ p["wk_w"] + p["wk_b"]).reshape(B, Tk, num_heads, dk).transpose(0, 2, 1, 3)
    v = (v_in @ p["wv_w"] + p["wv_b"]).reshape(B, Tk, num_heads, dk).transpose(0, 2, 1, 3)
    s = jnp.einsum("bhqd,bhkd->bhqk", q, k) / math.sqrt(dk)
    if mask is not None:
        s = s + mask[:, None, :, :] * (-1e9)
    p_attn = jax.nn.softmax(s, axis=-1)
    x = jnp.einsum("bhqk,bhkd->bhqd", p_attn, v)
    x = x.transpose(0, 2, 1, 3).reshape(B, Tq, D)
    return x @ p["dense_w"] + p["dense_b"]


def _ref_ln(z, g, b):
    m = jnp.mean(z, axis=-1, keepdims=True)
    v = jnp.mean((z - m) ** 2, axis=-1, keepdims=True)
    return (z - m) / jnp.sqrt(v + 1e-6) * g + b


def ref_decoder(params, tokens, memory, la_mask, pad_mask, d_model, num_heads):
    x = params["emb"][tokens] * math.sqrt(d_model)
    x = x + params["pe"][:, : tokens.shape[1], :]
    B, T, _ = x.shape
    for p in params["layers"]:
        a = _ref_mha(p["self"], x, x, x, jnp.broadcast_to(la_mask, (B, T, T)), num_heads)
        x = _ref_ln(x + a, p["ln1_g"], p["ln1_b"])
        S = memory.shape[1]
        s = _ref_mha(p["src"], x, memory, memory,
                     jnp.broadcast_to(pad_mask, (B, T, S)), num_heads)
        x = _ref_ln(x + s, p["ln2_g"], p["ln2_b"])
        h = jax.nn.relu(x @ p["ffn_w1"] + p["ffn_b1"]) @ p["ffn_w2"] + p["ffn_b2"]
        x = _ref_ln(x + h, p["ln3_g"], p["ln3_b"])
    return x


# ----------------------------- main -----------------------------

if __name__ == "__main__":
    num_layers = 2
    trg_vocab_size = 50
    max_len = 16
    d_model = 32
    num_heads = 4
    dff = 64

    B, T, S = 2, 8, 8

    key = jax.random.PRNGKey(0)
    kp, kt, km, kpad = jax.random.split(key, 4)

    params = init_decoder_params(kp, num_layers, trg_vocab_size, max_len, d_model, dff)
    prepared = prepare_decoder_params(params)

    tokens = jax.random.randint(kt, (B, T), 0, trg_vocab_size)
    memory = jax.random.normal(km, (B, S, d_model), jnp.float32)

    # look-ahead (causal) mask: 1 above the diagonal
    look_ahead_mask = jnp.triu(jnp.ones((T, T), jnp.float32), k=1)[None]  # (1, T, T)
    look_ahead_mask = jnp.broadcast_to(look_ahead_mask, (B, T, T))
    # target padding mask over memory positions: last two positions padded for batch 1
    trg_padding_mask = jnp.zeros((B, 1, S), jnp.float32)
    trg_padding_mask = trg_padding_mask.at[1, 0, -2:].set(1.0)

    out = decoder_forward(prepared, tokens, memory, look_ahead_mask, trg_padding_mask,
                          d_model, num_heads)
    out = jax.block_until_ready(out)

    ref = ref_decoder(params, tokens, memory, look_ahead_mask, trg_padding_mask,
                      d_model, num_heads)
    assert out.shape == (B, T, d_model)
    # Tolerance accounts for approx=True softmax reciprocal (EUP vrcp); use ~1e-2
    # if COMPUTE_DTYPE is set to bfloat16.
    assert jnp.allclose(out, ref, atol=2e-3, rtol=2e-3), "mismatch vs reference"

    print("KERNEL_OK")
</pallas_src>

<mosaic_0001>
module attributes {stable_mosaic.version = 11 : i64} {
  func.func @kernel(%arg0: i32, %arg1: memref<1x8x32xf32, #tpu.memory_space<vmem>>, %arg2: memref<1x8x32xf32, #tpu.memory_space<vmem>>, %arg3: memref<1x8x8xf32, #tpu.memory_space<vmem>>, %arg4: memref<1x8x8xf32, #tpu.memory_space<vmem>>, %arg5: memref<32x96xf32, #tpu.memory_space<vmem>>, %arg6: memref<1x96xf32, #tpu.memory_space<vmem>>, %arg7: memref<32x32xf32, #tpu.memory_space<vmem>>, %arg8: memref<1x32xf32, #tpu.memory_space<vmem>>, %arg9: memref<1x32xf32, #tpu.memory_space<vmem>>, %arg10: memref<1x32xf32, #tpu.memory_space<vmem>>, %arg11: memref<32x32xf32, #tpu.memory_space<vmem>>, %arg12: memref<1x32xf32, #tpu.memory_space<vmem>>, %arg13: memref<32x64xf32, #tpu.memory_space<vmem>>, %arg14: memref<1x64xf32, #tpu.memory_space<vmem>>, %arg15: memref<32x32xf32, #tpu.memory_space<vmem>>, %arg16: memref<1x32xf32, #tpu.memory_space<vmem>>, %arg17: memref<1x32xf32, #tpu.memory_space<vmem>>, %arg18: memref<1x32xf32, #tpu.memory_space<vmem>>, %arg19: memref<32x64xf32, #tpu.memory_space<vmem>>, %arg20: memref<1x64xf32, #tpu.memory_space<vmem>>, %arg21: memref<64x32xf32, #tpu.memory_space<vmem>>, %arg22: memref<1x32xf32, #tpu.memory_space<vmem>>, %arg23: memref<1x32xf32, #tpu.memory_space<vmem>>, %arg24: memref<1x32xf32, #tpu.memory_space<vmem>>, %arg25: memref<1x8x32xf32, #tpu.memory_space<vmem>>) attributes {dimension_semantics = [#tpu.dimension_semantics<parallel>], iteration_bounds = array<i64: 2>, scalar_prefetch = 0 : i64, scratch_operands = 0 : i64, tpu.core_type = #tpu.core_type<tc>, window_params = [{transform_indices = @transform_0, window_bounds = array<i64: 1, 8, 32>}, {transform_indices = @transform_1, window_bounds = array<i64: 1, 8, 32>}, {transform_indices = @transform_2, window_bounds = array<i64: 1, 8, 8>}, {transform_indices = @transform_3, window_bounds = array<i64: 1, 8, 8>}, {pipeline_mode = #tpu.pipeline_mode<synchronous>, transform_indices = @transform_4, window_bounds = array<i64: 32, 96>}, {pipeline_mode = #tpu.pipeline_mode<synchronous>, transform_indices = @transform_5, window_bounds = array<i64: 1, 96>}, {pipeline_mode = #tpu.pipeline_mode<synchronous>, transform_indices = @transform_6, window_bounds = array<i64: 32, 32>}, {pipeline_mode = #tpu.pipeline_mode<synchronous>, transform_indices = @transform_7, window_bounds = array<i64: 1, 32>}, {pipeline_mode = #tpu.pipeline_mode<synchronous>, transform_indices = @transform_8, window_bounds = array<i64: 1, 32>}, {pipeline_mode = #tpu.pipeline_mode<synchronous>, transform_indices = @transform_9, window_bounds = array<i64: 1, 32>}, {pipeline_mode = #tpu.pipeline_mode<synchronous>, transform_indices = @transform_10, window_bounds = array<i64: 32, 32>}, {pipeline_mode = #tpu.pipeline_mode<synchronous>, transform_indices = @transform_11, window_bounds = array<i64: 1, 32>}, {pipeline_mode = #tpu.pipeline_mode<synchronous>, transform_indices = @transform_12, window_bounds = array<i64: 32, 64>}, {pipeline_mode = #tpu.pipeline_mode<synchronous>, transform_indices = @transform_13, window_bounds = array<i64: 1, 64>}, {pipeline_mode = #tpu.pipeline_mode<synchronous>, transform_indices = @transform_14, window_bounds = array<i64: 32, 32>}, {pipeline_mode = #tpu.pipeline_mode<synchronous>, transform_indices = @transform_15, window_bounds = array<i64: 1, 32>}, {pipeline_mode = #tpu.pipeline_mode<synchronous>, transform_indices = @transform_16, window_bounds = array<i64: 1, 32>}, {pipeline_mode = #tpu.pipeline_mode<synchronous>, transform_indices = @transform_17, window_bounds = array<i64: 1, 32>}, {pipeline_mode = #tpu.pipeline_mode<synchronous>, transform_indices = @transform_18, window_bounds = array<i64: 32, 64>}, {pipeline_mode = #tpu.pipeline_mode<synchronous>, transform_indices = @transform_19, window_bounds = array<i64: 1, 64>}, {pipeline_mode = #tpu.pipeline_mode<synchronous>, transform_indices = @transform_20, window_bounds = array<i64: 64, 32>}, {pipeline_mode = #tpu.pipeline_mode<synchronous>, transform_indices = @transform_21, window_bounds = array<i64: 1, 32>}, {pipeline_mode = #tpu.pipeline_mode<synchronous>, transform_indices = @transform_22, window_bounds = array<i64: 1, 32>}, {pipeline_mode = #tpu.pipeline_mode<synchronous>, transform_indices = @transform_23, window_bounds = array<i64: 1, 32>}, {transform_indices = @transform_24, window_bounds = array<i64: 1, 8, 32>}]} {
    %c0 = arith.constant 0 : index
    %c0_0 = arith.constant 0 : index
    %c0_1 = arith.constant 0 : index
    %0 = vector.load %arg1[%c0, %c0_0, %c0_1] : memref<1x8x32xf32, #tpu.memory_space<vmem>>, vector<1x8x32xf32>
    %1 = vector.shape_cast %0 : vector<1x8x32xf32> to vector<8x32xf32>
    %c0_2 = arith.constant 0 : index
    %c0_3 = arith.constant 0 : index
    %c0_4 = arith.constant 0 : index
    %2 = vector.load %arg2[%c0_2, %c0_3, %c0_4] : memref<1x8x32xf32, #tpu.memory_space<vmem>>, vector<1x8x32xf32>
    %3 = vector.shape_cast %2 : vector<1x8x32xf32> to vector<8x32xf32>
    %c0_5 = arith.constant 0 : index
    %c0_6 = arith.constant 0 : index
    %4 = vector.load %arg5[%c0_5, %c0_6] : memref<32x96xf32, #tpu.memory_space<vmem>>, vector<32x96xf32>
    %cst = arith.constant dense<0.000000e+00> : vector<8x96xf32>
    %5 = tpu.matmul %1, %4, %cst {dimension_numbers = #tpu.dot_dimension_numbers<[1], [0], [0], [1], [0, 0, 1, 1], [], []>} : vector<8x32xf32>, vector<32x96xf32>, vector<8x96xf32> -> vector<8x96xf32>
    %c0_7 = arith.constant 0 : index
    %c0_8 = arith.constant 0 : index
    %6 = vector.load %arg6[%c0_7, %c0_8] : memref<1x96xf32, #tpu.memory_space<vmem>>, vector<1x96xf32>
    %7 = vector.broadcast %6 : vector<1x96xf32> to vector<8x96xf32>
    %8 = arith.addf %5, %7 : vector<8x96xf32>
    %9 = vector.extract_strided_slice %8 {offsets = [0, 0], sizes = [8, 32], strides = [1, 1]} : vector<8x96xf32> to vector<8x32xf32>
    %10 = vector.extract_strided_slice %8 {offsets = [0, 32], sizes = [8, 32], strides = [1, 1]} : vector<8x96xf32> to vector<8x32xf32>
    %11 = vector.extract_strided_slice %8 {offsets = [0, 64], sizes = [8, 32], strides = [1, 1]} : vector<8x96xf32> to vector<8x32xf32>
    %c0_9 = arith.constant 0 : index
    %c0_10 = arith.constant 0 : index
    %c0_11 = arith.constant 0 : index
    %12 = vector.load %arg3[%c0_9, %c0_10, %c0_11] : memref<1x8x8xf32, #tpu.memory_space<vmem>>, vector<1x8x8xf32>
    %13 = vector.shape_cast %12 : vector<1x8x8xf32> to vector<8x8xf32>
    %c0_12 = arith.constant 0 : index
    %c0_13 = arith.constant 0 : index
    %14 = vector.load %arg7[%c0_12, %c0_13] : memref<32x32xf32, #tpu.memory_space<vmem>>, vector<32x32xf32>
    %c0_14 = arith.constant 0 : index
    %c0_15 = arith.constant 0 : index
    %15 = vector.load %arg8[%c0_14, %c0_15] : memref<1x32xf32, #tpu.memory_space<vmem>>, vector<1x32xf32>
    %16 = vector.extract_strided_slice %9 {offsets = [0, 0], sizes = [8, 8], strides = [1, 1]} : vector<8x32xf32> to vector<8x8xf32>
    %cst_16 = arith.constant 0.353553385 : f32
    %17 = vector.broadcast %cst_16 : f32 to vector<8x8xf32>
    %18 = arith.mulf %16, %17 : vector<8x8xf32>
    %19 = vector.extract_strided_slice %10 {offsets = [0, 0], sizes = [8, 8], strides = [1, 1]} : vector<8x32xf32> to vector<8x8xf32>
    %cst_17 = arith.constant dense<0.000000e+00> : vector<8x8xf32>
    %20 = tpu.matmul %18, %19, %cst_17 {dimension_numbers = #tpu.dot_dimension_numbers<[1], [1], [0], [0], [0, 0, 1, 0], [], []>} : vector<8x8xf32>, vector<8x8xf32>, vector<8x8xf32> -> vector<8x8xf32>
    %21 = arith.addf %20, %13 : vector<8x8xf32>
    %cst_18 = arith.constant dense<0xFF800000> : vector<8xf32>
    %22 = vector.multi_reduction <maximumf>, %21, %cst_18 [1] : vector<8x8xf32> to vector<8xf32>
    %23 = vector.shape_cast %22 : vector<8xf32> to vector<8x1xf32>
    %24 = vector.broadcast %23 : vector<8x1xf32> to vector<8x8xf32>
    %25 = arith.subf %21, %24 : vector<8x8xf32>
    %26 = math.exp %25 : vector<8x8xf32>
    %cst_19 = arith.constant dense<0.000000e+00> : vector<8xf32>
    %27 = vector.multi_reduction <add>, %26, %cst_19 [1] : vector<8x8xf32> to vector<8xf32>
    %28 = vector.shape_cast %27 : vector<8xf32> to vector<8x1xf32>
    %29 = tpu.reciprocal %28 {approx = true} : vector<8x1xf32> -> vector<8x1xf32>
    %30 = vector.broadcast %29 : vector<8x1xf32> to vector<8x8xf32>
    %31 = arith.mulf %26, %30 : vector<8x8xf32>
    %32 = vector.extract_strided_slice %11 {offsets = [0, 0], sizes = [8, 8], strides = [1, 1]} : vector<8x32xf32> to vector<8x8xf32>
    %cst_20 = arith.constant dense<0.000000e+00> : vector<8x8xf32>
    %33 = tpu.matmul %31, %32, %cst_20 {dimension_numbers = #tpu.dot_dimension_numbers<[1], [0], [0], [1], [0, 0, 1, 1], [], []>} : vector<8x8xf32>, vector<8x8xf32>, vector<8x8xf32> -> vector<8x8xf32>
    %34 = vector.extract_strided_slice %14 {offsets = [0, 0], sizes = [8, 32], strides = [1, 1]} : vector<32x32xf32> to vector<8x32xf32>
    %cst_21 = arith.constant dense<0.000000e+00> : vector<8x32xf32>
    %35 = tpu.matmul %33, %34, %cst_21 {dimension_numbers = #tpu.dot_dimension_numbers<[1], [0], [0], [1], [0, 0, 1, 1], [], []>} : vector<8x8xf32>, vector<8x32xf32>, vector<8x32xf32> -> vector<8x32xf32>
    %36 = vector.broadcast %15 : vector<1x32xf32> to vector<8x32xf32>
    %37 = arith.addf %36, %35 : vector<8x32xf32>
    %38 = vector.extract_strided_slice %9 {offsets = [0, 8], sizes = [8, 8], strides = [1, 1]} : vector<8x32xf32> to vector<8x8xf32>
    %cst_22 = arith.constant 0.353553385 : f32
    %39 = vector.broadcast %cst_22 : f32 to vector<8x8xf32>
    %40 = arith.mulf %38, %39 : vector<8x8xf32>
    %41 = vector.extract_strided_slice %10 {offsets = [0, 8], sizes = [8, 8], strides = [1, 1]} : vector<8x32xf32> to vector<8x8xf32>
    %cst_23 = arith.constant dense<0.000000e+00> : vector<8x8xf32>
    %42 = tpu.matmul %40, %41, %cst_23 {dimension_numbers = #tpu.dot_dimension_numbers<[1], [1], [0], [0], [0, 0, 1, 0], [], []>} : vector<8x8xf32>, vector<8x8xf32>, vector<8x8xf32> -> vector<8x8xf32>
    %43 = arith.addf %42, %13 : vector<8x8xf32>
    %cst_24 = arith.constant dense<0xFF800000> : vector<8xf32>
    %44 = vector.multi_reduction <maximumf>, %43, %cst_24 [1] : vector<8x8xf32> to vector<8xf32>
    %45 = vector.shape_cast %44 : vector<8xf32> to vector<8x1xf32>
    %46 = vector.broadcast %45 : vector<8x1xf32> to vector<8x8xf32>
    %47 = arith.subf %43, %46 : vector<8x8xf32>
    %48 = math.exp %47 : vector<8x8xf32>
    %cst_25 = arith.constant dense<0.000000e+00> : vector<8xf32>
    %49 = vector.multi_reduction <add>, %48, %cst_25 [1] : vector<8x8xf32> to vector<8xf32>
    %50 = vector.shape_cast %49 : vector<8xf32> to vector<8x1xf32>
    %51 = tpu.reciprocal %50 {approx = true} : vector<8x1xf32> -> vector<8x1xf32>
    %52 = vector.broadcast %51 : vector<8x1xf32> to vector<8x8xf32>
    %53 = arith.mulf %48, %52 : vector<8x8xf32>
    %54 = vector.extract_strided_slice %11 {offsets = [0, 8], sizes = [8, 8], strides = [1, 1]} : vector<8x32xf32> to vector<8x8xf32>
    %cst_26 = arith.constant dense<0.000000e+00> : vector<8x8xf32>
    %55 = tpu.matmul %53, %54, %cst_26 {dimension_numbers = #tpu.dot_dimension_numbers<[1], [0], [0], [1], [0, 0, 1, 1], [], []>} : vector<8x8xf32>, vector<8x8xf32>, vector<8x8xf32> -> vector<8x8xf32>
    %56 = vector.extract_strided_slice %14 {offsets = [8, 0], sizes = [8, 32], strides = [1, 1]} : vector<32x32xf32> to vector<8x32xf32>
    %cst_27 = arith.constant dense<0.000000e+00> : vector<8x32xf32>
    %57 = tpu.matmul %55, %56, %cst_27 {dimension_numbers = #tpu.dot_dimension_numbers<[1], [0], [0], [1], [0, 0, 1, 1], [], []>} : vector<8x8xf32>, vector<8x32xf32>, vector<8x32xf32> -> vector<8x32xf32>
    %58 = arith.addf %37, %57 : vector<8x32xf32>
    %59 = vector.extract_strided_slice %9 {offsets = [0, 16], sizes = [8, 8], strides = [1, 1]} : vector<8x32xf32> to vector<8x8xf32>
    %cst_28 = arith.constant 0.353553385 : f32
    %60 = vector.broadcast %cst_28 : f32 to vector<8x8xf32>
    %61 = arith.mulf %59, %60 : vector<8x8xf32>
    %62 = vector.extract_strided_slice %10 {offsets = [0, 16], sizes = [8, 8], strides = [1, 1]} : vector<8x32xf32> to vector<8x8xf32>
    %cst_29 = arith.constant dense<0.000000e+00> : vector<8x8xf32>
    %63 = tpu.matmul %61, %62, %cst_29 {dimension_numbers = #tpu.dot_dimension_numbers<[1], [1], [0], [0], [0, 0, 1, 0], [], []>} : vector<8x8xf32>, vector<8x8xf32>, vector<8x8xf32> -> vector<8x8xf32>
    %64 = arith.addf %63, %13 : vector<8x8xf32>
    %cst_30 = arith.constant dense<0xFF800000> : vector<8xf32>
    %65 = vector.multi_reduction <maximumf>, %64, %cst_30 [1] : vector<8x8xf32> to vector<8xf32>
    %66 = vector.shape_cast %65 : vector<8xf32> to vector<8x1xf32>
    %67 = vector.broadcast %66 : vector<8x1xf32> to vector<8x8xf32>
    %68 = arith.subf %64, %67 : vector<8x8xf32>
    %69 = math.exp %68 : vector<8x8xf32>
    %cst_31 = arith.constant dense<0.000000e+00> : vector<8xf32>
    %70 = vector.multi_reduction <add>, %69, %cst_31 [1] : vector<8x8xf32> to vector<8xf32>
    %71 = vector.shape_cast %70 : vector<8xf32> to vector<8x1xf32>
    %72 = tpu.reciprocal %71 {approx = true} : vector<8x1xf32> -> vector<8x1xf32>
    %73 = vector.broadcast %72 : vector<8x1xf32> to vector<8x8xf32>
    %74 = arith.mulf %69, %73 : vector<8x8xf32>
    %75 = vector.extract_strided_slice %11 {offsets = [0, 16], sizes = [8, 8], strides = [1, 1]} : vector<8x32xf32> to vector<8x8xf32>
    %cst_32 = arith.constant dense<0.000000e+00> : vector<8x8xf32>
    %76 = tpu.matmul %74, %75, %cst_32 {dimension_numbers = #tpu.dot_dimension_numbers<[1], [0], [0], [1], [0, 0, 1, 1], [], []>} : vector<8x8xf32>, vector<8x8xf32>, vector<8x8xf32> -> vector<8x8xf32>
    %77 = vector.extract_strided_slice %14 {offsets = [16, 0], sizes = [8, 32], strides = [1, 1]} : vector<32x32xf32> to vector<8x32xf32>
    %cst_33 = arith.constant dense<0.000000e+00> : vector<8x32xf32>
    %78 = tpu.matmul %76, %77, %cst_33 {dimension_numbers = #tpu.dot_dimension_numbers<[1], [0], [0], [1], [0, 0, 1, 1], [], []>} : vector<8x8xf32>, vector<8x32xf32>, vector<8x32xf32> -> vector<8x32xf32>
    %79 = arith.addf %58, %78 : vector<8x32xf32>
    %80 = vector.extract_strided_slice %9 {offsets = [0, 24], sizes = [8, 8], strides = [1, 1]} : vector<8x32xf32> to vector<8x8xf32>
    %cst_34 = arith.constant 0.353553385 : f32
    %81 = vector.broadcast %cst_34 : f32 to vector<8x8xf32>
    %82 = arith.mulf %80, %81 : vector<8x8xf32>
    %83 = vector.extract_strided_slice %10 {offsets = [0, 24], sizes = [8, 8], strides = [1, 1]} : vector<8x32xf32> to vector<8x8xf32>
    %cst_35 = arith.constant dense<0.000000e+00> : vector<8x8xf32>
    %84 = tpu.matmul %82, %83, %cst_35 {dimension_numbers = #tpu.dot_dimension_numbers<[1], [1], [0], [0], [0, 0, 1, 0], [], []>} : vector<8x8xf32>, vector<8x8xf32>, vector<8x8xf32> -> vector<8x8xf32>
    %85 = arith.addf %84, %13 : vector<8x8xf32>
    %cst_36 = arith.constant dense<0xFF800000> : vector<8xf32>
    %86 = vector.multi_reduction <maximumf>, %85, %cst_36 [1] : vector<8x8xf32> to vector<8xf32>
    %87 = vector.shape_cast %86 : vector<8xf32> to vector<8x1xf32>
    %88 = vector.broadcast %87 : vector<8x1xf32> to vector<8x8xf32>
    %89 = arith.subf %85, %88 : vector<8x8xf32>
    %90 = math.exp %89 : vector<8x8xf32>
    %cst_37 = arith.constant dense<0.000000e+00> : vector<8xf32>
    %91 = vector.multi_reduction <add>, %90, %cst_37 [1] : vector<8x8xf32> to vector<8xf32>
    %92 = vector.shape_cast %91 : vector<8xf32> to vector<8x1xf32>
    %93 = tpu.reciprocal %92 {approx = true} : vector<8x1xf32> -> vector<8x1xf32>
    %94 = vector.broadcast %93 : vector<8x1xf32> to vector<8x8xf32>
    %95 = arith.mulf %90, %94 : vector<8x8xf32>
    %96 = vector.extract_strided_slice %11 {offsets = [0, 24], sizes = [8, 8], strides = [1, 1]} : vector<8x32xf32> to vector<8x8xf32>
    %cst_38 = arith.constant dense<0.000000e+00> : vector<8x8xf32>
    %97 = tpu.matmul %95, %96, %cst_38 {dimension_numbers = #tpu.dot_dimension_numbers<[1], [0], [0], [1], [0, 0, 1, 1], [], []>} : vector<8x8xf32>, vector<8x8xf32>, vector<8x8xf32> -> vector<8x8xf32>
    %98 = vector.extract_strided_slice %14 {offsets = [24, 0], sizes = [8, 32], strides = [1, 1]} : vector<32x32xf32> to vector<8x32xf32>
    %cst_39 = arith.constant dense<0.000000e+00> : vector<8x32xf32>
    %99 = tpu.matmul %97, %98, %cst_39 {dimension_numbers = #tpu.dot_dimension_numbers<[1], [0], [0], [1], [0, 0, 1, 1], [], []>} : vector<8x8xf32>, vector<8x32xf32>, vector<8x32xf32> -> vector<8x32xf32>
    %100 = arith.addf %79, %99 : vector<8x32xf32>
    %c0_40 = arith.constant 0 : index
    %c0_41 = arith.constant 0 : index
    %101 = vector.load %arg9[%c0_40, %c0_41] : memref<1x32xf32, #tpu.memory_space<vmem>>, vector<1x32xf32>
    %c0_42 = arith.constant 0 : index
    %c0_43 = arith.constant 0 : index
    %102 = vector.load %arg10[%c0_42, %c0_43] : memref<1x32xf32, #tpu.memory_space<vmem>>, vector<1x32xf32>
    %103 = arith.addf %1, %100 : vector<8x32xf32>
    %cst_44 = arith.constant dense<0.000000e+00> : vector<8xf32>
    %104 = vector.multi_reduction <add>, %103, %cst_44 [1] : vector<8x32xf32> to vector<8xf32>
    %105 = vector.shape_cast %104 : vector<8xf32> to vector<8x1xf32>
    %cst_45 = arith.constant 3.200000e+01 : f32
    %106 = vector.broadcast %cst_45 : f32 to vector<8x1xf32>
    %107 = arith.divf %105, %106 : vector<8x1xf32>
    %108 = vector.broadcast %107 : vector<8x1xf32> to vector<8x32xf32>
    %109 = arith.subf %103, %108 : vector<8x32xf32>
    %110 = arith.mulf %109, %109 : vector<8x32xf32>
    %cst_46 = arith.constant dense<0.000000e+00> : vector<8xf32>
    %111 = vector.multi_reduction <add>, %110, %cst_46 [1] : vector<8x32xf32> to vector<8xf32>
    %112 = vector.shape_cast %111 : vector<8xf32> to vector<8x1xf32>
    %cst_47 = arith.constant 3.200000e+01 : f32
    %113 = vector.broadcast %cst_47 : f32 to vector<8x1xf32>
    %114 = arith.divf %112, %113 : vector<8x1xf32>
    %115 = vector.broadcast %107 : vector<8x1xf32> to vector<8x32xf32>
    %116 = arith.subf %103, %115 : vector<8x32xf32>
    %cst_48 = arith.constant 9.99999997E-7 : f32
    %117 = vector.broadcast %cst_48 : f32 to vector<8x1xf32>
    %118 = arith.addf %114, %117 : vector<8x1xf32>
    %119 = math.rsqrt %118 : vector<8x1xf32>
    %120 = vector.broadcast %119 : vector<8x1xf32> to vector<8x32xf32>
    %121 = arith.mulf %116, %120 : vector<8x32xf32>
    %122 = vector.broadcast %101 : vector<1x32xf32> to vector<8x32xf32>
    %123 = arith.mulf %121, %122 : vector<8x32xf32>
    %124 = vector.broadcast %102 : vector<1x32xf32> to vector<8x32xf32>
    %125 = arith.addf %123, %124 : vector<8x32xf32>
    %c0_49 = arith.constant 0 : index
    %c0_50 = arith.constant 0 : index
    %126 = vector.load %arg11[%c0_49, %c0_50] : memref<32x32xf32, #tpu.memory_space<vmem>>, vector<32x32xf32>
    %cst_51 = arith.constant dense<0.000000e+00> : vector<8x32xf32>
    %127 = tpu.matmul %125, %126, %cst_51 {dimension_numbers = #tpu.dot_dimension_numbers<[1], [0], [0], [1], [0, 0, 1, 1], [], []>} : vector<8x32xf32>, vector<32x32xf32>, vector<8x32xf32> -> vector<8x32xf32>
    %c0_52 = arith.constant 0 : index
    %c0_53 = arith.constant 0 : index
    %128 = vector.load %arg12[%c0_52, %c0_53] : memref<1x32xf32, #tpu.memory_space<vmem>>, vector<1x32xf32>
    %129 = vector.broadcast %128 : vector<1x32xf32> to vector<8x32xf32>
    %130 = arith.addf %127, %129 : vector<8x32xf32>
    %c0_54 = arith.constant 0 : index
    %c0_55 = arith.constant 0 : index
    %131 = vector.load %arg13[%c0_54, %c0_55] : memref<32x64xf32, #tpu.memory_space<vmem>>, vector<32x64xf32>
    %cst_56 = arith.constant dense<0.000000e+00> : vector<8x64xf32>
    %132 = tpu.matmul %3, %131, %cst_56 {dimension_numbers = #tpu.dot_dimension_numbers<[1], [0], [0], [1], [0, 0, 1, 1], [], []>} : vector<8x32xf32>, vector<32x64xf32>, vector<8x64xf32> -> vector<8x64xf32>
    %c0_57 = arith.constant 0 : index
    %c0_58 = arith.constant 0 : index
    %133 = vector.load %arg14[%c0_57, %c0_58] : memref<1x64xf32, #tpu.memory_space<vmem>>, vector<1x64xf32>
    %134 = vector.broadcast %133 : vector<1x64xf32> to vector<8x64xf32>
    %135 = arith.addf %132, %134 : vector<8x64xf32>
    %136 = vector.extract_strided_slice %135 {offsets = [0, 0], sizes = [8, 32], strides = [1, 1]} : vector<8x64xf32> to vector<8x32xf32>
    %137 = vector.extract_strided_slice %135 {offsets = [0, 32], sizes = [8, 32], strides = [1, 1]} : vector<8x64xf32> to vector<8x32xf32>
    %c0_59 = arith.constant 0 : index
    %c0_60 = arith.constant 0 : index
    %c0_61 = arith.constant 0 : index
    %138 = vector.load %arg4[%c0_59, %c0_60, %c0_61] : memref<1x8x8xf32, #tpu.memory_space<vmem>>, vector<1x8x8xf32>
    %139 = vector.shape_cast %138 : vector<1x8x8xf32> to vector<8x8xf32>
    %c0_62 = arith.constant 0 : index
    %c0_63 = arith.constant 0 : index
    %140 = vector.load %arg15[%c0_62, %c0_63] : memref<32x32xf32, #tpu.memory_space<vmem>>, vector<32x32xf32>
    %c0_64 = arith.constant 0 : index
    %c0_65 = arith.constant 0 : index
    %141 = vector.load %arg16[%c0_64, %c0_65] : memref<1x32xf32, #tpu.memory_space<vmem>>, vector<1x32xf32>
    %142 = vector.extract_strided_slice %130 {offsets = [0, 0], sizes = [8, 8], strides = [1, 1]} : vector<8x32xf32> to vector<8x8xf32>
    %cst_66 = arith.constant 0.353553385 : f32
    %143 = vector.broadcast %cst_66 : f32 to vector<8x8xf32>
    %144 = arith.mulf %142, %143 : vector<8x8xf32>
    %145 = vector.extract_strided_slice %136 {offsets = [0, 0], sizes = [8, 8], strides = [1, 1]} : vector<8x32xf32> to vector<8x8xf32>
    %cst_67 = arith.constant dense<0.000000e+00> : vector<8x8xf32>
    %146 = tpu.matmul %144, %145, %cst_67 {dimension_numbers = #tpu.dot_dimension_numbers<[1], [1], [0], [0], [0, 0, 1, 0], [], []>} : vector<8x8xf32>, vector<8x8xf32>, vector<8x8xf32> -> vector<8x8xf32>
    %147 = arith.addf %146, %139 : vector<8x8xf32>
    %cst_68 = arith.constant dense<0xFF800000> : vector<8xf32>
    %148 = vector.multi_reduction <maximumf>, %147, %cst_68 [1] : vector<8x8xf32> to vector<8xf32>
    %149 = vector.shape_cast %148 : vector<8xf32> to vector<8x1xf32>
    %150 = vector.broadcast %149 : vector<8x1xf32> to vector<8x8xf32>
    %151 = arith.subf %147, %150 : vector<8x8xf32>
    %152 = math.exp %151 : vector<8x8xf32>
    %cst_69 = arith.constant dense<0.000000e+00> : vector<8xf32>
    %153 = vector.multi_reduction <add>, %152, %cst_69 [1] : vector<8x8xf32> to vector<8xf32>
    %154 = vector.shape_cast %153 : vector<8xf32> to vector<8x1xf32>
    %155 = tpu.reciprocal %154 {approx = true} : vector<8x1xf32> -> vector<8x1xf32>
    %156 = vector.broadcast %155 : vector<8x1xf32> to vector<8x8xf32>
    %157 = arith.mulf %152, %156 : vector<8x8xf32>
    %158 = vector.extract_strided_slice %137 {offsets = [0, 0], sizes = [8, 8], strides = [1, 1]} : vector<8x32xf32> to vector<8x8xf32>
    %cst_70 = arith.constant dense<0.000000e+00> : vector<8x8xf32>
    %159 = tpu.matmul %157, %158, %cst_70 {dimension_numbers = #tpu.dot_dimension_numbers<[1], [0], [0], [1], [0, 0, 1, 1], [], []>} : vector<8x8xf32>, vector<8x8xf32>, vector<8x8xf32> -> vector<8x8xf32>
    %160 = vector.extract_strided_slice %140 {offsets = [0, 0], sizes = [8, 32], strides = [1, 1]} : vector<32x32xf32> to vector<8x32xf32>
    %cst_71 = arith.constant dense<0.000000e+00> : vector<8x32xf32>
    %161 = tpu.matmul %159, %160, %cst_71 {dimension_numbers = #tpu.dot_dimension_numbers<[1], [0], [0], [1], [0, 0, 1, 1], [], []>} : vector<8x8xf32>, vector<8x32xf32>, vector<8x32xf32> -> vector<8x32xf32>
    %162 = vector.broadcast %141 : vector<1x32xf32> to vector<8x32xf32>
    %163 = arith.addf %162, %161 : vector<8x32xf32>
    %164 = vector.extract_strided_slice %130 {offsets = [0, 8], sizes = [8, 8], strides = [1, 1]} : vector<8x32xf32> to vector<8x8xf32>
    %cst_72 = arith.constant 0.353553385 : f32
    %165 = vector.broadcast %cst_72 : f32 to vector<8x8xf32>
    %166 = arith.mulf %164, %165 : vector<8x8xf32>
    %167 = vector.extract_strided_slice %136 {offsets = [0, 8], sizes = [8, 8], strides = [1, 1]} : vector<8x32xf32> to vector<8x8xf32>
    %cst_73 = arith.constant dense<0.000000e+00> : vector<8x8xf32>
    %168 = tpu.matmul %166, %167, %cst_73 {dimension_numbers = #tpu.dot_dimension_numbers<[1], [1], [0], [0], [0, 0, 1, 0], [], []>} : vector<8x8xf32>, vector<8x8xf32>, vector<8x8xf32> -> vector<8x8xf32>
    %169 = arith.addf %168, %139 : vector<8x8xf32>
    %cst_74 = arith.constant dense<0xFF800000> : vector<8xf32>
    %170 = vector.multi_reduction <maximumf>, %169, %cst_74 [1] : vector<8x8xf32> to vector<8xf32>
    %171 = vector.shape_cast %170 : vector<8xf32> to vector<8x1xf32>
    %172 = vector.broadcast %171 : vector<8x1xf32> to vector<8x8xf32>
    %173 = arith.subf %169, %172 : vector<8x8xf32>
    %174 = math.exp %173 : vector<8x8xf32>
    %cst_75 = arith.constant dense<0.000000e+00> : vector<8xf32>
    %175 = vector.multi_reduction <add>, %174, %cst_75 [1] : vector<8x8xf32> to vector<8xf32>
    %176 = vector.shape_cast %175 : vector<8xf32> to vector<8x1xf32>
    %177 = tpu.reciprocal %176 {approx = true} : vector<8x1xf32> -> vector<8x1xf32>
    %178 = vector.broadcast %177 : vector<8x1xf32> to vector<8x8xf32>
    %179 = arith.mulf %174, %178 : vector<8x8xf32>
    %180 = vector.extract_strided_slice %137 {offsets = [0, 8], sizes = [8, 8], strides = [1, 1]} : vector<8x32xf32> to vector<8x8xf32>
    %cst_76 = arith.constant dense<0.000000e+00> : vector<8x8xf32>
    %181 = tpu.matmul %179, %180, %cst_76 {dimension_numbers = #tpu.dot_dimension_numbers<[1], [0], [0], [1], [0, 0, 1, 1], [], []>} : vector<8x8xf32>, vector<8x8xf32>, vector<8x8xf32> -> vector<8x8xf32>
    %182 = vector.extract_strided_slice %140 {offsets = [8, 0], sizes = [8, 32], strides = [1, 1]} : vector<32x32xf32> to vector<8x32xf32>
    %cst_77 = arith.constant dense<0.000000e+00> : vector<8x32xf32>
    %183 = tpu.matmul %181, %182, %cst_77 {dimension_numbers = #tpu.dot_dimension_numbers<[1], [0], [0], [1], [0, 0, 1, 1], [], []>} : vector<8x8xf32>, vector<8x32xf32>, vector<8x32xf32> -> vector<8x32xf32>
    %184 = arith.addf %163, %183 : vector<8x32xf32>
    %185 = vector.extract_strided_slice %130 {offsets = [0, 16], sizes = [8, 8], strides = [1, 1]} : vector<8x32xf32> to vector<8x8xf32>
    %cst_78 = arith.constant 0.353553385 : f32
    %186 = vector.broadcast %cst_78 : f32 to vector<8x8xf32>
    %187 = arith.mulf %185, %186 : vector<8x8xf32>
    %188 = vector.extract_strided_slice %136 {offsets = [0, 16], sizes = [8, 8], strides = [1, 1]} : vector<8x32xf32> to vector<8x8xf32>
    %cst_79 = arith.constant dense<0.000000e+00> : vector<8x8xf32>
    %189 = tpu.matmul %187, %188, %cst_79 {dimension_numbers = #tpu.dot_dimension_numbers<[1], [1], [0], [0], [0, 0, 1, 0], [], []>} : vector<8x8xf32>, vector<8x8xf32>, vector<8x8xf32> -> vector<8x8xf32>
    %190 = arith.addf %189, %139 : vector<8x8xf32>
    %cst_80 = arith.constant dense<0xFF800000> : vector<8xf32>
    %191 = vector.multi_reduction <maximumf>, %190, %cst_80 [1] : vector<8x8xf32> to vector<8xf32>
    %192 = vector.shape_cast %191 : vector<8xf32> to vector<8x1xf32>
    %193 = vector.broadcast %192 : vector<8x1xf32> to vector<8x8xf32>
    %194 = arith.subf %190, %193 : vector<8x8xf32>
    %195 = math.exp %194 : vector<8x8xf32>
    %cst_81 = arith.constant dense<0.000000e+00> : vector<8xf32>
    %196 = vector.multi_reduction <add>, %195, %cst_81 [1] : vector<8x8xf32> to vector<8xf32>
    %197 = vector.shape_cast %196 : vector<8xf32> to vector<8x1xf32>
    %198 = tpu.reciprocal %197 {approx = true} : vector<8x1xf32> -> vector<8x1xf32>
    %199 = vector.broadcast %198 : vector<8x1xf32> to vector<8x8xf32>
    %200 = arith.mulf %195, %199 : vector<8x8xf32>
    %201 = vector.extract_strided_slice %137 {offsets = [0, 16], sizes = [8, 8], strides = [1, 1]} : vector<8x32xf32> to vector<8x8xf32>
    %cst_82 = arith.constant dense<0.000000e+00> : vector<8x8xf32>
    %202 = tpu.matmul %200, %201, %cst_82 {dimension_numbers = #tpu.dot_dimension_numbers<[1], [0], [0], [1], [0, 0, 1, 1], [], []>} : vector<8x8xf32>, vector<8x8xf32>, vector<8x8xf32> -> vector<8x8xf32>
    %203 = vector.extract_strided_slice %140 {offsets = [16, 0], sizes = [8, 32], strides = [1, 1]} : vector<32x32xf32> to vector<8x32xf32>
    %cst_83 = arith.constant dense<0.000000e+00> : vector<8x32xf32>
    %204 = tpu.matmul %202, %203, %cst_83 {dimension_numbers = #tpu.dot_dimension_numbers<[1], [0], [0], [1], [0, 0, 1, 1], [], []>} : vector<8x8xf32>, vector<8x32xf32>, vector<8x32xf32> -> vector<8x32xf32>
    %205 = arith.addf %184, %204 : vector<8x32xf32>
    %206 = vector.extract_strided_slice %130 {offsets = [0, 24], sizes = [8, 8], strides = [1, 1]} : vector<8x32xf32> to vector<8x8xf32>
    %cst_84 = arith.constant 0.353553385 : f32
    %207 = vector.broadcast %cst_84 : f32 to vector<8x8xf32>
    %208 = arith.mulf %206, %207 : vector<8x8xf32>
    %209 = vector.extract_strided_slice %136 {offsets = [0, 24], sizes = [8, 8], strides = [1, 1]} : vector<8x32xf32> to vector<8x8xf32>
    %cst_85 = arith.constant dense<0.000000e+00> : vector<8x8xf32>
    %210 = tpu.matmul %208, %209, %cst_85 {dimension_numbers = #tpu.dot_dimension_numbers<[1], [1], [0], [0], [0, 0, 1, 0], [], []>} : vector<8x8xf32>, vector<8x8xf32>, vector<8x8xf32> -> vector<8x8xf32>
    %211 = arith.addf %210, %139 : vector<8x8xf32>
    %cst_86 = arith.constant dense<0xFF800000> : vector<8xf32>
    %212 = vector.multi_reduction <maximumf>, %211, %cst_86 [1] : vector<8x8xf32> to vector<8xf32>
    %213 = vector.shape_cast %212 : vector<8xf32> to vector<8x1xf32>
    %214 = vector.broadcast %213 : vector<8x1xf32> to vector<8x8xf32>
    %215 = arith.subf %211, %214 : vector<8x8xf32>
    %216 = math.exp %215 : vector<8x8xf32>
    %cst_87 = arith.constant dense<0.000000e+00> : vector<8xf32>
    %217 = vector.multi_reduction <add>, %216, %cst_87 [1] : vector<8x8xf32> to vector<8xf32>
    %218 = vector.shape_cast %217 : vector<8xf32> to vector<8x1xf32>
    %219 = tpu.reciprocal %218 {approx = true} : vector<8x1xf32> -> vector<8x1xf32>
    %220 = vector.broadcast %219 : vector<8x1xf32> to vector<8x8xf32>
    %221 = arith.mulf %216, %220 : vector<8x8xf32>
    %222 = vector.extract_strided_slice %137 {offsets = [0, 24], sizes = [8, 8], strides = [1, 1]} : vector<8x32xf32> to vector<8x8xf32>
    %cst_88 = arith.constant dense<0.000000e+00> : vector<8x8xf32>
    %223 = tpu.matmul %221, %222, %cst_88 {dimension_numbers = #tpu.dot_dimension_numbers<[1], [0], [0], [1], [0, 0, 1, 1], [], []>} : vector<8x8xf32>, vector<8x8xf32>, vector<8x8xf32> -> vector<8x8xf32>
    %224 = vector.extract_strided_slice %140 {offsets = [24, 0], sizes = [8, 32], strides = [1, 1]} : vector<32x32xf32> to vector<8x32xf32>
    %cst_89 = arith.constant dense<0.000000e+00> : vector<8x32xf32>
    %225 = tpu.matmul %223, %224, %cst_89 {dimension_numbers = #tpu.dot_dimension_numbers<[1], [0], [0], [1], [0, 0, 1, 1], [], []>} : vector<8x8xf32>, vector<8x32xf32>, vector<8x32xf32> -> vector<8x32xf32>
    %226 = arith.addf %205, %225 : vector<8x32xf32>
    %c0_90 = arith.constant 0 : index
    %c0_91 = arith.constant 0 : index
    %227 = vector.load %arg17[%c0_90, %c0_91] : memref<1x32xf32, #tpu.memory_space<vmem>>, vector<1x32xf32>
    %c0_92 = arith.constant 0 : index
    %c0_93 = arith.constant 0 : index
    %228 = vector.load %arg18[%c0_92, %c0_93] : memref<1x32xf32, #tpu.memory_space<vmem>>, vector<1x32xf32>
    %229 = arith.addf %125, %226 : vector<8x32xf32>
    %cst_94 = arith.constant dense<0.000000e+00> : vector<8xf32>
    %230 = vector.multi_reduction <add>, %229, %cst_94 [1] : vector<8x32xf32> to vector<8xf32>
    %231 = vector.shape_cast %230 : vector<8xf32> to vector<8x1xf32>
    %cst_95 = arith.constant 3.200000e+01 : f32
    %232 = vector.broadcast %cst_95 : f32 to vector<8x1xf32>
    %233 = arith.divf %231, %232 : vector<8x1xf32>
    %234 = vector.broadcast %233 : vector<8x1xf32> to vector<8x32xf32>
    %235 = arith.subf %229, %234 : vector<8x32xf32>
    %236 = arith.mulf %235, %235 : vector<8x32xf32>
    %cst_96 = arith.constant dense<0.000000e+00> : vector<8xf32>
    %237 = vector.multi_reduction <add>, %236, %cst_96 [1] : vector<8x32xf32> to vector<8xf32>
    %238 = vector.shape_cast %237 : vector<8xf32> to vector<8x1xf32>
    %cst_97 = arith.constant 3.200000e+01 : f32
    %239 = vector.broadcast %cst_97 : f32 to vector<8x1xf32>
    %240 = arith.divf %238, %239 : vector<8x1xf32>
    %241 = vector.broadcast %233 : vector<8x1xf32> to vector<8x32xf32>
    %242 = arith.subf %229, %241 : vector<8x32xf32>
    %cst_98 = arith.constant 9.99999997E-7 : f32
    %243 = vector.broadcast %cst_98 : f32 to vector<8x1xf32>
    %244 = arith.addf %240, %243 : vector<8x1xf32>
    %245 = math.rsqrt %244 : vector<8x1xf32>
    %246 = vector.broadcast %245 : vector<8x1xf32> to vector<8x32xf32>
    %247 = arith.mulf %242, %246 : vector<8x32xf32>
    %248 = vector.broadcast %227 : vector<1x32xf32> to vector<8x32xf32>
    %249 = arith.mulf %247, %248 : vector<8x32xf32>
    %250 = vector.broadcast %228 : vector<1x32xf32> to vector<8x32xf32>
    %251 = arith.addf %249, %250 : vector<8x32xf32>
    %c0_99 = arith.constant 0 : index
    %c0_100 = arith.constant 0 : index
    %252 = vector.load %arg19[%c0_99, %c0_100] : memref<32x64xf32, #tpu.memory_space<vmem>>, vector<32x64xf32>
    %cst_101 = arith.constant dense<0.000000e+00> : vector<8x64xf32>
    %253 = tpu.matmul %251, %252, %cst_101 {dimension_numbers = #tpu.dot_dimension_numbers<[1], [0], [0], [1], [0, 0, 1, 1], [], []>} : vector<8x32xf32>, vector<32x64xf32>, vector<8x64xf32> -> vector<8x64xf32>
    %c0_102 = arith.constant 0 : index
    %c0_103 = arith.constant 0 : index
    %254 = vector.load %arg20[%c0_102, %c0_103] : memref<1x64xf32, #tpu.memory_space<vmem>>, vector<1x64xf32>
    %255 = vector.broadcast %254 : vector<1x64xf32> to vector<8x64xf32>
    %256 = arith.addf %253, %255 : vector<8x64xf32>
    %cst_104 = arith.constant 0.000000e+00 : f32
    %257 = vector.broadcast %cst_104 : f32 to vector<8x64xf32>
    %258 = arith.maximumf %256, %257 : vector<8x64xf32>
    %c0_105 = arith.constant 0 : index
    %c0_106 = arith.constant 0 : index
    %259 = vector.load %arg21[%c0_105, %c0_106] : memref<64x32xf32, #tpu.memory_space<vmem>>, vector<64x32xf32>
    %cst_107 = arith.constant dense<0.000000e+00> : vector<8x32xf32>
    %260 = tpu.matmul %258, %259, %cst_107 {dimension_numbers = #tpu.dot_dimension_numbers<[1], [0], [0], [1], [0, 0, 1, 1], [], []>} : vector<8x64xf32>, vector<64x32xf32>, vector<8x32xf32> -> vector<8x32xf32>
    %c0_108 = arith.constant 0 : index
    %c0_109 = arith.constant 0 : index
    %261 = vector.load %arg22[%c0_108, %c0_109] : memref<1x32xf32, #tpu.memory_space<vmem>>, vector<1x32xf32>
    %262 = vector.broadcast %261 : vector<1x32xf32> to vector<8x32xf32>
    %263 = arith.addf %260, %262 : vector<8x32xf32>
    %c0_110 = arith.constant 0 : index
    %c0_111 = arith.constant 0 : index
    %264 = vector.load %arg23[%c0_110, %c0_111] : memref<1x32xf32, #tpu.memory_space<vmem>>, vector<1x32xf32>
    %c0_112 = arith.constant 0 : index
    %c0_113 = arith.constant 0 : index
    %265 = vector.load %arg24[%c0_112, %c0_113] : memref<1x32xf32, #tpu.memory_space<vmem>>, vector<1x32xf32>
    %266 = arith.addf %251, %263 : vector<8x32xf32>
    %cst_114 = arith.constant dense<0.000000e+00> : vector<8xf32>
    %267 = vector.multi_reduction <add>, %266, %cst_114 [1] : vector<8x32xf32> to vector<8xf32>
    %268 = vector.shape_cast %267 : vector<8xf32> to vector<8x1xf32>
    %cst_115 = arith.constant 3.200000e+01 : f32
    %269 = vector.broadcast %cst_115 : f32 to vector<8x1xf32>
    %270 = arith.divf %268, %269 : vector<8x1xf32>
    %271 = vector.broadcast %270 : vector<8x1xf32> to vector<8x32xf32>
    %272 = arith.subf %266, %271 : vector<8x32xf32>
    %273 = arith.mulf %272, %272 : vector<8x32xf32>
    %cst_116 = arith.constant dense<0.000000e+00> : vector<8xf32>
    %274 = vector.multi_reduction <add>, %273, %cst_116 [1] : vector<8x32xf32> to vector<8xf32>
    %275 = vector.shape_cast %274 : vector<8xf32> to vector<8x1xf32>
    %cst_117 = arith.constant 3.200000e+01 : f32
    %276 = vector.broadcast %cst_117 : f32 to vector<8x1xf32>
    %277 = arith.divf %275, %276 : vector<8x1xf32>
    %278 = vector.broadcast %270 : vector<8x1xf32> to vector<8x32xf32>
    %279 = arith.subf %266, %278 : vector<8x32xf32>
    %cst_118 = arith.constant 9.99999997E-7 : f32
    %280 = vector.broadcast %cst_118 : f32 to vector<8x1xf32>
    %281 = arith.addf %277, %280 : vector<8x1xf32>
    %282 = math.rsqrt %281 : vector<8x1xf32>
    %283 = vector.broadcast %282 : vector<8x1xf32> to vector<8x32xf32>
    %284 = arith.mulf %279, %283 : vector<8x32xf32>
    %285 = vector.broadcast %264 : vector<1x32xf32> to vector<8x32xf32>
    %286 = arith.mulf %284, %285 : vector<8x32xf32>
    %287 = vector.broadcast %265 : vector<1x32xf32> to vector<8x32xf32>
    %288 = arith.addf %286, %287 : vector<8x32xf32>
    %c0_119 = arith.constant 0 : index
    %c0_120 = arith.constant 0 : index
    %c0_121 = arith.constant 0 : index
    %289 = vector.load %arg25[%c0_119, %c0_120, %c0_121] : memref<1x8x32xf32, #tpu.memory_space<vmem>>, vector<1x8x32xf32>
    %290 = vector.shape_cast %289 : vector<1x8x32xf32> to vector<8x32xf32>
    %291 = vector.shape_cast %288 : vector<8x32xf32> to vector<1x8x32xf32>
    tpu.vector_store %arg25[%c0_119, %c0_120, %c0_121], %291 {strides = array<i32>} : memref<1x8x32xf32, #tpu.memory_space<vmem>>, vector<1x8x32xf32>,
    return
  }
  func.func @transform_0(%arg0: i32) -> (i32, i32, i32) {
    %c0_i32 = arith.constant 0 : i32
    %c0_i32_0 = arith.constant 0 : i32
    %c0_i32_1 = arith.constant 0 : i32
    return %arg0, %c0_i32, %c0_i32_0 : i32, i32, i32
  }
  func.func @transform_1(%arg0: i32) -> (i32, i32, i32) {
    %c0_i32 = arith.constant 0 : i32
    %c0_i32_0 = arith.constant 0 : i32
    %c0_i32_1 = arith.constant 0 : i32
    return %arg0, %c0_i32, %c0_i32_0 : i32, i32, i32
  }
  func.func @transform_2(%arg0: i32) -> (i32, i32, i32) {
    %c0_i32 = arith.constant 0 : i32
    %c0_i32_0 = arith.constant 0 : i32
    %c0_i32_1 = arith.constant 0 : i32
    return %arg0, %c0_i32, %c0_i32_0 : i32, i32, i32
  }
  func.func @transform_3(%arg0: i32) -> (i32, i32, i32) {
    %c0_i32 = arith.constant 0 : i32
    %c0_i32_0 = arith.constant 0 : i32
    %c0_i32_1 = arith.constant 0 : i32
    return %arg0, %c0_i32, %c0_i32_0 : i32, i32, i32
  }
  func.func @transform_4(%arg0: i32) -> (i32, i32) {
    %c0_i32 = arith.constant 0 : i32
    %c0_i32_0 = arith.constant 0 : i32
    %c0_i32_1 = arith.constant 0 : i32
    return %c0_i32, %c0_i32_0 : i32, i32
  }
  func.func @transform_5(%arg0: i32) -> (i32, i32) {
    %c0_i32 = arith.constant 0 : i32
    %c0_i32_0 = arith.constant 0 : i32
    %c0_i32_1 = arith.constant 0 : i32
    return %c0_i32, %c0_i32_0 : i32, i32
  }
  func.func @transform_6(%arg0: i32) -> (i32, i32) {
    %c0_i32 = arith.constant 0 : i32
    %c0_i32_0 = arith.constant 0 : i32
    %c0_i32_1 = arith.constant 0 : i32
    return %c0_i32, %c0_i32_0 : i32, i32
  }
  func.func @transform_7(%arg0: i32) -> (i32, i32) {
    %c0_i32 = arith.constant 0 : i32
    %c0_i32_0 = arith.constant 0 : i32
    %c0_i32_1 = arith.constant 0 : i32
    return %c0_i32, %c0_i32_0 : i32, i32
  }
  func.func @transform_8(%arg0: i32) -> (i32, i32) {
    %c0_i32 = arith.constant 0 : i32
    %c0_i32_0 = arith.constant 0 : i32
    %c0_i32_1 = arith.constant 0 : i32
    return %c0_i32, %c0_i32_0 : i32, i32
  }
  func.func @transform_9(%arg0: i32) -> (i32, i32) {
    %c0_i32 = arith.constant 0 : i32
    %c0_i32_0 = arith.constant 0 : i32
    %c0_i32_1 = arith.constant 0 : i32
    return %c0_i32, %c0_i32_0 : i32, i32
  }
  func.func @transform_10(%arg0: i32) -> (i32, i32) {
    %c0_i32 = arith.constant 0 : i32
    %c0_i32_0 = arith.constant 0 : i32
    %c0_i32_1 = arith.constant 0 : i32
    return %c0_i32, %c0_i32_0 : i32, i32
  }
  func.func @transform_11(%arg0: i32) -> (i32, i32) {
    %c0_i32 = arith.constant 0 : i32
    %c0_i32_0 = arith.constant 0 : i32
    %c0_i32_1 = arith.constant 0 : i32
    return %c0_i32, %c0_i32_0 : i32, i32
  }
  func.func @transform_12(%arg0: i32) -> (i32, i32) {
    %c0_i32 = arith.constant 0 : i32
    %c0_i32_0 = arith.constant 0 : i32
    %c0_i32_1 = arith.constant 0 : i32
    return %c0_i32, %c0_i32_0 : i32, i32
  }
  func.func @transform_13(%arg0: i32) -> (i32, i32) {
    %c0_i32 = arith.constant 0 : i32
    %c0_i32_0 = arith.constant 0 : i32
    %c0_i32_1 = arith.constant 0 : i32
    return %c0_i32, %c0_i32_0 : i32, i32
  }
  func.func @transform_14(%arg0: i32) -> (i32, i32) {
    %c0_i32 = arith.constant 0 : i32
    %c0_i32_0 = arith.constant 0 : i32
    %c0_i32_1 = arith.constant 0 : i32
    return %c0_i32, %c0_i32_0 : i32, i32
  }
  func.func @transform_15(%arg0: i32) -> (i32, i32) {
    %c0_i32 = arith.constant 0 : i32
    %c0_i32_0 = arith.constant 0 : i32
    %c0_i32_1 = arith.constant 0 : i32
    return %c0_i32, %c0_i32_0 : i32, i32
  }
  func.func @transform_16(%arg0: i32) -> (i32, i32) {
    %c0_i32 = arith.constant 0 : i32
    %c0_i32_0 = arith.constant 0 : i32
    %c0_i32_1 = arith.constant 0 : i32
    return %c0_i32, %c0_i32_0 : i32, i32
  }
  func.func @transform_17(%arg0: i32) -> (i32, i32) {
    %c0_i32 = arith.constant 0 : i32
    %c0_i32_0 = arith.constant 0 : i32
    %c0_i32_1 = arith.constant 0 : i32
    return %c0_i32, %c0_i32_0 : i32, i32
  }
  func.func @transform_18(%arg0: i32) -> (i32, i32) {
    %c0_i32 = arith.constant 0 : i32
    %c0_i32_0 = arith.constant 0 : i32
    %c0_i32_1 = arith.constant 0 : i32
    return %c0_i32, %c0_i32_0 : i32, i32
  }
  func.func @transform_19(%arg0: i32) -> (i32, i32) {
    %c0_i32 = arith.constant 0 : i32
    %c0_i32_0 = arith.constant 0 : i32
    %c0_i32_1 = arith.constant 0 : i32
    return %c0_i32, %c0_i32_0 : i32, i32
  }
  func.func @transform_20(%arg0: i32) -> (i32, i32) {
    %c0_i32 = arith.constant 0 : i32
    %c0_i32_0 = arith.constant 0 : i32
    %c0_i32_1 = arith.constant 0 : i32
    return %c0_i32, %c0_i32_0 : i32, i32
  }
  func.func @transform_21(%arg0: i32) -> (i32, i32) {
    %c0_i32 = arith.constant 0 : i32
    %c0_i32_0 = arith.constant 0 : i32
    %c0_i32_1 = arith.constant 0 : i32
    return %c0_i32, %c0_i32_0 : i32, i32
  }
  func.func @transform_22(%arg0: i32) -> (i32, i32) {
    %c0_i32 = arith.constant 0 : i32
    %c0_i32_0 = arith.constant 0 : i32
    %c0_i32_1 = arith.constant 0 : i32
    return %c0_i32, %c0_i32_0 : i32, i32
  }
  func.func @transform_23(%arg0: i32) -> (i32, i32) {
    %c0_i32 = arith.constant 0 : i32
    %c0_i32_0 = arith.constant 0 : i32
    %c0_i32_1 = arith.constant 0 : i32
    return %c0_i32, %c0_i32_0 : i32, i32
  }
  func.func @transform_24(%arg0: i32) -> (i32, i32, i32) {
    %c0_i32 = arith.constant 0 : i32
    %c0_i32_0 = arith.constant 0 : i32
    %c0_i32_1 = arith.constant 0 : i32
    return %arg0, %c0_i32, %c0_i32_0 : i32, i32, i32
  }
}

module attributes {stable_mosaic.version = 11 : i64} {
  func.func @kernel(%arg0: i32, %arg1: memref<1x8x32xf32, #tpu.memory_space<vmem>>, %arg2: memref<1x8x32xf32, #tpu.memory_space<vmem>>, %arg3: memref<1x8x8xf32, #tpu.memory_space<vmem>>, %arg4: memref<1x8x8xf32, #tpu.memory_space<vmem>>, %arg5: memref<32x96xf32, #tpu.memory_space<vmem>>, %arg6: memref<1x96xf32, #tpu.memory_space<vmem>>, %arg7: memref<32x32xf32, #tpu.memory_space<vmem>>, %arg8: memref<1x32xf32, #tpu.memory_space<vmem>>, %arg9: memref<1x32xf32, #tpu.memory_space<vmem>>, %arg10: memref<1x32xf32, #tpu.memory_space<vmem>>, %arg11: memref<32x32xf32, #tpu.memory_space<vmem>>, %arg12: memref<1x32xf32, #tpu.memory_space<vmem>>, %arg13: memref<32x64xf32, #tpu.memory_space<vmem>>, %arg14: memref<1x64xf32, #tpu.memory_space<vmem>>, %arg15: memref<32x32xf32, #tpu.memory_space<vmem>>, %arg16: memref<1x32xf32, #tpu.memory_space<vmem>>, %arg17: memref<1x32xf32, #tpu.memory_space<vmem>>, %arg18: memref<1x32xf32, #tpu.memory_space<vmem>>, %arg19: memref<32x64xf32, #tpu.memory_space<vmem>>, %arg20: memref<1x64xf32, #tpu.memory_space<vmem>>, %arg21: memref<64x32xf32, #tpu.memory_space<vmem>>, %arg22: memref<1x32xf32, #tpu.memory_space<vmem>>, %arg23: memref<1x32xf32, #tpu.memory_space<vmem>>, %arg24: memref<1x32xf32, #tpu.memory_space<vmem>>, %arg25: memref<1x8x32xf32, #tpu.memory_space<vmem>>) attributes {dimension_semantics = [#tpu.dimension_semantics<parallel>], iteration_bounds = array<i64: 2>, scalar_prefetch = 0 : i64, scratch_operands = 0 : i64, tpu.core_type = #tpu.core_type<tc>, window_params = [{transform_indices = @transform_0, window_bounds = array<i64: 1, 8, 32>}, {transform_indices = @transform_1, window_bounds = array<i64: 1, 8, 32>}, {transform_indices = @transform_2, window_bounds = array<i64: 1, 8, 8>}, {transform_indices = @transform_3, window_bounds = array<i64: 1, 8, 8>}, {pipeline_mode = #tpu.pipeline_mode<synchronous>, transform_indices = @transform_4, window_bounds = array<i64: 32, 96>}, {pipeline_mode = #tpu.pipeline_mode<synchronous>, transform_indices = @transform_5, window_bounds = array<i64: 1, 96>}, {pipeline_mode = #tpu.pipeline_mode<synchronous>, transform_indices = @transform_6, window_bounds = array<i64: 32, 32>}, {pipeline_mode = #tpu.pipeline_mode<synchronous>, transform_indices = @transform_7, window_bounds = array<i64: 1, 32>}, {pipeline_mode = #tpu.pipeline_mode<synchronous>, transform_indices = @transform_8, window_bounds = array<i64: 1, 32>}, {pipeline_mode = #tpu.pipeline_mode<synchronous>, transform_indices = @transform_9, window_bounds = array<i64: 1, 32>}, {pipeline_mode = #tpu.pipeline_mode<synchronous>, transform_indices = @transform_10, window_bounds = array<i64: 32, 32>}, {pipeline_mode = #tpu.pipeline_mode<synchronous>, transform_indices = @transform_11, window_bounds = array<i64: 1, 32>}, {pipeline_mode = #tpu.pipeline_mode<synchronous>, transform_indices = @transform_12, window_bounds = array<i64: 32, 64>}, {pipeline_mode = #tpu.pipeline_mode<synchronous>, transform_indices = @transform_13, window_bounds = array<i64: 1, 64>}, {pipeline_mode = #tpu.pipeline_mode<synchronous>, transform_indices = @transform_14, window_bounds = array<i64: 32, 32>}, {pipeline_mode = #tpu.pipeline_mode<synchronous>, transform_indices = @transform_15, window_bounds = array<i64: 1, 32>}, {pipeline_mode = #tpu.pipeline_mode<synchronous>, transform_indices = @transform_16, window_bounds = array<i64: 1, 32>}, {pipeline_mode = #tpu.pipeline_mode<synchronous>, transform_indices = @transform_17, window_bounds = array<i64: 1, 32>}, {pipeline_mode = #tpu.pipeline_mode<synchronous>, transform_indices = @transform_18, window_bounds = array<i64: 32, 64>}, {pipeline_mode = #tpu.pipeline_mode<synchronous>, transform_indices = @transform_19, window_bounds = array<i64: 1, 64>}, {pipeline_mode = #tpu.pipeline_mode<synchronous>, transform_indices = @transform_20, window_bounds = array<i64: 64, 32>}, {pipeline_mode = #tpu.pipeline_mode<synchronous>, transform_indices = @transform_21, window_bounds = array<i64: 1, 32>}, {pipeline_mode = #tpu.pipeline_mode<synchronous>, transform_indices = @transform_22, window_bounds = array<i64: 1, 32>}, {pipeline_mode = #tpu.pipeline_mode<synchronous>, transform_indices = @transform_23, window_bounds = array<i64: 1, 32>}, {transform_indices = @transform_24, window_bounds = array<i64: 1, 8, 32>}]} {
    %c0 = arith.constant 0 : index
    %c0_0 = arith.constant 0 : index
    %c0_1 = arith.constant 0 : index
    %0 = vector.load %arg1[%c0, %c0_0, %c0_1] : memref<1x8x32xf32, #tpu.memory_space<vmem>>, vector<1x8x32xf32>
    %1 = vector.shape_cast %0 : vector<1x8x32xf32> to vector<8x32xf32>
    %c0_2 = arith.constant 0 : index
    %c0_3 = arith.constant 0 : index
    %c0_4 = arith.constant 0 : index
    %2 = vector.load %arg2[%c0_2, %c0_3, %c0_4] : memref<1x8x32xf32, #tpu.memory_space<vmem>>, vector<1x8x32xf32>
    %3 = vector.shape_cast %2 : vector<1x8x32xf32> to vector<8x32xf32>
    %c0_5 = arith.constant 0 : index
    %c0_6 = arith.constant 0 : index
    %4 = vector.load %arg5[%c0_5, %c0_6] : memref<32x96xf32, #tpu.memory_space<vmem>>, vector<32x96xf32>
    %cst = arith.constant dense<0.000000e+00> : vector<8x96xf32>
    %5 = tpu.matmul %1, %4, %cst {dimension_numbers = #tpu.dot_dimension_numbers<[1], [0], [0], [1], [0, 0, 1, 1], [], []>} : vector<8x32xf32>, vector<32x96xf32>, vector<8x96xf32> -> vector<8x96xf32>
    %c0_7 = arith.constant 0 : index
    %c0_8 = arith.constant 0 : index
    %6 = vector.load %arg6[%c0_7, %c0_8] : memref<1x96xf32, #tpu.memory_space<vmem>>, vector<1x96xf32>
    %7 = vector.broadcast %6 : vector<1x96xf32> to vector<8x96xf32>
    %8 = arith.addf %5, %7 : vector<8x96xf32>
    %9 = vector.extract_strided_slice %8 {offsets = [0, 0], sizes = [8, 32], strides = [1, 1]} : vector<8x96xf32> to vector<8x32xf32>
    %10 = vector.extract_strided_slice %8 {offsets = [0, 32], sizes = [8, 32], strides = [1, 1]} : vector<8x96xf32> to vector<8x32xf32>
    %11 = vector.extract_strided_slice %8 {offsets = [0, 64], sizes = [8, 32], strides = [1, 1]} : vector<8x96xf32> to vector<8x32xf32>
    %c0_9 = arith.constant 0 : index
    %c0_10 = arith.constant 0 : index
    %c0_11 = arith.constant 0 : index
    %12 = vector.load %arg3[%c0_9, %c0_10, %c0_11] : memref<1x8x8xf32, #tpu.memory_space<vmem>>, vector<1x8x8xf32>
    %13 = vector.shape_cast %12 : vector<1x8x8xf32> to vector<8x8xf32>
    %c0_12 = arith.constant 0 : index
    %c0_13 = arith.constant 0 : index
    %14 = vector.load %arg7[%c0_12, %c0_13] : memref<32x32xf32, #tpu.memory_space<vmem>>, vector<32x32xf32>
    %c0_14 = arith.constant 0 : index
    %c0_15 = arith.constant 0 : index
    %15 = vector.load %arg8[%c0_14, %c0_15] : memref<1x32xf32, #tpu.memory_space<vmem>>, vector<1x32xf32>
    %16 = vector.extract_strided_slice %9 {offsets = [0, 0], sizes = [8, 8], strides = [1, 1]} : vector<8x32xf32> to vector<8x8xf32>
    %cst_16 = arith.constant 0.353553385 : f32
    %17 = vector.broadcast %cst_16 : f32 to vector<8x8xf32>
    %18 = arith.mulf %16, %17 : vector<8x8xf32>
    %19 = vector.extract_strided_slice %10 {offsets = [0, 0], sizes = [8, 8], strides = [1, 1]} : vector<8x32xf32> to vector<8x8xf32>
    %cst_17 = arith.constant dense<0.000000e+00> : vector<8x8xf32>
    %20 = tpu.matmul %18, %19, %cst_17 {dimension_numbers = #tpu.dot_dimension_numbers<[1], [1], [0], [0], [0, 0, 1, 0], [], []>} : vector<8x8xf32>, vector<8x8xf32>, vector<8x8xf32> -> vector<8x8xf32>
    %21 = arith.addf %20, %13 : vector<8x8xf32>
    %cst_18 = arith.constant dense<0xFF800000> : vector<8xf32>
    %22 = vector.multi_reduction <maximumf>, %21, %cst_18 [1] : vector<8x8xf32> to vector<8xf32>
    %23 = vector.shape_cast %22 : vector<8xf32> to vector<8x1xf32>
    %24 = vector.broadcast %23 : vector<8x1xf32> to vector<8x8xf32>
    %25 = arith.subf %21, %24 : vector<8x8xf32>
    %26 = math.exp %25 : vector<8x8xf32>
    %cst_19 = arith.constant dense<0.000000e+00> : vector<8xf32>
    %27 = vector.multi_reduction <add>, %26, %cst_19 [1] : vector<8x8xf32> to vector<8xf32>
    %28 = vector.shape_cast %27 : vector<8xf32> to vector<8x1xf32>
    %29 = tpu.reciprocal %28 {approx = true} : vector<8x1xf32> -> vector<8x1xf32>
    %30 = vector.broadcast %29 : vector<8x1xf32> to vector<8x8xf32>
    %31 = arith.mulf %26, %30 : vector<8x8xf32>
    %32 = vector.extract_strided_slice %11 {offsets = [0, 0], sizes = [8, 8], strides = [1, 1]} : vector<8x32xf32> to vector<8x8xf32>
    %cst_20 = arith.constant dense<0.000000e+00> : vector<8x8xf32>
    %33 = tpu.matmul %31, %32, %cst_20 {dimension_numbers = #tpu.dot_dimension_numbers<[1], [0], [0], [1], [0, 0, 1, 1], [], []>} : vector<8x8xf32>, vector<8x8xf32>, vector<8x8xf32> -> vector<8x8xf32>
    %34 = vector.extract_strided_slice %14 {offsets = [0, 0], sizes = [8, 32], strides = [1, 1]} : vector<32x32xf32> to vector<8x32xf32>
    %cst_21 = arith.constant dense<0.000000e+00> : vector<8x32xf32>
    %35 = tpu.matmul %33, %34, %cst_21 {dimension_numbers = #tpu.dot_dimension_numbers<[1], [0], [0], [1], [0, 0, 1, 1], [], []>} : vector<8x8xf32>, vector<8x32xf32>, vector<8x32xf32> -> vector<8x32xf32>
    %36 = vector.broadcast %15 : vector<1x32xf32> to vector<8x32xf32>
    %37 = arith.addf %36, %35 : vector<8x32xf32>
    %38 = vector.extract_strided_slice %9 {offsets = [0, 8], sizes = [8, 8], strides = [1, 1]} : vector<8x32xf32> to vector<8x8xf32>
    %cst_22 = arith.constant 0.353553385 : f32
    %39 = vector.broadcast %cst_22 : f32 to vector<8x8xf32>
    %40 = arith.mulf %38, %39 : vector<8x8xf32>
    %41 = vector.extract_strided_slice %10 {offsets = [0, 8], sizes = [8, 8], strides = [1, 1]} : vector<8x32xf32> to vector<8x8xf32>
    %cst_23 = arith.constant dense<0.000000e+00> : vector<8x8xf32>
    %42 = tpu.matmul %40, %41, %cst_23 {dimension_numbers = #tpu.dot_dimension_numbers<[1], [1], [0], [0], [0, 0, 1, 0], [], []>} : vector<8x8xf32>, vector<8x8xf32>, vector<8x8xf32> -> vector<8x8xf32>
    %43 = arith.addf %42, %13 : vector<8x8xf32>
    %cst_24 = arith.constant dense<0xFF800000> : vector<8xf32>
    %44 = vector.multi_reduction <maximumf>, %43, %cst_24 [1] : vector<8x8xf32> to vector<8xf32>
    %45 = vector.shape_cast %44 : vector<8xf32> to vector<8x1xf32>
    %46 = vector.broadcast %45 : vector<8x1xf32> to vector<8x8xf32>
    %47 = arith.subf %43, %46 : vector<8x8xf32>
    %48 = math.exp %47 : vector<8x8xf32>
    %cst_25 = arith.constant dense<0.000000e+00> : vector<8xf32>
    %49 = vector.multi_reduction <add>, %48, %cst_25 [1] : vector<8x8xf32> to vector<8xf32>
    %50 = vector.shape_cast %49 : vector<8xf32> to vector<8x1xf32>
    %51 = tpu.reciprocal %50 {approx = true} : vector<8x1xf32> -> vector<8x1xf32>
    %52 = vector.broadcast %51 : vector<8x1xf32> to vector<8x8xf32>
    %53 = arith.mulf %48, %52 : vector<8x8xf32>
    %54 = vector.extract_strided_slice %11 {offsets = [0, 8], sizes = [8, 8], strides = [1, 1]} : vector<8x32xf32> to vector<8x8xf32>
    %cst_26 = arith.constant dense<0.000000e+00> : vector<8x8xf32>
    %55 = tpu.matmul %53, %54, %cst_26 {dimension_numbers = #tpu.dot_dimension_numbers<[1], [0], [0], [1], [0, 0, 1, 1], [], []>} : vector<8x8xf32>, vector<8x8xf32>, vector<8x8xf32> -> vector<8x8xf32>
    %56 = vector.extract_strided_slice %14 {offsets = [8, 0], sizes = [8, 32], strides = [1, 1]} : vector<32x32xf32> to vector<8x32xf32>
    %cst_27 = arith.constant dense<0.000000e+00> : vector<8x32xf32>
    %57 = tpu.matmul %55, %56, %cst_27 {dimension_numbers = #tpu.dot_dimension_numbers<[1], [0], [0], [1], [0, 0, 1, 1], [], []>} : vector<8x8xf32>, vector<8x32xf32>, vector<8x32xf32> -> vector<8x32xf32>
    %58 = arith.addf %37, %57 : vector<8x32xf32>
    %59 = vector.extract_strided_slice %9 {offsets = [0, 16], sizes = [8, 8], strides = [1, 1]} : vector<8x32xf32> to vector<8x8xf32>
    %cst_28 = arith.constant 0.353553385 : f32
    %60 = vector.broadcast %cst_28 : f32 to vector<8x8xf32>
    %61 = arith.mulf %59, %60 : vector<8x8xf32>
    %62 = vector.extract_strided_slice %10 {offsets = [0, 16], sizes = [8, 8], strides = [1, 1]} : vector<8x32xf32> to vector<8x8xf32>
    %cst_29 = arith.constant dense<0.000000e+00> : vector<8x8xf32>
    %63 = tpu.matmul %61, %62, %cst_29 {dimension_numbers = #tpu.dot_dimension_numbers<[1], [1], [0], [0], [0, 0, 1, 0], [], []>} : vector<8x8xf32>, vector<8x8xf32>, vector<8x8xf32> -> vector<8x8xf32>
    %64 = arith.addf %63, %13 : vector<8x8xf32>
    %cst_30 = arith.constant dense<0xFF800000> : vector<8xf32>
    %65 = vector.multi_reduction <maximumf>, %64, %cst_30 [1] : vector<8x8xf32> to vector<8xf32>
    %66 = vector.shape_cast %65 : vector<8xf32> to vector<8x1xf32>
    %67 = vector.broadcast %66 : vector<8x1xf32> to vector<8x8xf32>
    %68 = arith.subf %64, %67 : vector<8x8xf32>
    %69 = math.exp %68 : vector<8x8xf32>
    %cst_31 = arith.constant dense<0.000000e+00> : vector<8xf32>
    %70 = vector.multi_reduction <add>, %69, %cst_31 [1] : vector<8x8xf32> to vector<8xf32>
    %71 = vector.shape_cast %70 : vector<8xf32> to vector<8x1xf32>
    %72 = tpu.reciprocal %71 {approx = true} : vector<8x1xf32> -> vector<8x1xf32>
    %73 = vector.broadcast %72 : vector<8x1xf32> to vector<8x8xf32>
    %74 = arith.mulf %69, %73 : vector<8x8xf32>
    %75 = vector.extract_strided_slice %11 {offsets = [0, 16], sizes = [8, 8], strides = [1, 1]} : vector<8x32xf32> to vector<8x8xf32>
    %cst_32 = arith.constant dense<0.000000e+00> : vector<8x8xf32>
    %76 = tpu.matmul %74, %75, %cst_32 {dimension_numbers = #tpu.dot_dimension_numbers<[1], [0], [0], [1], [0, 0, 1, 1], [], []>} : vector<8x8xf32>, vector<8x8xf32>, vector<8x8xf32> -> vector<8x8xf32>
    %77 = vector.extract_strided_slice %14 {offsets = [16, 0], sizes = [8, 32], strides = [1, 1]} : vector<32x32xf32> to vector<8x32xf32>
    %cst_33 = arith.constant dense<0.000000e+00> : vector<8x32xf32>
    %78 = tpu.matmul %76, %77, %cst_33 {dimension_numbers = #tpu.dot_dimension_numbers<[1], [0], [0], [1], [0, 0, 1, 1], [], []>} : vector<8x8xf32>, vector<8x32xf32>, vector<8x32xf32> -> vector<8x32xf32>
    %79 = arith.addf %58, %78 : vector<8x32xf32>
    %80 = vector.extract_strided_slice %9 {offsets = [0, 24], sizes = [8, 8], strides = [1, 1]} : vector<8x32xf32> to vector<8x8xf32>
    %cst_34 = arith.constant 0.353553385 : f32
    %81 = vector.broadcast %cst_34 : f32 to vector<8x8xf32>
    %82 = arith.mulf %80, %81 : vector<8x8xf32>
    %83 = vector.extract_strided_slice %10 {offsets = [0, 24], sizes = [8, 8], strides = [1, 1]} : vector<8x32xf32> to vector<8x8xf32>
    %cst_35 = arith.constant dense<0.000000e+00> : vector<8x8xf32>
    %84 = tpu.matmul %82, %83, %cst_35 {dimension_numbers = #tpu.dot_dimension_numbers<[1], [1], [0], [0], [0, 0, 1, 0], [], []>} : vector<8x8xf32>, vector<8x8xf32>, vector<8x8xf32> -> vector<8x8xf32>
    %85 = arith.addf %84, %13 : vector<8x8xf32>
    %cst_36 = arith.constant dense<0xFF800000> : vector<8xf32>
    %86 = vector.multi_reduction <maximumf>, %85, %cst_36 [1] : vector<8x8xf32> to vector<8xf32>
    %87 = vector.shape_cast %86 : vector<8xf32> to vector<8x1xf32>
    %88 = vector.broadcast %87 : vector<8x1xf32> to vector<8x8xf32>
    %89 = arith.subf %85, %88 : vector<8x8xf32>
    %90 = math.exp %89 : vector<8x8xf32>
    %cst_37 = arith.constant dense<0.000000e+00> : vector<8xf32>
    %91 = vector.multi_reduction <add>, %90, %cst_37 [1] : vector<8x8xf32> to vector<8xf32>
    %92 = vector.shape_cast %91 : vector<8xf32> to vector<8x1xf32>
    %93 = tpu.reciprocal %92 {approx = true} : vector<8x1xf32> -> vector<8x1xf32>
    %94 = vector.broadcast %93 : vector<8x1xf32> to vector<8x8xf32>
    %95 = arith.mulf %90, %94 : vector<8x8xf32>
    %96 = vector.extract_strided_slice %11 {offsets = [0, 24], sizes = [8, 8], strides = [1, 1]} : vector<8x32xf32> to vector<8x8xf32>
    %cst_38 = arith.constant dense<0.000000e+00> : vector<8x8xf32>
    %97 = tpu.matmul %95, %96, %cst_38 {dimension_numbers = #tpu.dot_dimension_numbers<[1], [0], [0], [1], [0, 0, 1, 1], [], []>} : vector<8x8xf32>, vector<8x8xf32>, vector<8x8xf32> -> vector<8x8xf32>
    %98 = vector.extract_strided_slice %14 {offsets = [24, 0], sizes = [8, 32], strides = [1, 1]} : vector<32x32xf32> to vector<8x32xf32>
    %cst_39 = arith.constant dense<0.000000e+00> : vector<8x32xf32>
    %99 = tpu.matmul %97, %98, %cst_39 {dimension_numbers = #tpu.dot_dimension_numbers<[1], [0], [0], [1], [0, 0, 1, 1], [], []>} : vector<8x8xf32>, vector<8x32xf32>, vector<8x32xf32> -> vector<8x32xf32>
    %100 = arith.addf %79, %99 : vector<8x32xf32>
    %c0_40 = arith.constant 0 : index
    %c0_41 = arith.constant 0 : index
    %101 = vector.load %arg9[%c0_40, %c0_41] : memref<1x32xf32, #tpu.memory_space<vmem>>, vector<1x32xf32>
    %c0_42 = arith.constant 0 : index
    %c0_43 = arith.constant 0 : index
    %102 = vector.load %arg10[%c0_42, %c0_43] : memref<1x32xf32, #tpu.memory_space<vmem>>, vector<1x32xf32>
    %103 = arith.addf %1, %100 : vector<8x32xf32>
    %cst_44 = arith.constant dense<0.000000e+00> : vector<8xf32>
    %104 = vector.multi_reduction <add>, %103, %cst_44 [1] : vector<8x32xf32> to vector<8xf32>
    %105 = vector.shape_cast %104 : vector<8xf32> to vector<8x1xf32>
    %cst_45 = arith.constant 3.200000e+01 : f32
    %106 = vector.broadcast %cst_45 : f32 to vector<8x1xf32>
    %107 = arith.divf %105, %106 : vector<8x1xf32>
    %108 = vector.broadcast %107 : vector<8x1xf32> to vector<8x32xf32>
    %109 = arith.subf %103, %108 : vector<8x32xf32>
    %110 = arith.mulf %109, %109 : vector<8x32xf32>
    %cst_46 = arith.constant dense<0.000000e+00> : vector<8xf32>
    %111 = vector.multi_reduction <add>, %110, %cst_46 [1] : vector<8x32xf32> to vector<8xf32>
    %112 = vector.shape_cast %111 : vector<8xf32> to vector<8x1xf32>
    %cst_47 = arith.constant 3.200000e+01 : f32
    %113 = vector.broadcast %cst_47 : f32 to vector<8x1xf32>
    %114 = arith.divf %112, %113 : vector<8x1xf32>
    %115 = vector.broadcast %107 : vector<8x1xf32> to vector<8x32xf32>
    %116 = arith.subf %103, %115 : vector<8x32xf32>
    %cst_48 = arith.constant 9.99999997E-7 : f32
    %117 = vector.broadcast %cst_48 : f32 to vector<8x1xf32>
    %118 = arith.addf %114, %117 : vector<8x1xf32>
    %119 = math.rsqrt %118 : vector<8x1xf32>
    %120 = vector.broadcast %119 : vector<8x1xf32> to vector<8x32xf32>
    %121 = arith.mulf %116, %120 : vector<8x32xf32>
    %122 = vector.broadcast %101 : vector<1x32xf32> to vector<8x32xf32>
    %123 = arith.mulf %121, %122 : vector<8x32xf32>
    %124 = vector.broadcast %102 : vector<1x32xf32> to vector<8x32xf32>
    %125 = arith.addf %123, %124 : vector<8x32xf32>
    %c0_49 = arith.constant 0 : index
    %c0_50 = arith.constant 0 : index
    %126 = vector.load %arg11[%c0_49, %c0_50] : memref<32x32xf32, #tpu.memory_space<vmem>>, vector<32x32xf32>
    %cst_51 = arith.constant dense<0.000000e+00> : vector<8x32xf32>
    %127 = tpu.matmul %125, %126, %cst_51 {dimension_numbers = #tpu.dot_dimension_numbers<[1], [0], [0], [1], [0, 0, 1, 1], [], []>} : vector<8x32xf32>, vector<32x32xf32>, vector<8x32xf32> -> vector<8x32xf32>
    %c0_52 = arith.constant 0 : index
    %c0_53 = arith.constant 0 : index
    %128 = vector.load %arg12[%c0_52, %c0_53] : memref<1x32xf32, #tpu.memory_space<vmem>>, vector<1x32xf32>
    %129 = vector.broadcast %128 : vector<1x32xf32> to vector<8x32xf32>
    %130 = arith.addf %127, %129 : vector<8x32xf32>
    %c0_54 = arith.constant 0 : index
    %c0_55 = arith.constant 0 : index
    %131 = vector.load %arg13[%c0_54, %c0_55] : memref<32x64xf32, #tpu.memory_space<vmem>>, vector<32x64xf32>
    %cst_56 = arith.constant dense<0.000000e+00> : vector<8x64xf32>
    %132 = tpu.matmul %3, %131, %cst_56 {dimension_numbers = #tpu.dot_dimension_numbers<[1], [0], [0], [1], [0, 0, 1, 1], [], []>} : vector<8x32xf32>, vector<32x64xf32>, vector<8x64xf32> -> vector<8x64xf32>
    %c0_57 = arith.constant 0 : index
    %c0_58 = arith.constant 0 : index
    %133 = vector.load %arg14[%c0_57, %c0_58] : memref<1x64xf32, #tpu.memory_space<vmem>>, vector<1x64xf32>
    %134 = vector.broadcast %133 : vector<1x64xf32> to vector<8x64xf32>
    %135 = arith.addf %132, %134 : vector<8x64xf32>
    %136 = vector.extract_strided_slice %135 {offsets = [0, 0], sizes = [8, 32], strides = [1, 1]} : vector<8x64xf32> to vector<8x32xf32>
    %137 = vector.extract_strided_slice %135 {offsets = [0, 32], sizes = [8, 32], strides = [1, 1]} : vector<8x64xf32> to vector<8x32xf32>
    %c0_59 = arith.constant 0 : index
    %c0_60 = arith.constant 0 : index
    %c0_61 = arith.constant 0 : index
    %138 = vector.load %arg4[%c0_59, %c0_60, %c0_61] : memref<1x8x8xf32, #tpu.memory_space<vmem>>, vector<1x8x8xf32>
    %139 = vector.shape_cast %138 : vector<1x8x8xf32> to vector<8x8xf32>
    %c0_62 = arith.constant 0 : index
    %c0_63 = arith.constant 0 : index
    %140 = vector.load %arg15[%c0_62, %c0_63] : memref<32x32xf32, #tpu.memory_space<vmem>>, vector<32x32xf32>
    %c0_64 = arith.constant 0 : index
    %c0_65 = arith.constant 0 : index
    %141 = vector.load %arg16[%c0_64, %c0_65] : memref<1x32xf32, #tpu.memory_space<vmem>>, vector<1x32xf32>
    %142 = vector.extract_strided_slice %130 {offsets = [0, 0], sizes = [8, 8], strides = [1, 1]} : vector<8x32xf32> to vector<8x8xf32>
    %cst_66 = arith.constant 0.353553385 : f32
    %143 = vector.broadcast %cst_66 : f32 to vector<8x8xf32>
    %144 = arith.mulf %142, %143 : vector<8x8xf32>
    %145 = vector.extract_strided_slice %136 {offsets = [0, 0], sizes = [8, 8], strides = [1, 1]} : vector<8x32xf32> to vector<8x8xf32>
    %cst_67 = arith.constant dense<0.000000e+00> : vector<8x8xf32>
    %146 = tpu.matmul %144, %145, %cst_67 {dimension_numbers = #tpu.dot_dimension_numbers<[1], [1], [0], [0], [0, 0, 1, 0], [], []>} : vector<8x8xf32>, vector<8x8xf32>, vector<8x8xf32> -> vector<8x8xf32>
    %147 = arith.addf %146, %139 : vector<8x8xf32>
    %cst_68 = arith.constant dense<0xFF800000> : vector<8xf32>
    %148 = vector.multi_reduction <maximumf>, %147, %cst_68 [1] : vector<8x8xf32> to vector<8xf32>
    %149 = vector.shape_cast %148 : vector<8xf32> to vector<8x1xf32>
    %150 = vector.broadcast %149 : vector<8x1xf32> to vector<8x8xf32>
    %151 = arith.subf %147, %150 : vector<8x8xf32>
    %152 = math.exp %151 : vector<8x8xf32>
    %cst_69 = arith.constant dense<0.000000e+00> : vector<8xf32>
    %153 = vector.multi_reduction <add>, %152, %cst_69 [1] : vector<8x8xf32> to vector<8xf32>
    %154 = vector.shape_cast %153 : vector<8xf32> to vector<8x1xf32>
    %155 = tpu.reciprocal %154 {approx = true} : vector<8x1xf32> -> vector<8x1xf32>
    %156 = vector.broadcast %155 : vector<8x1xf32> to vector<8x8xf32>
    %157 = arith.mulf %152, %156 : vector<8x8xf32>
    %158 = vector.extract_strided_slice %137 {offsets = [0, 0], sizes = [8, 8], strides = [1, 1]} : vector<8x32xf32> to vector<8x8xf32>
    %cst_70 = arith.constant dense<0.000000e+00> : vector<8x8xf32>
    %159 = tpu.matmul %157, %158, %cst_70 {dimension_numbers = #tpu.dot_dimension_numbers<[1], [0], [0], [1], [0, 0, 1, 1], [], []>} : vector<8x8xf32>, vector<8x8xf32>, vector<8x8xf32> -> vector<8x8xf32>
    %160 = vector.extract_strided_slice %140 {offsets = [0, 0], sizes = [8, 32], strides = [1, 1]} : vector<32x32xf32> to vector<8x32xf32>
    %cst_71 = arith.constant dense<0.000000e+00> : vector<8x32xf32>
    %161 = tpu.matmul %159, %160, %cst_71 {dimension_numbers = #tpu.dot_dimension_numbers<[1], [0], [0], [1], [0, 0, 1, 1], [], []>} : vector<8x8xf32>, vector<8x32xf32>, vector<8x32xf32> -> vector<8x32xf32>
    %162 = vector.broadcast %141 : vector<1x32xf32> to vector<8x32xf32>
    %163 = arith.addf %162, %161 : vector<8x32xf32>
    %164 = vector.extract_strided_slice %130 {offsets = [0, 8], sizes = [8, 8], strides = [1, 1]} : vector<8x32xf32> to vector<8x8xf32>
    %cst_72 = arith.constant 0.353553385 : f32
    %165 = vector.broadcast %cst_72 : f32 to vector<8x8xf32>
    %166 = arith.mulf %164, %165 : vector<8x8xf32>
    %167 = vector.extract_strided_slice %136 {offsets = [0, 8], sizes = [8, 8], strides = [1, 1]} : vector<8x32xf32> to vector<8x8xf32>
    %cst_73 = arith.constant dense<0.000000e+00> : vector<8x8xf32>
    %168 = tpu.matmul %166, %167, %cst_73 {dimension_numbers = #tpu.dot_dimension_numbers<[1], [1], [0], [0], [0, 0, 1, 0], [], []>} : vector<8x8xf32>, vector<8x8xf32>, vector<8x8xf32> -> vector<8x8xf32>
    %169 = arith.addf %168, %139 : vector<8x8xf32>
    %cst_74 = arith.constant dense<0xFF800000> : vector<8xf32>
    %170 = vector.multi_reduction <maximumf>, %169, %cst_74 [1] : vector<8x8xf32> to vector<8xf32>
    %171 = vector.shape_cast %170 : vector<8xf32> to vector<8x1xf32>
    %172 = vector.broadcast %171 : vector<8x1xf32> to vector<8x8xf32>
    %173 = arith.subf %169, %172 : vector<8x8xf32>
    %174 = math.exp %173 : vector<8x8xf32>
    %cst_75 = arith.constant dense<0.000000e+00> : vector<8xf32>
    %175 = vector.multi_reduction <add>, %174, %cst_75 [1] : vector<8x8xf32> to vector<8xf32>
    %176 = vector.shape_cast %175 : vector<8xf32> to vector<8x1xf32>
    %177 = tpu.reciprocal %176 {approx = true} : vector<8x1xf32> -> vector<8x1xf32>
    %178 = vector.broadcast %177 : vector<8x1xf32> to vector<8x8xf32>
    %179 = arith.mulf %174, %178 : vector<8x8xf32>
    %180 = vector.extract_strided_slice %137 {offsets = [0, 8], sizes = [8, 8], strides = [1, 1]} : vector<8x32xf32> to vector<8x8xf32>
    %cst_76 = arith.constant dense<0.000000e+00> : vector<8x8xf32>
    %181 = tpu.matmul %179, %180, %cst_76 {dimension_numbers = #tpu.dot_dimension_numbers<[1], [0], [0], [1], [0, 0, 1, 1], [], []>} : vector<8x8xf32>, vector<8x8xf32>, vector<8x8xf32> -> vector<8x8xf32>
    %182 = vector.extract_strided_slice %140 {offsets = [8, 0], sizes = [8, 32], strides = [1, 1]} : vector<32x32xf32> to vector<8x32xf32>
    %cst_77 = arith.constant dense<0.000000e+00> : vector<8x32xf32>
    %183 = tpu.matmul %181, %182, %cst_77 {dimension_numbers = #tpu.dot_dimension_numbers<[1], [0], [0], [1], [0, 0, 1, 1], [], []>} : vector<8x8xf32>, vector<8x32xf32>, vector<8x32xf32> -> vector<8x32xf32>
    %184 = arith.addf %163, %183 : vector<8x32xf32>
    %185 = vector.extract_strided_slice %130 {offsets = [0, 16], sizes = [8, 8], strides = [1, 1]} : vector<8x32xf32> to vector<8x8xf32>
    %cst_78 = arith.constant 0.353553385 : f32
    %186 = vector.broadcast %cst_78 : f32 to vector<8x8xf32>
    %187 = arith.mulf %185, %186 : vector<8x8xf32>
    %188 = vector.extract_strided_slice %136 {offsets = [0, 16], sizes = [8, 8], strides = [1, 1]} : vector<8x32xf32> to vector<8x8xf32>
    %cst_79 = arith.constant dense<0.000000e+00> : vector<8x8xf32>
    %189 = tpu.matmul %187, %188, %cst_79 {dimension_numbers = #tpu.dot_dimension_numbers<[1], [1], [0], [0], [0, 0, 1, 0], [], []>} : vector<8x8xf32>, vector<8x8xf32>, vector<8x8xf32> -> vector<8x8xf32>
    %190 = arith.addf %189, %139 : vector<8x8xf32>
    %cst_80 = arith.constant dense<0xFF800000> : vector<8xf32>
    %191 = vector.multi_reduction <maximumf>, %190, %cst_80 [1] : vector<8x8xf32> to vector<8xf32>
    %192 = vector.shape_cast %191 : vector<8xf32> to vector<8x1xf32>
    %193 = vector.broadcast %192 : vector<8x1xf32> to vector<8x8xf32>
    %194 = arith.subf %190, %193 : vector<8x8xf32>
    %195 = math.exp %194 : vector<8x8xf32>
    %cst_81 = arith.constant dense<0.000000e+00> : vector<8xf32>
    %196 = vector.multi_reduction <add>, %195, %cst_81 [1] : vector<8x8xf32> to vector<8xf32>
    %197 = vector.shape_cast %196 : vector<8xf32> to vector<8x1xf32>
    %198 = tpu.reciprocal %197 {approx = true} : vector<8x1xf32> -> vector<8x1xf32>
    %199 = vector.broadcast %198 : vector<8x1xf32> to vector<8x8xf32>
    %200 = arith.mulf %195, %199 : vector<8x8xf32>
    %201 = vector.extract_strided_slice %137 {offsets = [0, 16], sizes = [8, 8], strides = [1, 1]} : vector<8x32xf32> to vector<8x8xf32>
    %cst_82 = arith.constant dense<0.000000e+00> : vector<8x8xf32>
    %202 = tpu.matmul %200, %201, %cst_82 {dimension_numbers = #tpu.dot_dimension_numbers<[1], [0], [0], [1], [0, 0, 1, 1], [], []>} : vector<8x8xf32>, vector<8x8xf32>, vector<8x8xf32> -> vector<8x8xf32>
    %203 = vector.extract_strided_slice %140 {offsets = [16, 0], sizes = [8, 32], strides = [1, 1]} : vector<32x32xf32> to vector<8x32xf32>
    %cst_83 = arith.constant dense<0.000000e+00> : vector<8x32xf32>
    %204 = tpu.matmul %202, %203, %cst_83 {dimension_numbers = #tpu.dot_dimension_numbers<[1], [0], [0], [1], [0, 0, 1, 1], [], []>} : vector<8x8xf32>, vector<8x32xf32>, vector<8x32xf32> -> vector<8x32xf32>
    %205 = arith.addf %184, %204 : vector<8x32xf32>
    %206 = vector.extract_strided_slice %130 {offsets = [0, 24], sizes = [8, 8], strides = [1, 1]} : vector<8x32xf32> to vector<8x8xf32>
    %cst_84 = arith.constant 0.353553385 : f32
    %207 = vector.broadcast %cst_84 : f32 to vector<8x8xf32>
    %208 = arith.mulf %206, %207 : vector<8x8xf32>
    %209 = vector.extract_strided_slice %136 {offsets = [0, 24], sizes = [8, 8], strides = [1, 1]} : vector<8x32xf32> to vector<8x8xf32>
    %cst_85 = arith.constant dense<0.000000e+00> : vector<8x8xf32>
    %210 = tpu.matmul %208, %209, %cst_85 {dimension_numbers = #tpu.dot_dimension_numbers<[1], [1], [0], [0], [0, 0, 1, 0], [], []>} : vector<8x8xf32>, vector<8x8xf32>, vector<8x8xf32> -> vector<8x8xf32>
    %211 = arith.addf %210, %139 : vector<8x8xf32>
    %cst_86 = arith.constant dense<0xFF800000> : vector<8xf32>
    %212 = vector.multi_reduction <maximumf>, %211, %cst_86 [1] : vector<8x8xf32> to vector<8xf32>
    %213 = vector.shape_cast %212 : vector<8xf32> to vector<8x1xf32>
    %214 = vector.broadcast %213 : vector<8x1xf32> to vector<8x8xf32>
    %215 = arith.subf %211, %214 : vector<8x8xf32>
    %216 = math.exp %215 : vector<8x8xf32>
    %cst_87 = arith.constant dense<0.000000e+00> : vector<8xf32>
    %217 = vector.multi_reduction <add>, %216, %cst_87 [1] : vector<8x8xf32> to vector<8xf32>
    %218 = vector.shape_cast %217 : vector<8xf32> to vector<8x1xf32>
    %219 = tpu.reciprocal %218 {approx = true} : vector<8x1xf32> -> vector<8x1xf32>
    %220 = vector.broadcast %219 : vector<8x1xf32> to vector<8x8xf32>
    %221 = arith.mulf %216, %220 : vector<8x8xf32>
    %222 = vector.extract_strided_slice %137 {offsets = [0, 24], sizes = [8, 8], strides = [1, 1]} : vector<8x32xf32> to vector<8x8xf32>
    %cst_88 = arith.constant dense<0.000000e+00> : vector<8x8xf32>
    %223 = tpu.matmul %221, %222, %cst_88 {dimension_numbers = #tpu.dot_dimension_numbers<[1], [0], [0], [1], [0, 0, 1, 1], [], []>} : vector<8x8xf32>, vector<8x8xf32>, vector<8x8xf32> -> vector<8x8xf32>
    %224 = vector.extract_strided_slice %140 {offsets = [24, 0], sizes = [8, 32], strides = [1, 1]} : vector<32x32xf32> to vector<8x32xf32>
    %cst_89 = arith.constant dense<0.000000e+00> : vector<8x32xf32>
    %225 = tpu.matmul %223, %224, %cst_89 {dimension_numbers = #tpu.dot_dimension_numbers<[1], [0], [0], [1], [0, 0, 1, 1], [], []>} : vector<8x8xf32>, vector<8x32xf32>, vector<8x32xf32> -> vector<8x32xf32>
    %226 = arith.addf %205, %225 : vector<8x32xf32>
    %c0_90 = arith.constant 0 : index
    %c0_91 = arith.constant 0 : index
    %227 = vector.load %arg17[%c0_90, %c0_91] : memref<1x32xf32, #tpu.memory_space<vmem>>, vector<1x32xf32>
    %c0_92 = arith.constant 0 : index
    %c0_93 = arith.constant 0 : index
    %228 = vector.load %arg18[%c0_92, %c0_93] : memref<1x32xf32, #tpu.memory_space<vmem>>, vector<1x32xf32>
    %229 = arith.addf %125, %226 : vector<8x32xf32>
    %cst_94 = arith.constant dense<0.000000e+00> : vector<8xf32>
    %230 = vector.multi_reduction <add>, %229, %cst_94 [1] : vector<8x32xf32> to vector<8xf32>
    %231 = vector.shape_cast %230 : vector<8xf32> to vector<8x1xf32>
    %cst_95 = arith.constant 3.200000e+01 : f32
    %232 = vector.broadcast %cst_95 : f32 to vector<8x1xf32>
    %233 = arith.divf %231, %232 : vector<8x1xf32>
    %234 = vector.broadcast %233 : vector<8x1xf32> to vector<8x32xf32>
    %235 = arith.subf %229, %234 : vector<8x32xf32>
    %236 = arith.mulf %235, %235 : vector<8x32xf32>
    %cst_96 = arith.constant dense<0.000000e+00> : vector<8xf32>
    %237 = vector.multi_reduction <add>, %236, %cst_96 [1] : vector<8x32xf32> to vector<8xf32>
    %238 = vector.shape_cast %237 : vector<8xf32> to vector<8x1xf32>
    %cst_97 = arith.constant 3.200000e+01 : f32
    %239 = vector.broadcast %cst_97 : f32 to vector<8x1xf32>
    %240 = arith.divf %238, %239 : vector<8x1xf32>
    %241 = vector.broadcast %233 : vector<8x1xf32> to vector<8x32xf32>
    %242 = arith.subf %229, %241 : vector<8x32xf32>
    %cst_98 = arith.constant 9.99999997E-7 : f32
    %243 = vector.broadcast %cst_98 : f32 to vector<8x1xf32>
    %244 = arith.addf %240, %243 : vector<8x1xf32>
    %245 = math.rsqrt %244 : vector<8x1xf32>
    %246 = vector.broadcast %245 : vector<8x1xf32> to vector<8x32xf32>
    %247 = arith.mulf %242, %246 : vector<8x32xf32>
    %248 = vector.broadcast %227 : vector<1x32xf32> to vector<8x32xf32>
    %249 = arith.mulf %247, %248 : vector<8x32xf32>
    %250 = vector.broadcast %228 : vector<1x32xf32> to vector<8x32xf32>
    %251 = arith.addf %249, %250 : vector<8x32xf32>
    %c0_99 = arith.constant 0 : index
    %c0_100 = arith.constant 0 : index
    %252 = vector.load %arg19[%c0_99, %c0_100] : memref<32x64xf32, #tpu.memory_space<vmem>>, vector<32x64xf32>
    %cst_101 = arith.constant dense<0.000000e+00> : vector<8x64xf32>
    %253 = tpu.matmul %251, %252, %cst_101 {dimension_numbers = #tpu.dot_dimension_numbers<[1], [0], [0], [1], [0, 0, 1, 1], [], []>} : vector<8x32xf32>, vector<32x64xf32>, vector<8x64xf32> -> vector<8x64xf32>
    %c0_102 = arith.constant 0 : index
    %c0_103 = arith.constant 0 : index
    %254 = vector.load %arg20[%c0_102, %c0_103] : memref<1x64xf32, #tpu.memory_space<vmem>>, vector<1x64xf32>
    %255 = vector.broadcast %254 : vector<1x64xf32> to vector<8x64xf32>
    %256 = arith.addf %253, %255 : vector<8x64xf32>
    %cst_104 = arith.constant 0.000000e+00 : f32
    %257 = vector.broadcast %cst_104 : f32 to vector<8x64xf32>
    %258 = arith.maximumf %256, %257 : vector<8x64xf32>
    %c0_105 = arith.constant 0 : index
    %c0_106 = arith.constant 0 : index
    %259 = vector.load %arg21[%c0_105, %c0_106] : memref<64x32xf32, #tpu.memory_space<vmem>>, vector<64x32xf32>
    %cst_107 = arith.constant dense<0.000000e+00> : vector<8x32xf32>
    %260 = tpu.matmul %258, %259, %cst_107 {dimension_numbers = #tpu.dot_dimension_numbers<[1], [0], [0], [1], [0, 0, 1, 1], [], []>} : vector<8x64xf32>, vector<64x32xf32>, vector<8x32xf32> -> vector<8x32xf32>
    %c0_108 = arith.constant 0 : index
    %c0_109 = arith.constant 0 : index
    %261 = vector.load %arg22[%c0_108, %c0_109] : memref<1x32xf32, #tpu.memory_space<vmem>>, vector<1x32xf32>
    %262 = vector.broadcast %261 : vector<1x32xf32> to vector<8x32xf32>
    %263 = arith.addf %260, %262 : vector<8x32xf32>
    %c0_110 = arith.constant 0 : index
    %c0_111 = arith.constant 0 : index
    %264 = vector.load %arg23[%c0_110, %c0_111] : memref<1x32xf32, #tpu.memory_space<vmem>>, vector<1x32xf32>
    %c0_112 = arith.constant 0 : index
    %c0_113 = arith.constant 0 : index
    %265 = vector.load %arg24[%c0_112, %c0_113] : memref<1x32xf32, #tpu.memory_space<vmem>>, vector<1x32xf32>
    %266 = arith.addf %251, %263 : vector<8x32xf32>
    %cst_114 = arith.constant dense<0.000000e+00> : vector<8xf32>
    %267 = vector.multi_reduction <add>, %266, %cst_114 [1] : vector<8x32xf32> to vector<8xf32>
    %268 = vector.shape_cast %267 : vector<8xf32> to vector<8x1xf32>
    %cst_115 = arith.constant 3.200000e+01 : f32
    %269 = vector.broadcast %cst_115 : f32 to vector<8x1xf32>
    %270 = arith.divf %268, %269 : vector<8x1xf32>
    %271 = vector.broadcast %270 : vector<8x1xf32> to vector<8x32xf32>
    %272 = arith.subf %266, %271 : vector<8x32xf32>
    %273 = arith.mulf %272, %272 : vector<8x32xf32>
    %cst_116 = arith.constant dense<0.000000e+00> : vector<8xf32>
    %274 = vector.multi_reduction <add>, %273, %cst_116 [1] : vector<8x32xf32> to vector<8xf32>
    %275 = vector.shape_cast %274 : vector<8xf32> to vector<8x1xf32>
    %cst_117 = arith.constant 3.200000e+01 : f32
    %276 = vector.broadcast %cst_117 : f32 to vector<8x1xf32>
    %277 = arith.divf %275, %276 : vector<8x1xf32>
    %278 = vector.broadcast %270 : vector<8x1xf32> to vector<8x32xf32>
    %279 = arith.subf %266, %278 : vector<8x32xf32>
    %cst_118 = arith.constant 9.99999997E-7 : f32
    %280 = vector.broadcast %cst_118 : f32 to vector<8x1xf32>
    %281 = arith.addf %277, %280 : vector<8x1xf32>
    %282 = math.rsqrt %281 : vector<8x1xf32>
    %283 = vector.broadcast %282 : vector<8x1xf32> to vector<8x32xf32>
    %284 = arith.mulf %279, %283 : vector<8x32xf32>
    %285 = vector.broadcast %264 : vector<1x32xf32> to vector<8x32xf32>
    %286 = arith.mulf %284, %285 : vector<8x32xf32>
    %287 = vector.broadcast %265 : vector<1x32xf32> to vector<8x32xf32>
    %288 = arith.addf %286, %287 : vector<8x32xf32>
    %c0_119 = arith.constant 0 : index
    %c0_120 = arith.constant 0 : index
    %c0_121 = arith.constant 0 : index
    %289 = vector.load %arg25[%c0_119, %c0_120, %c0_121] : memref<1x8x32xf32, #tpu.memory_space<vmem>>, vector<1x8x32xf32>
    %290 = vector.shape_cast %289 : vector<1x8x32xf32> to vector<8x32xf32>
    %291 = vector.shape_cast %288 : vector<8x32xf32> to vector<1x8x32xf32>
    tpu.vector_store %arg25[%c0_119, %c0_120, %c0_121], %291 {strides = array<i32>} : memref<1x8x32xf32, #tpu.memory_space<vmem>>, vector<1x8x32xf32>,
    return
  }
  func.func @transform_0(%arg0: i32) -> (i32, i32, i32) {
    %c0_i32 = arith.constant 0 : i32
    %c0_i32_0 = arith.constant 0 : i32
    %c0_i32_1 = arith.constant 0 : i32
    return %arg0, %c0_i32, %c0_i32_0 : i32, i32, i32
  }
  func.func @transform_1(%arg0: i32) -> (i32, i32, i32) {
    %c0_i32 = arith.constant 0 : i32
    %c0_i32_0 = arith.constant 0 : i32
    %c0_i32_1 = arith.constant 0 : i32
    return %arg0, %c0_i32, %c0_i32_0 : i32, i32, i32
  }
  func.func @transform_2(%arg0: i32) -> (i32, i32, i32) {
    %c0_i32 = arith.constant 0 : i32
    %c0_i32_0 = arith.constant 0 : i32
    %c0_i32_1 = arith.constant 0 : i32
    return %arg0, %c0_i32, %c0_i32_0 : i32, i32, i32
  }
  func.func @transform_3(%arg0: i32) -> (i32, i32, i32) {
    %c0_i32 = arith.constant 0 : i32
    %c0_i32_0 = arith.constant 0 : i32
    %c0_i32_1 = arith.constant 0 : i32
    return %arg0, %c0_i32, %c0_i32_0 : i32, i32, i32
  }
  func.func @transform_4(%arg0: i32) -> (i32, i32) {
    %c0_i32 = arith.constant 0 : i32
    %c0_i32_0 = arith.constant 0 : i32
    %c0_i32_1 = arith.constant 0 : i32
    return %c0_i32, %c0_i32_0 : i32, i32
  }
  func.func @transform_5(%arg0: i32) -> (i32, i32) {
    %c0_i32 = arith.constant 0 : i32
    %c0_i32_0 = arith.constant 0 : i32
    %c0_i32_1 = arith.constant 0 : i32
    return %c0_i32, %c0_i32_0 : i32, i32
  }
  func.func @transform_6(%arg0: i32) -> (i32, i32) {
    %c0_i32 = arith.constant 0 : i32
    %c0_i32_0 = arith.constant 0 : i32
    %c0_i32_1 = arith.constant 0 : i32
    return %c0_i32, %c0_i32_0 : i32, i32
  }
  func.func @transform_7(%arg0: i32) -> (i32, i32) {
    %c0_i32 = arith.constant 0 : i32
    %c0_i32_0 = arith.constant 0 : i32
    %c0_i32_1 = arith.constant 0 : i32
    return %c0_i32, %c0_i32_0 : i32, i32
  }
  func.func @transform_8(%arg0: i32) -> (i32, i32) {
    %c0_i32 = arith.constant 0 : i32
    %c0_i32_0 = arith.constant 0 : i32
    %c0_i32_1 = arith.constant 0 : i32
    return %c0_i32, %c0_i32_0 : i32, i32
  }
  func.func @transform_9(%arg0: i32) -> (i32, i32) {
    %c0_i32 = arith.constant 0 : i32
    %c0_i32_0 = arith.constant 0 : i32
    %c0_i32_1 = arith.constant 0 : i32
    return %c0_i32, %c0_i32_0 : i32, i32
  }
  func.func @transform_10(%arg0: i32) -> (i32, i32) {
    %c0_i32 = arith.constant 0 : i32
    %c0_i32_0 = arith.constant 0 : i32
    %c0_i32_1 = arith.constant 0 : i32
    return %c0_i32, %c0_i32_0 : i32, i32
  }
  func.func @transform_11(%arg0: i32) -> (i32, i32) {
    %c0_i32 = arith.constant 0 : i32
    %c0_i32_0 = arith.constant 0 : i32
    %c0_i32_1 = arith.constant 0 : i32
    return %c0_i32, %c0_i32_0 : i32, i32
  }
  func.func @transform_12(%arg0: i32) -> (i32, i32) {
    %c0_i32 = arith.constant 0 : i32
    %c0_i32_0 = arith.constant 0 : i32
    %c0_i32_1 = arith.constant 0 : i32
    return %c0_i32, %c0_i32_0 : i32, i32
  }
  func.func @transform_13(%arg0: i32) -> (i32, i32) {
    %c0_i32 = arith.constant 0 : i32
    %c0_i32_0 = arith.constant 0 : i32
    %c0_i32_1 = arith.constant 0 : i32
    return %c0_i32, %c0_i32_0 : i32, i32
  }
  func.func @transform_14(%arg0: i32) -> (i32, i32) {
    %c0_i32 = arith.constant 0 : i32
    %c0_i32_0 = arith.constant 0 : i32
    %c0_i32_1 = arith.constant 0 : i32
    return %c0_i32, %c0_i32_0 : i32, i32
  }
  func.func @transform_15(%arg0: i32) -> (i32, i32) {
    %c0_i32 = arith.constant 0 : i32
    %c0_i32_0 = arith.constant 0 : i32
    %c0_i32_1 = arith.constant 0 : i32
    return %c0_i32, %c0_i32_0 : i32, i32
  }
  func.func @transform_16(%arg0: i32) -> (i32, i32) {
    %c0_i32 = arith.constant 0 : i32
    %c0_i32_0 = arith.constant 0 : i32
    %c0_i32_1 = arith.constant 0 : i32
    return %c0_i32, %c0_i32_0 : i32, i32
  }
  func.func @transform_17(%arg0: i32) -> (i32, i32) {
    %c0_i32 = arith.constant 0 : i32
    %c0_i32_0 = arith.constant 0 : i32
    %c0_i32_1 = arith.constant 0 : i32
    return %c0_i32, %c0_i32_0 : i32, i32
  }
  func.func @transform_18(%arg0: i32) -> (i32, i32) {
    %c0_i32 = arith.constant 0 : i32
    %c0_i32_0 = arith.constant 0 : i32
    %c0_i32_1 = arith.constant 0 : i32
    return %c0_i32, %c0_i32_0 : i32, i32
  }
  func.func @transform_19(%arg0: i32) -> (i32, i32) {
    %c0_i32 = arith.constant 0 : i32
    %c0_i32_0 = arith.constant 0 : i32
    %c0_i32_1 = arith.constant 0 : i32
    return %c0_i32, %c0_i32_0 : i32, i32
  }
  func.func @transform_20(%arg0: i32) -> (i32, i32) {
    %c0_i32 = arith.constant 0 : i32
    %c0_i32_0 = arith.constant 0 : i32
    %c0_i32_1 = arith.constant 0 : i32
    return %c0_i32, %c0_i32_0 : i32, i32
  }
  func.func @transform_21(%arg0: i32) -> (i32, i32) {
    %c0_i32 = arith.constant 0 : i32
    %c0_i32_0 = arith.constant 0 : i32
    %c0_i32_1 = arith.constant 0 : i32
    return %c0_i32, %c0_i32_0 : i32, i32
  }
  func.func @transform_22(%arg0: i32) -> (i32, i32) {
    %c0_i32 = arith.constant 0 : i32
    %c0_i32_0 = arith.constant 0 : i32
    %c0_i32_1 = arith.constant 0 : i32
    return %c0_i32, %c0_i32_0 : i32, i32
  }
  func.func @transform_23(%arg0: i32) -> (i32, i32) {
    %c0_i32 = arith.constant 0 : i32
    %c0_i32_0 = arith.constant 0 : i32
    %c0_i32_1 = arith.constant 0 : i32
    return %c0_i32, %c0_i32_0 : i32, i32
  }
  func.func @transform_24(%arg0: i32) -> (i32, i32, i32) {
    %c0_i32 = arith.constant 0 : i32
    %c0_i32_0 = arith.constant 0 : i32
    %c0_i32_1 = arith.constant 0 : i32
    return %arg0, %c0_i32, %c0_i32_0 : i32, i32, i32
  }
}

</mosaic_0001>

<llo_original>
// kernel: decoder_forward.2
$region0: #{decoder_forward.2}
  #allocation0 [shape = 'u32[]', space=smem, size = 0x4, offset = 0x4, fixed_abs, tag = 'smem constant byte address 0x4 - core index']
  #allocation1 [shape = 'u32[144,128]{1,0:T(1,128)}', space=vmem, size = 0x12000, scoped, tag = 'internal scratch']
  %s0 = inlined_call_operand.vmem [shape: f32[2,8,32], index: 0, kind: input, shape index: {}]
  %s1 = inlined_call_operand.vmem [shape: f32[2,8,32], index: 1, kind: input, shape index: {}]
  %s2 = inlined_call_operand.vmem [shape: f32[2,8,8], index: 2, kind: input, shape index: {}]
  %s3 = inlined_call_operand.vmem [shape: f32[2,8,8], index: 3, kind: input, shape index: {}]
  %s4 = inlined_call_operand.vmem [shape: f32[32,96], index: 4, kind: input, shape index: {}]
  %s5 = inlined_call_operand.vmem [shape: f32[1,96], index: 5, kind: input, shape index: {}]
  %s6 = inlined_call_operand.vmem [shape: f32[32,32], index: 6, kind: input, shape index: {}]
  %s7 = inlined_call_operand.vmem [shape: f32[1,32], index: 7, kind: input, shape index: {}]
  %s8 = inlined_call_operand.vmem [shape: f32[1,32], index: 8, kind: input, shape index: {}]
  %s9 = inlined_call_operand.vmem [shape: f32[1,32], index: 9, kind: input, shape index: {}]
  %s10 = inlined_call_operand.vmem [shape: f32[32,32], index: 10, kind: input, shape index: {}]
  %s11 = inlined_call_operand.vmem [shape: f32[1,32], index: 11, kind: input, shape index: {}]
  %s12 = inlined_call_operand.vmem [shape: f32[32,64], index: 12, kind: input, shape index: {}]
  %s13 = inlined_call_operand.vmem [shape: f32[1,64], index: 13, kind: input, shape index: {}]
  %s14 = inlined_call_operand.vmem [shape: f32[32,32], index: 14, kind: input, shape index: {}]
  %s15 = inlined_call_operand.vmem [shape: f32[1,32], index: 15, kind: input, shape index: {}]
  %s16 = inlined_call_operand.vmem [shape: f32[1,32], index: 16, kind: input, shape index: {}]
  %s17 = inlined_call_operand.vmem [shape: f32[1,32], index: 17, kind: input, shape index: {}]
  %s18 = inlined_call_operand.vmem [shape: f32[32,64], index: 18, kind: input, shape index: {}]
  %s19 = inlined_call_operand.vmem [shape: f32[1,64], index: 19, kind: input, shape index: {}]
  %s20 = inlined_call_operand.vmem [shape: f32[64,32], index: 20, kind: input, shape index: {}]
  %s21 = inlined_call_operand.vmem [shape: f32[1,32], index: 21, kind: input, shape index: {}]
  %s22 = inlined_call_operand.vmem [shape: f32[1,32], index: 22, kind: input, shape index: {}]
  %s23 = inlined_call_operand.vmem [shape: f32[1,32], index: 23, kind: input, shape index: {}]
  %s24 = inlined_call_operand.vmem [shape: f32[2,8,32], index: 24, kind: output, shape index: {}]
  %s25 = sld [smem:[#allocation0]]
  $region129: #{decoder_forward.2} parent=0
    _
  %s27 = ssub.s32 1, %s25
  %s28 = scalar_select 0, %s27, %s25
  loop: start=0, step=1, limit=4
  $region2: #{decoder_forward.2} parent=0 // loop_pre_header
    _
  $region3: #{decoder_forward.2} parent=0 // loop_header
    %s30 = sphi 0, %s34
    %p31 = scmp.ge.s32.totalorder %s30, 4
    %s40 = sphi 0, %s42
    %s43 = sphi 0, %s40
    %s44 = sphi 0, %s43
    %s60 = sphi 0, %s44
    %s66 = sphi 0, %s68
    %s69 = sphi 0, %s66
    %s70 = sphi 0, %s69
    %s86 = sphi 0, %s70
    %s92 = sphi 0, %s94
    %s95 = sphi 0, %s92
    %s96 = sphi 0, %s95
    %s112 = sphi 0, %s96
    %s118 = sphi 0, %s120
    %s121 = sphi 0, %s118
    %s122 = sphi 0, %s121
    %s138 = sphi 0, %s122
    %s142 = sphi 0, %s142
    %s144 = sphi 0, %s142
    %s145 = sphi 0, %s144
    %s159 = sphi 0, %s145
    %s163 = sphi 0, %s163
    %s165 = sphi 0, %s163
    %s166 = sphi 0, %s165
    %s180 = sphi 0, %s166
    %s184 = sphi 0, %s184
    %s186 = sphi 0, %s184
    %s187 = sphi 0, %s186
    %s201 = sphi 0, %s187
    %s205 = sphi 0, %s205
    %s207 = sphi 0, %s205
    %s208 = sphi 0, %s207
    %s222 = sphi 0, %s208
    %s226 = sphi 0, %s226
    %s228 = sphi 0, %s226
    %s229 = sphi 0, %s228
    %s243 = sphi 0, %s229
    %s247 = sphi 0, %s247
    %s249 = sphi 0, %s247
    %s250 = sphi 0, %s249
    %s264 = sphi 0, %s250
    %s268 = sphi 0, %s268
    %s270 = sphi 0, %s268
    %s271 = sphi 0, %s270
    %s285 = sphi 0, %s271
    %s289 = sphi 0, %s289
    %s291 = sphi 0, %s289
    %s292 = sphi 0, %s291
    %s306 = sphi 0, %s292
    %s310 = sphi 0, %s310
    %s312 = sphi 0, %s310
    %s313 = sphi 0, %s312
    %s327 = sphi 0, %s313
    %s331 = sphi 0, %s331
    %s333 = sphi 0, %s331
    %s334 = sphi 0, %s333
    %s348 = sphi 0, %s334
    %s352 = sphi 0, %s352
    %s354 = sphi 0, %s352
    %s355 = sphi 0, %s354
    %s369 = sphi 0, %s355
    %s373 = sphi 0, %s373
    %s375 = sphi 0, %s373
    %s376 = sphi 0, %s375
    %s390 = sphi 0, %s376
    %s394 = sphi 0, %s394
    %s396 = sphi 0, %s394
    %s397 = sphi 0, %s396
    %s411 = sphi 0, %s397
    %s415 = sphi 0, %s415
    %s417 = sphi 0, %s415
    %s418 = sphi 0, %s417
    %s432 = sphi 0, %s418
    %s436 = sphi 0, %s436
    %s438 = sphi 0, %s436
    %s439 = sphi 0, %s438
    %s453 = sphi 0, %s439
    %s457 = sphi 0, %s457
    %s459 = sphi 0, %s457
    %s460 = sphi 0, %s459
    %s474 = sphi 0, %s460
    %s478 = sphi 0, %s478
    %s480 = sphi 0, %s478
    %s481 = sphi 0, %s480
    %s495 = sphi 0, %s481
    %s499 = sphi 0, %s499
    %s501 = sphi 0, %s499
    %s502 = sphi 0, %s501
    %s516 = sphi 0, %s502
    %s520 = sphi 0, %s520
    %s522 = sphi 0, %s520
    %s523 = sphi 0, %s522
    %s537 = sphi 0, %s523
    %s541 = sphi 0, %s541
    %s543 = sphi 0, %s541
    %s544 = sphi 0, %s543
    %s558 = sphi 0, %s544
    %s564 = sphi 0, %s566
    %s567 = sphi 0, %s564
    %s568 = sphi 0, %s567
    %s584 = sphi 0, %s568
  $region4: #{decoder_forward.2} parent=0 // loop_header_branch
    %33 = sbr.rel (%p31) target = $region8
  $region5: #{decoder_forward.2} parent=0 // loop_body
    %s35 = ssub.s32 %s30, 1
    %s36 = ssub.s32 %s30, 2
    %s37 = sadd.s32 %s30, 1
    %s38 = ssub.s32 %s30, %s37
    %p39 = scmp.eq.s32.totalorder %s38, 0
    %s41 = sadd.s32 %s40, 1
    %s42 = scalar_select %p39, %s40, %s41
    %p45 = pneg %p39
    %p46 = scmp.eq.s32.totalorder %s30, 1
    %p47 = por %p45, %p46
    %p48 = scmp.ne.s32.totalorder %s40, %s43
    %p49 = scmp.eq.s32.totalorder %s30, 0
    %p50 = por %p48, %p49
    %p51 = scmp.ne.s32.totalorder %s40, %s43
    %p52 = scmp.eq.s32.totalorder %s35, 1
    %p53 = por %p51, %p52
    %p54 = scmp.ne.s32.totalorder %s43, %s44
    %p55 = scmp.eq.s32.totalorder %s35, 0
    %p56 = por %p54, %p55
    %p57 = scmp.ne.s32.totalorder %s43, %s44
    %p58 = scmp.eq.s32.totalorder %s36, 1
    %p59 = por %p57, %p58
    %p61 = scmp.ne.s32.totalorder %s44, %s60
    %p62 = scmp.eq.s32.totalorder %s36, 0
    %p63 = por %p61, %p62
    %s64 = ssub.s32 %s30, %s37
    %p65 = scmp.eq.s32.totalorder %s64, 0
    %s67 = sadd.s32 %s66, 1
    %s68 = scalar_select %p65, %s66, %s67
    %p71 = pneg %p65
    %p72 = scmp.eq.s32.totalorder %s30, 1
    %p73 = por %p71, %p72
    %p74 = scmp.ne.s32.totalorder %s66, %s69
    %p75 = scmp.eq.s32.totalorder %s30, 0
    %p76 = por %p74, %p75
    %p77 = scmp.ne.s32.totalorder %s66, %s69
    %p78 = scmp.eq.s32.totalorder %s35, 1
    %p79 = por %p77, %p78
    %p80 = scmp.ne.s32.totalorder %s69, %s70
    %p81 = scmp.eq.s32.totalorder %s35, 0
    %p82 = por %p80, %p81
    %p83 = scmp.ne.s32.totalorder %s69, %s70
    %p84 = scmp.eq.s32.totalorder %s36, 1
    %p85 = por %p83, %p84
    %p87 = scmp.ne.s32.totalorder %s70, %s86
    %p88 = scmp.eq.s32.totalorder %s36, 0
    %p89 = por %p87, %p88
    %s90 = ssub.s32 %s30, %s37
    %p91 = scmp.eq.s32.totalorder %s90, 0
    %s93 = sadd.s32 %s92, 1
    %s94 = scalar_select %p91, %s92, %s93
    %p97 = pneg %p91
    %p98 = scmp.eq.s32.totalorder %s30, 1
    %p99 = por %p97, %p98
    %p100 = scmp.ne.s32.totalorder %s92, %s95
    %p101 = scmp.eq.s32.totalorder %s30, 0
    %p102 = por %p100, %p101
    %p103 = scmp.ne.s32.totalorder %s92, %s95
    %p104 = scmp.eq.s32.totalorder %s35, 1
    %p105 = por %p103, %p104
    %p106 = scmp.ne.s32.totalorder %s95, %s96
    %p107 = scmp.eq.s32.totalorder %s35, 0
    %p108 = por %p106, %p107
    %p109 = scmp.ne.s32.totalorder %s95, %s96
    %p110 = scmp.eq.s32.totalorder %s36, 1
    %p111 = por %p109, %p110
    %p113 = scmp.ne.s32.totalorder %s96, %s112
    %p114 = scmp.eq.s32.totalorder %s36, 0
    %p115 = por %p113, %p114
    %s116 = ssub.s32 %s30, %s37
    %p117 = scmp.eq.s32.totalorder %s116, 0
    %s119 = sadd.s32 %s118, 1
    %s120 = scalar_select %p117, %s118, %s119
    %p123 = pneg %p117
    %p124 = scmp.eq.s32.totalorder %s30, 1
    %p125 = por %p123, %p124
    %p126 = scmp.ne.s32.totalorder %s118, %s121
    %p127 = scmp.eq.s32.totalorder %s30, 0
    %p128 = por %p126, %p127
    %p129 = scmp.ne.s32.totalorder %s118, %s121
    %p130 = scmp.eq.s32.totalorder %s35, 1
    %p131 = por %p129, %p130
    %p132 = scmp.ne.s32.totalorder %s121, %s122
    %p133 = scmp.eq.s32.totalorder %s35, 0
    %p134 = por %p132, %p133
    %p135 = scmp.ne.s32.totalorder %s121, %s122
    %p136 = scmp.eq.s32.totalorder %s36, 1
    %p137 = por %p135, %p136
    %p139 = scmp.ne.s32.totalorder %s122, %s138
    %p140 = scmp.eq.s32.totalorder %s36, 0
    %p141 = por %p139, %p140
    %s143 = sadd.s32 %s142, 1
    %p146 = scmp.eq.s32.totalorder %s30, 1
    %p147 = scmp.ne.s32.totalorder %s142, %s144
    %p148 = scmp.eq.s32.totalorder %s30, 0
    %p149 = por %p147, %p148
    %p150 = scmp.ne.s32.totalorder %s142, %s144
    %p151 = scmp.eq.s32.totalorder %s35, 1
    %p152 = por %p150, %p151
    %p153 = scmp.ne.s32.totalorder %s144, %s145
    %p154 = scmp.eq.s32.totalorder %s35, 0
    %p155 = por %p153, %p154
    %p156 = scmp.ne.s32.totalorder %s144, %s145
    %p157 = scmp.eq.s32.totalorder %s36, 1
    %p158 = por %p156, %p157
    %p160 = scmp.ne.s32.totalorder %s145, %s159
    %p161 = scmp.eq.s32.totalorder %s36, 0
    %p162 = por %p160, %p161
    %s164 = sadd.s32 %s163, 1
    %p167 = scmp.eq.s32.totalorder %s30, 1
    %p168 = scmp.ne.s32.totalorder %s163, %s165
    %p169 = scmp.eq.s32.totalorder %s30, 0
    %p170 = por %p168, %p169
    %p171 = scmp.ne.s32.totalorder %s163, %s165
    %p172 = scmp.eq.s32.totalorder %s35, 1
    %p173 = por %p171, %p172
    %p174 = scmp.ne.s32.totalorder %s165, %s166
    %p175 = scmp.eq.s32.totalorder %s35, 0
    %p176 = por %p174, %p175
    %p177 = scmp.ne.s32.totalorder %s165, %s166
    %p178 = scmp.eq.s32.totalorder %s36, 1
    %p179 = por %p177, %p178
    %p181 = scmp.ne.s32.totalorder %s166, %s180
    %p182 = scmp.eq.s32.totalorder %s36, 0
    %p183 = por %p181, %p182
    %s185 = sadd.s32 %s184, 1
    %p188 = scmp.eq.s32.totalorder %s30, 1
    %p189 = scmp.ne.s32.totalorder %s184, %s186
    %p190 = scmp.eq.s32.totalorder %s30, 0
    %p191 = por %p189, %p190
    %p192 = scmp.ne.s32.totalorder %s184, %s186
    %p193 = scmp.eq.s32.totalorder %s35, 1
    %p194 = por %p192, %p193
    %p195 = scmp.ne.s32.totalorder %s186, %s187
    %p196 = scmp.eq.s32.totalorder %s35, 0
    %p197 = por %p195, %p196
    %p198 = scmp.ne.s32.totalorder %s186, %s187
    %p199 = scmp.eq.s32.totalorder %s36, 1
    %p200 = por %p198, %p199
    %p202 = scmp.ne.s32.totalorder %s187, %s201
    %p203 = scmp.eq.s32.totalorder %s36, 0
    %p204 = por %p202, %p203
    %s206 = sadd.s32 %s205, 1
    %p209 = scmp.eq.s32.totalorder %s30, 1
    %p210 = scmp.ne.s32.totalorder %s205, %s207
    %p211 = scmp.eq.s32.totalorder %s30, 0
    %p212 = por %p210, %p211
    %p213 = scmp.ne.s32.totalorder %s205, %s207
    %p214 = scmp.eq.s32.totalorder %s35, 1
    %p215 = por %p213, %p214
    %p216 = scmp.ne.s32.totalorder %s207, %s208
    %p217 = scmp.eq.s32.totalorder %s35, 0
    %p218 = por %p216, %p217
    %p219 = scmp.ne.s32.totalorder %s207, %s208
    %p220 = scmp.eq.s32.totalorder %s36, 1
    %p221 = por %p219, %p220
    %p223 = scmp.ne.s32.totalorder %s208, %s222
    %p224 = scmp.eq.s32.totalorder %s36, 0
    %p225 = por %p223, %p224
    %s227 = sadd.s32 %s226, 1
    %p230 = scmp.eq.s32.totalorder %s30, 1
    %p231 = scmp.ne.s32.totalorder %s226, %s228
    %p232 = scmp.eq.s32.totalorder %s30, 0
    %p233 = por %p231, %p232
    %p234 = scmp.ne.s32.totalorder %s226, %s228
    %p235 = scmp.eq.s32.totalorder %s35, 1
    %p236 = por %p234, %p235
    %p237 = scmp.ne.s32.totalorder %s228, %s229
    %p238 = scmp.eq.s32.totalorder %s35, 0
    %p239 = por %p237, %p238
    %p240 = scmp.ne.s32.totalorder %s228, %s229
    %p241 = scmp.eq.s32.totalorder %s36, 1
    %p242 = por %p240, %p241
    %p244 = scmp.ne.s32.totalorder %s229, %s243
    %p245 = scmp.eq.s32.totalorder %s36, 0
    %p246 = por %p244, %p245
    %s248 = sadd.s32 %s247, 1
    %p251 = scmp.eq.s32.totalorder %s30, 1
    %p252 = scmp.ne.s32.totalorder %s247, %s249
    %p253 = scmp.eq.s32.totalorder %s30, 0
    %p254 = por %p252, %p253
    %p255 = scmp.ne.s32.totalorder %s247, %s249
    %p256 = scmp.eq.s32.totalorder %s35, 1
    %p257 = por %p255, %p256
    %p258 = scmp.ne.s32.totalorder %s249, %s250
    %p259 = scmp.eq.s32.totalorder %s35, 0
    %p260 = por %p258, %p259
    %p261 = scmp.ne.s32.totalorder %s249, %s250
    %p262 = scmp.eq.s32.totalorder %s36, 1
    %p263 = por %p261, %p262
    %p265 = scmp.ne.s32.totalorder %s250, %s264
    %p266 = scmp.eq.s32.totalorder %s36, 0
    %p267 = por %p265, %p266
    %s269 = sadd.s32 %s268, 1
    %p272 = scmp.eq.s32.totalorder %s30, 1
    %p273 = scmp.ne.s32.totalorder %s268, %s270
    %p274 = scmp.eq.s32.totalorder %s30, 0
    %p275 = por %p273, %p274
    %p276 = scmp.ne.s32.totalorder %s268, %s270
    %p277 = scmp.eq.s32.totalorder %s35, 1
    %p278 = por %p276, %p277
    %p279 = scmp.ne.s32.totalorder %s270, %s271
    %p280 = scmp.eq.s32.totalorder %s35, 0
    %p281 = por %p279, %p280
    %p282 = scmp.ne.s32.totalorder %s270, %s271
    %p283 = scmp.eq.s32.totalorder %s36, 1
    %p284 = por %p282, %p283
    %p286 = scmp.ne.s32.totalorder %s271, %s285
    %p287 = scmp.eq.s32.totalorder %s36, 0
    %p288 = por %p286, %p287
    %s290 = sadd.s32 %s289, 1
    %p293 = scmp.eq.s32.totalorder %s30, 1
    %p294 = scmp.ne.s32.totalorder %s289, %s291
    %p295 = scmp.eq.s32.totalorder %s30, 0
    %p296 = por %p294, %p295
    %p297 = scmp.ne.s32.totalorder %s289, %s291
    %p298 = scmp.eq.s32.totalorder %s35, 1
    %p299 = por %p297, %p298
    %p300 = scmp.ne.s32.totalorder %s291, %s292
    %p301 = scmp.eq.s32.totalorder %s35, 0
    %p302 = por %p300, %p301
    %p303 = scmp.ne.s32.totalorder %s291, %s292
    %p304 = scmp.eq.s32.totalorder %s36, 1
    %p305 = por %p303, %p304
    %p307 = scmp.ne.s32.totalorder %s292, %s306
    %p308 = scmp.eq.s32.totalorder %s36, 0
    %p309 = por %p307, %p308
    %s311 = sadd.s32 %s310, 1
    %p314 = scmp.eq.s32.totalorder %s30, 1
    %p315 = scmp.ne.s32.totalorder %s310, %s312
    %p316 = scmp.eq.s32.totalorder %s30, 0
    %p317 = por %p315, %p316
    %p318 = scmp.ne.s32.totalorder %s310, %s312
    %p319 = scmp.eq.s32.totalorder %s35, 1
    %p320 = por %p318, %p319
    %p321 = scmp.ne.s32.totalorder %s312, %s313
    %p322 = scmp.eq.s32.totalorder %s35, 0
    %p323 = por %p321, %p322
    %p324 = scmp.ne.s32.totalorder %s312, %s313
    %p325 = scmp.eq.s32.totalorder %s36, 1
    %p326 = por %p324, %p325
    %p328 = scmp.ne.s32.totalorder %s313, %s327
    %p329 = scmp.eq.s32.totalorder %s36, 0
    %p330 = por %p328, %p329
    %s332 = sadd.s32 %s331, 1
    %p335 = scmp.eq.s32.totalorder %s30, 1
    %p336 = scmp.ne.s32.totalorder %s331, %s333
    %p337 = scmp.eq.s32.totalorder %s30, 0
    %p338 = por %p336, %p337
    %p339 = scmp.ne.s32.totalorder %s331, %s333
    %p340 = scmp.eq.s32.totalorder %s35, 1
    %p341 = por %p339, %p340
    %p342 = scmp.ne.s32.totalorder %s333, %s334
    %p343 = scmp.eq.s32.totalorder %s35, 0
    %p344 = por %p342, %p343
    %p345 = scmp.ne.s32.totalorder %s333, %s334
    %p346 = scmp.eq.s32.totalorder %s36, 1
    %p347 = por %p345, %p346
    %p349 = scmp.ne.s32.totalorder %s334, %s348
    %p350 = scmp.eq.s32.totalorder %s36, 0
    %p351 = por %p349, %p350
    %s353 = sadd.s32 %s352, 1
    %p356 = scmp.eq.s32.totalorder %s30, 1
    %p357 = scmp.ne.s32.totalorder %s352, %s354
    %p358 = scmp.eq.s32.totalorder %s30, 0
    %p359 = por %p357, %p358
    %p360 = scmp.ne.s32.totalorder %s352, %s354
    %p361 = scmp.eq.s32.totalorder %s35, 1
    %p362 = por %p360, %p361
    %p363 = scmp.ne.s32.totalorder %s354, %s355
    %p364 = scmp.eq.s32.totalorder %s35, 0
    %p365 = por %p363, %p364
    %p366 = scmp.ne.s32.totalorder %s354, %s355
    %p367 = scmp.eq.s32.totalorder %s36, 1
    %p368 = por %p366, %p367
    %p370 = scmp.ne.s32.totalorder %s355, %s369
    %p371 = scmp.eq.s32.totalorder %s36, 0
    %p372 = por %p370, %p371
    %s374 = sadd.s32 %s373, 1
    %p377 = scmp.eq.s32.totalorder %s30, 1
    %p378 = scmp.ne.s32.totalorder %s373, %s375
    %p379 = scmp.eq.s32.totalorder %s30, 0
    %p380 = por %p378, %p379
    %p381 = scmp.ne.s32.totalorder %s373, %s375
    %p382 = scmp.eq.s32.totalorder %s35, 1
    %p383 = por %p381, %p382
    %p384 = scmp.ne.s32.totalorder %s375, %s376
    %p385 = scmp.eq.s32.totalorder %s35, 0
    %p386 = por %p384, %p385
    %p387 = scmp.ne.s32.totalorder %s375, %s376
    %p388 = scmp.eq.s32.totalorder %s36, 1
    %p389 = por %p387, %p388
    %p391 = scmp.ne.s32.totalorder %s376, %s390
    %p392 = scmp.eq.s32.totalorder %s36, 0
    %p393 = por %p391, %p392
    %s395 = sadd.s32 %s394, 1
    %p398 = scmp.eq.s32.totalorder %s30, 1
    %p399 = scmp.ne.s32.totalorder %s394, %s396
    %p400 = scmp.eq.s32.totalorder %s30, 0
    %p401 = por %p399, %p400
    %p402 = scmp.ne.s32.totalorder %s394, %s396
    %p403 = scmp.eq.s32.totalorder %s35, 1
    %p404 = por %p402, %p403
    %p405 = scmp.ne.s32.totalorder %s396, %s397
    %p406 = scmp.eq.s32.totalorder %s35, 0
    %p407 = por %p405, %p406
    %p408 = scmp.ne.s32.totalorder %s396, %s397
    %p409 = scmp.eq.s32.totalorder %s36, 1
    %p410 = por %p408, %p409
    %p412 = scmp.ne.s32.totalorder %s397, %s411
    %p413 = scmp.eq.s32.totalorder %s36, 0
    %p414 = por %p412, %p413
    %s416 = sadd.s32 %s415, 1
    %p419 = scmp.eq.s32.totalorder %s30, 1
    %p420 = scmp.ne.s32.totalorder %s415, %s417
    %p421 = scmp.eq.s32.totalorder %s30, 0
    %p422 = por %p420, %p421
    %p423 = scmp.ne.s32.totalorder %s415, %s417
    %p424 = scmp.eq.s32.totalorder %s35, 1
    %p425 = por %p423, %p424
    %p426 = scmp.ne.s32.totalorder %s417, %s418
    %p427 = scmp.eq.s32.totalorder %s35, 0
    %p428 = por %p426, %p427
    %p429 = scmp.ne.s32.totalorder %s417, %s418
    %p430 = scmp.eq.s32.totalorder %s36, 1
    %p431 = por %p429, %p430
    %p433 = scmp.ne.s32.totalorder %s418, %s432
    %p434 = scmp.eq.s32.totalorder %s36, 0
    %p435 = por %p433, %p434
    %s437 = sadd.s32 %s436, 1
    %p440 = scmp.eq.s32.totalorder %s30, 1
    %p441 = scmp.ne.s32.totalorder %s436, %s438
    %p442 = scmp.eq.s32.totalorder %s30, 0
    %p443 = por %p441, %p442
    %p444 = scmp.ne.s32.totalorder %s436, %s438
    %p445 = scmp.eq.s32.totalorder %s35, 1
    %p446 = por %p444, %p445
    %p447 = scmp.ne.s32.totalorder %s438, %s439
    %p448 = scmp.eq.s32.totalorder %s35, 0
    %p449 = por %p447, %p448
    %p450 = scmp.ne.s32.totalorder %s438, %s439
    %p451 = scmp.eq.s32.totalorder %s36, 1
    %p452 = por %p450, %p451
    %p454 = scmp.ne.s32.totalorder %s439, %s453
    %p455 = scmp.eq.s32.totalorder %s36, 0
    %p456 = por %p454, %p455
    %s458 = sadd.s32 %s457, 1
    %p461 = scmp.eq.s32.totalorder %s30, 1
    %p462 = scmp.ne.s32.totalorder %s457, %s459
    %p463 = scmp.eq.s32.totalorder %s30, 0
    %p464 = por %p462, %p463
    %p465 = scmp.ne.s32.totalorder %s457, %s459
    %p466 = scmp.eq.s32.totalorder %s35, 1
    %p467 = por %p465, %p466
    %p468 = scmp.ne.s32.totalorder %s459, %s460
    %p469 = scmp.eq.s32.totalorder %s35, 0
    %p470 = por %p468, %p469
    %p471 = scmp.ne.s32.totalorder %s459, %s460
    %p472 = scmp.eq.s32.totalorder %s36, 1
    %p473 = por %p471, %p472
    %p475 = scmp.ne.s32.totalorder %s460, %s474
    %p476 = scmp.eq.s32.totalorder %s36, 0
    %p477 = por %p475, %p476
    %s479 = sadd.s32 %s478, 1
    %p482 = scmp.eq.s32.totalorder %s30, 1
    %p483 = scmp.ne.s32.totalorder %s478, %s480
    %p484 = scmp.eq.s32.totalorder %s30, 0
    %p485 = por %p483, %p484
    %p486 = scmp.ne.s32.totalorder %s478, %s480
    %p487 = scmp.eq.s32.totalorder %s35, 1
    %p488 = por %p486, %p487
    %p489 = scmp.ne.s32.totalorder %s480, %s481
    %p490 = scmp.eq.s32.totalorder %s35, 0
    %p491 = por %p489, %p490
    %p492 = scmp.ne.s32.totalorder %s480, %s481
    %p493 = scmp.eq.s32.totalorder %s36, 1
    %p494 = por %p492, %p493
    %p496 = scmp.ne.s32.totalorder %s481, %s495
    %p497 = scmp.eq.s32.totalorder %s36, 0
    %p498 = por %p496, %p497
    %s500 = sadd.s32 %s499, 1
    %p503 = scmp.eq.s32.totalorder %s30, 1
    %p504 = scmp.ne.s32.totalorder %s499, %s501
    %p505 = scmp.eq.s32.totalorder %s30, 0
    %p506 = por %p504, %p505
    %p507 = scmp.ne.s32.totalorder %s499, %s501
    %p508 = scmp.eq.s32.totalorder %s35, 1
    %p509 = por %p507, %p508
    %p510 = scmp.ne.s32.totalorder %s501, %s502
    %p511 = scmp.eq.s32.totalorder %s35, 0
    %p512 = por %p510, %p511
    %p513 = scmp.ne.s32.totalorder %s501, %s502
    %p514 = scmp.eq.s32.totalorder %s36, 1
    %p515 = por %p513, %p514
    %p517 = scmp.ne.s32.totalorder %s502, %s516
    %p518 = scmp.eq.s32.totalorder %s36, 0
    %p519 = por %p517, %p518
    %s521 = sadd.s32 %s520, 1
    %p524 = scmp.eq.s32.totalorder %s30, 1
    %p525 = scmp.ne.s32.totalorder %s520, %s522
    %p526 = scmp.eq.s32.totalorder %s30, 0
    %p527 = por %p525, %p526
    %p528 = scmp.ne.s32.totalorder %s520, %s522
    %p529 = scmp.eq.s32.totalorder %s35, 1
    %p530 = por %p528, %p529
    %p531 = scmp.ne.s32.totalorder %s522, %s523
    %p532 = scmp.eq.s32.totalorder %s35, 0
    %p533 = por %p531, %p532
    %p534 = scmp.ne.s32.totalorder %s522, %s523
    %p535 = scmp.eq.s32.totalorder %s36, 1
    %p536 = por %p534, %p535
    %p538 = scmp.ne.s32.totalorder %s523, %s537
    %p539 = scmp.eq.s32.totalorder %s36, 0
    %p540 = por %p538, %p539
    %s542 = sadd.s32 %s541, 1
    %p545 = scmp.eq.s32.totalorder %s30, 1
    %p546 = scmp.ne.s32.totalorder %s541, %s543
    %p547 = scmp.eq.s32.totalorder %s30, 0
    %p548 = por %p546, %p547
    %p549 = scmp.ne.s32.totalorder %s541, %s543
    %p550 = scmp.eq.s32.totalorder %s35, 1
    %p551 = por %p549, %p550
    %p552 = scmp.ne.s32.totalorder %s543, %s544
    %p553 = scmp.eq.s32.totalorder %s35, 0
    %p554 = por %p552, %p553
    %p555 = scmp.ne.s32.totalorder %s543, %s544
    %p556 = scmp.eq.s32.totalorder %s36, 1
    %p557 = por %p555, %p556
    %p559 = scmp.ne.s32.totalorder %s544, %s558
    %p560 = scmp.eq.s32.totalorder %s36, 0
    %p561 = por %p559, %p560
    %s562 = ssub.s32 %s30, %s37
    %p563 = scmp.eq.s32.totalorder %s562, 0
    %s565 = sadd.s32 %s564, 1
    %s566 = scalar_select %p563, %s564, %s565
    %p569 = pneg %p563
    %p570 = scmp.eq.s32.totalorder %s30, 1
    %p571 = por %p569, %p570
    %p572 = scmp.ne.s32.totalorder %s564, %s567
    %p573 = scmp.eq.s32.totalorder %s30, 0
    %p574 = por %p572, %p573
    %p575 = scmp.ne.s32.totalorder %s564, %s567
    %p576 = scmp.eq.s32.totalorder %s35, 1
    %p577 = por %p575, %p576
    %p578 = scmp.ne.s32.totalorder %s567, %s568
    %p579 = scmp.eq.s32.totalorder %s35, 0
    %p580 = por %p578, %p579
    %p581 = scmp.ne.s32.totalorder %s567, %s568
    %p582 = scmp.eq.s32.totalorder %s36, 1
    %p583 = por %p581, %p582
    %p585 = scmp.ne.s32.totalorder %s568, %s584
    %p586 = scmp.eq.s32.totalorder %s36, 0
    %p587 = por %p585, %p586
    %p588 = scmp.le.s32.totalorder 1, %s30
    %p589 = scmp.lt.s32.totalorder %s30, 3
    %p590 = pnand %p588, %p589
    %p591 = pneg %p590
    // Predicated region
    $region9: #{decoder_forward.2} parent=5 // pred_check
      _
    $region10: #{decoder_forward.2} parent=5 // pred_check_branch
      %593 = sbr.rel (%p590) target = $region12
    $region11: #{decoder_forward.2} parent=5 // pred_region
      %s594 = ssub.s32 %s30, 1
      // Predicated region
      $region13: #{decoder_forward.2} parent=11 // pred_check
        %p595 = pneg %p155
      $region14: #{decoder_forward.2} parent=11 // pred_check_branch
        %597 = sbr.rel (%p595) target = $region16
      $region15: #{decoder_forward.2} parent=11 // pred_region
        _
      $region16: #{decoder_forward.2} parent=11 // pred_fallthru
        _
      // Predicated region
      $region17: #{decoder_forward.2} parent=11 // pred_check
        %p598 = pneg %p176
      $region18: #{decoder_forward.2} parent=11 // pred_check_branch
        %600 = sbr.rel (%p598) target = $region20
      $region19: #{decoder_forward.2} parent=11 // pred_region
        _
      $region20: #{decoder_forward.2} parent=11 // pred_fallthru
        _
      // Predicated region
      $region21: #{decoder_forward.2} parent=11 // pred_check
        %p601 = pneg %p197
      $region22: #{decoder_forward.2} parent=11 // pred_check_branch
        %603 = sbr.rel (%p601) target = $region24
      $region23: #{decoder_forward.2} parent=11 // pred_region
        _
      $region24: #{decoder_forward.2} parent=11 // pred_fallthru
        _
      // Predicated region
      $region25: #{decoder_forward.2} parent=11 // pred_check
        %p604 = pneg %p218
      $region26: #{decoder_forward.2} parent=11 // pred_check_branch
        %606 = sbr.rel (%p604) target = $region28
      $region27: #{decoder_forward.2} parent=11 // pred_region
        _
      $region28: #{decoder_forward.2} parent=11 // pred_fallthru
        _
      // Predicated region
      $region29: #{decoder_forward.2} parent=11 // pred_check
        %p607 = pneg %p239
      $region30: #{decoder_forward.2} parent=11 // pred_check_branch
        %609 = sbr.rel (%p607) target = $region32
      $region31: #{decoder_forward.2} parent=11 // pred_region
        _
      $region32: #{decoder_forward.2} parent=11 // pred_fallthru
        _
      // Predicated region
      $region33: #{decoder_forward.2} parent=11 // pred_check
        %p610 = pneg %p260
      $region34: #{decoder_forward.2} parent=11 // pred_check_branch
        %612 = sbr.rel (%p610) target = $region36
      $region35: #{decoder_forward.2} parent=11 // pred_region
        _
      $region36: #{decoder_forward.2} parent=11 // pred_fallthru
        _
      // Predicated region
      $region37: #{decoder_forward.2} parent=11 // pred_check
        %p613 = pneg %p281
      $region38: #{decoder_forward.2} parent=11 // pred_check_branch
        %615 = sbr.rel (%p613) target = $region40
      $region39: #{decoder_forward.2} parent=11 // pred_region
        _
      $region40: #{decoder_forward.2} parent=11 // pred_fallthru
        _
      // Predicated region
      $region41: #{decoder_forward.2} parent=11 // pred_check
        %p616 = pneg %p302
      $region42: #{decoder_forward.2} parent=11 // pred_check_branch
        %618 = sbr.rel (%p616) target = $region44
      $region43: #{decoder_forward.2} parent=11 // pred_region
        _
      $region44: #{decoder_forward.2} parent=11 // pred_fallthru
        _
      // Predicated region
      $region45: #{decoder_forward.2} parent=11 // pred_check
        %p619 = pneg %p323
      $region46: #{decoder_forward.2} parent=11 // pred_check_branch
        %621 = sbr.rel (%p619) target = $region48
      $region47: #{decoder_forward.2} parent=11 // pred_region
        _
      $region48: #{decoder_forward.2} parent=11 // pred_fallthru
        _
      // Predicated region
      $region49: #{decoder_forward.2} parent=11 // pred_check
        %p622 = pneg %p344
      $region50: #{decoder_forward.2} parent=11 // pred_check_branch
        %624 = sbr.rel (%p622) target = $region52
      $region51: #{decoder_forward.2} parent=11 // pred_region
        _
      $region52: #{decoder_forward.2} parent=11 // pred_fallthru
        _
      // Predicated region
      $region53: #{decoder_forward.2} parent=11 // pred_check
        %p625 = pneg %p365
      $region54: #{decoder_forward.2} parent=11 // pred_check_branch
        %627 = sbr.rel (%p625) target = $region56
      $region55: #{decoder_forward.2} parent=11 // pred_region
        _
      $region56: #{decoder_forward.2} parent=11 // pred_fallthru
        _
      // Predicated region
      $region57: #{decoder_forward.2} parent=11 // pred_check
        %p628 = pneg %p386
      $region58: #{decoder_forward.2} parent=11 // pred_check_branch
        %630 = sbr.rel (%p628) target = $region60
      $region59: #{decoder_forward.2} parent=11 // pred_region
        _
      $region60: #{decoder_forward.2} parent=11 // pred_fallthru
        _
      // Predicated region
      $region61: #{decoder_forward.2} parent=11 // pred_check
        %p631 = pneg %p407
      $region62: #{decoder_forward.2} parent=11 // pred_check_branch
        %633 = sbr.rel (%p631) target = $region64
      $region63: #{decoder_forward.2} parent=11 // pred_region
        _
      $region64: #{decoder_forward.2} parent=11 // pred_fallthru
        _
      // Predicated region
      $region65: #{decoder_forward.2} parent=11 // pred_check
        %p634 = pneg %p428
      $region66: #{decoder_forward.2} parent=11 // pred_check_branch
        %636 = sbr.rel (%p634) target = $region68
      $region67: #{decoder_forward.2} parent=11 // pred_region
        _
      $region68: #{decoder_forward.2} parent=11 // pred_fallthru
        _
      // Predicated region
      $region69: #{decoder_forward.2} parent=11 // pred_check
        %p637 = pneg %p449
      $region70: #{decoder_forward.2} parent=11 // pred_check_branch
        %639 = sbr.rel (%p637) target = $region72
      $region71: #{decoder_forward.2} parent=11 // pred_region
        _
      $region72: #{decoder_forward.2} parent=11 // pred_fallthru
        _
      // Predicated region
      $region73: #{decoder_forward.2} parent=11 // pred_check
        %p640 = pneg %p470
      $region74: #{decoder_forward.2} parent=11 // pred_check_branch
        %642 = sbr.rel (%p640) target = $region76
      $region75: #{decoder_forward.2} parent=11 // pred_region
        _
      $region76: #{decoder_forward.2} parent=11 // pred_fallthru
        _
      // Predicated region
      $region77: #{decoder_forward.2} parent=11 // pred_check
        %p643 = pneg %p491
      $region78: #{decoder_forward.2} parent=11 // pred_check_branch
        %645 = sbr.rel (%p643) target = $region80
      $region79: #{decoder_forward.2} parent=11 // pred_region
        _
      $region80: #{decoder_forward.2} parent=11 // pred_fallthru
        _
      // Predicated region
      $region81: #{decoder_forward.2} parent=11 // pred_check
        %p646 = pneg %p512
      $region82: #{decoder_forward.2} parent=11 // pred_check_branch
        %648 = sbr.rel (%p646) target = $region84
      $region83: #{decoder_forward.2} parent=11 // pred_region
        _
      $region84: #{decoder_forward.2} parent=11 // pred_fallthru
        _
      // Predicated region
      $region85: #{decoder_forward.2} parent=11 // pred_check
        %p649 = pneg %p533
      $region86: #{decoder_forward.2} parent=11 // pred_check_branch
        %651 = sbr.rel (%p649) target = $region88
      $region87: #{decoder_forward.2} parent=11 // pred_region
        _
      $region88: #{decoder_forward.2} parent=11 // pred_fallthru
        _
      // Predicated region
      $region89: #{decoder_forward.2} parent=11 // pred_check
        %p652 = pneg %p554
      $region90: #{decoder_forward.2} parent=11 // pred_check_branch
        %654 = sbr.rel (%p652) target = $region92
      $region91: #{decoder_forward.2} parent=11 // pred_region
        _
      $region92: #{decoder_forward.2} parent=11 // pred_fallthru
        _
    $region12: #{decoder_forward.2} parent=5 // pred_fallthru
      _
    %p655 = scmp.lt.s32.totalorder %s30, 2
    // Predicated region
    $region93: #{decoder_forward.2} parent=5 // pred_check
      %p656 = pneg %p655
    $region94: #{decoder_forward.2} parent=5 // pred_check_branch
      %658 = sbr.rel (%p656) target = $region96
    $region95: #{decoder_forward.2} parent=5 // pred_region
      // Predicated region
      $region97: #{decoder_forward.2} parent=95 // pred_check
        %p659 = pneg %p50
      $region98: #{decoder_forward.2} parent=95 // pred_check_branch
        %661 = sbr.rel (%p659) target = $region100
      $region99: #{decoder_forward.2} parent=95 // pred_region
        %p662 = scmp.lt.s32.totalorder %s30, 1
        %s663 = scalar_select %p662, %s30, 1
        %s664 = smul.addr %s663, 8
        %s665 = scalar_lea.vmem %s0, %s664
      $region100: #{decoder_forward.2} parent=95 // pred_fallthru
        _
      // Predicated region
      $region101: #{decoder_forward.2} parent=95 // pred_check
        %p666 = pneg %p76
      $region102: #{decoder_forward.2} parent=95 // pred_check_branch
        %668 = sbr.rel (%p666) target = $region104
      $region103: #{decoder_forward.2} parent=95 // pred_region
        %p669 = scmp.lt.s32.totalorder %s30, 1
        %s670 = scalar_select %p669, %s30, 1
        %s671 = smul.addr %s670, 8
        %s672 = scalar_lea.vmem %s1, %s671
      $region104: #{decoder_forward.2} parent=95 // pred_fallthru
        _
      // Predicated region
      $region105: #{decoder_forward.2} parent=95 // pred_check
        %p673 = pneg %p102
      $region106: #{decoder_forward.2} parent=95 // pred_check_branch
        %675 = sbr.rel (%p673) target = $region108
      $region107: #{decoder_forward.2} parent=95 // pred_region
        %p676 = scmp.lt.s32.totalorder %s30, 1
        %s677 = scalar_select %p676, %s30, 1
        %s678 = smul.addr %s677, 8
        %s679 = scalar_lea.vmem %s2, %s678
      $region108: #{decoder_forward.2} parent=95 // pred_fallthru
        _
      // Predicated region
      $region109: #{decoder_forward.2} parent=95 // pred_check
        %p680 = pneg %p128
      $region110: #{decoder_forward.2} parent=95 // pred_check_branch
        %682 = sbr.rel (%p680) target = $region112
      $region111: #{decoder_forward.2} parent=95 // pred_region
        %p683 = scmp.lt.s32.totalorder %s30, 1
        %s684 = scalar_select %p683, %s30, 1
        %s685 = smul.addr %s684, 8
        %s686 = scalar_lea.vmem %s3, %s685
      $region112: #{decoder_forward.2} parent=95 // pred_fallthru
        _
    $region96: #{decoder_forward.2} parent=5 // pred_fallthru
      _
    %p687 = scmp.le.s32.totalorder 1, %s30
    %p688 = scmp.lt.s32.totalorder %s30, 3
    %p689 = pnand %p687, %p688
    %p690 = pneg %p689
    // Predicated region
    $region113: #{decoder_forward.2} parent=5 // pred_check
      _
    $region114: #{decoder_forward.2} parent=5 // pred_check_branch
      %692 = sbr.rel (%p689) target = $region116
    $region115: #{decoder_forward.2} parent=5 // pred_region
      %s693 = ssub.s32 %s30, 1
      %p694 = scmp.lt.s32.totalorder %s35, 1
      %s695 = scalar_select %p694, %s35, 1
      %s696 = smul.addr %s695, 8
      %s697 = scalar_lea.vmem %s0, %s696
      %p698 = pneg %p56
      %p699 = pneg %p53
      %p700 = scmp.lt.s32.totalorder %s35, 1
      %s701 = scalar_select %p700, %s35, 1
      %s702 = smul.addr %s701, 8
      %s703 = scalar_lea.vmem %s1, %s702
      %p704 = pneg %p82
      %p705 = pneg %p79
      %p706 = scmp.lt.s32.totalorder %s35, 1
      %s707 = scalar_select %p706, %s35, 1
      %s708 = smul.addr %s707, 8
      %s709 = scalar_lea.vmem %s2, %s708
      %p710 = pneg %p108
      %p711 = pneg %p105
      %p712 = scmp.lt.s32.totalorder %s35, 1
      %s713 = scalar_select %p712, %s35, 1
      %s714 = smul.addr %s713, 8
      %s715 = scalar_lea.vmem %s3, %s714
      %p716 = pneg %p134
      %p717 = pneg %p131
      %p718 = pneg %p155
      %p719 = pneg %p152
      %p720 = pneg %p176
      %p721 = pneg %p173
      %p722 = pneg %p197
      %p723 = pneg %p194
      %p724 = pneg %p218
      %p725 = pneg %p215
      %p726 = pneg %p239
      %p727 = pneg %p236
      %p728 = pneg %p260
      %p729 = pneg %p257
      %p730 = pneg %p281
      %p731 = pneg %p278
      %p732 = pneg %p302
      %p733 = pneg %p299
      %p734 = pneg %p323
      %p735 = pneg %p320
      %p736 = pneg %p344
      %p737 = pneg %p341
      %p738 = pneg %p365
      %p739 = pneg %p362
      %p740 = pneg %p386
      %p741 = pneg %p383
      %p742 = pneg %p407
      %p743 = pneg %p404
      %p744 = pneg %p428
      %p745 = pneg %p425
      %p746 = pneg %p449
      %p747 = pneg %p446
      %p748 = pneg %p470
      %p749 = pneg %p467
      %p750 = pneg %p491
      %p751 = pneg %p488
      %p752 = pneg %p512
      %p753 = pneg %p509
      %p754 = pneg %p533
      %p755 = pneg %p530
      %p756 = pneg %p554
      %p757 = pneg %p551
      %p758 = pneg %p580
      %p759 = pneg %p577
      %p760 = scmp.lt.s32.totalorder %s35, 1
      %s761 = scalar_select %p760, %s35, 1
      %s762 = smul.addr %s761, 8
      %s763 = scalar_lea.vmem %s24, %s762
      %p764 = scmp.lt.s32.totalorder %s35, 1
      %s765 = scalar_select %p764, %s35, 1
      %s766 = smul.addr %s765, 8
      %s767 = scalar_lea.vmem %s0, %s766
      %p768 = scmp.lt.s32.totalorder %s35, 1
      %s769 = scalar_select %p768, %s35, 1
      %s770 = smul.addr %s769, 8
      %s771 = scalar_lea.vmem %s1, %s770
      %p772 = scmp.lt.s32.totalorder %s35, 1
      %s773 = scalar_select %p772, %s35, 1
      %s774 = smul.addr %s773, 8
      %s775 = scalar_lea.vmem %s2, %s774
      %p776 = scmp.lt.s32.totalorder %s35, 1
      %s777 = scalar_select %p776, %s35, 1
      %s778 = smul.addr %s777, 8
      %s779 = scalar_lea.vmem %s3, %s778
      %p780 = scmp.lt.s32.totalorder %s35, 1
      %s781 = scalar_select %p780, %s35, 1
      %s782 = smul.addr %s781, 8
      %s783 = scalar_lea.vmem %s24, %s782
      %v784 = vld [vmem:[%s767] sm:$0xff]
      %v785 = vld [vmem:[%s771] sm:$0xff]
      %v786 = vld [vmem:[%s4] sm:$0xff]
      %v787 = vld [vmem:[%s4 + $0x8] sm:$0xff]
      %v788 = vld [vmem:[%s4 + $0x10] sm:$0xff]
      %v789 = vld [vmem:[%s4 + $0x18] sm:$0xff]
      %v790 = vld [vmem:[%s5] sm:$0x1]
      %v792 = vlaneseq
      %v793 = vshrl.u32 %v792, 7
      %v794 = vsub.s32 0, %v793
      %v795 = vrot.slane %v790, %v794
      %vm797 = vcmask 261120
      %v799 = vsel %vm797, %v784, 0
      %801 = vmatprep.subr.mxu0 0.0
      %802 = vmatpush1.msra.mxu0 %v786
      %803 = vmatprep.subr.mxu0 0.0
      %804 = vmatpush1.msra.mxu0 %v787
      %805 = vmatprep.subr.mxu0 0.0
      %806 = vmatpush1.msra.mxu0 %v788
      %807 = vmatprep.subr.mxu0 0.0
      %808 = vmatpush1.msra.mxu0 %v789
      %809 = vmatprep.subr.mxu0 0.0
      %810 = vmatpush1.msra.mxu0 0.0
      %811 = vmatprep.subr.mxu0 0.0
      %812 = vmatpush1.msra.mxu0 0.0
      %813 = vmatprep.subr.mxu0 0.0
      %814 = vmatpush1.msra.mxu0 0.0
      %815 = vmatprep.subr.mxu0 0.0
      %816 = vmatpush1.msra.mxu0 0.0
      %817 = vmatprep.subr.mxu0 0.0
      %818 = vmatpush1.msra.mxu0 0.0
      %819 = vmatprep.subr.mxu0 0.0
      %820 = vmatpush1.msra.mxu0 0.0
      %821 = vmatprep.subr.mxu0 0.0
      %822 = vmatpush1.msra.mxu0 0.0
      %823 = vmatprep.subr.mxu0 0.0
      %824 = vmatpush1.msra.mxu0 0.0
      %825 = vmatprep.subr.mxu0 0.0
      %826 = vmatpush1.msra.mxu0 0.0
      %827 = vmatprep.subr.mxu0 0.0
      %828 = vmatpush1.msra.mxu0 0.0
      %829 = vmatprep.subr.mxu0 0.0
      %830 = vmatpush1.msra.mxu0 0.0
      %831 = vmatprep.subr.mxu0 0.0
      %832 = vmatpush1.msra.mxu0 0.0
      %833 = vmatprep.subr.mxu0 0.0
      %834 = vmatpush1.msra.mxu0 0.0
      %835 = vmatprep.subr.mxu0 0.0
      %836 = vmatpush1.msra.mxu0 0.0
      %837 = vmatprep.subr.mxu0 0.0
      %838 = vmatpush1.msra.mxu0 0.0
      %839 = vmatprep.subr.mxu0 0.0
      %840 = vmatpush1.msra.mxu0 0.0
      %841 = vmatprep.subr.mxu0 0.0
      %842 = vmatpush1.msra.mxu0 0.0
      %843 = vmatprep.subr.mxu0 0.0
      %844 = vmatpush1.msra.mxu0 0.0
      %845 = vmatprep.subr.mxu0 0.0
      %846 = vmatpush1.msra.mxu0 0.0
      %847 = vmatprep.subr.mxu0 0.0
      %848 = vmatpush1.msra.mxu0 0.0
      %849 = vmatprep.subr.mxu0 0.0
      %850 = vmatpush1.msra.mxu0 0.0
      %851 = vmatprep.subr.mxu0 0.0
      %852 = vmatpush1.msra.mxu0 0.0
      %853 = vmatprep.subr.mxu0 0.0
      %854 = vmatpush1.msra.mxu0 0.0
      %855 = vmatprep.subr.mxu0 0.0
      %856 = vmatpush1.msra.mxu0 0.0
      %857 = vmatprep.subr.mxu0 0.0
      %858 = vmatpush1.msra.mxu0 0.0
      %859 = vmatprep.subr.mxu0 0.0
      %860 = vmatpush1.msra.mxu0 0.0
      %861 = vmatprep.subr.mxu0 0.0
      %862 = vmatpush1.msra.mxu0 0.0
      %863 = vmatprep.subr.mxu0 0.0
      %864 = vmatpush1.msra.mxu0 0.0
      %865 = vmatprep.mubr.f32.mxu0 0.0
      %866 = vmatmul.mubr.f32.gmra.mrb[0].mxu0 %v799
      %v867 = vpop.f32.mrb[0].mxu0
      %v868 = vadd.f32 %v795, %v867
      %v869 = vpop.f32.mrb[0].mxu0
      %870 = vdwg.mxu0
      %v871 = vld [vmem:[%s775] sm:$0xff]
      %v872 = vld [vmem:[%s6] sm:$0xff]
      %v873 = vld [vmem:[%s6 + $0x8] sm:$0xff]
      %v874 = vld [vmem:[%s6 + $0x10] sm:$0xff]
      %v875 = vld [vmem:[%s6 + $0x18] sm:$0xff]
      %v876 = vld [vmem:[%s7] sm:$0x1]
      %v877 = vmul.f32 %v868, 0.35355338
      %879 = vrot.lane.b32.xlu0 %v868, 96
      %v880 = vpop.permute.xlu0 %879
      %vm881 = vcmask 64512
      %v883 = vsel %vm881, %v877, 0
      %v885 = vsel %vm881, %v880, 0
      %887 = vmatprep.subr.mxu0 0.0
      %888 = vmatpush1.xpose.msra.mxu0 %v885
      %889 = vmatprep.subr.mxu0 0.0
      %890 = vmatpush1.xpose.msra.mxu0 0.0
      %891 = vmatprep.subr.mxu0 0.0
      %892 = vmatpush1.xpose.msra.mxu0 0.0
      %893 = vmatprep.subr.mxu0 0.0
      %894 = vmatpush1.xpose.msra.mxu0 0.0
      %895 = vmatprep.subr.mxu0 0.0
      %896 = vmatpush1.xpose.msra.mxu0 0.0
      %897 = vmatprep.subr.mxu0 0.0
      %898 = vmatpush1.xpose.msra.mxu0 0.0
      %899 = vmatprep.subr.mxu0 0.0
      %900 = vmatpush1.xpose.msra.mxu0 0.0
      %901 = vmatprep.subr.mxu0 0.0
      %902 = vmatpush1.xpose.msra.mxu0 0.0
      %903 = vmatprep.subr.mxu0 0.0
      %904 = vmatpush1.xpose.msra.mxu0 0.0
      %905 = vmatprep.subr.mxu0 0.0
      %906 = vmatpush1.xpose.msra.mxu0 0.0
      %907 = vmatprep.subr.mxu0 0.0
      %908 = vmatpush1.xpose.msra.mxu0 0.0
      %909 = vmatprep.subr.mxu0 0.0
      %910 = vmatpush1.xpose.msra.mxu0 0.0
      %911 = vmatprep.subr.mxu0 0.0
      %912 = vmatpush1.xpose.msra.mxu0 0.0
      %913 = vmatprep.subr.mxu0 0.0
      %914 = vmatpush1.xpose.msra.mxu0 0.0
      %915 = vmatprep.subr.mxu0 0.0
      %916 = vmatpush1.xpose.msra.mxu0 0.0
      %917 = vmatprep.subr.mxu0 0.0
      %918 = vmatpush1.xpose.msra.mxu0 0.0
      %919 = vmatprep.subr.mxu0 0.0
      %920 = vmatpush1.xpose.msra.mxu0 0.0
      %921 = vmatprep.subr.mxu0 0.0
      %922 = vmatpush1.xpose.msra.mxu0 0.0
      %923 = vmatprep.subr.mxu0 0.0
      %924 = vmatpush1.xpose.msra.mxu0 0.0
      %925 = vmatprep.subr.mxu0 0.0
      %926 = vmatpush1.xpose.msra.mxu0 0.0
      %927 = vmatprep.subr.mxu0 0.0
      %928 = vmatpush1.xpose.msra.mxu0 0.0
      %929 = vmatprep.subr.mxu0 0.0
      %930 = vmatpush1.xpose.msra.mxu0 0.0
      %931 = vmatprep.subr.mxu0 0.0
      %932 = vmatpush1.xpose.msra.mxu0 0.0
      %933 = vmatprep.subr.mxu0 0.0
      %934 = vmatpush1.xpose.msra.mxu0 0.0
      %935 = vmatprep.subr.mxu0 0.0
      %936 = vmatpush1.xpose.msra.mxu0 0.0
      %937 = vmatprep.subr.mxu0 0.0
      %938 = vmatpush1.xpose.msra.mxu0 0.0
      %939 = vmatprep.subr.mxu0 0.0
      %940 = vmatpush1.xpose.msra.mxu0 0.0
      %941 = vmatprep.subr.mxu0 0.0
      %942 = vmatpush1.xpose.msra.mxu0 0.0
      %943 = vmatprep.subr.mxu0 0.0
      %944 = vmatpush1.xpose.msra.mxu0 0.0
      %945 = vmatprep.subr.mxu0 0.0
      %946 = vmatpush1.xpose.msra.mxu0 0.0
      %947 = vmatprep.subr.mxu0 0.0
      %948 = vmatpush1.xpose.msra.mxu0 0.0
      %949 = vmatprep.subr.mxu0 0.0
      %950 = vmatpush1.xpose.msra.mxu0 0.0
      %951 = vmatprep.mubr.f32.mxu0 0.0
      %952 = vmatmul.mubr.f32.gmra.mrb[0].mxu0 %v883
      %v953 = vpop.f32.mrb[0].mxu0
      %v954 = vadd.f32 %v871, %v953
      %v955 = vpop.f32.mrb[0].mxu0
      %956 = vdwg.mxu0
      %v957 = vsel %vm881, %v954, -inf
      %958 = vmax.xlane.f32.xlu0 %v957
      %v959 = vpop.xlane.xlu0 %958
      %v960 = vsub.f32 %v954, %v959
      %v961 = vmul.f32 %v960, 1.442695
      %v962 = vpow.pop %v961
      %v963 = vsel %vm881, %v962, 0.0
      %964 = vadd.xlane.f32.xlu0 %v963
      %v965 = vpop.xlane.xlu0 %964
      %v966 = vrcp.pop %v965
      %v967 = vmul.f32 %v962, %v966
      %968 = vrot.lane.b32.xlu0 %v868, 64
      %v969 = vpop.permute.xlu0 %968
      %v972 = vsel %vm881, %v967, 0
      %974 = vmatprep.subr.mxu0 0.0
      %975 = vmatpush1.msra.mxu0 %v969
      %976 = vmatprep.subr.mxu0 0.0
      %977 = vmatpush1.msra.mxu0 0.0
      %978 = vmatprep.subr.mxu0 0.0
      %979 = vmatpush1.msra.mxu0 0.0
      %980 = vmatprep.subr.mxu0 0.0
      %981 = vmatpush1.msra.mxu0 0.0
      %982 = vmatprep.subr.mxu0 0.0
      %983 = vmatpush1.msra.mxu0 0.0
      %984 = vmatprep.subr.mxu0 0.0
      %985 = vmatpush1.msra.mxu0 0.0
      %986 = vmatprep.subr.mxu0 0.0
      %987 = vmatpush1.msra.mxu0 0.0
      %988 = vmatprep.subr.mxu0 0.0
      %989 = vmatpush1.msra.mxu0 0.0
      %990 = vmatprep.subr.mxu0 0.0
      %991 = vmatpush1.msra.mxu0 0.0
      %992 = vmatprep.subr.mxu0 0.0
      %993 = vmatpush1.msra.mxu0 0.0
      %994 = vmatprep.subr.mxu0 0.0
      %995 = vmatpush1.msra.mxu0 0.0
      %996 = vmatprep.subr.mxu0 0.0
      %997 = vmatpush1.msra.mxu0 0.0
      %998 = vmatprep.subr.mxu0 0.0
      %999 = vmatpush1.msra.mxu0 0.0
      %1000 = vmatprep.subr.mxu0 0.0
      %1001 = vmatpush1.msra.mxu0 0.0
      %1002 = vmatprep.subr.mxu0 0.0
      %1003 = vmatpush1.msra.mxu0 0.0
      %1004 = vmatprep.subr.mxu0 0.0
      %1005 = vmatpush1.msra.mxu0 0.0
      %1006 = vmatprep.subr.mxu0 0.0
      %1007 = vmatpush1.msra.mxu0 0.0
      %1008 = vmatprep.subr.mxu0 0.0
      %1009 = vmatpush1.msra.mxu0 0.0
      %1010 = vmatprep.subr.mxu0 0.0
      %1011 = vmatpush1.msra.mxu0 0.0
      %1012 = vmatprep.subr.mxu0 0.0
      %1013 = vmatpush1.msra.mxu0 0.0
      %1014 = vmatprep.subr.mxu0 0.0
      %1015 = vmatpush1.msra.mxu0 0.0
      %1016 = vmatprep.subr.mxu0 0.0
      %1017 = vmatpush1.msra.mxu0 0.0
      %1018 = vmatprep.subr.mxu0 0.0
      %1019 = vmatpush1.msra.mxu0 0.0
      %1020 = vmatprep.subr.mxu0 0.0
      %1021 = vmatpush1.msra.mxu0 0.0
      %1022 = vmatprep.subr.mxu0 0.0
      %1023 = vmatpush1.msra.mxu0 0.0
      %1024 = vmatprep.subr.mxu0 0.0
      %1025 = vmatpush1.msra.mxu0 0.0
      %1026 = vmatprep.subr.mxu0 0.0
      %1027 = vmatpush1.msra.mxu0 0.0
      %1028 = vmatprep.subr.mxu0 0.0
      %1029 = vmatpush1.msra.mxu0 0.0
      %1030 = vmatprep.subr.mxu0 0.0
      %1031 = vmatpush1.msra.mxu0 0.0
      %1032 = vmatprep.subr.mxu0 0.0
      %1033 = vmatpush1.msra.mxu0 0.0
      %1034 = vmatprep.subr.mxu0 0.0
      %1035 = vmatpush1.msra.mxu0 0.0
      %1036 = vmatprep.subr.mxu0 0.0
      %1037 = vmatpush1.msra.mxu0 0.0
      %1038 = vmatprep.mubr.f32.mxu0 0.0
      %1039 = vmatmul.mubr.f32.gmra.mrb[0].mxu0 %v972
      %v1040 = vpop.f32.mrb[0].mxu0
      %v1041 = vadd.f32 0.0, %v1040
      %v1042 = vpop.f32.mrb[0].mxu0
      %1043 = vdwg.mxu0
      %v1045 = vsel %vm881, %v1041, 0
      %1047 = vmatprep.subr.mxu0 0.0
      %1048 = vmatpush1.msra.mxu0 %v872
      %1049 = vmatprep.subr.mxu0 0.0
      %1050 = vmatpush1.msra.mxu0 0.0
      %1051 = vmatprep.subr.mxu0 0.0
      %1052 = vmatpush1.msra.mxu0 0.0
      %1053 = vmatprep.subr.mxu0 0.0
      %1054 = vmatpush1.msra.mxu0 0.0
      %1055 = vmatprep.subr.mxu0 0.0
      %1056 = vmatpush1.msra.mxu0 0.0
      %1057 = vmatprep.subr.mxu0 0.0
      %1058 = vmatpush1.msra.mxu0 0.0
      %1059 = vmatprep.subr.mxu0 0.0
      %1060 = vmatpush1.msra.mxu0 0.0
      %1061 = vmatprep.subr.mxu0 0.0
      %1062 = vmatpush1.msra.mxu0 0.0
      %1063 = vmatprep.subr.mxu0 0.0
      %1064 = vmatpush1.msra.mxu0 0.0
      %1065 = vmatprep.subr.mxu0 0.0
      %1066 = vmatpush1.msra.mxu0 0.0
      %1067 = vmatprep.subr.mxu0 0.0
      %1068 = vmatpush1.msra.mxu0 0.0
      %1069 = vmatprep.subr.mxu0 0.0
      %1070 = vmatpush1.msra.mxu0 0.0
      %1071 = vmatprep.subr.mxu0 0.0
      %1072 = vmatpush1.msra.mxu0 0.0
      %1073 = vmatprep.subr.mxu0 0.0
      %1074 = vmatpush1.msra.mxu0 0.0
      %1075 = vmatprep.subr.mxu0 0.0
      %1076 = vmatpush1.msra.mxu0 0.0
      %1077 = vmatprep.subr.mxu0 0.0
      %1078 = vmatpush1.msra.mxu0 0.0
      %1079 = vmatprep.subr.mxu0 0.0
      %1080 = vmatpush1.msra.mxu0 0.0
      %1081 = vmatprep.subr.mxu0 0.0
      %1082 = vmatpush1.msra.mxu0 0.0
      %1083 = vmatprep.subr.mxu0 0.0
      %1084 = vmatpush1.msra.mxu0 0.0
      %1085 = vmatprep.subr.mxu0 0.0
      %1086 = vmatpush1.msra.mxu0 0.0
      %1087 = vmatprep.subr.mxu0 0.0
      %1088 = vmatpush1.msra.mxu0 0.0
      %1089 = vmatprep.subr.mxu0 0.0
      %1090 = vmatpush1.msra.mxu0 0.0
      %1091 = vmatprep.subr.mxu0 0.0
      %1092 = vmatpush1.msra.mxu0 0.0
      %1093 = vmatprep.subr.mxu0 0.0
      %1094 = vmatpush1.msra.mxu0 0.0
      %1095 = vmatprep.subr.mxu0 0.0
      %1096 = vmatpush1.msra.mxu0 0.0
      %1097 = vmatprep.subr.mxu0 0.0
      %1098 = vmatpush1.msra.mxu0 0.0
      %1099 = vmatprep.subr.mxu0 0.0
      %1100 = vmatpush1.msra.mxu0 0.0
      %1101 = vmatprep.subr.mxu0 0.0
      %1102 = vmatpush1.msra.mxu0 0.0
      %1103 = vmatprep.subr.mxu0 0.0
      %1104 = vmatpush1.msra.mxu0 0.0
      %1105 = vmatprep.subr.mxu0 0.0
      %1106 = vmatpush1.msra.mxu0 0.0
      %1107 = vmatprep.subr.mxu0 0.0
      %1108 = vmatpush1.msra.mxu0 0.0
      %1109 = vmatprep.subr.mxu0 0.0
      %1110 = vmatpush1.msra.mxu0 0.0
      %1111 = vmatprep.mubr.f32.mxu0 0.0
      %1112 = vmatmul.mubr.f32.gmra.mrb[0].mxu0 %v1045
      %v1113 = vpop.f32.mrb[0].mxu0
      %v1114 = vadd.f32 0.0, %v1113
      %v1115 = vpop.f32.mrb[0].mxu0
      %1116 = vdwg.mxu0
      %v1118 = vlaneseq
      %v1119 = vshrl.u32 %v1118, 7
      %v1120 = vsub.s32 0, %v1119
      %v1121 = vrot.slane %v876, %v1120
      %v1123 = vadd.f32 %v1121, %v1114
      %1124 = vrot.lane.b32.xlu0 %v877, 120
      %v1125 = vpop.permute.xlu0 %1124
      %1126 = vrot.lane.b32.xlu0 %v868, 88
      %v1127 = vpop.permute.xlu0 %1126
      %v1128 = vsel %vm881, %v1125, 0
      %v1130 = vsel %vm881, %v1127, 0
      %1132 = vmatprep.subr.mxu0 0.0
      %1133 = vmatpush1.xpose.msra.mxu0 %v1130
      %1134 = vmatprep.subr.mxu0 0.0
      %1135 = vmatpush1.xpose.msra.mxu0 0.0
      %1136 = vmatprep.subr.mxu0 0.0
      %1137 = vmatpush1.xpose.msra.mxu0 0.0
      %1138 = vmatprep.subr.mxu0 0.0
      %1139 = vmatpush1.xpose.msra.mxu0 0.0
      %1140 = vmatprep.subr.mxu0 0.0
      %1141 = vmatpush1.xpose.msra.mxu0 0.0
      %1142 = vmatprep.subr.mxu0 0.0
      %1143 = vmatpush1.xpose.msra.mxu0 0.0
      %1144 = vmatprep.subr.mxu0 0.0
      %1145 = vmatpush1.xpose.msra.mxu0 0.0
      %1146 = vmatprep.subr.mxu0 0.0
      %1147 = vmatpush1.xpose.msra.mxu0 0.0
      %1148 = vmatprep.subr.mxu0 0.0
      %1149 = vmatpush1.xpose.msra.mxu0 0.0
      %1150 = vmatprep.subr.mxu0 0.0
      %1151 = vmatpush1.xpose.msra.mxu0 0.0
      %1152 = vmatprep.subr.mxu0 0.0
      %1153 = vmatpush1.xpose.msra.mxu0 0.0
      %1154 = vmatprep.subr.mxu0 0.0
      %1155 = vmatpush1.xpose.msra.mxu0 0.0
      %1156 = vmatprep.subr.mxu0 0.0
      %1157 = vmatpush1.xpose.msra.mxu0 0.0
      %1158 = vmatprep.subr.mxu0 0.0
      %1159 = vmatpush1.xpose.msra.mxu0 0.0
      %1160 = vmatprep.subr.mxu0 0.0
      %1161 = vmatpush1.xpose.msra.mxu0 0.0
      %1162 = vmatprep.subr.mxu0 0.0
      %1163 = vmatpush1.xpose.msra.mxu0 0.0
      %1164 = vmatprep.subr.mxu0 0.0
      %1165 = vmatpush1.xpose.msra.mxu0 0.0
      %1166 = vmatprep.subr.mxu0 0.0
      %1167 = vmatpush1.xpose.msra.mxu0 0.0
      %1168 = vmatprep.subr.mxu0 0.0
      %1169 = vmatpush1.xpose.msra.mxu0 0.0
      %1170 = vmatprep.subr.mxu0 0.0
      %1171 = vmatpush1.xpose.msra.mxu0 0.0
      %1172 = vmatprep.subr.mxu0 0.0
      %1173 = vmatpush1.xpose.msra.mxu0 0.0
      %1174 = vmatprep.subr.mxu0 0.0
      %1175 = vmatpush1.xpose.msra.mxu0 0.0
      %1176 = vmatprep.subr.mxu0 0.0
      %1177 = vmatpush1.xpose.msra.mxu0 0.0
      %1178 = vmatprep.subr.mxu0 0.0
      %1179 = vmatpush1.xpose.msra.mxu0 0.0
      %1180 = vmatprep.subr.mxu0 0.0
      %1181 = vmatpush1.xpose.msra.mxu0 0.0
      %1182 = vmatprep.subr.mxu0 0.0
      %1183 = vmatpush1.xpose.msra.mxu0 0.0
      %1184 = vmatprep.subr.mxu0 0.0
      %1185 = vmatpush1.xpose.msra.mxu0 0.0
      %1186 = vmatprep.subr.mxu0 0.0
      %1187 = vmatpush1.xpose.msra.mxu0 0.0
      %1188 = vmatprep.subr.mxu0 0.0
      %1189 = vmatpush1.xpose.msra.mxu0 0.0
      %1190 = vmatprep.subr.mxu0 0.0
      %1191 = vmatpush1.xpose.msra.mxu0 0.0
      %1192 = vmatprep.subr.mxu0 0.0
      %1193 = vmatpush1.xpose.msra.mxu0 0.0
      %1194 = vmatprep.subr.mxu0 0.0
      %1195 = vmatpush1.xpose.msra.mxu0 0.0
      %1196 = vmatprep.mubr.f32.mxu0 0.0
      %1197 = vmatmul.mubr.f32.gmra.mrb[0].mxu0 %v1128
      %v1198 = vpop.f32.mrb[0].mxu0
      %v1199 = vadd.f32 %v871, %v1198
      %v1200 = vpop.f32.mrb[0].mxu0
      %1201 = vdwg.mxu0
      %v1202 = vsel %vm881, %v1199, -inf
      %1203 = vmax.xlane.f32.xlu0 %v1202
      %v1204 = vpop.xlane.xlu0 %1203
      %v1205 = vsub.f32 %v1199, %v1204
      %v1206 = vmul.f32 %v1205, 1.442695
      %v1207 = vpow.pop %v1206
      %v1208 = vsel %vm881, %v1207, 0.0
      %1209 = vadd.xlane.f32.xlu0 %v1208
      %v1210 = vpop.xlane.xlu0 %1209
      %v1211 = vrcp.pop %v1210
      %v1212 = vmul.f32 %v1207, %v1211
      %1213 = vrot.lane.b32.xlu0 %v868, 56
      %v1214 = vpop.permute.xlu0 %1213
      %v1217 = vsel %vm881, %v1212, 0
      %1219 = vmatprep.subr.mxu0 0.0
      %1220 = vmatpush1.msra.mxu0 %v1214
      %1221 = vmatprep.subr.mxu0 0.0
      %1222 = vmatpush1.msra.mxu0 0.0
      %1223 = vmatprep.subr.mxu0 0.0
      %1224 = vmatpush1.msra.mxu0 0.0
      %1225 = vmatprep.subr.mxu0 0.0
      %1226 = vmatpush1.msra.mxu0 0.0
      %1227 = vmatprep.subr.mxu0 0.0
      %1228 = vmatpush1.msra.mxu0 0.0
      %1229 = vmatprep.subr.mxu0 0.0
      %1230 = vmatpush1.msra.mxu0 0.0
      %1231 = vmatprep.subr.mxu0 0.0
      %1232 = vmatpush1.msra.mxu0 0.0
      %1233 = vmatprep.subr.mxu0 0.0
      %1234 = vmatpush1.msra.mxu0 0.0
      %1235 = vmatprep.subr.mxu0 0.0
      %1236 = vmatpush1.msra.mxu0 0.0
      %1237 = vmatprep.subr.mxu0 0.0
      %1238 = vmatpush1.msra.mxu0 0.0
      %1239 = vmatprep.subr.mxu0 0.0
      %1240 = vmatpush1.msra.mxu0 0.0
      %1241 = vmatprep.subr.mxu0 0.0
      %1242 = vmatpush1.msra.mxu0 0.0
      %1243 = vmatprep.subr.mxu0 0.0
      %1244 = vmatpush1.msra.mxu0 0.0
      %1245 = vmatprep.subr.mxu0 0.0
      %1246 = vmatpush1.msra.mxu0 0.0
      %1247 = vmatprep.subr.mxu0 0.0
      %1248 = vmatpush1.msra.mxu0 0.0
      %1249 = vmatprep.subr.mxu0 0.0
      %1250 = vmatpush1.msra.mxu0 0.0
      %1251 = vmatprep.subr.mxu0 0.0
      %1252 = vmatpush1.msra.mxu0 0.0
      %1253 = vmatprep.subr.mxu0 0.0
      %1254 = vmatpush1.msra.mxu0 0.0
      %1255 = vmatprep.subr.mxu0 0.0
      %1256 = vmatpush1.msra.mxu0 0.0
      %1257 = vmatprep.subr.mxu0 0.0
      %1258 = vmatpush1.msra.mxu0 0.0
      %1259 = vmatprep.subr.mxu0 0.0
      %1260 = vmatpush1.msra.mxu0 0.0
      %1261 = vmatprep.subr.mxu0 0.0
      %1262 = vmatpush1.msra.mxu0 0.0
      %1263 = vmatprep.subr.mxu0 0.0
      %1264 = vmatpush1.msra.mxu0 0.0
      %1265 = vmatprep.subr.mxu0 0.0
      %1266 = vmatpush1.msra.mxu0 0.0
      %1267 = vmatprep.subr.mxu0 0.0
      %1268 = vmatpush1.msra.mxu0 0.0
      %1269 = vmatprep.subr.mxu0 0.0
      %1270 = vmatpush1.msra.mxu0 0.0
      %1271 = vmatprep.subr.mxu0 0.0
      %1272 = vmatpush1.msra.mxu0 0.0
      %1273 = vmatprep.subr.mxu0 0.0
      %1274 = vmatpush1.msra.mxu0 0.0
      %1275 = vmatprep.subr.mxu0 0.0
      %1276 = vmatpush1.msra.mxu0 0.0
      %1277 = vmatprep.subr.mxu0 0.0
      %1278 = vmatpush1.msra.mxu0 0.0
      %1279 = vmatprep.subr.mxu0 0.0
      %1280 = vmatpush1.msra.mxu0 0.0
      %1281 = vmatprep.subr.mxu0 0.0
      %1282 = vmatpush1.msra.mxu0 0.0
      %1283 = vmatprep.mubr.f32.mxu0 0.0
      %1284 = vmatmul.mubr.f32.gmra.mrb[0].mxu0 %v1217
      %v1285 = vpop.f32.mrb[0].mxu0
      %v1286 = vadd.f32 0.0, %v1285
      %v1287 = vpop.f32.mrb[0].mxu0
      %1288 = vdwg.mxu0
      %v1290 = vsel %vm881, %v1286, 0
      %1292 = vmatprep.subr.mxu0 0.0
      %1293 = vmatpush1.msra.mxu0 %v873
      %1294 = vmatprep.subr.mxu0 0.0
      %1295 = vmatpush1.msra.mxu0 0.0
      %1296 = vmatprep.subr.mxu0 0.0
      %1297 = vmatpush1.msra.mxu0 0.0
      %1298 = vmatprep.subr.mxu0 0.0
      %1299 = vmatpush1.msra.mxu0 0.0
      %1300 = vmatprep.subr.mxu0 0.0
      %1301 = vmatpush1.msra.mxu0 0.0
      %1302 = vmatprep.subr.mxu0 0.0
      %1303 = vmatpush1.msra.mxu0 0.0
      %1304 = vmatprep.subr.mxu0 0.0
      %1305 = vmatpush1.msra.mxu0 0.0
      %1306 = vmatprep.subr.mxu0 0.0
      %1307 = vmatpush1.msra.mxu0 0.0
      %1308 = vmatprep.subr.mxu0 0.0
      %1309 = vmatpush1.msra.mxu0 0.0
      %1310 = vmatprep.subr.mxu0 0.0
      %1311 = vmatpush1.msra.mxu0 0.0
      %1312 = vmatprep.subr.mxu0 0.0
      %1313 = vmatpush1.msra.mxu0 0.0
      %1314 = vmatprep.subr.mxu0 0.0
      %1315 = vmatpush1.msra.mxu0 0.0
      %1316 = vmatprep.subr.mxu0 0.0
      %1317 = vmatpush1.msra.mxu0 0.0
      %1318 = vmatprep.subr.mxu0 0.0
      %1319 = vmatpush1.msra.mxu0 0.0
      %1320 = vmatprep.subr.mxu0 0.0
      %1321 = vmatpush1.msra.mxu0 0.0
      %1322 = vmatprep.subr.mxu0 0.0
      %1323 = vmatpush1.msra.mxu0 0.0
      %1324 = vmatprep.subr.mxu0 0.0
      %1325 = vmatpush1.msra.mxu0 0.0
      %1326 = vmatprep.subr.mxu0 0.0
      %1327 = vmatpush1.msra.mxu0 0.0
      %1328 = vmatprep.subr.mxu0 0.0
      %1329 = vmatpush1.msra.mxu0 0.0
      %1330 = vmatprep.subr.mxu0 0.0
      %1331 = vmatpush1.msra.mxu0 0.0
      %1332 = vmatprep.subr.mxu0 0.0
      %1333 = vmatpush1.msra.mxu0 0.0
      %1334 = vmatprep.subr.mxu0 0.0
      %1335 = vmatpush1.msra.mxu0 0.0
      %1336 = vmatprep.subr.mxu0 0.0
      %1337 = vmatpush1.msra.mxu0 0.0
      %1338 = vmatprep.subr.mxu0 0.0
      %1339 = vmatpush1.msra.mxu0 0.0
      %1340 = vmatprep.subr.mxu0 0.0
      %1341 = vmatpush1.msra.mxu0 0.0
      %1342 = vmatprep.subr.mxu0 0.0
      %1343 = vmatpush1.msra.mxu0 0.0
      %1344 = vmatprep.subr.mxu0 0.0
      %1345 = vmatpush1.msra.mxu0 0.0
      %1346 = vmatprep.subr.mxu0 0.0
      %1347 = vmatpush1.msra.mxu0 0.0
      %1348 = vmatprep.subr.mxu0 0.0
      %1349 = vmatpush1.msra.mxu0 0.0
      %1350 = vmatprep.subr.mxu0 0.0
      %1351 = vmatpush1.msra.mxu0 0.0
      %1352 = vmatprep.subr.mxu0 0.0
      %1353 = vmatpush1.msra.mxu0 0.0
      %1354 = vmatprep.subr.mxu0 0.0
      %1355 = vmatpush1.msra.mxu0 0.0
      %1356 = vmatprep.mubr.f32.mxu0 0.0
      %1357 = vmatmul.mubr.f32.gmra.mrb[0].mxu0 %v1290
      %v1358 = vpop.f32.mrb[0].mxu0
      %v1359 = vadd.f32 0.0, %v1358
      %v1360 = vpop.f32.mrb[0].mxu0
      %1361 = vdwg.mxu0
      %v1362 = vadd.f32 %v1123, %v1359
      %1363 = vrot.lane.b32.xlu0 %v877, 112
      %v1364 = vpop.permute.xlu0 %1363
      %1365 = vrot.lane.b32.xlu0 %v868, 80
      %v1366 = vpop.permute.xlu0 %1365
      %v1367 = vsel %vm881, %v1364, 0
      %v1369 = vsel %vm881, %v1366, 0
      %1371 = vmatprep.subr.mxu0 0.0
      %1372 = vmatpush1.xpose.msra.mxu0 %v1369
      %1373 = vmatprep.subr.mxu0 0.0
      %1374 = vmatpush1.xpose.msra.mxu0 0.0
      %1375 = vmatprep.subr.mxu0 0.0
      %1376 = vmatpush1.xpose.msra.mxu0 0.0
      %1377 = vmatprep.subr.mxu0 0.0
      %1378 = vmatpush1.xpose.msra.mxu0 0.0
      %1379 = vmatprep.subr.mxu0 0.0
      %1380 = vmatpush1.xpose.msra.mxu0 0.0
      %1381 = vmatprep.subr.mxu0 0.0
      %1382 = vmatpush1.xpose.msra.mxu0 0.0
      %1383 = vmatprep.subr.mxu0 0.0
      %1384 = vmatpush1.xpose.msra.mxu0 0.0
      %1385 = vmatprep.subr.mxu0 0.0
      %1386 = vmatpush1.xpose.msra.mxu0 0.0
      %1387 = vmatprep.subr.mxu0 0.0
      %1388 = vmatpush1.xpose.msra.mxu0 0.0
      %1389 = vmatprep.subr.mxu0 0.0
      %1390 = vmatpush1.xpose.msra.mxu0 0.0
      %1391 = vmatprep.subr.mxu0 0.0
      %1392 = vmatpush1.xpose.msra.mxu0 0.0
      %1393 = vmatprep.subr.mxu0 0.0
      %1394 = vmatpush1.xpose.msra.mxu0 0.0
      %1395 = vmatprep.subr.mxu0 0.0
      %1396 = vmatpush1.xpose.msra.mxu0 0.0
      %1397 = vmatprep.subr.mxu0 0.0
      %1398 = vmatpush1.xpose.msra.mxu0 0.0
      %1399 = vmatprep.subr.mxu0 0.0
      %1400 = vmatpush1.xpose.msra.mxu0 0.0
      %1401 = vmatprep.subr.mxu0 0.0
      %1402 = vmatpush1.xpose.msra.mxu0 0.0
      %1403 = vmatprep.subr.mxu0 0.0
      %1404 = vmatpush1.xpose.msra.mxu0 0.0
      %1405 = vmatprep.subr.mxu0 0.0
      %1406 = vmatpush1.xpose.msra.mxu0 0.0
      %1407 = vmatprep.subr.mxu0 0.0
      %1408 = vmatpush1.xpose.msra.mxu0 0.0
      %1409 = vmatprep.subr.mxu0 0.0
      %1410 = vmatpush1.xpose.msra.mxu0 0.0
      %1411 = vmatprep.subr.mxu0 0.0
      %1412 = vmatpush1.xpose.msra.mxu0 0.0
      %1413 = vmatprep.subr.mxu0 0.0
      %1414 = vmatpush1.xpose.msra.mxu0 0.0
      %1415 = vmatprep.subr.mxu0 0.0
      %1416 = vmatpush1.xpose.msra.mxu0 0.0
      %1417 = vmatprep.subr.mxu0 0.0
      %1418 = vmatpush1.xpose.msra.mxu0 0.0
      %1419 = vmatprep.subr.mxu0 0.0
      %1420 = vmatpush1.xpose.msra.mxu0 0.0
      %1421 = vmatprep.subr.mxu0 0.0
      %1422 = vmatpush1.xpose.msra.mxu0 0.0
      %1423 = vmatprep.subr.mxu0 0.0
      %1424 = vmatpush1.xpose.msra.mxu0 0.0
      %1425 = vmatprep.subr.mxu0 0.0
      %1426 = vmatpush1.xpose.msra.mxu0 0.0
      %1427 = vmatprep.subr.mxu0 0.0
      %1428 = vmatpush1.xpose.msra.mxu0 0.0
      %1429 = vmatprep.subr.mxu0 0.0
      %1430 = vmatpush1.xpose.msra.mxu0 0.0
      %1431 = vmatprep.subr.mxu0 0.0
      %1432 = vmatpush1.xpose.msra.mxu0 0.0
      %1433 = vmatprep.subr.mxu0 0.0
      %1434 = vmatpush1.xpose.msra.mxu0 0.0
      %1435 = vmatprep.mubr.f32.mxu0 0.0
      %1436 = vmatmul.mubr.f32.gmra.mrb[0].mxu0 %v1367
      %v1437 = vpop.f32.mrb[0].mxu0
      %v1438 = vadd.f32 %v871, %v1437
      %v1439 = vpop.f32.mrb[0].mxu0
      %1440 = vdwg.mxu0
      %v1441 = vsel %vm881, %v1438, -inf
      %1442 = vmax.xlane.f32.xlu0 %v1441
      %v1443 = vpop.xlane.xlu0 %1442
      %v1444 = vsub.f32 %v1438, %v1443
      %v1445 = vmul.f32 %v1444, 1.442695
      %v1446 = vpow.pop %v1445
      %v1447 = vsel %vm881, %v1446, 0.0
      %1448 = vadd.xlane.f32.xlu0 %v1447
      %v1449 = vpop.xlane.xlu0 %1448
      %v1450 = vrcp.pop %v1449
      %v1451 = vmul.f32 %v1446, %v1450
      %1452 = vrot.lane.b32.xlu0 %v868, 48
      %v1453 = vpop.permute.xlu0 %1452
      %v1456 = vsel %vm881, %v1451, 0
      %1458 = vmatprep.subr.mxu0 0.0
      %1459 = vmatpush1.msra.mxu0 %v1453
      %1460 = vmatprep.subr.mxu0 0.0
      %1461 = vmatpush1.msra.mxu0 0.0
      %1462 = vmatprep.subr.mxu0 0.0
      %1463 = vmatpush1.msra.mxu0 0.0
      %1464 = vmatprep.subr.mxu0 0.0
      %1465 = vmatpush1.msra.mxu0 0.0
      %1466 = vmatprep.subr.mxu0 0.0
      %1467 = vmatpush1.msra.mxu0 0.0
      %1468 = vmatprep.subr.mxu0 0.0
      %1469 = vmatpush1.msra.mxu0 0.0
      %1470 = vmatprep.subr.mxu0 0.0
      %1471 = vmatpush1.msra.mxu0 0.0
      %1472 = vmatprep.subr.mxu0 0.0
      %1473 = vmatpush1.msra.mxu0 0.0
      %1474 = vmatprep.subr.mxu0 0.0
      %1475 = vmatpush1.msra.mxu0 0.0
      %1476 = vmatprep.subr.mxu0 0.0
      %1477 = vmatpush1.msra.mxu0 0.0
      %1478 = vmatprep.subr.mxu0 0.0
      %1479 = vmatpush1.msra.mxu0 0.0
      %1480 = vmatprep.subr.mxu0 0.0
      %1481 = vmatpush1.msra.mxu0 0.0
      %1482 = vmatprep.subr.mxu0 0.0
      %1483 = vmatpush1.msra.mxu0 0.0
      %1484 = vmatprep.subr.mxu0 0.0
      %1485 = vmatpush1.msra.mxu0 0.0
      %1486 = vmatprep.subr.mxu0 0.0
      %1487 = vmatpush1.msra.mxu0 0.0
      %1488 = vmatprep.subr.mxu0 0.0
      %1489 = vmatpush1.msra.mxu0 0.0
      %1490 = vmatprep.subr.mxu0 0.0
      %1491 = vmatpush1.msra.mxu0 0.0
      %1492 = vmatprep.subr.mxu0 0.0
      %1493 = vmatpush1.msra.mxu0 0.0
      %1494 = vmatprep.subr.mxu0 0.0
      %1495 = vmatpush1.msra.mxu0 0.0
      %1496 = vmatprep.subr.mxu0 0.0
      %1497 = vmatpush1.msra.mxu0 0.0
      %1498 = vmatprep.subr.mxu0 0.0
      %1499 = vmatpush1.msra.mxu0 0.0
      %1500 = vmatprep.subr.mxu0 0.0
      %1501 = vmatpush1.msra.mxu0 0.0
      %1502 = vmatprep.subr.mxu0 0.0
      %1503 = vmatpush1.msra.mxu0 0.0
      %1504 = vmatprep.subr.mxu0 0.0
      %1505 = vmatpush1.msra.mxu0 0.0
      %1506 = vmatprep.subr.mxu0 0.0
      %1507 = vmatpush1.msra.mxu0 0.0
      %1508 = vmatprep.subr.mxu0 0.0
      %1509 = vmatpush1.msra.mxu0 0.0
      %1510 = vmatprep.subr.mxu0 0.0
      %1511 = vmatpush1.msra.mxu0 0.0
      %1512 = vmatprep.subr.mxu0 0.0
      %1513 = vmatpush1.msra.mxu0 0.0
      %1514 = vmatprep.subr.mxu0 0.0
      %1515 = vmatpush1.msra.mxu0 0.0
      %1516 = vmatprep.subr.mxu0 0.0
      %1517 = vmatpush1.msra.mxu0 0.0
      %1518 = vmatprep.subr.mxu0 0.0
      %1519 = vmatpush1.msra.mxu0 0.0
      %1520 = vmatprep.subr.mxu0 0.0
      %1521 = vmatpush1.msra.mxu0 0.0
      %1522 = vmatprep.mubr.f32.mxu0 0.0
      %1523 = vmatmul.mubr.f32.gmra.mrb[0].mxu0 %v1456
      %v1524 = vpop.f32.mrb[0].mxu0
      %v1525 = vadd.f32 0.0, %v1524
      %v1526 = vpop.f32.mrb[0].mxu0
      %1527 = vdwg.mxu0
      %v1529 = vsel %vm881, %v1525, 0
      %1531 = vmatprep.subr.mxu0 0.0
      %1532 = vmatpush1.msra.mxu0 %v874
      %1533 = vmatprep.subr.mxu0 0.0
      %1534 = vmatpush1.msra.mxu0 0.0
      %1535 = vmatprep.subr.mxu0 0.0
      %1536 = vmatpush1.msra.mxu0 0.0
      %1537 = vmatprep.subr.mxu0 0.0
      %1538 = vmatpush1.msra.mxu0 0.0
      %1539 = vmatprep.subr.mxu0 0.0
      %1540 = vmatpush1.msra.mxu0 0.0
      %1541 = vmatprep.subr.mxu0 0.0
      %1542 = vmatpush1.msra.mxu0 0.0
      %1543 = vmatprep.subr.mxu0 0.0
      %1544 = vmatpush1.msra.mxu0 0.0
      %1545 = vmatprep.subr.mxu0 0.0
      %1546 = vmatpush1.msra.mxu0 0.0
      %1547 = vmatprep.subr.mxu0 0.0
      %1548 = vmatpush1.msra.mxu0 0.0
      %1549 = vmatprep.subr.mxu0 0.0
      %1550 = vmatpush1.msra.mxu0 0.0
      %1551 = vmatprep.subr.mxu0 0.0
      %1552 = vmatpush1.msra.mxu0 0.0
      %1553 = vmatprep.subr.mxu0 0.0
      %1554 = vmatpush1.msra.mxu0 0.0
      %1555 = vmatprep.subr.mxu0 0.0
      %1556 = vmatpush1.msra.mxu0 0.0
      %1557 = vmatprep.subr.mxu0 0.0
      %1558 = vmatpush1.msra.mxu0 0.0
      %1559 = vmatprep.subr.mxu0 0.0
      %1560 = vmatpush1.msra.mxu0 0.0
      %1561 = vmatprep.subr.mxu0 0.0
      %1562 = vmatpush1.msra.mxu0 0.0
      %1563 = vmatprep.subr.mxu0 0.0
      %1564 = vmatpush1.msra.mxu0 0.0
      %1565 = vmatprep.subr.mxu0 0.0
      %1566 = vmatpush1.msra.mxu0 0.0
      %1567 = vmatprep.subr.mxu0 0.0
      %1568 = vmatpush1.msra.mxu0 0.0
      %1569 = vmatprep.subr.mxu0 0.0
      %1570 = vmatpush1.msra.mxu0 0.0
      %1571 = vmatprep.subr.mxu0 0.0
      %1572 = vmatpush1.msra.mxu0 0.0
      %1573 = vmatprep.subr.mxu0 0.0
      %1574 = vmatpush1.msra.mxu0 0.0
      %1575 = vmatprep.subr.mxu0 0.0
      %1576 = vmatpush1.msra.mxu0 0.0
      %1577 = vmatprep.subr.mxu0 0.0
      %1578 = vmatpush1.msra.mxu0 0.0
      %1579 = vmatprep.subr.mxu0 0.0
      %1580 = vmatpush1.msra.mxu0 0.0
      %1581 = vmatprep.subr.mxu0 0.0
      %1582 = vmatpush1.msra.mxu0 0.0
      %1583 = vmatprep.subr.mxu0 0.0
      %1584 = vmatpush1.msra.mxu0 0.0
      %1585 = vmatprep.subr.mxu0 0.0
      %1586 = vmatpush1.msra.mxu0 0.0
      %1587 = vmatprep.subr.mxu0 0.0
      %1588 = vmatpush1.msra.mxu0 0.0
      %1589 = vmatprep.subr.mxu0 0.0
      %1590 = vmatpush1.msra.mxu0 0.0
      %1591 = vmatprep.subr.mxu0 0.0
      %1592 = vmatpush1.msra.mxu0 0.0
      %1593 = vmatprep.subr.mxu0 0.0
      %1594 = vmatpush1.msra.mxu0 0.0
      %1595 = vmatprep.mubr.f32.mxu0 0.0
      %1596 = vmatmul.mubr.f32.gmra.mrb[0].mxu0 %v1529
      %v1597 = vpop.f32.mrb[0].mxu0
      %v1598 = vadd.f32 0.0, %v1597
      %v1599 = vpop.f32.mrb[0].mxu0
      %1600 = vdwg.mxu0
      %v1601 = vadd.f32 %v1362, %v1598
      %1602 = vrot.lane.b32.xlu0 %v877, 104
      %v1603 = vpop.permute.xlu0 %1602
      %1604 = vrot.lane.b32.xlu0 %v868, 72
      %v1605 = vpop.permute.xlu0 %1604
      %v1606 = vsel %vm881, %v1603, 0
      %v1608 = vsel %vm881, %v1605, 0
      %1610 = vmatprep.subr.mxu0 0.0
      %1611 = vmatpush1.xpose.msra.mxu0 %v1608
      %1612 = vmatprep.subr.mxu0 0.0
      %1613 = vmatpush1.xpose.msra.mxu0 0.0
      %1614 = vmatprep.subr.mxu0 0.0
      %1615 = vmatpush1.xpose.msra.mxu0 0.0
      %1616 = vmatprep.subr.mxu0 0.0
      %1617 = vmatpush1.xpose.msra.mxu0 0.0
      %1618 = vmatprep.subr.mxu0 0.0
      %1619 = vmatpush1.xpose.msra.mxu0 0.0
      %1620 = vmatprep.subr.mxu0 0.0
      %1621 = vmatpush1.xpose.msra.mxu0 0.0
      %1622 = vmatprep.subr.mxu0 0.0
      %1623 = vmatpush1.xpose.msra.mxu0 0.0
      %1624 = vmatprep.subr.mxu0 0.0
      %1625 = vmatpush1.xpose.msra.mxu0 0.0
      %1626 = vmatprep.subr.mxu0 0.0
      %1627 = vmatpush1.xpose.msra.mxu0 0.0
      %1628 = vmatprep.subr.mxu0 0.0
      %1629 = vmatpush1.xpose.msra.mxu0 0.0
      %1630 = vmatprep.subr.mxu0 0.0
      %1631 = vmatpush1.xpose.msra.mxu0 0.0
      %1632 = vmatprep.subr.mxu0 0.0
      %1633 = vmatpush1.xpose.msra.mxu0 0.0
      %1634 = vmatprep.subr.mxu0 0.0
      %1635 = vmatpush1.xpose.msra.mxu0 0.0
      %1636 = vmatprep.subr.mxu0 0.0
      %1637 = vmatpush1.xpose.msra.mxu0 0.0
      %1638 = vmatprep.subr.mxu0 0.0
      %1639 = vmatpush1.xpose.msra.mxu0 0.0
      %1640 = vmatprep.subr.mxu0 0.0
      %1641 = vmatpush1.xpose.msra.mxu0 0.0
      %1642 = vmatprep.subr.mxu0 0.0
      %1643 = vmatpush1.xpose.msra.mxu0 0.0
      %1644 = vmatprep.subr.mxu0 0.0
      %1645 = vmatpush1.xpose.msra.mxu0 0.0
      %1646 = vmatprep.subr.mxu0 0.0
      %1647 = vmatpush1.xpose.msra.mxu0 0.0
      %1648 = vmatprep.subr.mxu0 0.0
      %1649 = vmatpush1.xpose.msra.mxu0 0.0
      %1650 = vmatprep.subr.mxu0 0.0
      %1651 = vmatpush1.xpose.msra.mxu0 0.0
      %1652 = vmatprep.subr.mxu0 0.0
      %1653 = vmatpush1.xpose.msra.mxu0 0.0
      %1654 = vmatprep.subr.mxu0 0.0
      %1655 = vmatpush1.xpose.msra.mxu0 0.0
      %1656 = vmatprep.subr.mxu0 0.0
      %1657 = vmatpush1.xpose.msra.mxu0 0.0
      %1658 = vmatprep.subr.mxu0 0.0
      %1659 = vmatpush1.xpose.msra.mxu0 0.0
      %1660 = vmatprep.subr.mxu0 0.0
      %1661 = vmatpush1.xpose.msra.mxu0 0.0
      %1662 = vmatprep.subr.mxu0 0.0
      %1663 = vmatpush1.xpose.msra.mxu0 0.0
      %1664 = vmatprep.subr.mxu0 0.0
      %1665 = vmatpush1.xpose.msra.mxu0 0.0
      %1666 = vmatprep.subr.mxu0 0.0
      %1667 = vmatpush1.xpose.msra.mxu0 0.0
      %1668 = vmatprep.subr.mxu0 0.0
      %1669 = vmatpush1.xpose.msra.mxu0 0.0
      %1670 = vmatprep.subr.mxu0 0.0
      %1671 = vmatpush1.xpose.msra.mxu0 0.0
      %1672 = vmatprep.subr.mxu0 0.0
      %1673 = vmatpush1.xpose.msra.mxu0 0.0
      %1674 = vmatprep.mubr.f32.mxu0 0.0
      %1675 = vmatmul.mubr.f32.gmra.mrb[0].mxu0 %v1606
      %v1676 = vpop.f32.mrb[0].mxu0
      %v1677 = vadd.f32 %v871, %v1676
      %v1678 = vpop.f32.mrb[0].mxu0
      %1679 = vdwg.mxu0
      %v1680 = vsel %vm881, %v1677, -inf
      %1681 = vmax.xlane.f32.xlu0 %v1680
      %v1682 = vpop.xlane.xlu0 %1681
      %v1683 = vsub.f32 %v1677, %v1682
      %v1684 = vmul.f32 %v1683, 1.442695
      %v1685 = vpow.pop %v1684
      %v1686 = vsel %vm881, %v1685, 0.0
      %1687 = vadd.xlane.f32.xlu0 %v1686
      %v1688 = vpop.xlane.xlu0 %1687
      %v1689 = vrcp.pop %v1688
      %v1690 = vmul.f32 %v1685, %v1689
      %1691 = vrot.lane.b32.xlu0 %v868, 40
      %v1692 = vpop.permute.xlu0 %1691
      %v1695 = vsel %vm881, %v1690, 0
      %1697 = vmatprep.subr.mxu0 0.0
      %1698 = vmatpush1.msra.mxu0 %v1692
      %1699 = vmatprep.subr.mxu0 0.0
      %1700 = vmatpush1.msra.mxu0 0.0
      %1701 = vmatprep.subr.mxu0 0.0
      %1702 = vmatpush1.msra.mxu0 0.0
      %1703 = vmatprep.subr.mxu0 0.0
      %1704 = vmatpush1.msra.mxu0 0.0
      %1705 = vmatprep.subr.mxu0 0.0
      %1706 = vmatpush1.msra.mxu0 0.0
      %1707 = vmatprep.subr.mxu0 0.0
      %1708 = vmatpush1.msra.mxu0 0.0
      %1709 = vmatprep.subr.mxu0 0.0
      %1710 = vmatpush1.msra.mxu0 0.0
      %1711 = vmatprep.subr.mxu0 0.0
      %1712 = vmatpush1.msra.mxu0 0.0
      %1713 = vmatprep.subr.mxu0 0.0
      %1714 = vmatpush1.msra.mxu0 0.0
      %1715 = vmatprep.subr.mxu0 0.0
      %1716 = vmatpush1.msra.mxu0 0.0
      %1717 = vmatprep.subr.mxu0 0.0
      %1718 = vmatpush1.msra.mxu0 0.0
      %1719 = vmatprep.subr.mxu0 0.0
      %1720 = vmatpush1.msra.mxu0 0.0
      %1721 = vmatprep.subr.mxu0 0.0
      %1722 = vmatpush1.msra.mxu0 0.0
      %1723 = vmatprep.subr.mxu0 0.0
      %1724 = vmatpush1.msra.mxu0 0.0
      %1725 = vmatprep.subr.mxu0 0.0
      %1726 = vmatpush1.msra.mxu0 0.0
      %1727 = vmatprep.subr.mxu0 0.0
      %1728 = vmatpush1.msra.mxu0 0.0
      %1729 = vmatprep.subr.mxu0 0.0
      %1730 = vmatpush1.msra.mxu0 0.0
      %1731 = vmatprep.subr.mxu0 0.0
      %1732 = vmatpush1.msra.mxu0 0.0
      %1733 = vmatprep.subr.mxu0 0.0
      %1734 = vmatpush1.msra.mxu0 0.0
      %1735 = vmatprep.subr.mxu0 0.0
      %1736 = vmatpush1.msra.mxu0 0.0
      %1737 = vmatprep.subr.mxu0 0.0
      %1738 = vmatpush1.msra.mxu0 0.0
      %1739 = vmatprep.subr.mxu0 0.0
      %1740 = vmatpush1.msra.mxu0 0.0
      %1741 = vmatprep.subr.mxu0 0.0
      %1742 = vmatpush1.msra.mxu0 0.0
      %1743 = vmatprep.subr.mxu0 0.0
      %1744 = vmatpush1.msra.mxu0 0.0
      %1745 = vmatprep.subr.mxu0 0.0
      %1746 = vmatpush1.msra.mxu0 0.0
      %1747 = vmatprep.subr.mxu0 0.0
      %1748 = vmatpush1.msra.mxu0 0.0
      %1749 = vmatprep.subr.mxu0 0.0
      %1750 = vmatpush1.msra.mxu0 0.0
      %1751 = vmatprep.subr.mxu0 0.0
      %1752 = vmatpush1.msra.mxu0 0.0
      %1753 = vmatprep.subr.mxu0 0.0
      %1754 = vmatpush1.msra.mxu0 0.0
      %1755 = vmatprep.subr.mxu0 0.0
      %1756 = vmatpush1.msra.mxu0 0.0
      %1757 = vmatprep.subr.mxu0 0.0
      %1758 = vmatpush1.msra.mxu0 0.0
      %1759 = vmatprep.subr.mxu0 0.0
      %1760 = vmatpush1.msra.mxu0 0.0
      %1761 = vmatprep.mubr.f32.mxu0 0.0
      %1762 = vmatmul.mubr.f32.gmra.mrb[0].mxu0 %v1695
      %v1763 = vpop.f32.mrb[0].mxu0
      %v1764 = vadd.f32 0.0, %v1763
      %v1765 = vpop.f32.mrb[0].mxu0
      %1766 = vdwg.mxu0
      %v1768 = vsel %vm881, %v1764, 0
      %1770 = vmatprep.subr.mxu0 0.0
      %1771 = vmatpush1.msra.mxu0 %v875
      %1772 = vmatprep.subr.mxu0 0.0
      %1773 = vmatpush1.msra.mxu0 0.0
      %1774 = vmatprep.subr.mxu0 0.0
      %1775 = vmatpush1.msra.mxu0 0.0
      %1776 = vmatprep.subr.mxu0 0.0
      %1777 = vmatpush1.msra.mxu0 0.0
      %1778 = vmatprep.subr.mxu0 0.0
      %1779 = vmatpush1.msra.mxu0 0.0
      %1780 = vmatprep.subr.mxu0 0.0
      %1781 = vmatpush1.msra.mxu0 0.0
      %1782 = vmatprep.subr.mxu0 0.0
      %1783 = vmatpush1.msra.mxu0 0.0
      %1784 = vmatprep.subr.mxu0 0.0
      %1785 = vmatpush1.msra.mxu0 0.0
      %1786 = vmatprep.subr.mxu0 0.0
      %1787 = vmatpush1.msra.mxu0 0.0
      %1788 = vmatprep.subr.mxu0 0.0
      %1789 = vmatpush1.msra.mxu0 0.0
      %1790 = vmatprep.subr.mxu0 0.0
      %1791 = vmatpush1.msra.mxu0 0.0
      %1792 = vmatprep.subr.mxu0 0.0
      %1793 = vmatpush1.msra.mxu0 0.0
      %1794 = vmatprep.subr.mxu0 0.0
      %1795 = vmatpush1.msra.mxu0 0.0
      %1796 = vmatprep.subr.mxu0 0.0
      %1797 = vmatpush1.msra.mxu0 0.0
      %1798 = vmatprep.subr.mxu0 0.0
      %1799 = vmatpush1.msra.mxu0 0.0
      %1800 = vmatprep.subr.mxu0 0.0
      %1801 = vmatpush1.msra.mxu0 0.0
      %1802 = vmatprep.subr.mxu0 0.0
      %1803 = vmatpush1.msra.mxu0 0.0
      %1804 = vmatprep.subr.mxu0 0.0
      %1805 = vmatpush1.msra.mxu0 0.0
      %1806 = vmatprep.subr.mxu0 0.0
      %1807 = vmatpush1.msra.mxu0 0.0
      %1808 = vmatprep.subr.mxu0 0.0
      %1809 = vmatpush1.msra.mxu0 0.0
      %1810 = vmatprep.subr.mxu0 0.0
      %1811 = vmatpush1.msra.mxu0 0.0
      %1812 = vmatprep.subr.mxu0 0.0
      %1813 = vmatpush1.msra.mxu0 0.0
      %1814 = vmatprep.subr.mxu0 0.0
      %1815 = vmatpush1.msra.mxu0 0.0
      %1816 = vmatprep.subr.mxu0 0.0
      %1817 = vmatpush1.msra.mxu0 0.0
      %1818 = vmatprep.subr.mxu0 0.0
      %1819 = vmatpush1.msra.mxu0 0.0
      %1820 = vmatprep.subr.mxu0 0.0
      %1821 = vmatpush1.msra.mxu0 0.0
      %1822 = vmatprep.subr.mxu0 0.0
      %1823 = vmatpush1.msra.mxu0 0.0
      %1824 = vmatprep.subr.mxu0 0.0
      %1825 = vmatpush1.msra.mxu0 0.0
      %1826 = vmatprep.subr.mxu0 0.0
      %1827 = vmatpush1.msra.mxu0 0.0
      %1828 = vmatprep.subr.mxu0 0.0
      %1829 = vmatpush1.msra.mxu0 0.0
      %1830 = vmatprep.subr.mxu0 0.0
      %1831 = vmatpush1.msra.mxu0 0.0
      %1832 = vmatprep.subr.mxu0 0.0
      %1833 = vmatpush1.msra.mxu0 0.0
      %1834 = vmatprep.mubr.f32.mxu0 0.0
      %1835 = vmatmul.mubr.f32.gmra.mrb[0].mxu0 %v1768
      %v1836 = vpop.f32.mrb[0].mxu0
      %v1837 = vadd.f32 0.0, %v1836
      %v1838 = vpop.f32.mrb[0].mxu0
      %1839 = vdwg.mxu0
      %v1840 = vadd.f32 %v1601, %v1837
      %v1841 = vld [vmem:[%s8] sm:$0x1]
      %v1842 = vld [vmem:[%s9] sm:$0x1]
      %v1843 = vadd.f32 %v784, %v1840
      %v1844 = vsel %vm797, %v1843, 0.0
      %1845 = vadd.xlane.f32.xlu0 %v1844
      %v1846 = vpop.xlane.xlu0 %1845
      %v1847 = vrcp.pop 32.0
      %v1848 = vmul.f32 %v1846, %v1847
      %v1849 = vsub.f32 %v1843, %v1848
      %v1850 = vmul.f32 %v1849, %v1849
      %v1851 = vsel %vm797, %v1850, 0.0
      %1852 = vadd.xlane.f32.xlu0 %v1851
      %v1853 = vpop.xlane.xlu0 %1852
      %v1854 = vmul.f32 %v1853, %v1847
      %v1855 = vadd.f32 %v1854, 1e-06
      %v1856 = vrsqrt.pop %v1855
      %v1857 = vmul.f32 %v1849, %v1856
      %v1859 = vlaneseq
      %v1860 = vshrl.u32 %v1859, 7
      %v1861 = vsub.s32 0, %v1860
      %v1862 = vrot.slane %v1841, %v1861
      %v1864 = vmul.f32 %v1857, %v1862
      %v1866 = vlaneseq
      %v1867 = vshrl.u32 %v1866, 7
      %v1868 = vsub.s32 0, %v1867
      %v1869 = vrot.slane %v1842, %v1868
      %v1871 = vadd.f32 %v1864, %v1869
      %v1872 = vld [vmem:[%s10] sm:$0xff]
      %v1873 = vld [vmem:[%s10 + $0x8] sm:$0xff]
      %v1874 = vld [vmem:[%s10 + $0x10] sm:$0xff]
      %v1875 = vld [vmem:[%s10 + $0x18] sm:$0xff]
      %v1876 = vld [vmem:[%s11] sm:$0x1]
      %v1878 = vlaneseq
      %v1879 = vshrl.u32 %v1878, 7
      %v1880 = vsub.s32 0, %v1879
      %v1881 = vrot.slane %v1876, %v1880
      %v1884 = vsel %vm797, %v1871, 0
      %1886 = vmatprep.subr.mxu0 0.0
      %1887 = vmatpush1.msra.mxu0 %v1872
      %1888 = vmatprep.subr.mxu0 0.0
      %1889 = vmatpush1.msra.mxu0 %v1873
      %1890 = vmatprep.subr.mxu0 0.0
      %1891 = vmatpush1.msra.mxu0 %v1874
      %1892 = vmatprep.subr.mxu0 0.0
      %1893 = vmatpush1.msra.mxu0 %v1875
      %1894 = vmatprep.subr.mxu0 0.0
      %1895 = vmatpush1.msra.mxu0 0.0
      %1896 = vmatprep.subr.mxu0 0.0
      %1897 = vmatpush1.msra.mxu0 0.0
      %1898 = vmatprep.subr.mxu0 0.0
      %1899 = vmatpush1.msra.mxu0 0.0
      %1900 = vmatprep.subr.mxu0 0.0
      %1901 = vmatpush1.msra.mxu0 0.0
      %1902 = vmatprep.subr.mxu0 0.0
      %1903 = vmatpush1.msra.mxu0 0.0
      %1904 = vmatprep.subr.mxu0 0.0
      %1905 = vmatpush1.msra.mxu0 0.0
      %1906 = vmatprep.subr.mxu0 0.0
      %1907 = vmatpush1.msra.mxu0 0.0
      %1908 = vmatprep.subr.mxu0 0.0
      %1909 = vmatpush1.msra.mxu0 0.0
      %1910 = vmatprep.subr.mxu0 0.0
      %1911 = vmatpush1.msra.mxu0 0.0
      %1912 = vmatprep.subr.mxu0 0.0
      %1913 = vmatpush1.msra.mxu0 0.0
      %1914 = vmatprep.subr.mxu0 0.0
      %1915 = vmatpush1.msra.mxu0 0.0
      %1916 = vmatprep.subr.mxu0 0.0
      %1917 = vmatpush1.msra.mxu0 0.0
      %1918 = vmatprep.subr.mxu0 0.0
      %1919 = vmatpush1.msra.mxu0 0.0
      %1920 = vmatprep.subr.mxu0 0.0
      %1921 = vmatpush1.msra.mxu0 0.0
      %1922 = vmatprep.subr.mxu0 0.0
      %1923 = vmatpush1.msra.mxu0 0.0
      %1924 = vmatprep.subr.mxu0 0.0
      %1925 = vmatpush1.msra.mxu0 0.0
      %1926 = vmatprep.subr.mxu0 0.0
      %1927 = vmatpush1.msra.mxu0 0.0
      %1928 = vmatprep.subr.mxu0 0.0
      %1929 = vmatpush1.msra.mxu0 0.0
      %1930 = vmatprep.subr.mxu0 0.0
      %1931 = vmatpush1.msra.mxu0 0.0
      %1932 = vmatprep.subr.mxu0 0.0
      %1933 = vmatpush1.msra.mxu0 0.0
      %1934 = vmatprep.subr.mxu0 0.0
      %1935 = vmatpush1.msra.mxu0 0.0
      %1936 = vmatprep.subr.mxu0 0.0
      %1937 = vmatpush1.msra.mxu0 0.0
      %1938 = vmatprep.subr.mxu0 0.0
      %1939 = vmatpush1.msra.mxu0 0.0
      %1940 = vmatprep.subr.mxu0 0.0
      %1941 = vmatpush1.msra.mxu0 0.0
      %1942 = vmatprep.subr.mxu0 0.0
      %1943 = vmatpush1.msra.mxu0 0.0
      %1944 = vmatprep.subr.mxu0 0.0
      %1945 = vmatpush1.msra.mxu0 0.0
      %1946 = vmatprep.subr.mxu0 0.0
      %1947 = vmatpush1.msra.mxu0 0.0
      %1948 = vmatprep.subr.mxu0 0.0
      %1949 = vmatpush1.msra.mxu0 0.0
      %1950 = vmatprep.mubr.f32.mxu0 0.0
      %1951 = vmatmul.mubr.f32.gmra.mrb[0].mxu0 %v1884
      %v1952 = vpop.f32.mrb[0].mxu0
      %v1953 = vadd.f32 %v1881, %v1952
      %v1954 = vpop.f32.mrb[0].mxu0
      %1955 = vdwg.mxu0
      %v1956 = vld [vmem:[%s12] sm:$0xff]
      %v1957 = vld [vmem:[%s12 + $0x8] sm:$0xff]
      %v1958 = vld [vmem:[%s12 + $0x10] sm:$0xff]
      %v1959 = vld [vmem:[%s12 + $0x18] sm:$0xff]
      %v1960 = vld [vmem:[%s13] sm:$0x1]
      %v1962 = vlaneseq
      %v1963 = vshrl.u32 %v1962, 7
      %v1964 = vsub.s32 0, %v1963
      %v1965 = vrot.slane %v1960, %v1964
      %v1968 = vsel %vm797, %v785, 0
      %1970 = vmatprep.subr.mxu0 0.0
      %1971 = vmatpush1.msra.mxu0 %v1956
      %1972 = vmatprep.subr.mxu0 0.0
      %1973 = vmatpush1.msra.mxu0 %v1957
      %1974 = vmatprep.subr.mxu0 0.0
      %1975 = vmatpush1.msra.mxu0 %v1958
      %1976 = vmatprep.subr.mxu0 0.0
      %1977 = vmatpush1.msra.mxu0 %v1959
      %1978 = vmatprep.subr.mxu0 0.0
      %1979 = vmatpush1.msra.mxu0 0.0
      %1980 = vmatprep.subr.mxu0 0.0
      %1981 = vmatpush1.msra.mxu0 0.0
      %1982 = vmatprep.subr.mxu0 0.0
      %1983 = vmatpush1.msra.mxu0 0.0
      %1984 = vmatprep.subr.mxu0 0.0
      %1985 = vmatpush1.msra.mxu0 0.0
      %1986 = vmatprep.subr.mxu0 0.0
      %1987 = vmatpush1.msra.mxu0 0.0
      %1988 = vmatprep.subr.mxu0 0.0
      %1989 = vmatpush1.msra.mxu0 0.0
      %1990 = vmatprep.subr.mxu0 0.0
      %1991 = vmatpush1.msra.mxu0 0.0
      %1992 = vmatprep.subr.mxu0 0.0
      %1993 = vmatpush1.msra.mxu0 0.0
      %1994 = vmatprep.subr.mxu0 0.0
      %1995 = vmatpush1.msra.mxu0 0.0
      %1996 = vmatprep.subr.mxu0 0.0
      %1997 = vmatpush1.msra.mxu0 0.0
      %1998 = vmatprep.subr.mxu0 0.0
      %1999 = vmatpush1.msra.mxu0 0.0
      %2000 = vmatprep.subr.mxu0 0.0
      %2001 = vmatpush1.msra.mxu0 0.0
      %2002 = vmatprep.subr.mxu0 0.0
      %2003 = vmatpush1.msra.mxu0 0.0
      %2004 = vmatprep.subr.mxu0 0.0
      %2005 = vmatpush1.msra.mxu0 0.0
      %2006 = vmatprep.subr.mxu0 0.0
      %2007 = vmatpush1.msra.mxu0 0.0
      %2008 = vmatprep.subr.mxu0 0.0
      %2009 = vmatpush1.msra.mxu0 0.0
      %2010 = vmatprep.subr.mxu0 0.0
      %2011 = vmatpush1.msra.mxu0 0.0
      %2012 = vmatprep.subr.mxu0 0.0
      %2013 = vmatpush1.msra.mxu0 0.0
      %2014 = vmatprep.subr.mxu0 0.0
      %2015 = vmatpush1.msra.mxu0 0.0
      %2016 = vmatprep.subr.mxu0 0.0
      %2017 = vmatpush1.msra.mxu0 0.0
      %2018 = vmatprep.subr.mxu0 0.0
      %2019 = vmatpush1.msra.mxu0 0.0
      %2020 = vmatprep.subr.mxu0 0.0
      %2021 = vmatpush1.msra.mxu0 0.0
      %2022 = vmatprep.subr.mxu0 0.0
      %2023 = vmatpush1.msra.mxu0 0.0
      %2024 = vmatprep.subr.mxu0 0.0
      %2025 = vmatpush1.msra.mxu0 0.0
      %2026 = vmatprep.subr.mxu0 0.0
      %2027 = vmatpush1.msra.mxu0 0.0
      %2028 = vmatprep.subr.mxu0 0.0
      %2029 = vmatpush1.msra.mxu0 0.0
      %2030 = vmatprep.subr.mxu0 0.0
      %2031 = vmatpush1.msra.mxu0 0.0
      %2032 = vmatprep.subr.mxu0 0.0
      %2033 = vmatpush1.msra.mxu0 0.0
      %2034 = vmatprep.mubr.f32.mxu0 0.0
      %2035 = vmatmul.mubr.f32.gmra.mrb[0].mxu0 %v1968
      %v2036 = vpop.f32.mrb[0].mxu0
      %v2037 = vadd.f32 %v1965, %v2036
      %v2038 = vpop.f32.mrb[0].mxu0
      %2039 = vdwg.mxu0
      %v2040 = vld [vmem:[%s779] sm:$0xff]
      %v2041 = vld [vmem:[%s14] sm:$0xff]
      %v2042 = vld [vmem:[%s14 + $0x8] sm:$0xff]
      %v2043 = vld [vmem:[%s14 + $0x10] sm:$0xff]
      %v2044 = vld [vmem:[%s14 + $0x18] sm:$0xff]
      %v2045 = vld [vmem:[%s15] sm:$0x1]
      %v2046 = vmul.f32 %v1953, 0.35355338
      %v2048 = vsel %vm881, %v2046, 0
      %v2051 = vsel %vm881, %v2037, 0
      %2053 = vmatprep.subr.mxu0 0.0
      %2054 = vmatpush1.xpose.msra.mxu0 %v2051
      %2055 = vmatprep.subr.mxu0 0.0
      %2056 = vmatpush1.xpose.msra.mxu0 0.0
      %2057 = vmatprep.subr.mxu0 0.0
      %2058 = vmatpush1.xpose.msra.mxu0 0.0
      %2059 = vmatprep.subr.mxu0 0.0
      %2060 = vmatpush1.xpose.msra.mxu0 0.0
      %2061 = vmatprep.subr.mxu0 0.0
      %2062 = vmatpush1.xpose.msra.mxu0 0.0
      %2063 = vmatprep.subr.mxu0 0.0
      %2064 = vmatpush1.xpose.msra.mxu0 0.0
      %2065 = vmatprep.subr.mxu0 0.0
      %2066 = vmatpush1.xpose.msra.mxu0 0.0
      %2067 = vmatprep.subr.mxu0 0.0
      %2068 = vmatpush1.xpose.msra.mxu0 0.0
      %2069 = vmatprep.subr.mxu0 0.0
      %2070 = vmatpush1.xpose.msra.mxu0 0.0
      %2071 = vmatprep.subr.mxu0 0.0
      %2072 = vmatpush1.xpose.msra.mxu0 0.0
      %2073 = vmatprep.subr.mxu0 0.0
      %2074 = vmatpush1.xpose.msra.mxu0 0.0
      %2075 = vmatprep.subr.mxu0 0.0
      %2076 = vmatpush1.xpose.msra.mxu0 0.0
      %2077 = vmatprep.subr.mxu0 0.0
      %2078 = vmatpush1.xpose.msra.mxu0 0.0
      %2079 = vmatprep.subr.mxu0 0.0
      %2080 = vmatpush1.xpose.msra.mxu0 0.0
      %2081 = vmatprep.subr.mxu0 0.0
      %2082 = vmatpush1.xpose.msra.mxu0 0.0
      %2083 = vmatprep.subr.mxu0 0.0
      %2084 = vmatpush1.xpose.msra.mxu0 0.0
      %2085 = vmatprep.subr.mxu0 0.0
      %2086 = vmatpush1.xpose.msra.mxu0 0.0
      %2087 = vmatprep.subr.mxu0 0.0
      %2088 = vmatpush1.xpose.msra.mxu0 0.0
      %2089 = vmatprep.subr.mxu0 0.0
      %2090 = vmatpush1.xpose.msra.mxu0 0.0
      %2091 = vmatprep.subr.mxu0 0.0
      %2092 = vmatpush1.xpose.msra.mxu0 0.0
      %2093 = vmatprep.subr.mxu0 0.0
      %2094 = vmatpush1.xpose.msra.mxu0 0.0
      %2095 = vmatprep.subr.mxu0 0.0
      %2096 = vmatpush1.xpose.msra.mxu0 0.0
      %2097 = vmatprep.subr.mxu0 0.0
      %2098 = vmatpush1.xpose.msra.mxu0 0.0
      %2099 = vmatprep.subr.mxu0 0.0
      %2100 = vmatpush1.xpose.msra.mxu0 0.0
      %2101 = vmatprep.subr.mxu0 0.0
      %2102 = vmatpush1.xpose.msra.mxu0 0.0
      %2103 = vmatprep.subr.mxu0 0.0
      %2104 = vmatpush1.xpose.msra.mxu0 0.0
      %2105 = vmatprep.subr.mxu0 0.0
      %2106 = vmatpush1.xpose.msra.mxu0 0.0
      %2107 = vmatprep.subr.mxu0 0.0
      %2108 = vmatpush1.xpose.msra.mxu0 0.0
      %2109 = vmatprep.subr.mxu0 0.0
      %2110 = vmatpush1.xpose.msra.mxu0 0.0
      %2111 = vmatprep.subr.mxu0 0.0
      %2112 = vmatpush1.xpose.msra.mxu0 0.0
      %2113 = vmatprep.subr.mxu0 0.0
      %2114 = vmatpush1.xpose.msra.mxu0 0.0
      %2115 = vmatprep.subr.mxu0 0.0
      %2116 = vmatpush1.xpose.msra.mxu0 0.0
      %2117 = vmatprep.mubr.f32.mxu0 0.0
      %2118 = vmatmul.mubr.f32.gmra.mrb[0].mxu0 %v2048
      %v2119 = vpop.f32.mrb[0].mxu0
      %v2120 = vadd.f32 %v2040, %v2119
      %v2121 = vpop.f32.mrb[0].mxu0
      %2122 = vdwg.mxu0
      %v2123 = vsel %vm881, %v2120, -inf
      %2124 = vmax.xlane.f32.xlu0 %v2123
      %v2125 = vpop.xlane.xlu0 %2124
      %v2126 = vsub.f32 %v2120, %v2125
      %v2127 = vmul.f32 %v2126, 1.442695
      %v2128 = vpow.pop %v2127
      %v2129 = vsel %vm881, %v2128, 0.0
      %2130 = vadd.xlane.f32.xlu0 %v2129
      %v2131 = vpop.xlane.xlu0 %2130
      %v2132 = vrcp.pop %v2131
      %v2133 = vmul.f32 %v2128, %v2132
      %2134 = vrot.lane.b32.xlu0 %v2037, 96
      %v2135 = vpop.permute.xlu0 %2134
      %v2138 = vsel %vm881, %v2133, 0
      %2140 = vmatprep.subr.mxu0 0.0
      %2141 = vmatpush1.msra.mxu0 %v2135
      %2142 = vmatprep.subr.mxu0 0.0
      %2143 = vmatpush1.msra.mxu0 0.0
      %2144 = vmatprep.subr.mxu0 0.0
      %2145 = vmatpush1.msra.mxu0 0.0
      %2146 = vmatprep.subr.mxu0 0.0
      %2147 = vmatpush1.msra.mxu0 0.0
      %2148 = vmatprep.subr.mxu0 0.0
      %2149 = vmatpush1.msra.mxu0 0.0
      %2150 = vmatprep.subr.mxu0 0.0
      %2151 = vmatpush1.msra.mxu0 0.0
      %2152 = vmatprep.subr.mxu0 0.0
      %2153 = vmatpush1.msra.mxu0 0.0
      %2154 = vmatprep.subr.mxu0 0.0
      %2155 = vmatpush1.msra.mxu0 0.0
      %2156 = vmatprep.subr.mxu0 0.0
      %2157 = vmatpush1.msra.mxu0 0.0
      %2158 = vmatprep.subr.mxu0 0.0
      %2159 = vmatpush1.msra.mxu0 0.0
      %2160 = vmatprep.subr.mxu0 0.0
      %2161 = vmatpush1.msra.mxu0 0.0
      %2162 = vmatprep.subr.mxu0 0.0
      %2163 = vmatpush1.msra.mxu0 0.0
      %2164 = vmatprep.subr.mxu0 0.0
      %2165 = vmatpush1.msra.mxu0 0.0
      %2166 = vmatprep.subr.mxu0 0.0
      %2167 = vmatpush1.msra.mxu0 0.0
      %2168 = vmatprep.subr.mxu0 0.0
      %2169 = vmatpush1.msra.mxu0 0.0
      %2170 = vmatprep.subr.mxu0 0.0
      %2171 = vmatpush1.msra.mxu0 0.0
      %2172 = vmatprep.subr.mxu0 0.0
      %2173 = vmatpush1.msra.mxu0 0.0
      %2174 = vmatprep.subr.mxu0 0.0
      %2175 = vmatpush1.msra.mxu0 0.0
      %2176 = vmatprep.subr.mxu0 0.0
      %2177 = vmatpush1.msra.mxu0 0.0
      %2178 = vmatprep.subr.mxu0 0.0
      %2179 = vmatpush1.msra.mxu0 0.0
      %2180 = vmatprep.subr.mxu0 0.0
      %2181 = vmatpush1.msra.mxu0 0.0
      %2182 = vmatprep.subr.mxu0 0.0
      %2183 = vmatpush1.msra.mxu0 0.0
      %2184 = vmatprep.subr.mxu0 0.0
      %2185 = vmatpush1.msra.mxu0 0.0
      %2186 = vmatprep.subr.mxu0 0.0
      %2187 = vmatpush1.msra.mxu0 0.0
      %2188 = vmatprep.subr.mxu0 0.0
      %2189 = vmatpush1.msra.mxu0 0.0
      %2190 = vmatprep.subr.mxu0 0.0
      %2191 = vmatpush1.msra.mxu0 0.0
      %2192 = vmatprep.subr.mxu0 0.0
      %2193 = vmatpush1.msra.mxu0 0.0
      %2194 = vmatprep.subr.mxu0 0.0
      %2195 = vmatpush1.msra.mxu0 0.0
      %2196 = vmatprep.subr.mxu0 0.0
      %2197 = vmatpush1.msra.mxu0 0.0
      %2198 = vmatprep.subr.mxu0 0.0
      %2199 = vmatpush1.msra.mxu0 0.0
      %2200 = vmatprep.subr.mxu0 0.0
      %2201 = vmatpush1.msra.mxu0 0.0
      %2202 = vmatprep.subr.mxu0 0.0
      %2203 = vmatpush1.msra.mxu0 0.0
      %2204 = vmatprep.mubr.f32.mxu0 0.0
      %2205 = vmatmul.mubr.f32.gmra.mrb[0].mxu0 %v2138
      %v2206 = vpop.f32.mrb[0].mxu0
      %v2207 = vadd.f32 0.0, %v2206
      %v2208 = vpop.f32.mrb[0].mxu0
      %2209 = vdwg.mxu0
      %v2211 = vsel %vm881, %v2207, 0
      %2213 = vmatprep.subr.mxu0 0.0
      %2214 = vmatpush1.msra.mxu0 %v2041
      %2215 = vmatprep.subr.mxu0 0.0
      %2216 = vmatpush1.msra.mxu0 0.0
      %2217 = vmatprep.subr.mxu0 0.0
      %2218 = vmatpush1.msra.mxu0 0.0
      %2219 = vmatprep.subr.mxu0 0.0
      %2220 = vmatpush1.msra.mxu0 0.0
      %2221 = vmatprep.subr.mxu0 0.0
      %2222 = vmatpush1.msra.mxu0 0.0
      %2223 = vmatprep.subr.mxu0 0.0
      %2224 = vmatpush1.msra.mxu0 0.0
      %2225 = vmatprep.subr.mxu0 0.0
      %2226 = vmatpush1.msra.mxu0 0.0
      %2227 = vmatprep.subr.mxu0 0.0
      %2228 = vmatpush1.msra.mxu0 0.0
      %2229 = vmatprep.subr.mxu0 0.0
      %2230 = vmatpush1.msra.mxu0 0.0
      %2231 = vmatprep.subr.mxu0 0.0
      %2232 = vmatpush1.msra.mxu0 0.0
      %2233 = vmatprep.subr.mxu0 0.0
      %2234 = vmatpush1.msra.mxu0 0.0
      %2235 = vmatprep.subr.mxu0 0.0
      %2236 = vmatpush1.msra.mxu0 0.0
      %2237 = vmatprep.subr.mxu0 0.0
      %2238 = vmatpush1.msra.mxu0 0.0
      %2239 = vmatprep.subr.mxu0 0.0
      %2240 = vmatpush1.msra.mxu0 0.0
      %2241 = vmatprep.subr.mxu0 0.0
      %2242 = vmatpush1.msra.mxu0 0.0
      %2243 = vmatprep.subr.mxu0 0.0
      %2244 = vmatpush1.msra.mxu0 0.0
      %2245 = vmatprep.subr.mxu0 0.0
      %2246 = vmatpush1.msra.mxu0 0.0
      %2247 = vmatprep.subr.mxu0 0.0
      %2248 = vmatpush1.msra.mxu0 0.0
      %2249 = vmatprep.subr.mxu0 0.0
      %2250 = vmatpush1.msra.mxu0 0.0
      %2251 = vmatprep.subr.mxu0 0.0
      %2252 = vmatpush1.msra.mxu0 0.0
      %2253 = vmatprep.subr.mxu0 0.0
      %2254 = vmatpush1.msra.mxu0 0.0
      %2255 = vmatprep.subr.mxu0 0.0
      %2256 = vmatpush1.msra.mxu0 0.0
      %2257 = vmatprep.subr.mxu0 0.0
      %2258 = vmatpush1.msra.mxu0 0.0
      %2259 = vmatprep.subr.mxu0 0.0
      %2260 = vmatpush1.msra.mxu0 0.0
      %2261 = vmatprep.subr.mxu0 0.0
      %2262 = vmatpush1.msra.mxu0 0.0
      %2263 = vmatprep.subr.mxu0 0.0
      %2264 = vmatpush1.msra.mxu0 0.0
      %2265 = vmatprep.subr.mxu0 0.0
      %2266 = vmatpush1.msra.mxu0 0.0
      %2267 = vmatprep.subr.mxu0 0.0
      %2268 = vmatpush1.msra.mxu0 0.0
      %2269 = vmatprep.subr.mxu0 0.0
      %2270 = vmatpush1.msra.mxu0 0.0
      %2271 = vmatprep.subr.mxu0 0.0
      %2272 = vmatpush1.msra.mxu0 0.0
      %2273 = vmatprep.subr.mxu0 0.0
      %2274 = vmatpush1.msra.mxu0 0.0
      %2275 = vmatprep.subr.mxu0 0.0
      %2276 = vmatpush1.msra.mxu0 0.0
      %2277 = vmatprep.mubr.f32.mxu0 0.0
      %2278 = vmatmul.mubr.f32.gmra.mrb[0].mxu0 %v2211
      %v2279 = vpop.f32.mrb[0].mxu0
      %v2280 = vadd.f32 0.0, %v2279
      %v2281 = vpop.f32.mrb[0].mxu0
      %2282 = vdwg.mxu0
      %v2284 = vlaneseq
      %v2285 = vshrl.u32 %v2284, 7
      %v2286 = vsub.s32 0, %v2285
      %v2287 = vrot.slane %v2045, %v2286
      %v2289 = vadd.f32 %v2287, %v2280
      %2290 = vrot.lane.b32.xlu0 %v2046, 120
      %v2291 = vpop.permute.xlu0 %2290
      %2292 = vrot.lane.b32.xlu0 %v2037, 120
      %v2293 = vpop.permute.xlu0 %2292
      %v2294 = vsel %vm881, %v2291, 0
      %v2296 = vsel %vm881, %v2293, 0
      %2298 = vmatprep.subr.mxu0 0.0
      %2299 = vmatpush1.xpose.msra.mxu0 %v2296
      %2300 = vmatprep.subr.mxu0 0.0
      %2301 = vmatpush1.xpose.msra.mxu0 0.0
      %2302 = vmatprep.subr.mxu0 0.0
      %2303 = vmatpush1.xpose.msra.mxu0 0.0
      %2304 = vmatprep.subr.mxu0 0.0
      %2305 = vmatpush1.xpose.msra.mxu0 0.0
      %2306 = vmatprep.subr.mxu0 0.0
      %2307 = vmatpush1.xpose.msra.mxu0 0.0
      %2308 = vmatprep.subr.mxu0 0.0
      %2309 = vmatpush1.xpose.msra.mxu0 0.0
      %2310 = vmatprep.subr.mxu0 0.0
      %2311 = vmatpush1.xpose.msra.mxu0 0.0
      %2312 = vmatprep.subr.mxu0 0.0
      %2313 = vmatpush1.xpose.msra.mxu0 0.0
      %2314 = vmatprep.subr.mxu0 0.0
      %2315 = vmatpush1.xpose.msra.mxu0 0.0
      %2316 = vmatprep.subr.mxu0 0.0
      %2317 = vmatpush1.xpose.msra.mxu0 0.0
      %2318 = vmatprep.subr.mxu0 0.0
      %2319 = vmatpush1.xpose.msra.mxu0 0.0
      %2320 = vmatprep.subr.mxu0 0.0
      %2321 = vmatpush1.xpose.msra.mxu0 0.0
      %2322 = vmatprep.subr.mxu0 0.0
      %2323 = vmatpush1.xpose.msra.mxu0 0.0
      %2324 = vmatprep.subr.mxu0 0.0
      %2325 = vmatpush1.xpose.msra.mxu0 0.0
      %2326 = vmatprep.subr.mxu0 0.0
      %2327 = vmatpush1.xpose.msra.mxu0 0.0
      %2328 = vmatprep.subr.mxu0 0.0
      %2329 = vmatpush1.xpose.msra.mxu0 0.0
      %2330 = vmatprep.subr.mxu0 0.0
      %2331 = vmatpush1.xpose.msra.mxu0 0.0
      %2332 = vmatprep.subr.mxu0 0.0
      %2333 = vmatpush1.xpose.msra.mxu0 0.0
      %2334 = vmatprep.subr.mxu0 0.0
      %2335 = vmatpush1.xpose.msra.mxu0 0.0
      %2336 = vmatprep.subr.mxu0 0.0
      %2337 = vmatpush1.xpose.msra.mxu0 0.0
      %2338 = vmatprep.subr.mxu0 0.0
      %2339 = vmatpush1.xpose.msra.mxu0 0.0
      %2340 = vmatprep.subr.mxu0 0.0
      %2341 = vmatpush1.xpose.msra.mxu0 0.0
      %2342 = vmatprep.subr.mxu0 0.0
      %2343 = vmatpush1.xpose.msra.mxu0 0.0
      %2344 = vmatprep.subr.mxu0 0.0
      %2345 = vmatpush1.xpose.msra.mxu0 0.0
      %2346 = vmatprep.subr.mxu0 0.0
      %2347 = vmatpush1.xpose.msra.mxu0 0.0
      %2348 = vmatprep.subr.mxu0 0.0
      %2349 = vmatpush1.xpose.msra.mxu0 0.0
      %2350 = vmatprep.subr.mxu0 0.0
      %2351 = vmatpush1.xpose.msra.mxu0 0.0
      %2352 = vmatprep.subr.mxu0 0.0
      %2353 = vmatpush1.xpose.msra.mxu0 0.0
      %2354 = vmatprep.subr.mxu0 0.0
      %2355 = vmatpush1.xpose.msra.mxu0 0.0
      %2356 = vmatprep.subr.mxu0 0.0
      %2357 = vmatpush1.xpose.msra.mxu0 0.0
      %2358 = vmatprep.subr.mxu0 0.0
      %2359 = vmatpush1.xpose.msra.mxu0 0.0
      %2360 = vmatprep.subr.mxu0 0.0
      %2361 = vmatpush1.xpose.msra.mxu0 0.0
      %2362 = vmatprep.mubr.f32.mxu0 0.0
      %2363 = vmatmul.mubr.f32.gmra.mrb[0].mxu0 %v2294
      %v2364 = vpop.f32.mrb[0].mxu0
      %v2365 = vadd.f32 %v2040, %v2364
      %v2366 = vpop.f32.mrb[0].mxu0
      %2367 = vdwg.mxu0
      %v2368 = vsel %vm881, %v2365, -inf
      %2369 = vmax.xlane.f32.xlu0 %v2368
      %v2370 = vpop.xlane.xlu0 %2369
      %v2371 = vsub.f32 %v2365, %v2370
      %v2372 = vmul.f32 %v2371, 1.442695
      %v2373 = vpow.pop %v2372
      %v2374 = vsel %vm881, %v2373, 0.0
      %2375 = vadd.xlane.f32.xlu0 %v2374
      %v2376 = vpop.xlane.xlu0 %2375
      %v2377 = vrcp.pop %v2376
      %v2378 = vmul.f32 %v2373, %v2377
      %2379 = vrot.lane.b32.xlu0 %v2037, 88
      %v2380 = vpop.permute.xlu0 %2379
      %v2383 = vsel %vm881, %v2378, 0
      %2385 = vmatprep.subr.mxu0 0.0
      %2386 = vmatpush1.msra.mxu0 %v2380
      %2387 = vmatprep.subr.mxu0 0.0
      %2388 = vmatpush1.msra.mxu0 0.0
      %2389 = vmatprep.subr.mxu0 0.0
      %2390 = vmatpush1.msra.mxu0 0.0
      %2391 = vmatprep.subr.mxu0 0.0
      %2392 = vmatpush1.msra.mxu0 0.0
      %2393 = vmatprep.subr.mxu0 0.0
      %2394 = vmatpush1.msra.mxu0 0.0
      %2395 = vmatprep.subr.mxu0 0.0
      %2396 = vmatpush1.msra.mxu0 0.0
      %2397 = vmatprep.subr.mxu0 0.0
      %2398 = vmatpush1.msra.mxu0 0.0
      %2399 = vmatprep.subr.mxu0 0.0
      %2400 = vmatpush1.msra.mxu0 0.0
      %2401 = vmatprep.subr.mxu0 0.0
      %2402 = vmatpush1.msra.mxu0 0.0
      %2403 = vmatprep.subr.mxu0 0.0
      %2404 = vmatpush1.msra.mxu0 0.0
      %2405 = vmatprep.subr.mxu0 0.0
      %2406 = vmatpush1.msra.mxu0 0.0
      %2407 = vmatprep.subr.mxu0 0.0
      %2408 = vmatpush1.msra.mxu0 0.0
      %2409 = vmatprep.subr.mxu0 0.0
      %2410 = vmatpush1.msra.mxu0 0.0
      %2411 = vmatprep.subr.mxu0 0.0
      %2412 = vmatpush1.msra.mxu0 0.0
      %2413 = vmatprep.subr.mxu0 0.0
      %2414 = vmatpush1.msra.mxu0 0.0
      %2415 = vmatprep.subr.mxu0 0.0
      %2416 = vmatpush1.msra.mxu0 0.0
      %2417 = vmatprep.subr.mxu0 0.0
      %2418 = vmatpush1.msra.mxu0 0.0
      %2419 = vmatprep.subr.mxu0 0.0
      %2420 = vmatpush1.msra.mxu0 0.0
      %2421 = vmatprep.subr.mxu0 0.0
      %2422 = vmatpush1.msra.mxu0 0.0
      %2423 = vmatprep.subr.mxu0 0.0
      %2424 = vmatpush1.msra.mxu0 0.0
      %2425 = vmatprep.subr.mxu0 0.0
      %2426 = vmatpush1.msra.mxu0 0.0
      %2427 = vmatprep.subr.mxu0 0.0
      %2428 = vmatpush1.msra.mxu0 0.0
      %2429 = vmatprep.subr.mxu0 0.0
      %2430 = vmatpush1.msra.mxu0 0.0
      %2431 = vmatprep.subr.mxu0 0.0
      %2432 = vmatpush1.msra.mxu0 0.0
      %2433 = vmatprep.subr.mxu0 0.0
      %2434 = vmatpush1.msra.mxu0 0.0
      %2435 = vmatprep.subr.mxu0 0.0
      %2436 = vmatpush1.msra.mxu0 0.0
      %2437 = vmatprep.subr.mxu0 0.0
      %2438 = vmatpush1.msra.mxu0 0.0
      %2439 = vmatprep.subr.mxu0 0.0
      %2440 = vmatpush1.msra.mxu0 0.0
      %2441 = vmatprep.subr.mxu0 0.0
      %2442 = vmatpush1.msra.mxu0 0.0
      %2443 = vmatprep.subr.mxu0 0.0
      %2444 = vmatpush1.msra.mxu0 0.0
      %2445 = vmatprep.subr.mxu0 0.0
      %2446 = vmatpush1.msra.mxu0 0.0
      %2447 = vmatprep.subr.mxu0 0.0
      %2448 = vmatpush1.msra.mxu0 0.0
      %2449 = vmatprep.mubr.f32.mxu0 0.0
      %2450 = vmatmul.mubr.f32.gmra.mrb[0].mxu0 %v2383
      %v2451 = vpop.f32.mrb[0].mxu0
      %v2452 = vadd.f32 0.0, %v2451
      %v2453 = vpop.f32.mrb[0].mxu0
      %2454 = vdwg.mxu0
      %v2456 = vsel %vm881, %v2452, 0
      %2458 = vmatprep.subr.mxu0 0.0
      %2459 = vmatpush1.msra.mxu0 %v2042
      %2460 = vmatprep.subr.mxu0 0.0
      %2461 = vmatpush1.msra.mxu0 0.0
      %2462 = vmatprep.subr.mxu0 0.0
      %2463 = vmatpush1.msra.mxu0 0.0
      %2464 = vmatprep.subr.mxu0 0.0
      %2465 = vmatpush1.msra.mxu0 0.0
      %2466 = vmatprep.subr.mxu0 0.0
      %2467 = vmatpush1.msra.mxu0 0.0
      %2468 = vmatprep.subr.mxu0 0.0
      %2469 = vmatpush1.msra.mxu0 0.0
      %2470 = vmatprep.subr.mxu0 0.0
      %2471 = vmatpush1.msra.mxu0 0.0
      %2472 = vmatprep.subr.mxu0 0.0
      %2473 = vmatpush1.msra.mxu0 0.0
      %2474 = vmatprep.subr.mxu0 0.0
      %2475 = vmatpush1.msra.mxu0 0.0
      %2476 = vmatprep.subr.mxu0 0.0
      %2477 = vmatpush1.msra.mxu0 0.0
      %2478 = vmatprep.subr.mxu0 0.0
      %2479 = vmatpush1.msra.mxu0 0.0
      %2480 = vmatprep.subr.mxu0 0.0
      %2481 = vmatpush1.msra.mxu0 0.0
      %2482 = vmatprep.subr.mxu0 0.0
      %2483 = vmatpush1.msra.mxu0 0.0
      %2484 = vmatprep.subr.mxu0 0.0
      %2485 = vmatpush1.msra.mxu0 0.0
      %2486 = vmatprep.subr.mxu0 0.0
      %2487 = vmatpush1.msra.mxu0 0.0
      %2488 = vmatprep.subr.mxu0 0.0
      %2489 = vmatpush1.msra.mxu0 0.0
      %2490 = vmatprep.subr.mxu0 0.0
      %2491 = vmatpush1.msra.mxu0 0.0
      %2492 = vmatprep.subr.mxu0 0.0
      %2493 = vmatpush1.msra.mxu0 0.0
      %2494 = vmatprep.subr.mxu0 0.0
      %2495 = vmatpush1.msra.mxu0 0.0
      %2496 = vmatprep.subr.mxu0 0.0
      %2497 = vmatpush1.msra.mxu0 0.0
      %2498 = vmatprep.subr.mxu0 0.0
      %2499 = vmatpush1.msra.mxu0 0.0
      %2500 = vmatprep.subr.mxu0 0.0
      %2501 = vmatpush1.msra.mxu0 0.0
      %2502 = vmatprep.subr.mxu0 0.0
      %2503 = vmatpush1.msra.mxu0 0.0
      %2504 = vmatprep.subr.mxu0 0.0
      %2505 = vmatpush1.msra.mxu0 0.0
      %2506 = vmatprep.subr.mxu0 0.0
      %2507 = vmatpush1.msra.mxu0 0.0
      %2508 = vmatprep.subr.mxu0 0.0
      %2509 = vmatpush1.msra.mxu0 0.0
      %2510 = vmatprep.subr.mxu0 0.0
      %2511 = vmatpush1.msra.mxu0 0.0
      %2512 = vmatprep.subr.mxu0 0.0
      %2513 = vmatpush1.msra.mxu0 0.0
      %2514 = vmatprep.subr.mxu0 0.0
      %2515 = vmatpush1.msra.mxu0 0.0
      %2516 = vmatprep.subr.mxu0 0.0
      %2517 = vmatpush1.msra.mxu0 0.0
      %2518 = vmatprep.subr.mxu0 0.0
      %2519 = vmatpush1.msra.mxu0 0.0
      %2520 = vmatprep.subr.mxu0 0.0
      %2521 = vmatpush1.msra.mxu0 0.0
      %2522 = vmatprep.mubr.f32.mxu0 0.0
      %2523 = vmatmul.mubr.f32.gmra.mrb[0].mxu0 %v2456
      %v2524 = vpop.f32.mrb[0].mxu0
      %v2525 = vadd.f32 0.0, %v2524
      %v2526 = vpop.f32.mrb[0].mxu0
      %2527 = vdwg.mxu0
      %v2528 = vadd.f32 %v2289, %v2525
      %2529 = vrot.lane.b32.xlu0 %v2046, 112
      %v2530 = vpop.permute.xlu0 %2529
      %2531 = vrot.lane.b32.xlu0 %v2037, 112
      %v2532 = vpop.permute.xlu0 %2531
      %v2533 = vsel %vm881, %v2530, 0
      %v2535 = vsel %vm881, %v2532, 0
      %2537 = vmatprep.subr.mxu0 0.0
      %2538 = vmatpush1.xpose.msra.mxu0 %v2535
      %2539 = vmatprep.subr.mxu0 0.0
      %2540 = vmatpush1.xpose.msra.mxu0 0.0
      %2541 = vmatprep.subr.mxu0 0.0
      %2542 = vmatpush1.xpose.msra.mxu0 0.0
      %2543 = vmatprep.subr.mxu0 0.0
      %2544 = vmatpush1.xpose.msra.mxu0 0.0
      %2545 = vmatprep.subr.mxu0 0.0
      %2546 = vmatpush1.xpose.msra.mxu0 0.0
      %2547 = vmatprep.subr.mxu0 0.0
      %2548 = vmatpush1.xpose.msra.mxu0 0.0
      %2549 = vmatprep.subr.mxu0 0.0
      %2550 = vmatpush1.xpose.msra.mxu0 0.0
      %2551 = vmatprep.subr.mxu0 0.0
      %2552 = vmatpush1.xpose.msra.mxu0 0.0
      %2553 = vmatprep.subr.mxu0 0.0
      %2554 = vmatpush1.xpose.msra.mxu0 0.0
      %2555 = vmatprep.subr.mxu0 0.0
      %2556 = vmatpush1.xpose.msra.mxu0 0.0
      %2557 = vmatprep.subr.mxu0 0.0
      %2558 = vmatpush1.xpose.msra.mxu0 0.0
      %2559 = vmatprep.subr.mxu0 0.0
      %2560 = vmatpush1.xpose.msra.mxu0 0.0
      %2561 = vmatprep.subr.mxu0 0.0
      %2562 = vmatpush1.xpose.msra.mxu0 0.0
      %2563 = vmatprep.subr.mxu0 0.0
      %2564 = vmatpush1.xpose.msra.mxu0 0.0
      %2565 = vmatprep.subr.mxu0 0.0
      %2566 = vmatpush1.xpose.msra.mxu0 0.0
      %2567 = vmatprep.subr.mxu0 0.0
      %2568 = vmatpush1.xpose.msra.mxu0 0.0
      %2569 = vmatprep.subr.mxu0 0.0
      %2570 = vmatpush1.xpose.msra.mxu0 0.0
      %2571 = vmatprep.subr.mxu0 0.0
      %2572 = vmatpush1.xpose.msra.mxu0 0.0
      %2573 = vmatprep.subr.mxu0 0.0
      %2574 = vmatpush1.xpose.msra.mxu0 0.0
      %2575 = vmatprep.subr.mxu0 0.0
      %2576 = vmatpush1.xpose.msra.mxu0 0.0
      %2577 = vmatprep.subr.mxu0 0.0
      %2578 = vmatpush1.xpose.msra.mxu0 0.0
      %2579 = vmatprep.subr.mxu0 0.0
      %2580 = vmatpush1.xpose.msra.mxu0 0.0
      %2581 = vmatprep.subr.mxu0 0.0
      %2582 = vmatpush1.xpose.msra.mxu0 0.0
      %2583 = vmatprep.subr.mxu0 0.0
      %2584 = vmatpush1.xpose.msra.mxu0 0.0
      %2585 = vmatprep.subr.mxu0 0.0
      %2586 = vmatpush1.xpose.msra.mxu0 0.0
      %2587 = vmatprep.subr.mxu0 0.0
      %2588 = vmatpush1.xpose.msra.mxu0 0.0
      %2589 = vmatprep.subr.mxu0 0.0
      %2590 = vmatpush1.xpose.msra.mxu0 0.0
      %2591 = vmatprep.subr.mxu0 0.0
      %2592 = vmatpush1.xpose.msra.mxu0 0.0
      %2593 = vmatprep.subr.mxu0 0.0
      %2594 = vmatpush1.xpose.msra.mxu0 0.0
      %2595 = vmatprep.subr.mxu0 0.0
      %2596 = vmatpush1.xpose.msra.mxu0 0.0
      %2597 = vmatprep.subr.mxu0 0.0
      %2598 = vmatpush1.xpose.msra.mxu0 0.0
      %2599 = vmatprep.subr.mxu0 0.0
      %2600 = vmatpush1.xpose.msra.mxu0 0.0
      %2601 = vmatprep.mubr.f32.mxu0 0.0
      %2602 = vmatmul.mubr.f32.gmra.mrb[0].mxu0 %v2533
      %v2603 = vpop.f32.mrb[0].mxu0
      %v2604 = vadd.f32 %v2040, %v2603
      %v2605 = vpop.f32.mrb[0].mxu0
      %2606 = vdwg.mxu0
      %v2607 = vsel %vm881, %v2604, -inf
      %2608 = vmax.xlane.f32.xlu0 %v2607
      %v2609 = vpop.xlane.xlu0 %2608
      %v2610 = vsub.f32 %v2604, %v2609
      %v2611 = vmul.f32 %v2610, 1.442695
      %v2612 = vpow.pop %v2611
      %v2613 = vsel %vm881, %v2612, 0.0
      %2614 = vadd.xlane.f32.xlu0 %v2613
      %v2615 = vpop.xlane.xlu0 %2614
      %v2616 = vrcp.pop %v2615
      %v2617 = vmul.f32 %v2612, %v2616
      %2618 = vrot.lane.b32.xlu0 %v2037, 80
      %v2619 = vpop.permute.xlu0 %2618
      %v2622 = vsel %vm881, %v2617, 0
      %2624 = vmatprep.subr.mxu0 0.0
      %2625 = vmatpush1.msra.mxu0 %v2619
      %2626 = vmatprep.subr.mxu0 0.0
      %2627 = vmatpush1.msra.mxu0 0.0
      %2628 = vmatprep.subr.mxu0 0.0
      %2629 = vmatpush1.msra.mxu0 0.0
      %2630 = vmatprep.subr.mxu0 0.0
      %2631 = vmatpush1.msra.mxu0 0.0
      %2632 = vmatprep.subr.mxu0 0.0
      %2633 = vmatpush1.msra.mxu0 0.0
      %2634 = vmatprep.subr.mxu0 0.0
      %2635 = vmatpush1.msra.mxu0 0.0
      %2636 = vmatprep.subr.mxu0 0.0
      %2637 = vmatpush1.msra.mxu0 0.0
      %2638 = vmatprep.subr.mxu0 0.0
      %2639 = vmatpush1.msra.mxu0 0.0
      %2640 = vmatprep.subr.mxu0 0.0
      %2641 = vmatpush1.msra.mxu0 0.0
      %2642 = vmatprep.subr.mxu0 0.0
      %2643 = vmatpush1.msra.mxu0 0.0
      %2644 = vmatprep.subr.mxu0 0.0
      %2645 = vmatpush1.msra.mxu0 0.0
      %2646 = vmatprep.subr.mxu0 0.0
      %2647 = vmatpush1.msra.mxu0 0.0
      %2648 = vmatprep.subr.mxu0 0.0
      %2649 = vmatpush1.msra.mxu0 0.0
      %2650 = vmatprep.subr.mxu0 0.0
      %2651 = vmatpush1.msra.mxu0 0.0
      %2652 = vmatprep.subr.mxu0 0.0
      %2653 = vmatpush1.msra.mxu0 0.0
      %2654 = vmatprep.subr.mxu0 0.0
      %2655 = vmatpush1.msra.mxu0 0.0
      %2656 = vmatprep.subr.mxu0 0.0
      %2657 = vmatpush1.msra.mxu0 0.0
      %2658 = vmatprep.subr.mxu0 0.0
      %2659 = vmatpush1.msra.mxu0 0.0
      %2660 = vmatprep.subr.mxu0 0.0
      %2661 = vmatpush1.msra.mxu0 0.0
      %2662 = vmatprep.subr.mxu0 0.0
      %2663 = vmatpush1.msra.mxu0 0.0
      %2664 = vmatprep.subr.mxu0 0.0
      %2665 = vmatpush1.msra.mxu0 0.0
      %2666 = vmatprep.subr.mxu0 0.0
      %2667 = vmatpush1.msra.mxu0 0.0
      %2668 = vmatprep.subr.mxu0 0.0
      %2669 = vmatpush1.msra.mxu0 0.0
      %2670 = vmatprep.subr.mxu0 0.0
      %2671 = vmatpush1.msra.mxu0 0.0
      %2672 = vmatprep.subr.mxu0 0.0
      %2673 = vmatpush1.msra.mxu0 0.0
      %2674 = vmatprep.subr.mxu0 0.0
      %2675 = vmatpush1.msra.mxu0 0.0
      %2676 = vmatprep.subr.mxu0 0.0
      %2677 = vmatpush1.msra.mxu0 0.0
      %2678 = vmatprep.subr.mxu0 0.0
      %2679 = vmatpush1.msra.mxu0 0.0
      %2680 = vmatprep.subr.mxu0 0.0
      %2681 = vmatpush1.msra.mxu0 0.0
      %2682 = vmatprep.subr.mxu0 0.0
      %2683 = vmatpush1.msra.mxu0 0.0
      %2684 = vmatprep.subr.mxu0 0.0
      %2685 = vmatpush1.msra.mxu0 0.0
      %2686 = vmatprep.subr.mxu0 0.0
      %2687 = vmatpush1.msra.mxu0 0.0
      %2688 = vmatprep.mubr.f32.mxu0 0.0
      %2689 = vmatmul.mubr.f32.gmra.mrb[0].mxu0 %v2622
      %v2690 = vpop.f32.mrb[0].mxu0
      %v2691 = vadd.f32 0.0, %v2690
      %v2692 = vpop.f32.mrb[0].mxu0
      %2693 = vdwg.mxu0
      %v2695 = vsel %vm881, %v2691, 0
      %2697 = vmatprep.subr.mxu0 0.0
      %2698 = vmatpush1.msra.mxu0 %v2043
      %2699 = vmatprep.subr.mxu0 0.0
      %2700 = vmatpush1.msra.mxu0 0.0
      %2701 = vmatprep.subr.mxu0 0.0
      %2702 = vmatpush1.msra.mxu0 0.0
      %2703 = vmatprep.subr.mxu0 0.0
      %2704 = vmatpush1.msra.mxu0 0.0
      %2705 = vmatprep.subr.mxu0 0.0
      %2706 = vmatpush1.msra.mxu0 0.0
      %2707 = vmatprep.subr.mxu0 0.0
      %2708 = vmatpush1.msra.mxu0 0.0
      %2709 = vmatprep.subr.mxu0 0.0
      %2710 = vmatpush1.msra.mxu0 0.0
      %2711 = vmatprep.subr.mxu0 0.0
      %2712 = vmatpush1.msra.mxu0 0.0
      %2713 = vmatprep.subr.mxu0 0.0
      %2714 = vmatpush1.msra.mxu0 0.0
      %2715 = vmatprep.subr.mxu0 0.0
      %2716 = vmatpush1.msra.mxu0 0.0
      %2717 = vmatprep.subr.mxu0 0.0
      %2718 = vmatpush1.msra.mxu0 0.0
      %2719 = vmatprep.subr.mxu0 0.0
      %2720 = vmatpush1.msra.mxu0 0.0
      %2721 = vmatprep.subr.mxu0 0.0
      %2722 = vmatpush1.msra.mxu0 0.0
      %2723 = vmatprep.subr.mxu0 0.0
      %2724 = vmatpush1.msra.mxu0 0.0
      %2725 = vmatprep.subr.mxu0 0.0
      %2726 = vmatpush1.msra.mxu0 0.0
      %2727 = vmatprep.subr.mxu0 0.0
      %2728 = vmatpush1.msra.mxu0 0.0
      %2729 = vmatprep.subr.mxu0 0.0
      %2730 = vmatpush1.msra.mxu0 0.0
      %2731 = vmatprep.subr.mxu0 0.0
      %2732 = vmatpush1.msra.mxu0 0.0
      %2733 = vmatprep.subr.mxu0 0.0
      %2734 = vmatpush1.msra.mxu0 0.0
      %2735 = vmatprep.subr.mxu0 0.0
      %2736 = vmatpush1.msra.mxu0 0.0
      %2737 = vmatprep.subr.mxu0 0.0
      %2738 = vmatpush1.msra.mxu0 0.0
      %2739 = vmatprep.subr.mxu0 0.0
      %2740 = vmatpush1.msra.mxu0 0.0
      %2741 = vmatprep.subr.mxu0 0.0
      %2742 = vmatpush1.msra.mxu0 0.0
      %2743 = vmatprep.subr.mxu0 0.0
      %2744 = vmatpush1.msra.mxu0 0.0
      %2745 = vmatprep.subr.mxu0 0.0
      %2746 = vmatpush1.msra.mxu0 0.0
      %2747 = vmatprep.subr.mxu0 0.0
      %2748 = vmatpush1.msra.mxu0 0.0
      %2749 = vmatprep.subr.mxu0 0.0
      %2750 = vmatpush1.msra.mxu0 0.0
      %2751 = vmatprep.subr.mxu0 0.0
      %2752 = vmatpush1.msra.mxu0 0.0
      %2753 = vmatprep.subr.mxu0 0.0
      %2754 = vmatpush1.msra.mxu0 0.0
      %2755 = vmatprep.subr.mxu0 0.0
      %2756 = vmatpush1.msra.mxu0 0.0
      %2757 = vmatprep.subr.mxu0 0.0
      %2758 = vmatpush1.msra.mxu0 0.0
      %2759 = vmatprep.subr.mxu0 0.0
      %2760 = vmatpush1.msra.mxu0 0.0
      %2761 = vmatprep.mubr.f32.mxu0 0.0
      %2762 = vmatmul.mubr.f32.gmra.mrb[0].mxu0 %v2695
      %v2763 = vpop.f32.mrb[0].mxu0
      %v2764 = vadd.f32 0.0, %v2763
      %v2765 = vpop.f32.mrb[0].mxu0
      %2766 = vdwg.mxu0
      %v2767 = vadd.f32 %v2528, %v2764
      %2768 = vrot.lane.b32.xlu0 %v2046, 104
      %v2769 = vpop.permute.xlu0 %2768
      %2770 = vrot.lane.b32.xlu0 %v2037, 104
      %v2771 = vpop.permute.xlu0 %2770
      %v2772 = vsel %vm881, %v2769, 0
      %v2774 = vsel %vm881, %v2771, 0
      %2776 = vmatprep.subr.mxu0 0.0
      %2777 = vmatpush1.xpose.msra.mxu0 %v2774
      %2778 = vmatprep.subr.mxu0 0.0
      %2779 = vmatpush1.xpose.msra.mxu0 0.0
      %2780 = vmatprep.subr.mxu0 0.0
      %2781 = vmatpush1.xpose.msra.mxu0 0.0
      %2782 = vmatprep.subr.mxu0 0.0
      %2783 = vmatpush1.xpose.msra.mxu0 0.0
      %2784 = vmatprep.subr.mxu0 0.0
      %2785 = vmatpush1.xpose.msra.mxu0 0.0
      %2786 = vmatprep.subr.mxu0 0.0
      %2787 = vmatpush1.xpose.msra.mxu0 0.0
      %2788 = vmatprep.subr.mxu0 0.0
      %2789 = vmatpush1.xpose.msra.mxu0 0.0
      %2790 = vmatprep.subr.mxu0 0.0
      %2791 = vmatpush1.xpose.msra.mxu0 0.0
      %2792 = vmatprep.subr.mxu0 0.0
      %2793 = vmatpush1.xpose.msra.mxu0 0.0
      %2794 = vmatprep.subr.mxu0 0.0
      %2795 = vmatpush1.xpose.msra.mxu0 0.0
      %2796 = vmatprep.subr.mxu0 0.0
      %2797 = vmatpush1.xpose.msra.mxu0 0.0
      %2798 = vmatprep.subr.mxu0 0.0
      %2799 = vmatpush1.xpose.msra.mxu0 0.0
      %2800 = vmatprep.subr.mxu0 0.0
      %2801 = vmatpush1.xpose.msra.mxu0 0.0
      %2802 = vmatprep.subr.mxu0 0.0
      %2803 = vmatpush1.xpose.msra.mxu0 0.0
      %2804 = vmatprep.subr.mxu0 0.0
      %2805 = vmatpush1.xpose.msra.mxu0 0.0
      %2806 = vmatprep.subr.mxu0 0.0
      %2807 = vmatpush1.xpose.msra.mxu0 0.0
      %2808 = vmatprep.subr.mxu0 0.0
      %2809 = vmatpush1.xpose.msra.mxu0 0.0
      %2810 = vmatprep.subr.mxu0 0.0
      %2811 = vmatpush1.xpose.msra.mxu0 0.0
      %2812 = vmatprep.subr.mxu0 0.0
      %2813 = vmatpush1.xpose.msra.mxu0 0.0
      %2814 = vmatprep.subr.mxu0 0.0
      %2815 = vmatpush1.xpose.msra.mxu0 0.0
      %2816 = vmatprep.subr.mxu0 0.0
      %2817 = vmatpush1.xpose.msra.mxu0 0.0
      %2818 = vmatprep.subr.mxu0 0.0
      %2819 = vmatpush1.xpose.msra.mxu0 0.0
      %2820 = vmatprep.subr.mxu0 0.0
      %2821 = vmatpush1.xpose.msra.mxu0 0.0
      %2822 = vmatprep.subr.mxu0 0.0
      %2823 = vmatpush1.xpose.msra.mxu0 0.0
      %2824 = vmatprep.subr.mxu0 0.0
      %2825 = vmatpush1.xpose.msra.mxu0 0.0
      %2826 = vmatprep.subr.mxu0 0.0
      %2827 = vmatpush1.xpose.msra.mxu0 0.0
      %2828 = vmatprep.subr.mxu0 0.0
      %2829 = vmatpush1.xpose.msra.mxu0 0.0
      %2830 = vmatprep.subr.mxu0 0.0
      %2831 = vmatpush1.xpose.msra.mxu0 0.0
      %2832 = vmatprep.subr.mxu0 0.0
      %2833 = vmatpush1.xpose.msra.mxu0 0.0
      %2834 = vmatprep.subr.mxu0 0.0
      %2835 = vmatpush1.xpose.msra.mxu0 0.0
      %2836 = vmatprep.subr.mxu0 0.0
      %2837 = vmatpush1.xpose.msra.mxu0 0.0
      %2838 = vmatprep.subr.mxu0 0.0
      %2839 = vmatpush1.xpose.msra.mxu0 0.0
      %2840 = vmatprep.mubr.f32.mxu0 0.0
      %2841 = vmatmul.mubr.f32.gmra.mrb[0].mxu0 %v2772
      %v2842 = vpop.f32.mrb[0].mxu0
      %v2843 = vadd.f32 %v2040, %v2842
      %v2844 = vpop.f32.mrb[0].mxu0
      %2845 = vdwg.mxu0
      %v2846 = vsel %vm881, %v2843, -inf
      %2847 = vmax.xlane.f32.xlu0 %v2846
      %v2848 = vpop.xlane.xlu0 %2847
      %v2849 = vsub.f32 %v2843, %v2848
      %v2850 = vmul.f32 %v2849, 1.442695
      %v2851 = vpow.pop %v2850
      %v2852 = vsel %vm881, %v2851, 0.0
      %2853 = vadd.xlane.f32.xlu0 %v2852
      %v2854 = vpop.xlane.xlu0 %2853
      %v2855 = vrcp.pop %v2854
      %v2856 = vmul.f32 %v2851, %v2855
      %2857 = vrot.lane.b32.xlu0 %v2037, 72
      %v2858 = vpop.permute.xlu0 %2857
      %v2861 = vsel %vm881, %v2856, 0
      %2863 = vmatprep.subr.mxu0 0.0
      %2864 = vmatpush1.msra.mxu0 %v2858
      %2865 = vmatprep.subr.mxu0 0.0
      %2866 = vmatpush1.msra.mxu0 0.0
      %2867 = vmatprep.subr.mxu0 0.0
      %2868 = vmatpush1.msra.mxu0 0.0
      %2869 = vmatprep.subr.mxu0 0.0
      %2870 = vmatpush1.msra.mxu0 0.0
      %2871 = vmatprep.subr.mxu0 0.0
      %2872 = vmatpush1.msra.mxu0 0.0
      %2873 = vmatprep.subr.mxu0 0.0
      %2874 = vmatpush1.msra.mxu0 0.0
      %2875 = vmatprep.subr.mxu0 0.0
      %2876 = vmatpush1.msra.mxu0 0.0
      %2877 = vmatprep.subr.mxu0 0.0
      %2878 = vmatpush1.msra.mxu0 0.0
      %2879 = vmatprep.subr.mxu0 0.0
      %2880 = vmatpush1.msra.mxu0 0.0
      %2881 = vmatprep.subr.mxu0 0.0
      %2882 = vmatpush1.msra.mxu0 0.0
      %2883 = vmatprep.subr.mxu0 0.0
      %2884 = vmatpush1.msra.mxu0 0.0
      %2885 = vmatprep.subr.mxu0 0.0
      %2886 = vmatpush1.msra.mxu0 0.0
      %2887 = vmatprep.subr.mxu0 0.0
      %2888 = vmatpush1.msra.mxu0 0.0
      %2889 = vmatprep.subr.mxu0 0.0
      %2890 = vmatpush1.msra.mxu0 0.0
      %2891 = vmatprep.subr.mxu0 0.0
      %2892 = vmatpush1.msra.mxu0 0.0
      %2893 = vmatprep.subr.mxu0 0.0
      %2894 = vmatpush1.msra.mxu0 0.0
      %2895 = vmatprep.subr.mxu0 0.0
      %2896 = vmatpush1.msra.mxu0 0.0
      %2897 = vmatprep.subr.mxu0 0.0
      %2898 = vmatpush1.msra.mxu0 0.0
      %2899 = vmatprep.subr.mxu0 0.0
      %2900 = vmatpush1.msra.mxu0 0.0
      %2901 = vmatprep.subr.mxu0 0.0
      %2902 = vmatpush1.msra.mxu0 0.0
      %2903 = vmatprep.subr.mxu0 0.0
      %2904 = vmatpush1.msra.mxu0 0.0
      %2905 = vmatprep.subr.mxu0 0.0
      %2906 = vmatpush1.msra.mxu0 0.0
      %2907 = vmatprep.subr.mxu0 0.0
      %2908 = vmatpush1.msra.mxu0 0.0
      %2909 = vmatprep.subr.mxu0 0.0
      %2910 = vmatpush1.msra.mxu0 0.0
      %2911 = vmatprep.subr.mxu0 0.0
      %2912 = vmatpush1.msra.mxu0 0.0
      %2913 = vmatprep.subr.mxu0 0.0
      %2914 = vmatpush1.msra.mxu0 0.0
      %2915 = vmatprep.subr.mxu0 0.0
      %2916 = vmatpush1.msra.mxu0 0.0
      %2917 = vmatprep.subr.mxu0 0.0
      %2918 = vmatpush1.msra.mxu0 0.0
      %2919 = vmatprep.subr.mxu0 0.0
      %2920 = vmatpush1.msra.mxu0 0.0
      %2921 = vmatprep.subr.mxu0 0.0
      %2922 = vmatpush1.msra.mxu0 0.0
      %2923 = vmatprep.subr.mxu0 0.0
      %2924 = vmatpush1.msra.mxu0 0.0
      %2925 = vmatprep.subr.mxu0 0.0
      %2926 = vmatpush1.msra.mxu0 0.0
      %2927 = vmatprep.mubr.f32.mxu0 0.0
      %2928 = vmatmul.mubr.f32.gmra.mrb[0].mxu0 %v2861
      %v2929 = vpop.f32.mrb[0].mxu0
      %v2930 = vadd.f32 0.0, %v2929
      %v2931 = vpop.f32.mrb[0].mxu0
      %2932 = vdwg.mxu0
      %v2934 = vsel %vm881, %v2930, 0
      %2936 = vmatprep.subr.mxu0 0.0
      %2937 = vmatpush1.msra.mxu0 %v2044
      %2938 = vmatprep.subr.mxu0 0.0
      %2939 = vmatpush1.msra.mxu0 0.0
      %2940 = vmatprep.subr.mxu0 0.0
      %2941 = vmatpush1.msra.mxu0 0.0
      %2942 = vmatprep.subr.mxu0 0.0
      %2943 = vmatpush1.msra.mxu0 0.0
      %2944 = vmatprep.subr.mxu0 0.0
      %2945 = vmatpush1.msra.mxu0 0.0
      %2946 = vmatprep.subr.mxu0 0.0
      %2947 = vmatpush1.msra.mxu0 0.0
      %2948 = vmatprep.subr.mxu0 0.0
      %2949 = vmatpush1.msra.mxu0 0.0
      %2950 = vmatprep.subr.mxu0 0.0
      %2951 = vmatpush1.msra.mxu0 0.0
      %2952 = vmatprep.subr.mxu0 0.0
      %2953 = vmatpush1.msra.mxu0 0.0
      %2954 = vmatprep.subr.mxu0 0.0
      %2955 = vmatpush1.msra.mxu0 0.0
      %2956 = vmatprep.subr.mxu0 0.0
      %2957 = vmatpush1.msra.mxu0 0.0
      %2958 = vmatprep.subr.mxu0 0.0
      %2959 = vmatpush1.msra.mxu0 0.0
      %2960 = vmatprep.subr.mxu0 0.0
      %2961 = vmatpush1.msra.mxu0 0.0
      %2962 = vmatprep.subr.mxu0 0.0
      %2963 = vmatpush1.msra.mxu0 0.0
      %2964 = vmatprep.subr.mxu0 0.0
      %2965 = vmatpush1.msra.mxu0 0.0
      %2966 = vmatprep.subr.mxu0 0.0
      %2967 = vmatpush1.msra.mxu0 0.0
      %2968 = vmatprep.subr.mxu0 0.0
      %2969 = vmatpush1.msra.mxu0 0.0
      %2970 = vmatprep.subr.mxu0 0.0
      %2971 = vmatpush1.msra.mxu0 0.0
      %2972 = vmatprep.subr.mxu0 0.0
      %2973 = vmatpush1.msra.mxu0 0.0
      %2974 = vmatprep.subr.mxu0 0.0
      %2975 = vmatpush1.msra.mxu0 0.0
      %2976 = vmatprep.subr.mxu0 0.0
      %2977 = vmatpush1.msra.mxu0 0.0
      %2978 = vmatprep.subr.mxu0 0.0
      %2979 = vmatpush1.msra.mxu0 0.0
      %2980 = vmatprep.subr.mxu0 0.0
      %2981 = vmatpush1.msra.mxu0 0.0
      %2982 = vmatprep.subr.mxu0 0.0
      %2983 = vmatpush1.msra.mxu0 0.0
      %2984 = vmatprep.subr.mxu0 0.0
      %2985 = vmatpush1.msra.mxu0 0.0
      %2986 = vmatprep.subr.mxu0 0.0
      %2987 = vmatpush1.msra.mxu0 0.0
      %2988 = vmatprep.subr.mxu0 0.0
      %2989 = vmatpush1.msra.mxu0 0.0
      %2990 = vmatprep.subr.mxu0 0.0
      %2991 = vmatpush1.msra.mxu0 0.0
      %2992 = vmatprep.subr.mxu0 0.0
      %2993 = vmatpush1.msra.mxu0 0.0
      %2994 = vmatprep.subr.mxu0 0.0
      %2995 = vmatpush1.msra.mxu0 0.0
      %2996 = vmatprep.subr.mxu0 0.0
      %2997 = vmatpush1.msra.mxu0 0.0
      %2998 = vmatprep.subr.mxu0 0.0
      %2999 = vmatpush1.msra.mxu0 0.0
      %3000 = vmatprep.mubr.f32.mxu0 0.0
      %3001 = vmatmul.mubr.f32.gmra.mrb[0].mxu0 %v2934
      %v3002 = vpop.f32.mrb[0].mxu0
      %v3003 = vadd.f32 0.0, %v3002
      %v3004 = vpop.f32.mrb[0].mxu0
      %3005 = vdwg.mxu0
      %v3006 = vadd.f32 %v2767, %v3003
      %v3007 = vld [vmem:[%s16] sm:$0x1]
      %v3008 = vld [vmem:[%s17] sm:$0x1]
      %v3009 = vadd.f32 %v1871, %v3006
      %v3010 = vsel %vm797, %v3009, 0.0
      %3011 = vadd.xlane.f32.xlu0 %v3010
      %v3012 = vpop.xlane.xlu0 %3011
      %v3013 = vmul.f32 %v3012, %v1847
      %v3014 = vsub.f32 %v3009, %v3013
      %v3015 = vmul.f32 %v3014, %v3014
      %v3016 = vsel %vm797, %v3015, 0.0
      %3017 = vadd.xlane.f32.xlu0 %v3016
      %v3018 = vpop.xlane.xlu0 %3017
      %v3019 = vmul.f32 %v3018, %v1847
      %v3020 = vadd.f32 %v3019, 1e-06
      %v3021 = vrsqrt.pop %v3020
      %v3022 = vmul.f32 %v3014, %v3021
      %v3024 = vlaneseq
      %v3025 = vshrl.u32 %v3024, 7
      %v3026 = vsub.s32 0, %v3025
      %v3027 = vrot.slane %v3007, %v3026
      %v3029 = vmul.f32 %v3022, %v3027
      %v3031 = vlaneseq
      %v3032 = vshrl.u32 %v3031, 7
      %v3033 = vsub.s32 0, %v3032
      %v3034 = vrot.slane %v3008, %v3033
      %v3036 = vadd.f32 %v3029, %v3034
      %v3037 = vld [vmem:[%s18] sm:$0xff]
      %v3038 = vld [vmem:[%s18 + $0x8] sm:$0xff]
      %v3039 = vld [vmem:[%s18 + $0x10] sm:$0xff]
      %v3040 = vld [vmem:[%s18 + $0x18] sm:$0xff]
      %v3041 = vld [vmem:[%s19] sm:$0x1]
      %v3043 = vlaneseq
      %v3044 = vshrl.u32 %v3043, 7
      %v3045 = vsub.s32 0, %v3044
      %v3046 = vrot.slane %v3041, %v3045
      %v3049 = vsel %vm797, %v3036, 0
      %3051 = vmatprep.subr.mxu0 0.0
      %3052 = vmatpush1.msra.mxu0 %v3037
      %3053 = vmatprep.subr.mxu0 0.0
      %3054 = vmatpush1.msra.mxu0 %v3038
      %3055 = vmatprep.subr.mxu0 0.0
      %3056 = vmatpush1.msra.mxu0 %v3039
      %3057 = vmatprep.subr.mxu0 0.0
      %3058 = vmatpush1.msra.mxu0 %v3040
      %3059 = vmatprep.subr.mxu0 0.0
      %3060 = vmatpush1.msra.mxu0 0.0
      %3061 = vmatprep.subr.mxu0 0.0
      %3062 = vmatpush1.msra.mxu0 0.0
      %3063 = vmatprep.subr.mxu0 0.0
      %3064 = vmatpush1.msra.mxu0 0.0
      %3065 = vmatprep.subr.mxu0 0.0
      %3066 = vmatpush1.msra.mxu0 0.0
      %3067 = vmatprep.subr.mxu0 0.0
      %3068 = vmatpush1.msra.mxu0 0.0
      %3069 = vmatprep.subr.mxu0 0.0
      %3070 = vmatpush1.msra.mxu0 0.0
      %3071 = vmatprep.subr.mxu0 0.0
      %3072 = vmatpush1.msra.mxu0 0.0
      %3073 = vmatprep.subr.mxu0 0.0
      %3074 = vmatpush1.msra.mxu0 0.0
      %3075 = vmatprep.subr.mxu0 0.0
      %3076 = vmatpush1.msra.mxu0 0.0
      %3077 = vmatprep.subr.mxu0 0.0
      %3078 = vmatpush1.msra.mxu0 0.0
      %3079 = vmatprep.subr.mxu0 0.0
      %3080 = vmatpush1.msra.mxu0 0.0
      %3081 = vmatprep.subr.mxu0 0.0
      %3082 = vmatpush1.msra.mxu0 0.0
      %3083 = vmatprep.subr.mxu0 0.0
      %3084 = vmatpush1.msra.mxu0 0.0
      %3085 = vmatprep.subr.mxu0 0.0
      %3086 = vmatpush1.msra.mxu0 0.0
      %3087 = vmatprep.subr.mxu0 0.0
      %3088 = vmatpush1.msra.mxu0 0.0
      %3089 = vmatprep.subr.mxu0 0.0
      %3090 = vmatpush1.msra.mxu0 0.0
      %3091 = vmatprep.subr.mxu0 0.0
      %3092 = vmatpush1.msra.mxu0 0.0
      %3093 = vmatprep.subr.mxu0 0.0
      %3094 = vmatpush1.msra.mxu0 0.0
      %3095 = vmatprep.subr.mxu0 0.0
      %3096 = vmatpush1.msra.mxu0 0.0
      %3097 = vmatprep.subr.mxu0 0.0
      %3098 = vmatpush1.msra.mxu0 0.0
      %3099 = vmatprep.subr.mxu0 0.0
      %3100 = vmatpush1.msra.mxu0 0.0
      %3101 = vmatprep.subr.mxu0 0.0
      %3102 = vmatpush1.msra.mxu0 0.0
      %3103 = vmatprep.subr.mxu0 0.0
      %3104 = vmatpush1.msra.mxu0 0.0
      %3105 = vmatprep.subr.mxu0 0.0
      %3106 = vmatpush1.msra.mxu0 0.0
      %3107 = vmatprep.subr.mxu0 0.0
      %3108 = vmatpush1.msra.mxu0 0.0
      %3109 = vmatprep.subr.mxu0 0.0
      %3110 = vmatpush1.msra.mxu0 0.0
      %3111 = vmatprep.subr.mxu0 0.0
      %3112 = vmatpush1.msra.mxu0 0.0
      %3113 = vmatprep.subr.mxu0 0.0
      %3114 = vmatpush1.msra.mxu0 0.0
      %3115 = vmatprep.mubr.f32.mxu0 0.0
      %3116 = vmatmul.mubr.f32.gmra.mrb[0].mxu0 %v3049
      %v3117 = vpop.f32.mrb[0].mxu0
      %v3118 = vadd.f32 %v3046, %v3117
      %v3119 = vpop.f32.mrb[0].mxu0
      %3120 = vdwg.mxu0
      %v3121 = vmax.f32 %v3118, 0.0
      %v3122 = vld [vmem:[%s20] sm:$0xff]
      %v3123 = vld [vmem:[%s20 + $0x8] sm:$0xff]
      %v3124 = vld [vmem:[%s20 + $0x10] sm:$0xff]
      %v3125 = vld [vmem:[%s20 + $0x18] sm:$0xff]
      %v3126 = vld [vmem:[%s20 + $0x20] sm:$0xff]
      %v3127 = vld [vmem:[%s20 + $0x28] sm:$0xff]
      %v3128 = vld [vmem:[%s20 + $0x30] sm:$0xff]
      %v3129 = vld [vmem:[%s20 + $0x38] sm:$0xff]
      %v3130 = vld [vmem:[%s21] sm:$0x1]
      %v3132 = vlaneseq
      %v3133 = vshrl.u32 %v3132, 7
      %v3134 = vsub.s32 0, %v3133
      %v3135 = vrot.slane %v3130, %v3134
      %vm3137 = vcmask 523264
      %v3139 = vsel %vm3137, %v3121, 0
      %3141 = vmatprep.subr.mxu0 0.0
      %3142 = vmatpush1.msra.mxu0 %v3122
      %3143 = vmatprep.subr.mxu0 0.0
      %3144 = vmatpush1.msra.mxu0 %v3123
      %3145 = vmatprep.subr.mxu0 0.0
      %3146 = vmatpush1.msra.mxu0 %v3124
      %3147 = vmatprep.subr.mxu0 0.0
      %3148 = vmatpush1.msra.mxu0 %v3125
      %3149 = vmatprep.subr.mxu0 0.0
      %3150 = vmatpush1.msra.mxu0 %v3126
      %3151 = vmatprep.subr.mxu0 0.0
      %3152 = vmatpush1.msra.mxu0 %v3127
      %3153 = vmatprep.subr.mxu0 0.0
      %3154 = vmatpush1.msra.mxu0 %v3128
      %3155 = vmatprep.subr.mxu0 0.0
      %3156 = vmatpush1.msra.mxu0 %v3129
      %3157 = vmatprep.subr.mxu0 0.0
      %3158 = vmatpush1.msra.mxu0 0.0
      %3159 = vmatprep.subr.mxu0 0.0
      %3160 = vmatpush1.msra.mxu0 0.0
      %3161 = vmatprep.subr.mxu0 0.0
      %3162 = vmatpush1.msra.mxu0 0.0
      %3163 = vmatprep.subr.mxu0 0.0
      %3164 = vmatpush1.msra.mxu0 0.0
      %3165 = vmatprep.subr.mxu0 0.0
      %3166 = vmatpush1.msra.mxu0 0.0
      %3167 = vmatprep.subr.mxu0 0.0
      %3168 = vmatpush1.msra.mxu0 0.0
      %3169 = vmatprep.subr.mxu0 0.0
      %3170 = vmatpush1.msra.mxu0 0.0
      %3171 = vmatprep.subr.mxu0 0.0
      %3172 = vmatpush1.msra.mxu0 0.0
      %3173 = vmatprep.subr.mxu0 0.0
      %3174 = vmatpush1.msra.mxu0 0.0
      %3175 = vmatprep.subr.mxu0 0.0
      %3176 = vmatpush1.msra.mxu0 0.0
      %3177 = vmatprep.subr.mxu0 0.0
      %3178 = vmatpush1.msra.mxu0 0.0
      %3179 = vmatprep.subr.mxu0 0.0
      %3180 = vmatpush1.msra.mxu0 0.0
      %3181 = vmatprep.subr.mxu0 0.0
      %3182 = vmatpush1.msra.mxu0 0.0
      %3183 = vmatprep.subr.mxu0 0.0
      %3184 = vmatpush1.msra.mxu0 0.0
      %3185 = vmatprep.subr.mxu0 0.0
      %3186 = vmatpush1.msra.mxu0 0.0
      %3187 = vmatprep.subr.mxu0 0.0
      %3188 = vmatpush1.msra.mxu0 0.0
      %3189 = vmatprep.subr.mxu0 0.0
      %3190 = vmatpush1.msra.mxu0 0.0
      %3191 = vmatprep.subr.mxu0 0.0
      %3192 = vmatpush1.msra.mxu0 0.0
      %3193 = vmatprep.subr.mxu0 0.0
      %3194 = vmatpush1.msra.mxu0 0.0
      %3195 = vmatprep.subr.mxu0 0.0
      %3196 = vmatpush1.msra.mxu0 0.0
      %3197 = vmatprep.subr.mxu0 0.0
      %3198 = vmatpush1.msra.mxu0 0.0
      %3199 = vmatprep.subr.mxu0 0.0
      %3200 = vmatpush1.msra.mxu0 0.0
      %3201 = vmatprep.subr.mxu0 0.0
      %3202 = vmatpush1.msra.mxu0 0.0
      %3203 = vmatprep.subr.mxu0 0.0
      %3204 = vmatpush1.msra.mxu0 0.0
      %3205 = vmatprep.mubr.f32.mxu0 0.0
      %3206 = vmatmul.mubr.f32.gmra.mrb[0].mxu0 %v3139
      %v3207 = vpop.f32.mrb[0].mxu0
      %v3208 = vadd.f32 %v3135, %v3207
      %v3209 = vpop.f32.mrb[0].mxu0
      %3210 = vdwg.mxu0
      %v3211 = vld [vmem:[%s22] sm:$0x1]
      %v3212 = vld [vmem:[%s23] sm:$0x1]
      %v3213 = vadd.f32 %v3036, %v3208
      %v3214 = vsel %vm797, %v3213, 0.0
      %3215 = vadd.xlane.f32.xlu0 %v3214
      %v3216 = vpop.xlane.xlu0 %3215
      %v3217 = vmul.f32 %v3216, %v1847
      %v3218 = vsub.f32 %v3213, %v3217
      %v3219 = vmul.f32 %v3218, %v3218
      %v3220 = vsel %vm797, %v3219, 0.0
      %3221 = vadd.xlane.f32.xlu0 %v3220
      %v3222 = vpop.xlane.xlu0 %3221
      %v3223 = vmul.f32 %v3222, %v1847
      %v3224 = vadd.f32 %v3223, 1e-06
      %v3225 = vrsqrt.pop %v3224
      %v3226 = vmul.f32 %v3218, %v3225
      %v3228 = vlaneseq
      %v3229 = vshrl.u32 %v3228, 7
      %v3230 = vsub.s32 0, %v3229
      %v3231 = vrot.slane %v3211, %v3230
      %v3233 = vmul.f32 %v3226, %v3231
      %v3235 = vlaneseq
      %v3236 = vshrl.u32 %v3235, 7
      %v3237 = vsub.s32 0, %v3236
      %v3238 = vrot.slane %v3212, %v3237
      %v3240 = vadd.f32 %v3233, %v3238
      %3241 = vst.msk [vmem:[%s783] sm:$0xff] %vm797, %v3240
      %p3242 = scmp.lt.s32.totalorder %s35, 1
      %s3243 = scalar_select %p3242, %s35, 1
      %s3244 = smul.addr %s3243, 8
      %s3245 = scalar_lea.vmem %s24, %s3244
      // Predicated region
      $region117: #{decoder_forward.2} parent=115 // pred_check
        %p3246 = pneg %p577
      $region118: #{decoder_forward.2} parent=115 // pred_check_branch
        %3248 = sbr.rel (%p3246) target = $region120
      $region119: #{decoder_forward.2} parent=115 // pred_region
        _
      $region120: #{decoder_forward.2} parent=115 // pred_fallthru
        _
    $region116: #{decoder_forward.2} parent=5 // pred_fallthru
      _
    %p3249 = scmp.le.s32.totalorder 2, %s30
    // Predicated region
    $region121: #{decoder_forward.2} parent=5 // pred_check
      %p3250 = pneg %p3249
    $region122: #{decoder_forward.2} parent=5 // pred_check_branch
      %3252 = sbr.rel (%p3250) target = $region124
    $region123: #{decoder_forward.2} parent=5 // pred_region
      %s3253 = ssub.s32 %s30, 2
      // Predicated region
      $region125: #{decoder_forward.2} parent=123 // pred_check
        %p3254 = pneg %p583
      $region126: #{decoder_forward.2} parent=123 // pred_check_branch
        %3256 = sbr.rel (%p3254) target = $region128
      $region127: #{decoder_forward.2} parent=123 // pred_region
        %p3257 = scmp.lt.s32.totalorder %s36, 1
        %s3258 = scalar_select %p3257, %s36, 1
        %s3259 = smul.addr %s3258, 8
        %s3260 = scalar_lea.vmem %s24, %s3259
      $region128: #{decoder_forward.2} parent=123 // pred_fallthru
        _
    $region124: #{decoder_forward.2} parent=5 // pred_fallthru
      _
  $region6: #{decoder_forward.2} parent=0 // loop_footer
    %s34 = sadd.s32 1, %s30
  $region7: #{decoder_forward.2} parent=0 // loop_footer_branch
    %29 = sbr.rel target = $region3
  $region8: #{decoder_forward.2} parent=0 // loop_exit
    _

// kernel: decoder_forward.3
$region0: #{decoder_forward.3}
  #allocation0 [shape = 'u32[]', space=smem, size = 0x4, offset = 0x4, fixed_abs, tag = 'smem constant byte address 0x4 - core index']
  #allocation1 [shape = 'u32[144,128]{1,0:T(1,128)}', space=vmem, size = 0x12000, scoped, tag = 'internal scratch']
  %s0 = inlined_call_operand.vmem [shape: f32[2,8,32], index: 0, kind: input, shape index: {}]
  %s1 = inlined_call_operand.vmem [shape: f32[2,8,32], index: 1, kind: input, shape index: {}]
  %s2 = inlined_call_operand.vmem [shape: f32[2,8,8], index: 2, kind: input, shape index: {}]
  %s3 = inlined_call_operand.vmem [shape: f32[2,8,8], index: 3, kind: input, shape index: {}]
  %s4 = inlined_call_operand.vmem [shape: f32[32,96], index: 4, kind: input, shape index: {}]
  %s5 = inlined_call_operand.vmem [shape: f32[1,96], index: 5, kind: input, shape index: {}]
  %s6 = inlined_call_operand.vmem [shape: f32[32,32], index: 6, kind: input, shape index: {}]
  %s7 = inlined_call_operand.vmem [shape: f32[1,32], index: 7, kind: input, shape index: {}]
  %s8 = inlined_call_operand.vmem [shape: f32[1,32], index: 8, kind: input, shape index: {}]
  %s9 = inlined_call_operand.vmem [shape: f32[1,32], index: 9, kind: input, shape index: {}]
  %s10 = inlined_call_operand.vmem [shape: f32[32,32], index: 10, kind: input, shape index: {}]
  %s11 = inlined_call_operand.vmem [shape: f32[1,32], index: 11, kind: input, shape index: {}]
  %s12 = inlined_call_operand.vmem [shape: f32[32,64], index: 12, kind: input, shape index: {}]
  %s13 = inlined_call_operand.vmem [shape: f32[1,64], index: 13, kind: input, shape index: {}]
  %s14 = inlined_call_operand.vmem [shape: f32[32,32], index: 14, kind: input, shape index: {}]
  %s15 = inlined_call_operand.vmem [shape: f32[1,32], index: 15, kind: input, shape index: {}]
  %s16 = inlined_call_operand.vmem [shape: f32[1,32], index: 16, kind: input, shape index: {}]
  %s17 = inlined_call_operand.vmem [shape: f32[1,32], index: 17, kind: input, shape index: {}]
  %s18 = inlined_call_operand.vmem [shape: f32[32,64], index: 18, kind: input, shape index: {}]
  %s19 = inlined_call_operand.vmem [shape: f32[1,64], index: 19, kind: input, shape index: {}]
  %s20 = inlined_call_operand.vmem [shape: f32[64,32], index: 20, kind: input, shape index: {}]
  %s21 = inlined_call_operand.vmem [shape: f32[1,32], index: 21, kind: input, shape index: {}]
  %s22 = inlined_call_operand.vmem [shape: f32[1,32], index: 22, kind: input, shape index: {}]
  %s23 = inlined_call_operand.hbm [shape: f32[1,32], index: 23, kind: input, shape index: {}]
  %s24 = inlined_call_operand.hbm [shape: f32[2,8,32], index: 24, kind: output, shape index: {}]
  %s25 = sld [smem:[#allocation0]]
  $region133: #{decoder_forward.3} parent=0
    _
  %s27 = ssub.s32 1, %s25
  %s28 = scalar_select 0, %s27, %s25
  $region1: #{decoder_forward.3} parent=0
    #allocation2 [shape = 'u8[512]{0}', space=vmem, size = 0x400, scoped, tag = 'input window, operand 23, single buffered']
    #allocation3 [shape = 's32[2]{0}', space=sflag, size = 0x8, scoped, tag = 'scoped memory for decoder_forward.3']
    #allocation4 [shape = 's32[2]{0}', space=sflag, size = 0x8, scoped, tag = 'scoped memory for decoder_forward.3']
    #allocation5 [shape = 'u8[8192]{0}', space=vmem, size = 0x2000, scoped, tag = 'output window, operand 0']
    %29 = vsyncpa [#allocation3], 0
    %30 = vsyncpa [#allocation4], 0
    %s31 = scalar_lea.sflag [#allocation4], 1
    %32 = vsyncpa %s31, 0
    loop: start=0, step=1, limit=4
    $region2: #{decoder_forward.3} parent=1 // loop_pre_header
      _
    $region3: #{decoder_forward.3} parent=1 // loop_header
      %s34 = sphi 0, %s38
      %p35 = scmp.ge.s32.totalorder %s34, 4
      %s44 = sphi 0, %s46
      %s47 = sphi 0, %s44
      %s48 = sphi 0, %s47
      %s64 = sphi 0, %s48
      %s70 = sphi 0, %s72
      %s73 = sphi 0, %s70
      %s74 = sphi 0, %s73
      %s90 = sphi 0, %s74
      %s96 = sphi 0, %s98
      %s99 = sphi 0, %s96
      %s100 = sphi 0, %s99
      %s116 = sphi 0, %s100
      %s122 = sphi 0, %s124
      %s125 = sphi 0, %s122
      %s126 = sphi 0, %s125
      %s142 = sphi 0, %s126
      %s146 = sphi 0, %s146
      %s148 = sphi 0, %s146
      %s149 = sphi 0, %s148
      %s163 = sphi 0, %s149
      %s167 = sphi 0, %s167
      %s169 = sphi 0, %s167
      %s170 = sphi 0, %s169
      %s184 = sphi 0, %s170
      %s188 = sphi 0, %s188
      %s190 = sphi 0, %s188
      %s191 = sphi 0, %s190
      %s205 = sphi 0, %s191
      %s209 = sphi 0, %s209
      %s211 = sphi 0, %s209
      %s212 = sphi 0, %s211
      %s226 = sphi 0, %s212
      %s230 = sphi 0, %s230
      %s232 = sphi 0, %s230
      %s233 = sphi 0, %s232
      %s247 = sphi 0, %s233
      %s251 = sphi 0, %s251
      %s253 = sphi 0, %s251
      %s254 = sphi 0, %s253
      %s268 = sphi 0, %s254
      %s272 = sphi 0, %s272
      %s274 = sphi 0, %s272
      %s275 = sphi 0, %s274
      %s289 = sphi 0, %s275
      %s293 = sphi 0, %s293
      %s295 = sphi 0, %s293
      %s296 = sphi 0, %s295
      %s310 = sphi 0, %s296
      %s314 = sphi 0, %s314
      %s316 = sphi 0, %s314
      %s317 = sphi 0, %s316
      %s331 = sphi 0, %s317
      %s335 = sphi 0, %s335
      %s337 = sphi 0, %s335
      %s338 = sphi 0, %s337
      %s352 = sphi 0, %s338
      %s356 = sphi 0, %s356
      %s358 = sphi 0, %s356
      %s359 = sphi 0, %s358
      %s373 = sphi 0, %s359
      %s377 = sphi 0, %s377
      %s379 = sphi 0, %s377
      %s380 = sphi 0, %s379
      %s394 = sphi 0, %s380
      %s398 = sphi 0, %s398
      %s400 = sphi 0, %s398
      %s401 = sphi 0, %s400
      %s415 = sphi 0, %s401
      %s419 = sphi 0, %s419
      %s421 = sphi 0, %s419
      %s422 = sphi 0, %s421
      %s436 = sphi 0, %s422
      %s440 = sphi 0, %s440
      %s442 = sphi 0, %s440
      %s443 = sphi 0, %s442
      %s457 = sphi 0, %s443
      %s461 = sphi 0, %s461
      %s463 = sphi 0, %s461
      %s464 = sphi 0, %s463
      %s478 = sphi 0, %s464
      %s482 = sphi 0, %s482
      %s484 = sphi 0, %s482
      %s485 = sphi 0, %s484
      %s499 = sphi 0, %s485
      %s503 = sphi 0, %s503
      %s505 = sphi 0, %s503
      %s506 = sphi 0, %s505
      %s520 = sphi 0, %s506
      %s524 = sphi 0, %s524
      %s526 = sphi 0, %s524
      %s527 = sphi 0, %s526
      %s541 = sphi 0, %s527
      %s545 = sphi 0, %s545
      %s547 = sphi 0, %s545
      %s548 = sphi 0, %s547
      %s562 = sphi 0, %s548
      %s568 = sphi 0, %s570
      %s571 = sphi 0, %s568
      %s572 = sphi 0, %s571
      %s588 = sphi 0, %s572
    $region4: #{decoder_forward.3} parent=1 // loop_header_branch
      %37 = sbr.rel (%p35) target = $region8
    $region5: #{decoder_forward.3} parent=1 // loop_body
      %s39 = ssub.s32 %s34, 1
      %s40 = ssub.s32 %s34, 2
      %s41 = sadd.s32 %s34, 1
      %s42 = ssub.s32 %s34, %s41
      %p43 = scmp.eq.s32.totalorder %s42, 0
      %s45 = sadd.s32 %s44, 1
      %s46 = scalar_select %p43, %s44, %s45
      %p49 = pneg %p43
      %p50 = scmp.eq.s32.totalorder %s34, 1
      %p51 = por %p49, %p50
      %p52 = scmp.ne.s32.totalorder %s44, %s47
      %p53 = scmp.eq.s32.totalorder %s34, 0
      %p54 = por %p52, %p53
      %p55 = scmp.ne.s32.totalorder %s44, %s47
      %p56 = scmp.eq.s32.totalorder %s39, 1
      %p57 = por %p55, %p56
      %p58 = scmp.ne.s32.totalorder %s47, %s48
      %p59 = scmp.eq.s32.totalorder %s39, 0
      %p60 = por %p58, %p59
      %p61 = scmp.ne.s32.totalorder %s47, %s48
      %p62 = scmp.eq.s32.totalorder %s40, 1
      %p63 = por %p61, %p62
      %p65 = scmp.ne.s32.totalorder %s48, %s64
      %p66 = scmp.eq.s32.totalorder %s40, 0
      %p67 = por %p65, %p66
      %s68 = ssub.s32 %s34, %s41
      %p69 = scmp.eq.s32.totalorder %s68, 0
      %s71 = sadd.s32 %s70, 1
      %s72 = scalar_select %p69, %s70, %s71
      %p75 = pneg %p69
      %p76 = scmp.eq.s32.totalorder %s34, 1
      %p77 = por %p75, %p76
      %p78 = scmp.ne.s32.totalorder %s70, %s73
      %p79 = scmp.eq.s32.totalorder %s34, 0
      %p80 = por %p78, %p79
      %p81 = scmp.ne.s32.totalorder %s70, %s73
      %p82 = scmp.eq.s32.totalorder %s39, 1
      %p83 = por %p81, %p82
      %p84 = scmp.ne.s32.totalorder %s73, %s74
      %p85 = scmp.eq.s32.totalorder %s39, 0
      %p86 = por %p84, %p85
      %p87 = scmp.ne.s32.totalorder %s73, %s74
      %p88 = scmp.eq.s32.totalorder %s40, 1
      %p89 = por %p87, %p88
      %p91 = scmp.ne.s32.totalorder %s74, %s90
      %p92 = scmp.eq.s32.totalorder %s40, 0
      %p93 = por %p91, %p92
      %s94 = ssub.s32 %s34, %s41
      %p95 = scmp.eq.s32.totalorder %s94, 0
      %s97 = sadd.s32 %s96, 1
      %s98 = scalar_select %p95, %s96, %s97
      %p101 = pneg %p95
      %p102 = scmp.eq.s32.totalorder %s34, 1
      %p103 = por %p101, %p102
      %p104 = scmp.ne.s32.totalorder %s96, %s99
      %p105 = scmp.eq.s32.totalorder %s34, 0
      %p106 = por %p104, %p105
      %p107 = scmp.ne.s32.totalorder %s96, %s99
      %p108 = scmp.eq.s32.totalorder %s39, 1
      %p109 = por %p107, %p108
      %p110 = scmp.ne.s32.totalorder %s99, %s100
      %p111 = scmp.eq.s32.totalorder %s39, 0
      %p112 = por %p110, %p111
      %p113 = scmp.ne.s32.totalorder %s99, %s100
      %p114 = scmp.eq.s32.totalorder %s40, 1
      %p115 = por %p113, %p114
      %p117 = scmp.ne.s32.totalorder %s100, %s116
      %p118 = scmp.eq.s32.totalorder %s40, 0
      %p119 = por %p117, %p118
      %s120 = ssub.s32 %s34, %s41
      %p121 = scmp.eq.s32.totalorder %s120, 0
      %s123 = sadd.s32 %s122, 1
      %s124 = scalar_select %p121, %s122, %s123
      %p127 = pneg %p121
      %p128 = scmp.eq.s32.totalorder %s34, 1
      %p129 = por %p127, %p128
      %p130 = scmp.ne.s32.totalorder %s122, %s125
      %p131 = scmp.eq.s32.totalorder %s34, 0
      %p132 = por %p130, %p131
      %p133 = scmp.ne.s32.totalorder %s122, %s125
      %p134 = scmp.eq.s32.totalorder %s39, 1
      %p135 = por %p133, %p134
      %p136 = scmp.ne.s32.totalorder %s125, %s126
      %p137 = scmp.eq.s32.totalorder %s39, 0
      %p138 = por %p136, %p137
      %p139 = scmp.ne.s32.totalorder %s125, %s126
      %p140 = scmp.eq.s32.totalorder %s40, 1
      %p141 = por %p139, %p140
      %p143 = scmp.ne.s32.totalorder %s126, %s142
      %p144 = scmp.eq.s32.totalorder %s40, 0
      %p145 = por %p143, %p144
      %s147 = sadd.s32 %s146, 1
      %p150 = scmp.eq.s32.totalorder %s34, 1
      %p151 = scmp.ne.s32.totalorder %s146, %s148
      %p152 = scmp.eq.s32.totalorder %s34, 0
      %p153 = por %p151, %p152
      %p154 = scmp.ne.s32.totalorder %s146, %s148
      %p155 = scmp.eq.s32.totalorder %s39, 1
      %p156 = por %p154, %p155
      %p157 = scmp.ne.s32.totalorder %s148, %s149
      %p158 = scmp.eq.s32.totalorder %s39, 0
      %p159 = por %p157, %p158
      %p160 = scmp.ne.s32.totalorder %s148, %s149
      %p161 = scmp.eq.s32.totalorder %s40, 1
      %p162 = por %p160, %p161
      %p164 = scmp.ne.s32.totalorder %s149, %s163
      %p165 = scmp.eq.s32.totalorder %s40, 0
      %p166 = por %p164, %p165
      %s168 = sadd.s32 %s167, 1
      %p171 = scmp.eq.s32.totalorder %s34, 1
      %p172 = scmp.ne.s32.totalorder %s167, %s169
      %p173 = scmp.eq.s32.totalorder %s34, 0
      %p174 = por %p172, %p173
      %p175 = scmp.ne.s32.totalorder %s167, %s169
      %p176 = scmp.eq.s32.totalorder %s39, 1
      %p177 = por %p175, %p176
      %p178 = scmp.ne.s32.totalorder %s169, %s170
      %p179 = scmp.eq.s32.totalorder %s39, 0
      %p180 = por %p178, %p179
      %p181 = scmp.ne.s32.totalorder %s169, %s170
      %p182 = scmp.eq.s32.totalorder %s40, 1
      %p183 = por %p181, %p182
      %p185 = scmp.ne.s32.totalorder %s170, %s184
      %p186 = scmp.eq.s32.totalorder %s40, 0
      %p187 = por %p185, %p186
      %s189 = sadd.s32 %s188, 1
      %p192 = scmp.eq.s32.totalorder %s34, 1
      %p193 = scmp.ne.s32.totalorder %s188, %s190
      %p194 = scmp.eq.s32.totalorder %s34, 0
      %p195 = por %p193, %p194
      %p196 = scmp.ne.s32.totalorder %s188, %s190
      %p197 = scmp.eq.s32.totalorder %s39, 1
      %p198 = por %p196, %p197
      %p199 = scmp.ne.s32.totalorder %s190, %s191
      %p200 = scmp.eq.s32.totalorder %s39, 0
      %p201 = por %p199, %p200
      %p202 = scmp.ne.s32.totalorder %s190, %s191
      %p203 = scmp.eq.s32.totalorder %s40, 1
      %p204 = por %p202, %p203
      %p206 = scmp.ne.s32.totalorder %s191, %s205
      %p207 = scmp.eq.s32.totalorder %s40, 0
      %p208 = por %p206, %p207
      %s210 = sadd.s32 %s209, 1
      %p213 = scmp.eq.s32.totalorder %s34, 1
      %p214 = scmp.ne.s32.totalorder %s209, %s211
      %p215 = scmp.eq.s32.totalorder %s34, 0
      %p216 = por %p214, %p215
      %p217 = scmp.ne.s32.totalorder %s209, %s211
      %p218 = scmp.eq.s32.totalorder %s39, 1
      %p219 = por %p217, %p218
      %p220 = scmp.ne.s32.totalorder %s211, %s212
      %p221 = scmp.eq.s32.totalorder %s39, 0
      %p222 = por %p220, %p221
      %p223 = scmp.ne.s32.totalorder %s211, %s212
      %p224 = scmp.eq.s32.totalorder %s40, 1
      %p225 = por %p223, %p224
      %p227 = scmp.ne.s32.totalorder %s212, %s226
      %p228 = scmp.eq.s32.totalorder %s40, 0
      %p229 = por %p227, %p228
      %s231 = sadd.s32 %s230, 1
      %p234 = scmp.eq.s32.totalorder %s34, 1
      %p235 = scmp.ne.s32.totalorder %s230, %s232
      %p236 = scmp.eq.s32.totalorder %s34, 0
      %p237 = por %p235, %p236
      %p238 = scmp.ne.s32.totalorder %s230, %s232
      %p239 = scmp.eq.s32.totalorder %s39, 1
      %p240 = por %p238, %p239
      %p241 = scmp.ne.s32.totalorder %s232, %s233
      %p242 = scmp.eq.s32.totalorder %s39, 0
      %p243 = por %p241, %p242
      %p244 = scmp.ne.s32.totalorder %s232, %s233
      %p245 = scmp.eq.s32.totalorder %s40, 1
      %p246 = por %p244, %p245
      %p248 = scmp.ne.s32.totalorder %s233, %s247
      %p249 = scmp.eq.s32.totalorder %s40, 0
      %p250 = por %p248, %p249
      %s252 = sadd.s32 %s251, 1
      %p255 = scmp.eq.s32.totalorder %s34, 1
      %p256 = scmp.ne.s32.totalorder %s251, %s253
      %p257 = scmp.eq.s32.totalorder %s34, 0
      %p258 = por %p256, %p257
      %p259 = scmp.ne.s32.totalorder %s251, %s253
      %p260 = scmp.eq.s32.totalorder %s39, 1
      %p261 = por %p259, %p260
      %p262 = scmp.ne.s32.totalorder %s253, %s254
      %p263 = scmp.eq.s32.totalorder %s39, 0
      %p264 = por %p262, %p263
      %p265 = scmp.ne.s32.totalorder %s253, %s254
      %p266 = scmp.eq.s32.totalorder %s40, 1
      %p267 = por %p265, %p266
      %p269 = scmp.ne.s32.totalorder %s254, %s268
      %p270 = scmp.eq.s32.totalorder %s40, 0
      %p271 = por %p269, %p270
      %s273 = sadd.s32 %s272, 1
      %p276 = scmp.eq.s32.totalorder %s34, 1
      %p277 = scmp.ne.s32.totalorder %s272, %s274
      %p278 = scmp.eq.s32.totalorder %s34, 0
      %p279 = por %p277, %p278
      %p280 = scmp.ne.s32.totalorder %s272, %s274
      %p281 = scmp.eq.s32.totalorder %s39, 1
      %p282 = por %p280, %p281
      %p283 = scmp.ne.s32.totalorder %s274, %s275
      %p284 = scmp.eq.s32.totalorder %s39, 0
      %p285 = por %p283, %p284
      %p286 = scmp.ne.s32.totalorder %s274, %s275
      %p287 = scmp.eq.s32.totalorder %s40, 1
      %p288 = por %p286, %p287
      %p290 = scmp.ne.s32.totalorder %s275, %s289
      %p291 = scmp.eq.s32.totalorder %s40, 0
      %p292 = por %p290, %p291
      %s294 = sadd.s32 %s293, 1
      %p297 = scmp.eq.s32.totalorder %s34, 1
      %p298 = scmp.ne.s32.totalorder %s293, %s295
      %p299 = scmp.eq.s32.totalorder %s34, 0
      %p300 = por %p298, %p299
      %p301 = scmp.ne.s32.totalorder %s293, %s295
      %p302 = scmp.eq.s32.totalorder %s39, 1
      %p303 = por %p301, %p302
      %p304 = scmp.ne.s32.totalorder %s295, %s296
      %p305 = scmp.eq.s32.totalorder %s39, 0
      %p306 = por %p304, %p305
      %p307 = scmp.ne.s32.totalorder %s295, %s296
      %p308 = scmp.eq.s32.totalorder %s40, 1
      %p309 = por %p307, %p308
      %p311 = scmp.ne.s32.totalorder %s296, %s310
      %p312 = scmp.eq.s32.totalorder %s40, 0
      %p313 = por %p311, %p312
      %s315 = sadd.s32 %s314, 1
      %p318 = scmp.eq.s32.totalorder %s34, 1
      %p319 = scmp.ne.s32.totalorder %s314, %s316
      %p320 = scmp.eq.s32.totalorder %s34, 0
      %p321 = por %p319, %p320
      %p322 = scmp.ne.s32.totalorder %s314, %s316
      %p323 = scmp.eq.s32.totalorder %s39, 1
      %p324 = por %p322, %p323
      %p325 = scmp.ne.s32.totalorder %s316, %s317
      %p326 = scmp.eq.s32.totalorder %s39, 0
      %p327 = por %p325, %p326
      %p328 = scmp.ne.s32.totalorder %s316, %s317
      %p329 = scmp.eq.s32.totalorder %s40, 1
      %p330 = por %p328, %p329
      %p332 = scmp.ne.s32.totalorder %s317, %s331
      %p333 = scmp.eq.s32.totalorder %s40, 0
      %p334 = por %p332, %p333
      %s336 = sadd.s32 %s335, 1
      %p339 = scmp.eq.s32.totalorder %s34, 1
      %p340 = scmp.ne.s32.totalorder %s335, %s337
      %p341 = scmp.eq.s32.totalorder %s34, 0
      %p342 = por %p340, %p341
      %p343 = scmp.ne.s32.totalorder %s335, %s337
      %p344 = scmp.eq.s32.totalorder %s39, 1
      %p345 = por %p343, %p344
      %p346 = scmp.ne.s32.totalorder %s337, %s338
      %p347 = scmp.eq.s32.totalorder %s39, 0
      %p348 = por %p346, %p347
      %p349 = scmp.ne.s32.totalorder %s337, %s338
      %p350 = scmp.eq.s32.totalorder %s40, 1
      %p351 = por %p349, %p350
      %p353 = scmp.ne.s32.totalorder %s338, %s352
      %p354 = scmp.eq.s32.totalorder %s40, 0
      %p355 = por %p353, %p354
      %s357 = sadd.s32 %s356, 1
      %p360 = scmp.eq.s32.totalorder %s34, 1
      %p361 = scmp.ne.s32.totalorder %s356, %s358
      %p362 = scmp.eq.s32.totalorder %s34, 0
      %p363 = por %p361, %p362
      %p364 = scmp.ne.s32.totalorder %s356, %s358
      %p365 = scmp.eq.s32.totalorder %s39, 1
      %p366 = por %p364, %p365
      %p367 = scmp.ne.s32.totalorder %s358, %s359
      %p368 = scmp.eq.s32.totalorder %s39, 0
      %p369 = por %p367, %p368
      %p370 = scmp.ne.s32.totalorder %s358, %s359
      %p371 = scmp.eq.s32.totalorder %s40, 1
      %p372 = por %p370, %p371
      %p374 = scmp.ne.s32.totalorder %s359, %s373
      %p375 = scmp.eq.s32.totalorder %s40, 0
      %p376 = por %p374, %p375
      %s378 = sadd.s32 %s377, 1
      %p381 = scmp.eq.s32.totalorder %s34, 1
      %p382 = scmp.ne.s32.totalorder %s377, %s379
      %p383 = scmp.eq.s32.totalorder %s34, 0
      %p384 = por %p382, %p383
      %p385 = scmp.ne.s32.totalorder %s377, %s379
      %p386 = scmp.eq.s32.totalorder %s39, 1
      %p387 = por %p385, %p386
      %p388 = scmp.ne.s32.totalorder %s379, %s380
      %p389 = scmp.eq.s32.totalorder %s39, 0
      %p390 = por %p388, %p389
      %p391 = scmp.ne.s32.totalorder %s379, %s380
      %p392 = scmp.eq.s32.totalorder %s40, 1
      %p393 = por %p391, %p392
      %p395 = scmp.ne.s32.totalorder %s380, %s394
      %p396 = scmp.eq.s32.totalorder %s40, 0
      %p397 = por %p395, %p396
      %s399 = sadd.s32 %s398, 1
      %p402 = scmp.eq.s32.totalorder %s34, 1
      %p403 = scmp.ne.s32.totalorder %s398, %s400
      %p404 = scmp.eq.s32.totalorder %s34, 0
      %p405 = por %p403, %p404
      %p406 = scmp.ne.s32.totalorder %s398, %s400
      %p407 = scmp.eq.s32.totalorder %s39, 1
      %p408 = por %p406, %p407
      %p409 = scmp.ne.s32.totalorder %s400, %s401
      %p410 = scmp.eq.s32.totalorder %s39, 0
      %p411 = por %p409, %p410
      %p412 = scmp.ne.s32.totalorder %s400, %s401
      %p413 = scmp.eq.s32.totalorder %s40, 1
      %p414 = por %p412, %p413
      %p416 = scmp.ne.s32.totalorder %s401, %s415
      %p417 = scmp.eq.s32.totalorder %s40, 0
      %p418 = por %p416, %p417
      %s420 = sadd.s32 %s419, 1
      %p423 = scmp.eq.s32.totalorder %s34, 1
      %p424 = scmp.ne.s32.totalorder %s419, %s421
      %p425 = scmp.eq.s32.totalorder %s34, 0
      %p426 = por %p424, %p425
      %p427 = scmp.ne.s32.totalorder %s419, %s421
      %p428 = scmp.eq.s32.totalorder %s39, 1
      %p429 = por %p427, %p428
      %p430 = scmp.ne.s32.totalorder %s421, %s422
      %p431 = scmp.eq.s32.totalorder %s39, 0
      %p432 = por %p430, %p431
      %p433 = scmp.ne.s32.totalorder %s421, %s422
      %p434 = scmp.eq.s32.totalorder %s40, 1
      %p435 = por %p433, %p434
      %p437 = scmp.ne.s32.totalorder %s422, %s436
      %p438 = scmp.eq.s32.totalorder %s40, 0
      %p439 = por %p437, %p438
      %s441 = sadd.s32 %s440, 1
      %p444 = scmp.eq.s32.totalorder %s34, 1
      %p445 = scmp.ne.s32.totalorder %s440, %s442
      %p446 = scmp.eq.s32.totalorder %s34, 0
      %p447 = por %p445, %p446
      %p448 = scmp.ne.s32.totalorder %s440, %s442
      %p449 = scmp.eq.s32.totalorder %s39, 1
      %p450 = por %p448, %p449
      %p451 = scmp.ne.s32.totalorder %s442, %s443
      %p452 = scmp.eq.s32.totalorder %s39, 0
      %p453 = por %p451, %p452
      %p454 = scmp.ne.s32.totalorder %s442, %s443
      %p455 = scmp.eq.s32.totalorder %s40, 1
      %p456 = por %p454, %p455
      %p458 = scmp.ne.s32.totalorder %s443, %s457
      %p459 = scmp.eq.s32.totalorder %s40, 0
      %p460 = por %p458, %p459
      %s462 = sadd.s32 %s461, 1
      %p465 = scmp.eq.s32.totalorder %s34, 1
      %p466 = scmp.ne.s32.totalorder %s461, %s463
      %p467 = scmp.eq.s32.totalorder %s34, 0
      %p468 = por %p466, %p467
      %p469 = scmp.ne.s32.totalorder %s461, %s463
      %p470 = scmp.eq.s32.totalorder %s39, 1
      %p471 = por %p469, %p470
      %p472 = scmp.ne.s32.totalorder %s463, %s464
      %p473 = scmp.eq.s32.totalorder %s39, 0
      %p474 = por %p472, %p473
      %p475 = scmp.ne.s32.totalorder %s463, %s464
      %p476 = scmp.eq.s32.totalorder %s40, 1
      %p477 = por %p475, %p476
      %p479 = scmp.ne.s32.totalorder %s464, %s478
      %p480 = scmp.eq.s32.totalorder %s40, 0
      %p481 = por %p479, %p480
      %s483 = sadd.s32 %s482, 1
      %p486 = scmp.eq.s32.totalorder %s34, 1
      %p487 = scmp.ne.s32.totalorder %s482, %s484
      %p488 = scmp.eq.s32.totalorder %s34, 0
      %p489 = por %p487, %p488
      %p490 = scmp.ne.s32.totalorder %s482, %s484
      %p491 = scmp.eq.s32.totalorder %s39, 1
      %p492 = por %p490, %p491
      %p493 = scmp.ne.s32.totalorder %s484, %s485
      %p494 = scmp.eq.s32.totalorder %s39, 0
      %p495 = por %p493, %p494
      %p496 = scmp.ne.s32.totalorder %s484, %s485
      %p497 = scmp.eq.s32.totalorder %s40, 1
      %p498 = por %p496, %p497
      %p500 = scmp.ne.s32.totalorder %s485, %s499
      %p501 = scmp.eq.s32.totalorder %s40, 0
      %p502 = por %p500, %p501
      %s504 = sadd.s32 %s503, 1
      %p507 = scmp.eq.s32.totalorder %s34, 1
      %p508 = scmp.ne.s32.totalorder %s503, %s505
      %p509 = scmp.eq.s32.totalorder %s34, 0
      %p510 = por %p508, %p509
      %p511 = scmp.ne.s32.totalorder %s503, %s505
      %p512 = scmp.eq.s32.totalorder %s39, 1
      %p513 = por %p511, %p512
      %p514 = scmp.ne.s32.totalorder %s505, %s506
      %p515 = scmp.eq.s32.totalorder %s39, 0
      %p516 = por %p514, %p515
      %p517 = scmp.ne.s32.totalorder %s505, %s506
      %p518 = scmp.eq.s32.totalorder %s40, 1
      %p519 = por %p517, %p518
      %p521 = scmp.ne.s32.totalorder %s506, %s520
      %p522 = scmp.eq.s32.totalorder %s40, 0
      %p523 = por %p521, %p522
      %s525 = sadd.s32 %s524, 1
      %p528 = scmp.eq.s32.totalorder %s34, 1
      %p529 = scmp.ne.s32.totalorder %s524, %s526
      %p530 = scmp.eq.s32.totalorder %s34, 0
      %p531 = por %p529, %p530
      %p532 = scmp.ne.s32.totalorder %s524, %s526
      %p533 = scmp.eq.s32.totalorder %s39, 1
      %p534 = por %p532, %p533
      %p535 = scmp.ne.s32.totalorder %s526, %s527
      %p536 = scmp.eq.s32.totalorder %s39, 0
      %p537 = por %p535, %p536
      %p538 = scmp.ne.s32.totalorder %s526, %s527
      %p539 = scmp.eq.s32.totalorder %s40, 1
      %p540 = por %p538, %p539
      %p542 = scmp.ne.s32.totalorder %s527, %s541
      %p543 = scmp.eq.s32.totalorder %s40, 0
      %p544 = por %p542, %p543
      %s546 = sadd.s32 %s545, 1
      %p549 = scmp.eq.s32.totalorder %s34, 1
      %p550 = scmp.ne.s32.totalorder %s545, %s547
      %p551 = scmp.eq.s32.totalorder %s34, 0
      %p552 = por %p550, %p551
      %p553 = scmp.ne.s32.totalorder %s545, %s547
      %p554 = scmp.eq.s32.totalorder %s39, 1
      %p555 = por %p553, %p554
      %p556 = scmp.ne.s32.totalorder %s547, %s548
      %p557 = scmp.eq.s32.totalorder %s39, 0
      %p558 = por %p556, %p557
      %p559 = scmp.ne.s32.totalorder %s547, %s548
      %p560 = scmp.eq.s32.totalorder %s40, 1
      %p561 = por %p559, %p560
      %p563 = scmp.ne.s32.totalorder %s548, %s562
      %p564 = scmp.eq.s32.totalorder %s40, 0
      %p565 = por %p563, %p564
      %s566 = ssub.s32 %s34, %s41
      %p567 = scmp.eq.s32.totalorder %s566, 0
      %s569 = sadd.s32 %s568, 1
      %s570 = scalar_select %p567, %s568, %s569
      %p573 = pneg %p567
      %p574 = scmp.eq.s32.totalorder %s34, 1
      %p575 = por %p573, %p574
      %p576 = scmp.ne.s32.totalorder %s568, %s571
      %p577 = scmp.eq.s32.totalorder %s34, 0
      %p578 = por %p576, %p577
      %p579 = scmp.ne.s32.totalorder %s568, %s571
      %p580 = scmp.eq.s32.totalorder %s39, 1
      %p581 = por %p579, %p580
      %p582 = scmp.ne.s32.totalorder %s571, %s572
      %p583 = scmp.eq.s32.totalorder %s39, 0
      %p584 = por %p582, %p583
      %p585 = scmp.ne.s32.totalorder %s571, %s572
      %p586 = scmp.eq.s32.totalorder %s40, 1
      %p587 = por %p585, %p586
      %p589 = scmp.ne.s32.totalorder %s572, %s588
      %p590 = scmp.eq.s32.totalorder %s40, 0
      %p591 = por %p589, %p590
      %p592 = scmp.le.s32.totalorder 1, %s34
      %p593 = scmp.lt.s32.totalorder %s34, 3
      %p594 = pnand %p592, %p593
      %p595 = pneg %p594
      // Predicated region
      $region9: #{decoder_forward.3} parent=5 // pred_check
        _
      $region10: #{decoder_forward.3} parent=5 // pred_check_branch
        %597 = sbr.rel (%p594) target = $region12
      $region11: #{decoder_forward.3} parent=5 // pred_region
        %s598 = ssub.s32 %s34, 1
        // Predicated region
        $region13: #{decoder_forward.3} parent=11 // pred_check
          %p599 = pneg %p159
        $region14: #{decoder_forward.3} parent=11 // pred_check_branch
          %601 = sbr.rel (%p599) target = $region16
        $region15: #{decoder_forward.3} parent=11 // pred_region
          _
        $region16: #{decoder_forward.3} parent=11 // pred_fallthru
          _
        // Predicated region
        $region17: #{decoder_forward.3} parent=11 // pred_check
          %p602 = pneg %p180
        $region18: #{decoder_forward.3} parent=11 // pred_check_branch
          %604 = sbr.rel (%p602) target = $region20
        $region19: #{decoder_forward.3} parent=11 // pred_region
          _
        $region20: #{decoder_forward.3} parent=11 // pred_fallthru
          _
        // Predicated region
        $region21: #{decoder_forward.3} parent=11 // pred_check
          %p605 = pneg %p201
        $region22: #{decoder_forward.3} parent=11 // pred_check_branch
          %607 = sbr.rel (%p605) target = $region24
        $region23: #{decoder_forward.3} parent=11 // pred_region
          _
        $region24: #{decoder_forward.3} parent=11 // pred_fallthru
          _
        // Predicated region
        $region25: #{decoder_forward.3} parent=11 // pred_check
          %p608 = pneg %p222
        $region26: #{decoder_forward.3} parent=11 // pred_check_branch
          %610 = sbr.rel (%p608) target = $region28
        $region27: #{decoder_forward.3} parent=11 // pred_region
          _
        $region28: #{decoder_forward.3} parent=11 // pred_fallthru
          _
        // Predicated region
        $region29: #{decoder_forward.3} parent=11 // pred_check
          %p611 = pneg %p243
        $region30: #{decoder_forward.3} parent=11 // pred_check_branch
          %613 = sbr.rel (%p611) target = $region32
        $region31: #{decoder_forward.3} parent=11 // pred_region
          _
        $region32: #{decoder_forward.3} parent=11 // pred_fallthru
          _
        // Predicated region
        $region33: #{decoder_forward.3} parent=11 // pred_check
          %p614 = pneg %p264
        $region34: #{decoder_forward.3} parent=11 // pred_check_branch
          %616 = sbr.rel (%p614) target = $region36
        $region35: #{decoder_forward.3} parent=11 // pred_region
          _
        $region36: #{decoder_forward.3} parent=11 // pred_fallthru
          _
        // Predicated region
        $region37: #{decoder_forward.3} parent=11 // pred_check
          %p617 = pneg %p285
        $region38: #{decoder_forward.3} parent=11 // pred_check_branch
          %619 = sbr.rel (%p617) target = $region40
        $region39: #{decoder_forward.3} parent=11 // pred_region
          _
        $region40: #{decoder_forward.3} parent=11 // pred_fallthru
          _
        // Predicated region
        $region41: #{decoder_forward.3} parent=11 // pred_check
          %p620 = pneg %p306
        $region42: #{decoder_forward.3} parent=11 // pred_check_branch
          %622 = sbr.rel (%p620) target = $region44
        $region43: #{decoder_forward.3} parent=11 // pred_region
          _
        $region44: #{decoder_forward.3} parent=11 // pred_fallthru
          _
        // Predicated region
        $region45: #{decoder_forward.3} parent=11 // pred_check
          %p623 = pneg %p327
        $region46: #{decoder_forward.3} parent=11 // pred_check_branch
          %625 = sbr.rel (%p623) target = $region48
        $region47: #{decoder_forward.3} parent=11 // pred_region
          _
        $region48: #{decoder_forward.3} parent=11 // pred_fallthru
          _
        // Predicated region
        $region49: #{decoder_forward.3} parent=11 // pred_check
          %p626 = pneg %p348
        $region50: #{decoder_forward.3} parent=11 // pred_check_branch
          %628 = sbr.rel (%p626) target = $region52
        $region51: #{decoder_forward.3} parent=11 // pred_region
          _
        $region52: #{decoder_forward.3} parent=11 // pred_fallthru
          _
        // Predicated region
        $region53: #{decoder_forward.3} parent=11 // pred_check
          %p629 = pneg %p369
        $region54: #{decoder_forward.3} parent=11 // pred_check_branch
          %631 = sbr.rel (%p629) target = $region56
        $region55: #{decoder_forward.3} parent=11 // pred_region
          _
        $region56: #{decoder_forward.3} parent=11 // pred_fallthru
          _
        // Predicated region
        $region57: #{decoder_forward.3} parent=11 // pred_check
          %p632 = pneg %p390
        $region58: #{decoder_forward.3} parent=11 // pred_check_branch
          %634 = sbr.rel (%p632) target = $region60
        $region59: #{decoder_forward.3} parent=11 // pred_region
          _
        $region60: #{decoder_forward.3} parent=11 // pred_fallthru
          _
        // Predicated region
        $region61: #{decoder_forward.3} parent=11 // pred_check
          %p635 = pneg %p411
        $region62: #{decoder_forward.3} parent=11 // pred_check_branch
          %637 = sbr.rel (%p635) target = $region64
        $region63: #{decoder_forward.3} parent=11 // pred_region
          _
        $region64: #{decoder_forward.3} parent=11 // pred_fallthru
          _
        // Predicated region
        $region65: #{decoder_forward.3} parent=11 // pred_check
          %p638 = pneg %p432
        $region66: #{decoder_forward.3} parent=11 // pred_check_branch
          %640 = sbr.rel (%p638) target = $region68
        $region67: #{decoder_forward.3} parent=11 // pred_region
          _
        $region68: #{decoder_forward.3} parent=11 // pred_fallthru
          _
        // Predicated region
        $region69: #{decoder_forward.3} parent=11 // pred_check
          %p641 = pneg %p453
        $region70: #{decoder_forward.3} parent=11 // pred_check_branch
          %643 = sbr.rel (%p641) target = $region72
        $region71: #{decoder_forward.3} parent=11 // pred_region
          _
        $region72: #{decoder_forward.3} parent=11 // pred_fallthru
          _
        // Predicated region
        $region73: #{decoder_forward.3} parent=11 // pred_check
          %p644 = pneg %p474
        $region74: #{decoder_forward.3} parent=11 // pred_check_branch
          %646 = sbr.rel (%p644) target = $region76
        $region75: #{decoder_forward.3} parent=11 // pred_region
          _
        $region76: #{decoder_forward.3} parent=11 // pred_fallthru
          _
        // Predicated region
        $region77: #{decoder_forward.3} parent=11 // pred_check
          %p647 = pneg %p495
        $region78: #{decoder_forward.3} parent=11 // pred_check_branch
          %649 = sbr.rel (%p647) target = $region80
        $region79: #{decoder_forward.3} parent=11 // pred_region
          _
        $region80: #{decoder_forward.3} parent=11 // pred_fallthru
          _
        // Predicated region
        $region81: #{decoder_forward.3} parent=11 // pred_check
          %p650 = pneg %p516
        $region82: #{decoder_forward.3} parent=11 // pred_check_branch
          %652 = sbr.rel (%p650) target = $region84
        $region83: #{decoder_forward.3} parent=11 // pred_region
          _
        $region84: #{decoder_forward.3} parent=11 // pred_fallthru
          _
        // Predicated region
        $region85: #{decoder_forward.3} parent=11 // pred_check
          %p653 = pneg %p537
        $region86: #{decoder_forward.3} parent=11 // pred_check_branch
          %655 = sbr.rel (%p653) target = $region88
        $region87: #{decoder_forward.3} parent=11 // pred_region
          _
        $region88: #{decoder_forward.3} parent=11 // pred_fallthru
          _
        // Predicated region
        $region89: #{decoder_forward.3} parent=11 // pred_check
          %p656 = pneg %p558
        $region90: #{decoder_forward.3} parent=11 // pred_check_branch
          %658 = sbr.rel (%p656) target = $region92
        $region91: #{decoder_forward.3} parent=11 // pred_region
          %s660 = ssub.s32 16, 16
          %661 = vsyncadd [#allocation3], %s660
          %s663 = sshll.u32 [#allocation2], 4
          %s664 = int_to_ptr.vmem [resolvable:$true] %s663
          %666 = dma.hbm_to_vmem [thread:$0]  %s23, 16, %s664, [#allocation3]
        $region92: #{decoder_forward.3} parent=11 // pred_fallthru
          _
      $region12: #{decoder_forward.3} parent=5 // pred_fallthru
        _
      %p667 = scmp.lt.s32.totalorder %s34, 2
      // Predicated region
      $region93: #{decoder_forward.3} parent=5 // pred_check
        %p668 = pneg %p667
      $region94: #{decoder_forward.3} parent=5 // pred_check_branch
        %670 = sbr.rel (%p668) target = $region96
      $region95: #{decoder_forward.3} parent=5 // pred_region
        // Predicated region
        $region97: #{decoder_forward.3} parent=95 // pred_check
          %p671 = pneg %p54
        $region98: #{decoder_forward.3} parent=95 // pred_check_branch
          %673 = sbr.rel (%p671) target = $region100
        $region99: #{decoder_forward.3} parent=95 // pred_region
          %p674 = scmp.lt.s32.totalorder %s34, 1
          %s675 = scalar_select %p674, %s34, 1
          %s676 = smul.addr %s675, 8
          %s677 = scalar_lea.vmem %s0, %s676
        $region100: #{decoder_forward.3} parent=95 // pred_fallthru
          _
        // Predicated region
        $region101: #{decoder_forward.3} parent=95 // pred_check
          %p678 = pneg %p80
        $region102: #{decoder_forward.3} parent=95 // pred_check_branch
          %680 = sbr.rel (%p678) target = $region104
        $region103: #{decoder_forward.3} parent=95 // pred_region
          %p681 = scmp.lt.s32.totalorder %s34, 1
          %s682 = scalar_select %p681, %s34, 1
          %s683 = smul.addr %s682, 8
          %s684 = scalar_lea.vmem %s1, %s683
        $region104: #{decoder_forward.3} parent=95 // pred_fallthru
          _
        // Predicated region
        $region105: #{decoder_forward.3} parent=95 // pred_check
          %p685 = pneg %p106
        $region106: #{decoder_forward.3} parent=95 // pred_check_branch
          %687 = sbr.rel (%p685) target = $region108
        $region107: #{decoder_forward.3} parent=95 // pred_region
          %p688 = scmp.lt.s32.totalorder %s34, 1
          %s689 = scalar_select %p688, %s34, 1
          %s690 = smul.addr %s689, 8
          %s691 = scalar_lea.vmem %s2, %s690
        $region108: #{decoder_forward.3} parent=95 // pred_fallthru
          _
        // Predicated region
        $region109: #{decoder_forward.3} parent=95 // pred_check
          %p692 = pneg %p132
        $region110: #{decoder_forward.3} parent=95 // pred_check_branch
          %694 = sbr.rel (%p692) target = $region112
        $region111: #{decoder_forward.3} parent=95 // pred_region
          %p695 = scmp.lt.s32.totalorder %s34, 1
          %s696 = scalar_select %p695, %s34, 1
          %s697 = smul.addr %s696, 8
          %s698 = scalar_lea.vmem %s3, %s697
        $region112: #{decoder_forward.3} parent=95 // pred_fallthru
          _
      $region96: #{decoder_forward.3} parent=5 // pred_fallthru
        _
      %p699 = scmp.le.s32.totalorder 1, %s34
      %p700 = scmp.lt.s32.totalorder %s34, 3
      %p701 = pnand %p699, %p700
      %p702 = pneg %p701
      // Predicated region
      $region113: #{decoder_forward.3} parent=5 // pred_check
        _
      $region114: #{decoder_forward.3} parent=5 // pred_check_branch
        %704 = sbr.rel (%p701) target = $region116
      $region115: #{decoder_forward.3} parent=5 // pred_region
        %s705 = ssub.s32 %s34, 1
        // Predicated region
        $region117: #{decoder_forward.3} parent=115 // pred_check
          %p706 = pneg %p558
        $region118: #{decoder_forward.3} parent=115 // pred_check_branch
          %708 = sbr.rel (%p706) target = $region120
        $region119: #{decoder_forward.3} parent=115 // pred_region
          %709 = dma.done [#allocation3], 16
        $region120: #{decoder_forward.3} parent=115 // pred_fallthru
          _
        %p710 = scmp.lt.s32.totalorder %s39, 1
        %s711 = scalar_select %p710, %s39, 1
        %s712 = smul.addr %s711, 8
        %s713 = scalar_lea.vmem %s0, %s712
        %p714 = pneg %p60
        %p715 = pneg %p57
        %p716 = scmp.lt.s32.totalorder %s39, 1
        %s717 = scalar_select %p716, %s39, 1
        %s718 = smul.addr %s717, 8
        %s719 = scalar_lea.vmem %s1, %s718
        %p720 = pneg %p86
        %p721 = pneg %p83
        %p722 = scmp.lt.s32.totalorder %s39, 1
        %s723 = scalar_select %p722, %s39, 1
        %s724 = smul.addr %s723, 8
        %s725 = scalar_lea.vmem %s2, %s724
        %p726 = pneg %p112
        %p727 = pneg %p109
        %p728 = scmp.lt.s32.totalorder %s39, 1
        %s729 = scalar_select %p728, %s39, 1
        %s730 = smul.addr %s729, 8
        %s731 = scalar_lea.vmem %s3, %s730
        %p732 = pneg %p138
        %p733 = pneg %p135
        %p734 = pneg %p159
        %p735 = pneg %p156
        %p736 = pneg %p180
        %p737 = pneg %p177
        %p738 = pneg %p201
        %p739 = pneg %p198
        %p740 = pneg %p222
        %p741 = pneg %p219
        %p742 = pneg %p243
        %p743 = pneg %p240
        %p744 = pneg %p264
        %p745 = pneg %p261
        %p746 = pneg %p285
        %p747 = pneg %p282
        %p748 = pneg %p306
        %p749 = pneg %p303
        %p750 = pneg %p327
        %p751 = pneg %p324
        %p752 = pneg %p348
        %p753 = pneg %p345
        %p754 = pneg %p369
        %p755 = pneg %p366
        %p756 = pneg %p390
        %p757 = pneg %p387
        %p758 = pneg %p411
        %p759 = pneg %p408
        %p760 = pneg %p432
        %p761 = pneg %p429
        %p762 = pneg %p453
        %p763 = pneg %p450
        %p764 = pneg %p474
        %p765 = pneg %p471
        %p766 = pneg %p495
        %p767 = pneg %p492
        %p768 = pneg %p516
        %p769 = pneg %p513
        %p770 = pneg %p537
        %p771 = pneg %p534
        %p772 = pneg %p558
        %p773 = pneg %p555
        %p774 = pneg %p584
        %p775 = pneg %p581
        %s776 = sand.u32 %s571, 1
        %s777 = scalar_lea.sflag [#allocation4], %s776
        %s778 = sand.u32 %s571, 1
        %s779 = smul.addr %s778, 8
        %s780 = scalar_lea.vmem [#allocation5], %s779
        %p781 = scmp.lt.s32.totalorder %s39, 1
        %s782 = scalar_select %p781, %s39, 1
        %s783 = smul.addr %s782, 8
        %s784 = scalar_lea.vmem %s0, %s783
        %p785 = scmp.lt.s32.totalorder %s39, 1
        %s786 = scalar_select %p785, %s39, 1
        %s787 = smul.addr %s786, 8
        %s788 = scalar_lea.vmem %s1, %s787
        %p789 = scmp.lt.s32.totalorder %s39, 1
        %s790 = scalar_select %p789, %s39, 1
        %s791 = smul.addr %s790, 8
        %s792 = scalar_lea.vmem %s2, %s791
        %p793 = scmp.lt.s32.totalorder %s39, 1
        %s794 = scalar_select %p793, %s39, 1
        %s795 = smul.addr %s794, 8
        %s796 = scalar_lea.vmem %s3, %s795
        %v797 = vld [vmem:[%s784] sm:$0xff]
        %v798 = vld [vmem:[%s788] sm:$0xff]
        %v799 = vld [vmem:[%s4] sm:$0xff]
        %v800 = vld [vmem:[%s4 + $0x8] sm:$0xff]
        %v801 = vld [vmem:[%s4 + $0x10] sm:$0xff]
        %v802 = vld [vmem:[%s4 + $0x18] sm:$0xff]
        %v803 = vld [vmem:[%s5] sm:$0x1]
        %v805 = vlaneseq
        %v806 = vshrl.u32 %v805, 7
        %v807 = vsub.s32 0, %v806
        %v808 = vrot.slane %v803, %v807
        %vm810 = vcmask 261120
        %v812 = vsel %vm810, %v797, 0
        %814 = vmatprep.subr.mxu0 0.0
        %815 = vmatpush1.msra.mxu0 %v799
        %816 = vmatprep.subr.mxu0 0.0
        %817 = vmatpush1.msra.mxu0 %v800
        %818 = vmatprep.subr.mxu0 0.0
        %819 = vmatpush1.msra.mxu0 %v801
        %820 = vmatprep.subr.mxu0 0.0
        %821 = vmatpush1.msra.mxu0 %v802
        %822 = vmatprep.subr.mxu0 0.0
        %823 = vmatpush1.msra.mxu0 0.0
        %824 = vmatprep.subr.mxu0 0.0
        %825 = vmatpush1.msra.mxu0 0.0
        %826 = vmatprep.subr.mxu0 0.0
        %827 = vmatpush1.msra.mxu0 0.0
        %828 = vmatprep.subr.mxu0 0.0
        %829 = vmatpush1.msra.mxu0 0.0
        %830 = vmatprep.subr.mxu0 0.0
        %831 = vmatpush1.msra.mxu0 0.0
        %832 = vmatprep.subr.mxu0 0.0
        %833 = vmatpush1.msra.mxu0 0.0
        %834 = vmatprep.subr.mxu0 0.0
        %835 = vmatpush1.msra.mxu0 0.0
        %836 = vmatprep.subr.mxu0 0.0
        %837 = vmatpush1.msra.mxu0 0.0
        %838 = vmatprep.subr.mxu0 0.0
        %839 = vmatpush1.msra.mxu0 0.0
        %840 = vmatprep.subr.mxu0 0.0
        %841 = vmatpush1.msra.mxu0 0.0
        %842 = vmatprep.subr.mxu0 0.0
        %843 = vmatpush1.msra.mxu0 0.0
        %844 = vmatprep.subr.mxu0 0.0
        %845 = vmatpush1.msra.mxu0 0.0
        %846 = vmatprep.subr.mxu0 0.0
        %847 = vmatpush1.msra.mxu0 0.0
        %848 = vmatprep.subr.mxu0 0.0
        %849 = vmatpush1.msra.mxu0 0.0
        %850 = vmatprep.subr.mxu0 0.0
        %851 = vmatpush1.msra.mxu0 0.0
        %852 = vmatprep.subr.mxu0 0.0
        %853 = vmatpush1.msra.mxu0 0.0
        %854 = vmatprep.subr.mxu0 0.0
        %855 = vmatpush1.msra.mxu0 0.0
        %856 = vmatprep.subr.mxu0 0.0
        %857 = vmatpush1.msra.mxu0 0.0
        %858 = vmatprep.subr.mxu0 0.0
        %859 = vmatpush1.msra.mxu0 0.0
        %860 = vmatprep.subr.mxu0 0.0
        %861 = vmatpush1.msra.mxu0 0.0
        %862 = vmatprep.subr.mxu0 0.0
        %863 = vmatpush1.msra.mxu0 0.0
        %864 = vmatprep.subr.mxu0 0.0
        %865 = vmatpush1.msra.mxu0 0.0
        %866 = vmatprep.subr.mxu0 0.0
        %867 = vmatpush1.msra.mxu0 0.0
        %868 = vmatprep.subr.mxu0 0.0
        %869 = vmatpush1.msra.mxu0 0.0
        %870 = vmatprep.subr.mxu0 0.0
        %871 = vmatpush1.msra.mxu0 0.0
        %872 = vmatprep.subr.mxu0 0.0
        %873 = vmatpush1.msra.mxu0 0.0
        %874 = vmatprep.subr.mxu0 0.0
        %875 = vmatpush1.msra.mxu0 0.0
        %876 = vmatprep.subr.mxu0 0.0
        %877 = vmatpush1.msra.mxu0 0.0
        %878 = vmatprep.mubr.f32.mxu0 0.0
        %879 = vmatmul.mubr.f32.gmra.mrb[0].mxu0 %v812
        %v880 = vpop.f32.mrb[0].mxu0
        %v881 = vadd.f32 %v808, %v880
        %v882 = vpop.f32.mrb[0].mxu0
        %883 = vdwg.mxu0
        %v884 = vld [vmem:[%s792] sm:$0xff]
        %v885 = vld [vmem:[%s6] sm:$0xff]
        %v886 = vld [vmem:[%s6 + $0x8] sm:$0xff]
        %v887 = vld [vmem:[%s6 + $0x10] sm:$0xff]
        %v888 = vld [vmem:[%s6 + $0x18] sm:$0xff]
        %v889 = vld [vmem:[%s7] sm:$0x1]
        %v890 = vmul.f32 %v881, 0.35355338
        %892 = vrot.lane.b32.xlu0 %v881, 96
        %v893 = vpop.permute.xlu0 %892
        %vm894 = vcmask 64512
        %v896 = vsel %vm894, %v890, 0
        %v898 = vsel %vm894, %v893, 0
        %900 = vmatprep.subr.mxu0 0.0
        %901 = vmatpush1.xpose.msra.mxu0 %v898
        %902 = vmatprep.subr.mxu0 0.0
        %903 = vmatpush1.xpose.msra.mxu0 0.0
        %904 = vmatprep.subr.mxu0 0.0
        %905 = vmatpush1.xpose.msra.mxu0 0.0
        %906 = vmatprep.subr.mxu0 0.0
        %907 = vmatpush1.xpose.msra.mxu0 0.0
        %908 = vmatprep.subr.mxu0 0.0
        %909 = vmatpush1.xpose.msra.mxu0 0.0
        %910 = vmatprep.subr.mxu0 0.0
        %911 = vmatpush1.xpose.msra.mxu0 0.0
        %912 = vmatprep.subr.mxu0 0.0
        %913 = vmatpush1.xpose.msra.mxu0 0.0
        %914 = vmatprep.subr.mxu0 0.0
        %915 = vmatpush1.xpose.msra.mxu0 0.0
        %916 = vmatprep.subr.mxu0 0.0
        %917 = vmatpush1.xpose.msra.mxu0 0.0
        %918 = vmatprep.subr.mxu0 0.0
        %919 = vmatpush1.xpose.msra.mxu0 0.0
        %920 = vmatprep.subr.mxu0 0.0
        %921 = vmatpush1.xpose.msra.mxu0 0.0
        %922 = vmatprep.subr.mxu0 0.0
        %923 = vmatpush1.xpose.msra.mxu0 0.0
        %924 = vmatprep.subr.mxu0 0.0
        %925 = vmatpush1.xpose.msra.mxu0 0.0
        %926 = vmatprep.subr.mxu0 0.0
        %927 = vmatpush1.xpose.msra.mxu0 0.0
        %928 = vmatprep.subr.mxu0 0.0
        %929 = vmatpush1.xpose.msra.mxu0 0.0
        %930 = vmatprep.subr.mxu0 0.0
        %931 = vmatpush1.xpose.msra.mxu0 0.0
        %932 = vmatprep.subr.mxu0 0.0
        %933 = vmatpush1.xpose.msra.mxu0 0.0
        %934 = vmatprep.subr.mxu0 0.0
        %935 = vmatpush1.xpose.msra.mxu0 0.0
        %936 = vmatprep.subr.mxu0 0.0
        %937 = vmatpush1.xpose.msra.mxu0 0.0
        %938 = vmatprep.subr.mxu0 0.0
        %939 = vmatpush1.xpose.msra.mxu0 0.0
        %940 = vmatprep.subr.mxu0 0.0
        %941 = vmatpush1.xpose.msra.mxu0 0.0
        %942 = vmatprep.subr.mxu0 0.0
        %943 = vmatpush1.xpose.msra.mxu0 0.0
        %944 = vmatprep.subr.mxu0 0.0
        %945 = vmatpush1.xpose.msra.mxu0 0.0
        %946 = vmatprep.subr.mxu0 0.0
        %947 = vmatpush1.xpose.msra.mxu0 0.0
        %948 = vmatprep.subr.mxu0 0.0
        %949 = vmatpush1.xpose.msra.mxu0 0.0
        %950 = vmatprep.subr.mxu0 0.0
        %951 = vmatpush1.xpose.msra.mxu0 0.0
        %952 = vmatprep.subr.mxu0 0.0
        %953 = vmatpush1.xpose.msra.mxu0 0.0
        %954 = vmatprep.subr.mxu0 0.0
        %955 = vmatpush1.xpose.msra.mxu0 0.0
        %956 = vmatprep.subr.mxu0 0.0
        %957 = vmatpush1.xpose.msra.mxu0 0.0
        %958 = vmatprep.subr.mxu0 0.0
        %959 = vmatpush1.xpose.msra.mxu0 0.0
        %960 = vmatprep.subr.mxu0 0.0
        %961 = vmatpush1.xpose.msra.mxu0 0.0
        %962 = vmatprep.subr.mxu0 0.0
        %963 = vmatpush1.xpose.msra.mxu0 0.0
        %964 = vmatprep.mubr.f32.mxu0 0.0
        %965 = vmatmul.mubr.f32.gmra.mrb[0].mxu0 %v896
        %v966 = vpop.f32.mrb[0].mxu0
        %v967 = vadd.f32 %v884, %v966
        %v968 = vpop.f32.mrb[0].mxu0
        %969 = vdwg.mxu0
        %v970 = vsel %vm894, %v967, -inf
        %971 = vmax.xlane.f32.xlu0 %v970
        %v972 = vpop.xlane.xlu0 %971
        %v973 = vsub.f32 %v967, %v972
        %v974 = vmul.f32 %v973, 1.442695
        %v975 = vpow.pop %v974
        %v976 = vsel %vm894, %v975, 0.0
        %977 = vadd.xlane.f32.xlu0 %v976
        %v978 = vpop.xlane.xlu0 %977
        %v979 = vrcp.pop %v978
        %v980 = vmul.f32 %v975, %v979
        %981 = vrot.lane.b32.xlu0 %v881, 64
        %v982 = vpop.permute.xlu0 %981
        %v985 = vsel %vm894, %v980, 0
        %987 = vmatprep.subr.mxu0 0.0
        %988 = vmatpush1.msra.mxu0 %v982
        %989 = vmatprep.subr.mxu0 0.0
        %990 = vmatpush1.msra.mxu0 0.0
        %991 = vmatprep.subr.mxu0 0.0
        %992 = vmatpush1.msra.mxu0 0.0
        %993 = vmatprep.subr.mxu0 0.0
        %994 = vmatpush1.msra.mxu0 0.0
        %995 = vmatprep.subr.mxu0 0.0
        %996 = vmatpush1.msra.mxu0 0.0
        %997 = vmatprep.subr.mxu0 0.0
        %998 = vmatpush1.msra.mxu0 0.0
        %999 = vmatprep.subr.mxu0 0.0
        %1000 = vmatpush1.msra.mxu0 0.0
        %1001 = vmatprep.subr.mxu0 0.0
        %1002 = vmatpush1.msra.mxu0 0.0
        %1003 = vmatprep.subr.mxu0 0.0
        %1004 = vmatpush1.msra.mxu0 0.0
        %1005 = vmatprep.subr.mxu0 0.0
        %1006 = vmatpush1.msra.mxu0 0.0
        %1007 = vmatprep.subr.mxu0 0.0
        %1008 = vmatpush1.msra.mxu0 0.0
        %1009 = vmatprep.subr.mxu0 0.0
        %1010 = vmatpush1.msra.mxu0 0.0
        %1011 = vmatprep.subr.mxu0 0.0
        %1012 = vmatpush1.msra.mxu0 0.0
        %1013 = vmatprep.subr.mxu0 0.0
        %1014 = vmatpush1.msra.mxu0 0.0
        %1015 = vmatprep.subr.mxu0 0.0
        %1016 = vmatpush1.msra.mxu0 0.0
        %1017 = vmatprep.subr.mxu0 0.0
        %1018 = vmatpush1.msra.mxu0 0.0
        %1019 = vmatprep.subr.mxu0 0.0
        %1020 = vmatpush1.msra.mxu0 0.0
        %1021 = vmatprep.subr.mxu0 0.0
        %1022 = vmatpush1.msra.mxu0 0.0
        %1023 = vmatprep.subr.mxu0 0.0
        %1024 = vmatpush1.msra.mxu0 0.0
        %1025 = vmatprep.subr.mxu0 0.0
        %1026 = vmatpush1.msra.mxu0 0.0
        %1027 = vmatprep.subr.mxu0 0.0
        %1028 = vmatpush1.msra.mxu0 0.0
        %1029 = vmatprep.subr.mxu0 0.0
        %1030 = vmatpush1.msra.mxu0 0.0
        %1031 = vmatprep.subr.mxu0 0.0
        %1032 = vmatpush1.msra.mxu0 0.0
        %1033 = vmatprep.subr.mxu0 0.0
        %1034 = vmatpush1.msra.mxu0 0.0
        %1035 = vmatprep.subr.mxu0 0.0
        %1036 = vmatpush1.msra.mxu0 0.0
        %1037 = vmatprep.subr.mxu0 0.0
        %1038 = vmatpush1.msra.mxu0 0.0
        %1039 = vmatprep.subr.mxu0 0.0
        %1040 = vmatpush1.msra.mxu0 0.0
        %1041 = vmatprep.subr.mxu0 0.0
        %1042 = vmatpush1.msra.mxu0 0.0
        %1043 = vmatprep.subr.mxu0 0.0
        %1044 = vmatpush1.msra.mxu0 0.0
        %1045 = vmatprep.subr.mxu0 0.0
        %1046 = vmatpush1.msra.mxu0 0.0
        %1047 = vmatprep.subr.mxu0 0.0
        %1048 = vmatpush1.msra.mxu0 0.0
        %1049 = vmatprep.subr.mxu0 0.0
        %1050 = vmatpush1.msra.mxu0 0.0
        %1051 = vmatprep.mubr.f32.mxu0 0.0
        %1052 = vmatmul.mubr.f32.gmra.mrb[0].mxu0 %v985
        %v1053 = vpop.f32.mrb[0].mxu0
        %v1054 = vadd.f32 0.0, %v1053
        %v1055 = vpop.f32.mrb[0].mxu0
        %1056 = vdwg.mxu0
        %v1058 = vsel %vm894, %v1054, 0
        %1060 = vmatprep.subr.mxu0 0.0
        %1061 = vmatpush1.msra.mxu0 %v885
        %1062 = vmatprep.subr.mxu0 0.0
        %1063 = vmatpush1.msra.mxu0 0.0
        %1064 = vmatprep.subr.mxu0 0.0
        %1065 = vmatpush1.msra.mxu0 0.0
        %1066 = vmatprep.subr.mxu0 0.0
        %1067 = vmatpush1.msra.mxu0 0.0
        %1068 = vmatprep.subr.mxu0 0.0
        %1069 = vmatpush1.msra.mxu0 0.0
        %1070 = vmatprep.subr.mxu0 0.0
        %1071 = vmatpush1.msra.mxu0 0.0
        %1072 = vmatprep.subr.mxu0 0.0
        %1073 = vmatpush1.msra.mxu0 0.0
        %1074 = vmatprep.subr.mxu0 0.0
        %1075 = vmatpush1.msra.mxu0 0.0
        %1076 = vmatprep.subr.mxu0 0.0
        %1077 = vmatpush1.msra.mxu0 0.0
        %1078 = vmatprep.subr.mxu0 0.0
        %1079 = vmatpush1.msra.mxu0 0.0
        %1080 = vmatprep.subr.mxu0 0.0
        %1081 = vmatpush1.msra.mxu0 0.0
        %1082 = vmatprep.subr.mxu0 0.0
        %1083 = vmatpush1.msra.mxu0 0.0
        %1084 = vmatprep.subr.mxu0 0.0
        %1085 = vmatpush1.msra.mxu0 0.0
        %1086 = vmatprep.subr.mxu0 0.0
        %1087 = vmatpush1.msra.mxu0 0.0
        %1088 = vmatprep.subr.mxu0 0.0
        %1089 = vmatpush1.msra.mxu0 0.0
        %1090 = vmatprep.subr.mxu0 0.0
        %1091 = vmatpush1.msra.mxu0 0.0
        %1092 = vmatprep.subr.mxu0 0.0
        %1093 = vmatpush1.msra.mxu0 0.0
        %1094 = vmatprep.subr.mxu0 0.0
        %1095 = vmatpush1.msra.mxu0 0.0
        %1096 = vmatprep.subr.mxu0 0.0
        %1097 = vmatpush1.msra.mxu0 0.0
        %1098 = vmatprep.subr.mxu0 0.0
        %1099 = vmatpush1.msra.mxu0 0.0
        %1100 = vmatprep.subr.mxu0 0.0
        %1101 = vmatpush1.msra.mxu0 0.0
        %1102 = vmatprep.subr.mxu0 0.0
        %1103 = vmatpush1.msra.mxu0 0.0
        %1104 = vmatprep.subr.mxu0 0.0
        %1105 = vmatpush1.msra.mxu0 0.0
        %1106 = vmatprep.subr.mxu0 0.0
        %1107 = vmatpush1.msra.mxu0 0.0
        %1108 = vmatprep.subr.mxu0 0.0
        %1109 = vmatpush1.msra.mxu0 0.0
        %1110 = vmatprep.subr.mxu0 0.0
        %1111 = vmatpush1.msra.mxu0 0.0
        %1112 = vmatprep.subr.mxu0 0.0
        %1113 = vmatpush1.msra.mxu0 0.0
        %1114 = vmatprep.subr.mxu0 0.0
        %1115 = vmatpush1.msra.mxu0 0.0
        %1116 = vmatprep.subr.mxu0 0.0
        %1117 = vmatpush1.msra.mxu0 0.0
        %1118 = vmatprep.subr.mxu0 0.0
        %1119 = vmatpush1.msra.mxu0 0.0
        %1120 = vmatprep.subr.mxu0 0.0
        %1121 = vmatpush1.msra.mxu0 0.0
        %1122 = vmatprep.subr.mxu0 0.0
        %1123 = vmatpush1.msra.mxu0 0.0
        %1124 = vmatprep.mubr.f32.mxu0 0.0
        %1125 = vmatmul.mubr.f32.gmra.mrb[0].mxu0 %v1058
        %v1126 = vpop.f32.mrb[0].mxu0
        %v1127 = vadd.f32 0.0, %v1126
        %v1128 = vpop.f32.mrb[0].mxu0
        %1129 = vdwg.mxu0
        %v1131 = vlaneseq
        %v1132 = vshrl.u32 %v1131, 7
        %v1133 = vsub.s32 0, %v1132
        %v1134 = vrot.slane %v889, %v1133
        %v1136 = vadd.f32 %v1134, %v1127
        %1137 = vrot.lane.b32.xlu0 %v890, 120
        %v1138 = vpop.permute.xlu0 %1137
        %1139 = vrot.lane.b32.xlu0 %v881, 88
        %v1140 = vpop.permute.xlu0 %1139
        %v1141 = vsel %vm894, %v1138, 0
        %v1143 = vsel %vm894, %v1140, 0
        %1145 = vmatprep.subr.mxu0 0.0
        %1146 = vmatpush1.xpose.msra.mxu0 %v1143
        %1147 = vmatprep.subr.mxu0 0.0
        %1148 = vmatpush1.xpose.msra.mxu0 0.0
        %1149 = vmatprep.subr.mxu0 0.0
        %1150 = vmatpush1.xpose.msra.mxu0 0.0
        %1151 = vmatprep.subr.mxu0 0.0
        %1152 = vmatpush1.xpose.msra.mxu0 0.0
        %1153 = vmatprep.subr.mxu0 0.0
        %1154 = vmatpush1.xpose.msra.mxu0 0.0
        %1155 = vmatprep.subr.mxu0 0.0
        %1156 = vmatpush1.xpose.msra.mxu0 0.0
        %1157 = vmatprep.subr.mxu0 0.0
        %1158 = vmatpush1.xpose.msra.mxu0 0.0
        %1159 = vmatprep.subr.mxu0 0.0
        %1160 = vmatpush1.xpose.msra.mxu0 0.0
        %1161 = vmatprep.subr.mxu0 0.0
        %1162 = vmatpush1.xpose.msra.mxu0 0.0
        %1163 = vmatprep.subr.mxu0 0.0
        %1164 = vmatpush1.xpose.msra.mxu0 0.0
        %1165 = vmatprep.subr.mxu0 0.0
        %1166 = vmatpush1.xpose.msra.mxu0 0.0
        %1167 = vmatprep.subr.mxu0 0.0
        %1168 = vmatpush1.xpose.msra.mxu0 0.0
        %1169 = vmatprep.subr.mxu0 0.0
        %1170 = vmatpush1.xpose.msra.mxu0 0.0
        %1171 = vmatprep.subr.mxu0 0.0
        %1172 = vmatpush1.xpose.msra.mxu0 0.0
        %1173 = vmatprep.subr.mxu0 0.0
        %1174 = vmatpush1.xpose.msra.mxu0 0.0
        %1175 = vmatprep.subr.mxu0 0.0
        %1176 = vmatpush1.xpose.msra.mxu0 0.0
        %1177 = vmatprep.subr.mxu0 0.0
        %1178 = vmatpush1.xpose.msra.mxu0 0.0
        %1179 = vmatprep.subr.mxu0 0.0
        %1180 = vmatpush1.xpose.msra.mxu0 0.0
        %1181 = vmatprep.subr.mxu0 0.0
        %1182 = vmatpush1.xpose.msra.mxu0 0.0
        %1183 = vmatprep.subr.mxu0 0.0
        %1184 = vmatpush1.xpose.msra.mxu0 0.0
        %1185 = vmatprep.subr.mxu0 0.0
        %1186 = vmatpush1.xpose.msra.mxu0 0.0
        %1187 = vmatprep.subr.mxu0 0.0
        %1188 = vmatpush1.xpose.msra.mxu0 0.0
        %1189 = vmatprep.subr.mxu0 0.0
        %1190 = vmatpush1.xpose.msra.mxu0 0.0
        %1191 = vmatprep.subr.mxu0 0.0
        %1192 = vmatpush1.xpose.msra.mxu0 0.0
        %1193 = vmatprep.subr.mxu0 0.0
        %1194 = vmatpush1.xpose.msra.mxu0 0.0
        %1195 = vmatprep.subr.mxu0 0.0
        %1196 = vmatpush1.xpose.msra.mxu0 0.0
        %1197 = vmatprep.subr.mxu0 0.0
        %1198 = vmatpush1.xpose.msra.mxu0 0.0
        %1199 = vmatprep.subr.mxu0 0.0
        %1200 = vmatpush1.xpose.msra.mxu0 0.0
        %1201 = vmatprep.subr.mxu0 0.0
        %1202 = vmatpush1.xpose.msra.mxu0 0.0
        %1203 = vmatprep.subr.mxu0 0.0
        %1204 = vmatpush1.xpose.msra.mxu0 0.0
        %1205 = vmatprep.subr.mxu0 0.0
        %1206 = vmatpush1.xpose.msra.mxu0 0.0
        %1207 = vmatprep.subr.mxu0 0.0
        %1208 = vmatpush1.xpose.msra.mxu0 0.0
        %1209 = vmatprep.mubr.f32.mxu0 0.0
        %1210 = vmatmul.mubr.f32.gmra.mrb[0].mxu0 %v1141
        %v1211 = vpop.f32.mrb[0].mxu0
        %v1212 = vadd.f32 %v884, %v1211
        %v1213 = vpop.f32.mrb[0].mxu0
        %1214 = vdwg.mxu0
        %v1215 = vsel %vm894, %v1212, -inf
        %1216 = vmax.xlane.f32.xlu0 %v1215
        %v1217 = vpop.xlane.xlu0 %1216
        %v1218 = vsub.f32 %v1212, %v1217
        %v1219 = vmul.f32 %v1218, 1.442695
        %v1220 = vpow.pop %v1219
        %v1221 = vsel %vm894, %v1220, 0.0
        %1222 = vadd.xlane.f32.xlu0 %v1221
        %v1223 = vpop.xlane.xlu0 %1222
        %v1224 = vrcp.pop %v1223
        %v1225 = vmul.f32 %v1220, %v1224
        %1226 = vrot.lane.b32.xlu0 %v881, 56
        %v1227 = vpop.permute.xlu0 %1226
        %v1230 = vsel %vm894, %v1225, 0
        %1232 = vmatprep.subr.mxu0 0.0
        %1233 = vmatpush1.msra.mxu0 %v1227
        %1234 = vmatprep.subr.mxu0 0.0
        %1235 = vmatpush1.msra.mxu0 0.0
        %1236 = vmatprep.subr.mxu0 0.0
        %1237 = vmatpush1.msra.mxu0 0.0
        %1238 = vmatprep.subr.mxu0 0.0
        %1239 = vmatpush1.msra.mxu0 0.0
        %1240 = vmatprep.subr.mxu0 0.0
        %1241 = vmatpush1.msra.mxu0 0.0
        %1242 = vmatprep.subr.mxu0 0.0
        %1243 = vmatpush1.msra.mxu0 0.0
        %1244 = vmatprep.subr.mxu0 0.0
        %1245 = vmatpush1.msra.mxu0 0.0
        %1246 = vmatprep.subr.mxu0 0.0
        %1247 = vmatpush1.msra.mxu0 0.0
        %1248 = vmatprep.subr.mxu0 0.0
        %1249 = vmatpush1.msra.mxu0 0.0
        %1250 = vmatprep.subr.mxu0 0.0
        %1251 = vmatpush1.msra.mxu0 0.0
        %1252 = vmatprep.subr.mxu0 0.0
        %1253 = vmatpush1.msra.mxu0 0.0
        %1254 = vmatprep.subr.mxu0 0.0
        %1255 = vmatpush1.msra.mxu0 0.0
        %1256 = vmatprep.subr.mxu0 0.0
        %1257 = vmatpush1.msra.mxu0 0.0
        %1258 = vmatprep.subr.mxu0 0.0
        %1259 = vmatpush1.msra.mxu0 0.0
        %1260 = vmatprep.subr.mxu0 0.0
        %1261 = vmatpush1.msra.mxu0 0.0
        %1262 = vmatprep.subr.mxu0 0.0
        %1263 = vmatpush1.msra.mxu0 0.0
        %1264 = vmatprep.subr.mxu0 0.0
        %1265 = vmatpush1.msra.mxu0 0.0
        %1266 = vmatprep.subr.mxu0 0.0
        %1267 = vmatpush1.msra.mxu0 0.0
        %1268 = vmatprep.subr.mxu0 0.0
        %1269 = vmatpush1.msra.mxu0 0.0
        %1270 = vmatprep.subr.mxu0 0.0
        %1271 = vmatpush1.msra.mxu0 0.0
        %1272 = vmatprep.subr.mxu0 0.0
        %1273 = vmatpush1.msra.mxu0 0.0
        %1274 = vmatprep.subr.mxu0 0.0
        %1275 = vmatpush1.msra.mxu0 0.0
        %1276 = vmatprep.subr.mxu0 0.0
        %1277 = vmatpush1.msra.mxu0 0.0
        %1278 = vmatprep.subr.mxu0 0.0
        %1279 = vmatpush1.msra.mxu0 0.0
        %1280 = vmatprep.subr.mxu0 0.0
        %1281 = vmatpush1.msra.mxu0 0.0
        %1282 = vmatprep.subr.mxu0 0.0
        %1283 = vmatpush1.msra.mxu0 0.0
        %1284 = vmatprep.subr.mxu0 0.0
        %1285 = vmatpush1.msra.mxu0 0.0
        %1286 = vmatprep.subr.mxu0 0.0
        %1287 = vmatpush1.msra.mxu0 0.0
        %1288 = vmatprep.subr.mxu0 0.0
        %1289 = vmatpush1.msra.mxu0 0.0
        %1290 = vmatprep.subr.mxu0 0.0
        %1291 = vmatpush1.msra.mxu0 0.0
        %1292 = vmatprep.subr.mxu0 0.0
        %1293 = vmatpush1.msra.mxu0 0.0
        %1294 = vmatprep.subr.mxu0 0.0
        %1295 = vmatpush1.msra.mxu0 0.0
        %1296 = vmatprep.mubr.f32.mxu0 0.0
        %1297 = vmatmul.mubr.f32.gmra.mrb[0].mxu0 %v1230
        %v1298 = vpop.f32.mrb[0].mxu0
        %v1299 = vadd.f32 0.0, %v1298
        %v1300 = vpop.f32.mrb[0].mxu0
        %1301 = vdwg.mxu0
        %v1303 = vsel %vm894, %v1299, 0
        %1305 = vmatprep.subr.mxu0 0.0
        %1306 = vmatpush1.msra.mxu0 %v886
        %1307 = vmatprep.subr.mxu0 0.0
        %1308 = vmatpush1.msra.mxu0 0.0
        %1309 = vmatprep.subr.mxu0 0.0
        %1310 = vmatpush1.msra.mxu0 0.0
        %1311 = vmatprep.subr.mxu0 0.0
        %1312 = vmatpush1.msra.mxu0 0.0
        %1313 = vmatprep.subr.mxu0 0.0
        %1314 = vmatpush1.msra.mxu0 0.0
        %1315 = vmatprep.subr.mxu0 0.0
        %1316 = vmatpush1.msra.mxu0 0.0
        %1317 = vmatprep.subr.mxu0 0.0
        %1318 = vmatpush1.msra.mxu0 0.0
        %1319 = vmatprep.subr.mxu0 0.0
        %1320 = vmatpush1.msra.mxu0 0.0
        %1321 = vmatprep.subr.mxu0 0.0
        %1322 = vmatpush1.msra.mxu0 0.0
        %1323 = vmatprep.subr.mxu0 0.0
        %1324 = vmatpush1.msra.mxu0 0.0
        %1325 = vmatprep.subr.mxu0 0.0
        %1326 = vmatpush1.msra.mxu0 0.0
        %1327 = vmatprep.subr.mxu0 0.0
        %1328 = vmatpush1.msra.mxu0 0.0
        %1329 = vmatprep.subr.mxu0 0.0
        %1330 = vmatpush1.msra.mxu0 0.0
        %1331 = vmatprep.subr.mxu0 0.0
        %1332 = vmatpush1.msra.mxu0 0.0
        %1333 = vmatprep.subr.mxu0 0.0
        %1334 = vmatpush1.msra.mxu0 0.0
        %1335 = vmatprep.subr.mxu0 0.0
        %1336 = vmatpush1.msra.mxu0 0.0
        %1337 = vmatprep.subr.mxu0 0.0
        %1338 = vmatpush1.msra.mxu0 0.0
        %1339 = vmatprep.subr.mxu0 0.0
        %1340 = vmatpush1.msra.mxu0 0.0
        %1341 = vmatprep.subr.mxu0 0.0
        %1342 = vmatpush1.msra.mxu0 0.0
        %1343 = vmatprep.subr.mxu0 0.0
        %1344 = vmatpush1.msra.mxu0 0.0
        %1345 = vmatprep.subr.mxu0 0.0
        %1346 = vmatpush1.msra.mxu0 0.0
        %1347 = vmatprep.subr.mxu0 0.0
        %1348 = vmatpush1.msra.mxu0 0.0
        %1349 = vmatprep.subr.mxu0 0.0
        %1350 = vmatpush1.msra.mxu0 0.0
        %1351 = vmatprep.subr.mxu0 0.0
        %1352 = vmatpush1.msra.mxu0 0.0
        %1353 = vmatprep.subr.mxu0 0.0
        %1354 = vmatpush1.msra.mxu0 0.0
        %1355 = vmatprep.subr.mxu0 0.0
        %1356 = vmatpush1.msra.mxu0 0.0
        %1357 = vmatprep.subr.mxu0 0.0
        %1358 = vmatpush1.msra.mxu0 0.0
        %1359 = vmatprep.subr.mxu0 0.0
        %1360 = vmatpush1.msra.mxu0 0.0
        %1361 = vmatprep.subr.mxu0 0.0
        %1362 = vmatpush1.msra.mxu0 0.0
        %1363 = vmatprep.subr.mxu0 0.0
        %1364 = vmatpush1.msra.mxu0 0.0
        %1365 = vmatprep.subr.mxu0 0.0
        %1366 = vmatpush1.msra.mxu0 0.0
        %1367 = vmatprep.subr.mxu0 0.0
        %1368 = vmatpush1.msra.mxu0 0.0
        %1369 = vmatprep.mubr.f32.mxu0 0.0
        %1370 = vmatmul.mubr.f32.gmra.mrb[0].mxu0 %v1303
        %v1371 = vpop.f32.mrb[0].mxu0
        %v1372 = vadd.f32 0.0, %v1371
        %v1373 = vpop.f32.mrb[0].mxu0
        %1374 = vdwg.mxu0
        %v1375 = vadd.f32 %v1136, %v1372
        %1376 = vrot.lane.b32.xlu0 %v890, 112
        %v1377 = vpop.permute.xlu0 %1376
        %1378 = vrot.lane.b32.xlu0 %v881, 80
        %v1379 = vpop.permute.xlu0 %1378
        %v1380 = vsel %vm894, %v1377, 0
        %v1382 = vsel %vm894, %v1379, 0
        %1384 = vmatprep.subr.mxu0 0.0
        %1385 = vmatpush1.xpose.msra.mxu0 %v1382
        %1386 = vmatprep.subr.mxu0 0.0
        %1387 = vmatpush1.xpose.msra.mxu0 0.0
        %1388 = vmatprep.subr.mxu0 0.0
        %1389 = vmatpush1.xpose.msra.mxu0 0.0
        %1390 = vmatprep.subr.mxu0 0.0
        %1391 = vmatpush1.xpose.msra.mxu0 0.0
        %1392 = vmatprep.subr.mxu0 0.0
        %1393 = vmatpush1.xpose.msra.mxu0 0.0
        %1394 = vmatprep.subr.mxu0 0.0
        %1395 = vmatpush1.xpose.msra.mxu0 0.0
        %1396 = vmatprep.subr.mxu0 0.0
        %1397 = vmatpush1.xpose.msra.mxu0 0.0
        %1398 = vmatprep.subr.mxu0 0.0
        %1399 = vmatpush1.xpose.msra.mxu0 0.0
        %1400 = vmatprep.subr.mxu0 0.0
        %1401 = vmatpush1.xpose.msra.mxu0 0.0
        %1402 = vmatprep.subr.mxu0 0.0
        %1403 = vmatpush1.xpose.msra.mxu0 0.0
        %1404 = vmatprep.subr.mxu0 0.0
        %1405 = vmatpush1.xpose.msra.mxu0 0.0
        %1406 = vmatprep.subr.mxu0 0.0
        %1407 = vmatpush1.xpose.msra.mxu0 0.0
        %1408 = vmatprep.subr.mxu0 0.0
        %1409 = vmatpush1.xpose.msra.mxu0 0.0
        %1410 = vmatprep.subr.mxu0 0.0
        %1411 = vmatpush1.xpose.msra.mxu0 0.0
        %1412 = vmatprep.subr.mxu0 0.0
        %1413 = vmatpush1.xpose.msra.mxu0 0.0
        %1414 = vmatprep.subr.mxu0 0.0
        %1415 = vmatpush1.xpose.msra.mxu0 0.0
        %1416 = vmatprep.subr.mxu0 0.0
        %1417 = vmatpush1.xpose.msra.mxu0 0.0
        %1418 = vmatprep.subr.mxu0 0.0
        %1419 = vmatpush1.xpose.msra.mxu0 0.0
        %1420 = vmatprep.subr.mxu0 0.0
        %1421 = vmatpush1.xpose.msra.mxu0 0.0
        %1422 = vmatprep.subr.mxu0 0.0
        %1423 = vmatpush1.xpose.msra.mxu0 0.0
        %1424 = vmatprep.subr.mxu0 0.0
        %1425 = vmatpush1.xpose.msra.mxu0 0.0
        %1426 = vmatprep.subr.mxu0 0.0
        %1427 = vmatpush1.xpose.msra.mxu0 0.0
        %1428 = vmatprep.subr.mxu0 0.0
        %1429 = vmatpush1.xpose.msra.mxu0 0.0
        %1430 = vmatprep.subr.mxu0 0.0
        %1431 = vmatpush1.xpose.msra.mxu0 0.0
        %1432 = vmatprep.subr.mxu0 0.0
        %1433 = vmatpush1.xpose.msra.mxu0 0.0
        %1434 = vmatprep.subr.mxu0 0.0
        %1435 = vmatpush1.xpose.msra.mxu0 0.0
        %1436 = vmatprep.subr.mxu0 0.0
        %1437 = vmatpush1.xpose.msra.mxu0 0.0
        %1438 = vmatprep.subr.mxu0 0.0
        %1439 = vmatpush1.xpose.msra.mxu0 0.0
        %1440 = vmatprep.subr.mxu0 0.0
        %1441 = vmatpush1.xpose.msra.mxu0 0.0
        %1442 = vmatprep.subr.mxu0 0.0
        %1443 = vmatpush1.xpose.msra.mxu0 0.0
        %1444 = vmatprep.subr.mxu0 0.0
        %1445 = vmatpush1.xpose.msra.mxu0 0.0
        %1446 = vmatprep.subr.mxu0 0.0
        %1447 = vmatpush1.xpose.msra.mxu0 0.0
        %1448 = vmatprep.mubr.f32.mxu0 0.0
        %1449 = vmatmul.mubr.f32.gmra.mrb[0].mxu0 %v1380
        %v1450 = vpop.f32.mrb[0].mxu0
        %v1451 = vadd.f32 %v884, %v1450
        %v1452 = vpop.f32.mrb[0].mxu0
        %1453 = vdwg.mxu0
        %v1454 = vsel %vm894, %v1451, -inf
        %1455 = vmax.xlane.f32.xlu0 %v1454
        %v1456 = vpop.xlane.xlu0 %1455
        %v1457 = vsub.f32 %v1451, %v1456
        %v1458 = vmul.f32 %v1457, 1.442695
        %v1459 = vpow.pop %v1458
        %v1460 = vsel %vm894, %v1459, 0.0
        %1461 = vadd.xlane.f32.xlu0 %v1460
        %v1462 = vpop.xlane.xlu0 %1461
        %v1463 = vrcp.pop %v1462
        %v1464 = vmul.f32 %v1459, %v1463
        %1465 = vrot.lane.b32.xlu0 %v881, 48
        %v1466 = vpop.permute.xlu0 %1465
        %v1469 = vsel %vm894, %v1464, 0
        %1471 = vmatprep.subr.mxu0 0.0
        %1472 = vmatpush1.msra.mxu0 %v1466
        %1473 = vmatprep.subr.mxu0 0.0
        %1474 = vmatpush1.msra.mxu0 0.0
        %1475 = vmatprep.subr.mxu0 0.0
        %1476 = vmatpush1.msra.mxu0 0.0
        %1477 = vmatprep.subr.mxu0 0.0
        %1478 = vmatpush1.msra.mxu0 0.0
        %1479 = vmatprep.subr.mxu0 0.0
        %1480 = vmatpush1.msra.mxu0 0.0
        %1481 = vmatprep.subr.mxu0 0.0
        %1482 = vmatpush1.msra.mxu0 0.0
        %1483 = vmatprep.subr.mxu0 0.0
        %1484 = vmatpush1.msra.mxu0 0.0
        %1485 = vmatprep.subr.mxu0 0.0
        %1486 = vmatpush1.msra.mxu0 0.0
        %1487 = vmatprep.subr.mxu0 0.0
        %1488 = vmatpush1.msra.mxu0 0.0
        %1489 = vmatprep.subr.mxu0 0.0
        %1490 = vmatpush1.msra.mxu0 0.0
        %1491 = vmatprep.subr.mxu0 0.0
        %1492 = vmatpush1.msra.mxu0 0.0
        %1493 = vmatprep.subr.mxu0 0.0
        %1494 = vmatpush1.msra.mxu0 0.0
        %1495 = vmatprep.subr.mxu0 0.0
        %1496 = vmatpush1.msra.mxu0 0.0
        %1497 = vmatprep.subr.mxu0 0.0
        %1498 = vmatpush1.msra.mxu0 0.0
        %1499 = vmatprep.subr.mxu0 0.0
        %1500 = vmatpush1.msra.mxu0 0.0
        %1501 = vmatprep.subr.mxu0 0.0
        %1502 = vmatpush1.msra.mxu0 0.0
        %1503 = vmatprep.subr.mxu0 0.0
        %1504 = vmatpush1.msra.mxu0 0.0
        %1505 = vmatprep.subr.mxu0 0.0
        %1506 = vmatpush1.msra.mxu0 0.0
        %1507 = vmatprep.subr.mxu0 0.0
        %1508 = vmatpush1.msra.mxu0 0.0
        %1509 = vmatprep.subr.mxu0 0.0
        %1510 = vmatpush1.msra.mxu0 0.0
        %1511 = vmatprep.subr.mxu0 0.0
        %1512 = vmatpush1.msra.mxu0 0.0
        %1513 = vmatprep.subr.mxu0 0.0
        %1514 = vmatpush1.msra.mxu0 0.0
        %1515 = vmatprep.subr.mxu0 0.0
        %1516 = vmatpush1.msra.mxu0 0.0
        %1517 = vmatprep.subr.mxu0 0.0
        %1518 = vmatpush1.msra.mxu0 0.0
        %1519 = vmatprep.subr.mxu0 0.0
        %1520 = vmatpush1.msra.mxu0 0.0
        %1521 = vmatprep.subr.mxu0 0.0
        %1522 = vmatpush1.msra.mxu0 0.0
        %1523 = vmatprep.subr.mxu0 0.0
        %1524 = vmatpush1.msra.mxu0 0.0
        %1525 = vmatprep.subr.mxu0 0.0
        %1526 = vmatpush1.msra.mxu0 0.0
        %1527 = vmatprep.subr.mxu0 0.0
        %1528 = vmatpush1.msra.mxu0 0.0
        %1529 = vmatprep.subr.mxu0 0.0
        %1530 = vmatpush1.msra.mxu0 0.0
        %1531 = vmatprep.subr.mxu0 0.0
        %1532 = vmatpush1.msra.mxu0 0.0
        %1533 = vmatprep.subr.mxu0 0.0
        %1534 = vmatpush1.msra.mxu0 0.0
        %1535 = vmatprep.mubr.f32.mxu0 0.0
        %1536 = vmatmul.mubr.f32.gmra.mrb[0].mxu0 %v1469
        %v1537 = vpop.f32.mrb[0].mxu0
        %v1538 = vadd.f32 0.0, %v1537
        %v1539 = vpop.f32.mrb[0].mxu0
        %1540 = vdwg.mxu0
        %v1542 = vsel %vm894, %v1538, 0
        %1544 = vmatprep.subr.mxu0 0.0
        %1545 = vmatpush1.msra.mxu0 %v887
        %1546 = vmatprep.subr.mxu0 0.0
        %1547 = vmatpush1.msra.mxu0 0.0
        %1548 = vmatprep.subr.mxu0 0.0
        %1549 = vmatpush1.msra.mxu0 0.0
        %1550 = vmatprep.subr.mxu0 0.0
        %1551 = vmatpush1.msra.mxu0 0.0
        %1552 = vmatprep.subr.mxu0 0.0
        %1553 = vmatpush1.msra.mxu0 0.0
        %1554 = vmatprep.subr.mxu0 0.0
        %1555 = vmatpush1.msra.mxu0 0.0
        %1556 = vmatprep.subr.mxu0 0.0
        %1557 = vmatpush1.msra.mxu0 0.0
        %1558 = vmatprep.subr.mxu0 0.0
        %1559 = vmatpush1.msra.mxu0 0.0
        %1560 = vmatprep.subr.mxu0 0.0
        %1561 = vmatpush1.msra.mxu0 0.0
        %1562 = vmatprep.subr.mxu0 0.0
        %1563 = vmatpush1.msra.mxu0 0.0
        %1564 = vmatprep.subr.mxu0 0.0
        %1565 = vmatpush1.msra.mxu0 0.0
        %1566 = vmatprep.subr.mxu0 0.0
        %1567 = vmatpush1.msra.mxu0 0.0
        %1568 = vmatprep.subr.mxu0 0.0
        %1569 = vmatpush1.msra.mxu0 0.0
        %1570 = vmatprep.subr.mxu0 0.0
        %1571 = vmatpush1.msra.mxu0 0.0
        %1572 = vmatprep.subr.mxu0 0.0
        %1573 = vmatpush1.msra.mxu0 0.0
        %1574 = vmatprep.subr.mxu0 0.0
        %1575 = vmatpush1.msra.mxu0 0.0
        %1576 = vmatprep.subr.mxu0 0.0
        %1577 = vmatpush1.msra.mxu0 0.0
        %1578 = vmatprep.subr.mxu0 0.0
        %1579 = vmatpush1.msra.mxu0 0.0
        %1580 = vmatprep.subr.mxu0 0.0
        %1581 = vmatpush1.msra.mxu0 0.0
        %1582 = vmatprep.subr.mxu0 0.0
        %1583 = vmatpush1.msra.mxu0 0.0
        %1584 = vmatprep.subr.mxu0 0.0
        %1585 = vmatpush1.msra.mxu0 0.0
        %1586 = vmatprep.subr.mxu0 0.0
        %1587 = vmatpush1.msra.mxu0 0.0
        %1588 = vmatprep.subr.mxu0 0.0
        %1589 = vmatpush1.msra.mxu0 0.0
        %1590 = vmatprep.subr.mxu0 0.0
        %1591 = vmatpush1.msra.mxu0 0.0
        %1592 = vmatprep.subr.mxu0 0.0
        %1593 = vmatpush1.msra.mxu0 0.0
        %1594 = vmatprep.subr.mxu0 0.0
        %1595 = vmatpush1.msra.mxu0 0.0
        %1596 = vmatprep.subr.mxu0 0.0
        %1597 = vmatpush1.msra.mxu0 0.0
        %1598 = vmatprep.subr.mxu0 0.0
        %1599 = vmatpush1.msra.mxu0 0.0
        %1600 = vmatprep.subr.mxu0 0.0
        %1601 = vmatpush1.msra.mxu0 0.0
        %1602 = vmatprep.subr.mxu0 0.0
        %1603 = vmatpush1.msra.mxu0 0.0
        %1604 = vmatprep.subr.mxu0 0.0
        %1605 = vmatpush1.msra.mxu0 0.0
        %1606 = vmatprep.subr.mxu0 0.0
        %1607 = vmatpush1.msra.mxu0 0.0
        %1608 = vmatprep.mubr.f32.mxu0 0.0
        %1609 = vmatmul.mubr.f32.gmra.mrb[0].mxu0 %v1542
        %v1610 = vpop.f32.mrb[0].mxu0
        %v1611 = vadd.f32 0.0, %v1610
        %v1612 = vpop.f32.mrb[0].mxu0
        %1613 = vdwg.mxu0
        %v1614 = vadd.f32 %v1375, %v1611
        %1615 = vrot.lane.b32.xlu0 %v890, 104
        %v1616 = vpop.permute.xlu0 %1615
        %1617 = vrot.lane.b32.xlu0 %v881, 72
        %v1618 = vpop.permute.xlu0 %1617
        %v1619 = vsel %vm894, %v1616, 0
        %v1621 = vsel %vm894, %v1618, 0
        %1623 = vmatprep.subr.mxu0 0.0
        %1624 = vmatpush1.xpose.msra.mxu0 %v1621
        %1625 = vmatprep.subr.mxu0 0.0
        %1626 = vmatpush1.xpose.msra.mxu0 0.0
        %1627 = vmatprep.subr.mxu0 0.0
        %1628 = vmatpush1.xpose.msra.mxu0 0.0
        %1629 = vmatprep.subr.mxu0 0.0
        %1630 = vmatpush1.xpose.msra.mxu0 0.0
        %1631 = vmatprep.subr.mxu0 0.0
        %1632 = vmatpush1.xpose.msra.mxu0 0.0
        %1633 = vmatprep.subr.mxu0 0.0
        %1634 = vmatpush1.xpose.msra.mxu0 0.0
        %1635 = vmatprep.subr.mxu0 0.0
        %1636 = vmatpush1.xpose.msra.mxu0 0.0
        %1637 = vmatprep.subr.mxu0 0.0
        %1638 = vmatpush1.xpose.msra.mxu0 0.0
        %1639 = vmatprep.subr.mxu0 0.0
        %1640 = vmatpush1.xpose.msra.mxu0 0.0
        %1641 = vmatprep.subr.mxu0 0.0
        %1642 = vmatpush1.xpose.msra.mxu0 0.0
        %1643 = vmatprep.subr.mxu0 0.0
        %1644 = vmatpush1.xpose.msra.mxu0 0.0
        %1645 = vmatprep.subr.mxu0 0.0
        %1646 = vmatpush1.xpose.msra.mxu0 0.0
        %1647 = vmatprep.subr.mxu0 0.0
        %1648 = vmatpush1.xpose.msra.mxu0 0.0
        %1649 = vmatprep.subr.mxu0 0.0
        %1650 = vmatpush1.xpose.msra.mxu0 0.0
        %1651 = vmatprep.subr.mxu0 0.0
        %1652 = vmatpush1.xpose.msra.mxu0 0.0
        %1653 = vmatprep.subr.mxu0 0.0
        %1654 = vmatpush1.xpose.msra.mxu0 0.0
        %1655 = vmatprep.subr.mxu0 0.0
        %1656 = vmatpush1.xpose.msra.mxu0 0.0
        %1657 = vmatprep.subr.mxu0 0.0
        %1658 = vmatpush1.xpose.msra.mxu0 0.0
        %1659 = vmatprep.subr.mxu0 0.0
        %1660 = vmatpush1.xpose.msra.mxu0 0.0
        %1661 = vmatprep.subr.mxu0 0.0
        %1662 = vmatpush1.xpose.msra.mxu0 0.0
        %1663 = vmatprep.subr.mxu0 0.0
        %1664 = vmatpush1.xpose.msra.mxu0 0.0
        %1665 = vmatprep.subr.mxu0 0.0
        %1666 = vmatpush1.xpose.msra.mxu0 0.0
        %1667 = vmatprep.subr.mxu0 0.0
        %1668 = vmatpush1.xpose.msra.mxu0 0.0
        %1669 = vmatprep.subr.mxu0 0.0
        %1670 = vmatpush1.xpose.msra.mxu0 0.0
        %1671 = vmatprep.subr.mxu0 0.0
        %1672 = vmatpush1.xpose.msra.mxu0 0.0
        %1673 = vmatprep.subr.mxu0 0.0
        %1674 = vmatpush1.xpose.msra.mxu0 0.0
        %1675 = vmatprep.subr.mxu0 0.0
        %1676 = vmatpush1.xpose.msra.mxu0 0.0
        %1677 = vmatprep.subr.mxu0 0.0
        %1678 = vmatpush1.xpose.msra.mxu0 0.0
        %1679 = vmatprep.subr.mxu0 0.0
        %1680 = vmatpush1.xpose.msra.mxu0 0.0
        %1681 = vmatprep.subr.mxu0 0.0
        %1682 = vmatpush1.xpose.msra.mxu0 0.0
        %1683 = vmatprep.subr.mxu0 0.0
        %1684 = vmatpush1.xpose.msra.mxu0 0.0
        %1685 = vmatprep.subr.mxu0 0.0
        %1686 = vmatpush1.xpose.msra.mxu0 0.0
        %1687 = vmatprep.mubr.f32.mxu0 0.0
        %1688 = vmatmul.mubr.f32.gmra.mrb[0].mxu0 %v1619
        %v1689 = vpop.f32.mrb[0].mxu0
        %v1690 = vadd.f32 %v884, %v1689
        %v1691 = vpop.f32.mrb[0].mxu0
        %1692 = vdwg.mxu0
        %v1693 = vsel %vm894, %v1690, -inf
        %1694 = vmax.xlane.f32.xlu0 %v1693
        %v1695 = vpop.xlane.xlu0 %1694
        %v1696 = vsub.f32 %v1690, %v1695
        %v1697 = vmul.f32 %v1696, 1.442695
        %v1698 = vpow.pop %v1697
        %v1699 = vsel %vm894, %v1698, 0.0
        %1700 = vadd.xlane.f32.xlu0 %v1699
        %v1701 = vpop.xlane.xlu0 %1700
        %v1702 = vrcp.pop %v1701
        %v1703 = vmul.f32 %v1698, %v1702
        %1704 = vrot.lane.b32.xlu0 %v881, 40
        %v1705 = vpop.permute.xlu0 %1704
        %v1708 = vsel %vm894, %v1703, 0
        %1710 = vmatprep.subr.mxu0 0.0
        %1711 = vmatpush1.msra.mxu0 %v1705
        %1712 = vmatprep.subr.mxu0 0.0
        %1713 = vmatpush1.msra.mxu0 0.0
        %1714 = vmatprep.subr.mxu0 0.0
        %1715 = vmatpush1.msra.mxu0 0.0
        %1716 = vmatprep.subr.mxu0 0.0
        %1717 = vmatpush1.msra.mxu0 0.0
        %1718 = vmatprep.subr.mxu0 0.0
        %1719 = vmatpush1.msra.mxu0 0.0
        %1720 = vmatprep.subr.mxu0 0.0
        %1721 = vmatpush1.msra.mxu0 0.0
        %1722 = vmatprep.subr.mxu0 0.0
        %1723 = vmatpush1.msra.mxu0 0.0
        %1724 = vmatprep.subr.mxu0 0.0
        %1725 = vmatpush1.msra.mxu0 0.0
        %1726 = vmatprep.subr.mxu0 0.0
        %1727 = vmatpush1.msra.mxu0 0.0
        %1728 = vmatprep.subr.mxu0 0.0
        %1729 = vmatpush1.msra.mxu0 0.0
        %1730 = vmatprep.subr.mxu0 0.0
        %1731 = vmatpush1.msra.mxu0 0.0
        %1732 = vmatprep.subr.mxu0 0.0
        %1733 = vmatpush1.msra.mxu0 0.0
        %1734 = vmatprep.subr.mxu0 0.0
        %1735 = vmatpush1.msra.mxu0 0.0
        %1736 = vmatprep.subr.mxu0 0.0
        %1737 = vmatpush1.msra.mxu0 0.0
        %1738 = vmatprep.subr.mxu0 0.0
        %1739 = vmatpush1.msra.mxu0 0.0
        %1740 = vmatprep.subr.mxu0 0.0
        %1741 = vmatpush1.msra.mxu0 0.0
        %1742 = vmatprep.subr.mxu0 0.0
        %1743 = vmatpush1.msra.mxu0 0.0
        %1744 = vmatprep.subr.mxu0 0.0
        %1745 = vmatpush1.msra.mxu0 0.0
        %1746 = vmatprep.subr.mxu0 0.0
        %1747 = vmatpush1.msra.mxu0 0.0
        %1748 = vmatprep.subr.mxu0 0.0
        %1749 = vmatpush1.msra.mxu0 0.0
        %1750 = vmatprep.subr.mxu0 0.0
        %1751 = vmatpush1.msra.mxu0 0.0
        %1752 = vmatprep.subr.mxu0 0.0
        %1753 = vmatpush1.msra.mxu0 0.0
        %1754 = vmatprep.subr.mxu0 0.0
        %1755 = vmatpush1.msra.mxu0 0.0
        %1756 = vmatprep.subr.mxu0 0.0
        %1757 = vmatpush1.msra.mxu0 0.0
        %1758 = vmatprep.subr.mxu0 0.0
        %1759 = vmatpush1.msra.mxu0 0.0
        %1760 = vmatprep.subr.mxu0 0.0
        %1761 = vmatpush1.msra.mxu0 0.0
        %1762 = vmatprep.subr.mxu0 0.0
        %1763 = vmatpush1.msra.mxu0 0.0
        %1764 = vmatprep.subr.mxu0 0.0
        %1765 = vmatpush1.msra.mxu0 0.0
        %1766 = vmatprep.subr.mxu0 0.0
        %1767 = vmatpush1.msra.mxu0 0.0
        %1768 = vmatprep.subr.mxu0 0.0
        %1769 = vmatpush1.msra.mxu0 0.0
        %1770 = vmatprep.subr.mxu0 0.0
        %1771 = vmatpush1.msra.mxu0 0.0
        %1772 = vmatprep.subr.mxu0 0.0
        %1773 = vmatpush1.msra.mxu0 0.0
        %1774 = vmatprep.mubr.f32.mxu0 0.0
        %1775 = vmatmul.mubr.f32.gmra.mrb[0].mxu0 %v1708
        %v1776 = vpop.f32.mrb[0].mxu0
        %v1777 = vadd.f32 0.0, %v1776
        %v1778 = vpop.f32.mrb[0].mxu0
        %1779 = vdwg.mxu0
        %v1781 = vsel %vm894, %v1777, 0
        %1783 = vmatprep.subr.mxu0 0.0
        %1784 = vmatpush1.msra.mxu0 %v888
        %1785 = vmatprep.subr.mxu0 0.0
        %1786 = vmatpush1.msra.mxu0 0.0
        %1787 = vmatprep.subr.mxu0 0.0
        %1788 = vmatpush1.msra.mxu0 0.0
        %1789 = vmatprep.subr.mxu0 0.0
        %1790 = vmatpush1.msra.mxu0 0.0
        %1791 = vmatprep.subr.mxu0 0.0
        %1792 = vmatpush1.msra.mxu0 0.0
        %1793 = vmatprep.subr.mxu0 0.0
        %1794 = vmatpush1.msra.mxu0 0.0
        %1795 = vmatprep.subr.mxu0 0.0
        %1796 = vmatpush1.msra.mxu0 0.0
        %1797 = vmatprep.subr.mxu0 0.0
        %1798 = vmatpush1.msra.mxu0 0.0
        %1799 = vmatprep.subr.mxu0 0.0
        %1800 = vmatpush1.msra.mxu0 0.0
        %1801 = vmatprep.subr.mxu0 0.0
        %1802 = vmatpush1.msra.mxu0 0.0
        %1803 = vmatprep.subr.mxu0 0.0
        %1804 = vmatpush1.msra.mxu0 0.0
        %1805 = vmatprep.subr.mxu0 0.0
        %1806 = vmatpush1.msra.mxu0 0.0
        %1807 = vmatprep.subr.mxu0 0.0
        %1808 = vmatpush1.msra.mxu0 0.0
        %1809 = vmatprep.subr.mxu0 0.0
        %1810 = vmatpush1.msra.mxu0 0.0
        %1811 = vmatprep.subr.mxu0 0.0
        %1812 = vmatpush1.msra.mxu0 0.0
        %1813 = vmatprep.subr.mxu0 0.0
        %1814 = vmatpush1.msra.mxu0 0.0
        %1815 = vmatprep.subr.mxu0 0.0
        %1816 = vmatpush1.msra.mxu0 0.0
        %1817 = vmatprep.subr.mxu0 0.0
        %1818 = vmatpush1.msra.mxu0 0.0
        %1819 = vmatprep.subr.mxu0 0.0
        %1820 = vmatpush1.msra.mxu0 0.0
        %1821 = vmatprep.subr.mxu0 0.0
        %1822 = vmatpush1.msra.mxu0 0.0
        %1823 = vmatprep.subr.mxu0 0.0
        %1824 = vmatpush1.msra.mxu0 0.0
        %1825 = vmatprep.subr.mxu0 0.0
        %1826 = vmatpush1.msra.mxu0 0.0
        %1827 = vmatprep.subr.mxu0 0.0
        %1828 = vmatpush1.msra.mxu0 0.0
        %1829 = vmatprep.subr.mxu0 0.0
        %1830 = vmatpush1.msra.mxu0 0.0
        %1831 = vmatprep.subr.mxu0 0.0
        %1832 = vmatpush1.msra.mxu0 0.0
        %1833 = vmatprep.subr.mxu0 0.0
        %1834 = vmatpush1.msra.mxu0 0.0
        %1835 = vmatprep.subr.mxu0 0.0
        %1836 = vmatpush1.msra.mxu0 0.0
        %1837 = vmatprep.subr.mxu0 0.0
        %1838 = vmatpush1.msra.mxu0 0.0
        %1839 = vmatprep.subr.mxu0 0.0
        %1840 = vmatpush1.msra.mxu0 0.0
        %1841 = vmatprep.subr.mxu0 0.0
        %1842 = vmatpush1.msra.mxu0 0.0
        %1843 = vmatprep.subr.mxu0 0.0
        %1844 = vmatpush1.msra.mxu0 0.0
        %1845 = vmatprep.subr.mxu0 0.0
        %1846 = vmatpush1.msra.mxu0 0.0
        %1847 = vmatprep.mubr.f32.mxu0 0.0
        %1848 = vmatmul.mubr.f32.gmra.mrb[0].mxu0 %v1781
        %v1849 = vpop.f32.mrb[0].mxu0
        %v1850 = vadd.f32 0.0, %v1849
        %v1851 = vpop.f32.mrb[0].mxu0
        %1852 = vdwg.mxu0
        %v1853 = vadd.f32 %v1614, %v1850
        %v1854 = vld [vmem:[%s8] sm:$0x1]
        %v1855 = vld [vmem:[%s9] sm:$0x1]
        %v1856 = vadd.f32 %v797, %v1853
        %v1857 = vsel %vm810, %v1856, 0.0
        %1858 = vadd.xlane.f32.xlu0 %v1857
        %v1859 = vpop.xlane.xlu0 %1858
        %v1860 = vrcp.pop 32.0
        %v1861 = vmul.f32 %v1859, %v1860
        %v1862 = vsub.f32 %v1856, %v1861
        %v1863 = vmul.f32 %v1862, %v1862
        %v1864 = vsel %vm810, %v1863, 0.0
        %1865 = vadd.xlane.f32.xlu0 %v1864
        %v1866 = vpop.xlane.xlu0 %1865
        %v1867 = vmul.f32 %v1866, %v1860
        %v1868 = vadd.f32 %v1867, 1e-06
        %v1869 = vrsqrt.pop %v1868
        %v1870 = vmul.f32 %v1862, %v1869
        %v1872 = vlaneseq
        %v1873 = vshrl.u32 %v1872, 7
        %v1874 = vsub.s32 0, %v1873
        %v1875 = vrot.slane %v1854, %v1874
        %v1877 = vmul.f32 %v1870, %v1875
        %v1879 = vlaneseq
        %v1880 = vshrl.u32 %v1879, 7
        %v1881 = vsub.s32 0, %v1880
        %v1882 = vrot.slane %v1855, %v1881
        %v1884 = vadd.f32 %v1877, %v1882
        %v1885 = vld [vmem:[%s10] sm:$0xff]
        %v1886 = vld [vmem:[%s10 + $0x8] sm:$0xff]
        %v1887 = vld [vmem:[%s10 + $0x10] sm:$0xff]
        %v1888 = vld [vmem:[%s10 + $0x18] sm:$0xff]
        %v1889 = vld [vmem:[%s11] sm:$0x1]
        %v1891 = vlaneseq
        %v1892 = vshrl.u32 %v1891, 7
        %v1893 = vsub.s32 0, %v1892
        %v1894 = vrot.slane %v1889, %v1893
        %v1897 = vsel %vm810, %v1884, 0
        %1899 = vmatprep.subr.mxu0 0.0
        %1900 = vmatpush1.msra.mxu0 %v1885
        %1901 = vmatprep.subr.mxu0 0.0
        %1902 = vmatpush1.msra.mxu0 %v1886
        %1903 = vmatprep.subr.mxu0 0.0
        %1904 = vmatpush1.msra.mxu0 %v1887
        %1905 = vmatprep.subr.mxu0 0.0
        %1906 = vmatpush1.msra.mxu0 %v1888
        %1907 = vmatprep.subr.mxu0 0.0
        %1908 = vmatpush1.msra.mxu0 0.0
        %1909 = vmatprep.subr.mxu0 0.0
        %1910 = vmatpush1.msra.mxu0 0.0
        %1911 = vmatprep.subr.mxu0 0.0
        %1912 = vmatpush1.msra.mxu0 0.0
        %1913 = vmatprep.subr.mxu0 0.0
        %1914 = vmatpush1.msra.mxu0 0.0
        %1915 = vmatprep.subr.mxu0 0.0
        %1916 = vmatpush1.msra.mxu0 0.0
        %1917 = vmatprep.subr.mxu0 0.0
        %1918 = vmatpush1.msra.mxu0 0.0
        %1919 = vmatprep.subr.mxu0 0.0
        %1920 = vmatpush1.msra.mxu0 0.0
        %1921 = vmatprep.subr.mxu0 0.0
        %1922 = vmatpush1.msra.mxu0 0.0
        %1923 = vmatprep.subr.mxu0 0.0
        %1924 = vmatpush1.msra.mxu0 0.0
        %1925 = vmatprep.subr.mxu0 0.0
        %1926 = vmatpush1.msra.mxu0 0.0
        %1927 = vmatprep.subr.mxu0 0.0
        %1928 = vmatpush1.msra.mxu0 0.0
        %1929 = vmatprep.subr.mxu0 0.0
        %1930 = vmatpush1.msra.mxu0 0.0
        %1931 = vmatprep.subr.mxu0 0.0
        %1932 = vmatpush1.msra.mxu0 0.0
        %1933 = vmatprep.subr.mxu0 0.0
        %1934 = vmatpush1.msra.mxu0 0.0
        %1935 = vmatprep.subr.mxu0 0.0
        %1936 = vmatpush1.msra.mxu0 0.0
        %1937 = vmatprep.subr.mxu0 0.0
        %1938 = vmatpush1.msra.mxu0 0.0
        %1939 = vmatprep.subr.mxu0 0.0
        %1940 = vmatpush1.msra.mxu0 0.0
        %1941 = vmatprep.subr.mxu0 0.0
        %1942 = vmatpush1.msra.mxu0 0.0
        %1943 = vmatprep.subr.mxu0 0.0
        %1944 = vmatpush1.msra.mxu0 0.0
        %1945 = vmatprep.subr.mxu0 0.0
        %1946 = vmatpush1.msra.mxu0 0.0
        %1947 = vmatprep.subr.mxu0 0.0
        %1948 = vmatpush1.msra.mxu0 0.0
        %1949 = vmatprep.subr.mxu0 0.0
        %1950 = vmatpush1.msra.mxu0 0.0
        %1951 = vmatprep.subr.mxu0 0.0
        %1952 = vmatpush1.msra.mxu0 0.0
        %1953 = vmatprep.subr.mxu0 0.0
        %1954 = vmatpush1.msra.mxu0 0.0
        %1955 = vmatprep.subr.mxu0 0.0
        %1956 = vmatpush1.msra.mxu0 0.0
        %1957 = vmatprep.subr.mxu0 0.0
        %1958 = vmatpush1.msra.mxu0 0.0
        %1959 = vmatprep.subr.mxu0 0.0
        %1960 = vmatpush1.msra.mxu0 0.0
        %1961 = vmatprep.subr.mxu0 0.0
        %1962 = vmatpush1.msra.mxu0 0.0
        %1963 = vmatprep.mubr.f32.mxu0 0.0
        %1964 = vmatmul.mubr.f32.gmra.mrb[0].mxu0 %v1897
        %v1965 = vpop.f32.mrb[0].mxu0
        %v1966 = vadd.f32 %v1894, %v1965
        %v1967 = vpop.f32.mrb[0].mxu0
        %1968 = vdwg.mxu0
        %v1969 = vld [vmem:[%s12] sm:$0xff]
        %v1970 = vld [vmem:[%s12 + $0x8] sm:$0xff]
        %v1971 = vld [vmem:[%s12 + $0x10] sm:$0xff]
        %v1972 = vld [vmem:[%s12 + $0x18] sm:$0xff]
        %v1973 = vld [vmem:[%s13] sm:$0x1]
        %v1975 = vlaneseq
        %v1976 = vshrl.u32 %v1975, 7
        %v1977 = vsub.s32 0, %v1976
        %v1978 = vrot.slane %v1973, %v1977
        %v1981 = vsel %vm810, %v798, 0
        %1983 = vmatprep.subr.mxu0 0.0
        %1984 = vmatpush1.msra.mxu0 %v1969
        %1985 = vmatprep.subr.mxu0 0.0
        %1986 = vmatpush1.msra.mxu0 %v1970
        %1987 = vmatprep.subr.mxu0 0.0
        %1988 = vmatpush1.msra.mxu0 %v1971
        %1989 = vmatprep.subr.mxu0 0.0
        %1990 = vmatpush1.msra.mxu0 %v1972
        %1991 = vmatprep.subr.mxu0 0.0
        %1992 = vmatpush1.msra.mxu0 0.0
        %1993 = vmatprep.subr.mxu0 0.0
        %1994 = vmatpush1.msra.mxu0 0.0
        %1995 = vmatprep.subr.mxu0 0.0
        %1996 = vmatpush1.msra.mxu0 0.0
        %1997 = vmatprep.subr.mxu0 0.0
        %1998 = vmatpush1.msra.mxu0 0.0
        %1999 = vmatprep.subr.mxu0 0.0
        %2000 = vmatpush1.msra.mxu0 0.0
        %2001 = vmatprep.subr.mxu0 0.0
        %2002 = vmatpush1.msra.mxu0 0.0
        %2003 = vmatprep.subr.mxu0 0.0
        %2004 = vmatpush1.msra.mxu0 0.0
        %2005 = vmatprep.subr.mxu0 0.0
        %2006 = vmatpush1.msra.mxu0 0.0
        %2007 = vmatprep.subr.mxu0 0.0
        %2008 = vmatpush1.msra.mxu0 0.0
        %2009 = vmatprep.subr.mxu0 0.0
        %2010 = vmatpush1.msra.mxu0 0.0
        %2011 = vmatprep.subr.mxu0 0.0
        %2012 = vmatpush1.msra.mxu0 0.0
        %2013 = vmatprep.subr.mxu0 0.0
        %2014 = vmatpush1.msra.mxu0 0.0
        %2015 = vmatprep.subr.mxu0 0.0
        %2016 = vmatpush1.msra.mxu0 0.0
        %2017 = vmatprep.subr.mxu0 0.0
        %2018 = vmatpush1.msra.mxu0 0.0
        %2019 = vmatprep.subr.mxu0 0.0
        %2020 = vmatpush1.msra.mxu0 0.0
        %2021 = vmatprep.subr.mxu0 0.0
        %2022 = vmatpush1.msra.mxu0 0.0
        %2023 = vmatprep.subr.mxu0 0.0
        %2024 = vmatpush1.msra.mxu0 0.0
        %2025 = vmatprep.subr.mxu0 0.0
        %2026 = vmatpush1.msra.mxu0 0.0
        %2027 = vmatprep.subr.mxu0 0.0
        %2028 = vmatpush1.msra.mxu0 0.0
        %2029 = vmatprep.subr.mxu0 0.0
        %2030 = vmatpush1.msra.mxu0 0.0
        %2031 = vmatprep.subr.mxu0 0.0
        %2032 = vmatpush1.msra.mxu0 0.0
        %2033 = vmatprep.subr.mxu0 0.0
        %2034 = vmatpush1.msra.mxu0 0.0
        %2035 = vmatprep.subr.mxu0 0.0
        %2036 = vmatpush1.msra.mxu0 0.0
        %2037 = vmatprep.subr.mxu0 0.0
        %2038 = vmatpush1.msra.mxu0 0.0
        %2039 = vmatprep.subr.mxu0 0.0
        %2040 = vmatpush1.msra.mxu0 0.0
        %2041 = vmatprep.subr.mxu0 0.0
        %2042 = vmatpush1.msra.mxu0 0.0
        %2043 = vmatprep.subr.mxu0 0.0
        %2044 = vmatpush1.msra.mxu0 0.0
        %2045 = vmatprep.subr.mxu0 0.0
        %2046 = vmatpush1.msra.mxu0 0.0
        %2047 = vmatprep.mubr.f32.mxu0 0.0
        %2048 = vmatmul.mubr.f32.gmra.mrb[0].mxu0 %v1981
        %v2049 = vpop.f32.mrb[0].mxu0
        %v2050 = vadd.f32 %v1978, %v2049
        %v2051 = vpop.f32.mrb[0].mxu0
        %2052 = vdwg.mxu0
        %v2053 = vld [vmem:[%s796] sm:$0xff]
        %v2054 = vld [vmem:[%s14] sm:$0xff]
        %v2055 = vld [vmem:[%s14 + $0x8] sm:$0xff]
        %v2056 = vld [vmem:[%s14 + $0x10] sm:$0xff]
        %v2057 = vld [vmem:[%s14 + $0x18] sm:$0xff]
        %v2058 = vld [vmem:[%s15] sm:$0x1]
        %v2059 = vmul.f32 %v1966, 0.35355338
        %v2061 = vsel %vm894, %v2059, 0
        %v2064 = vsel %vm894, %v2050, 0
        %2066 = vmatprep.subr.mxu0 0.0
        %2067 = vmatpush1.xpose.msra.mxu0 %v2064
        %2068 = vmatprep.subr.mxu0 0.0
        %2069 = vmatpush1.xpose.msra.mxu0 0.0
        %2070 = vmatprep.subr.mxu0 0.0
        %2071 = vmatpush1.xpose.msra.mxu0 0.0
        %2072 = vmatprep.subr.mxu0 0.0
        %2073 = vmatpush1.xpose.msra.mxu0 0.0
        %2074 = vmatprep.subr.mxu0 0.0
        %2075 = vmatpush1.xpose.msra.mxu0 0.0
        %2076 = vmatprep.subr.mxu0 0.0
        %2077 = vmatpush1.xpose.msra.mxu0 0.0
        %2078 = vmatprep.subr.mxu0 0.0
        %2079 = vmatpush1.xpose.msra.mxu0 0.0
        %2080 = vmatprep.subr.mxu0 0.0
        %2081 = vmatpush1.xpose.msra.mxu0 0.0
        %2082 = vmatprep.subr.mxu0 0.0
        %2083 = vmatpush1.xpose.msra.mxu0 0.0
        %2084 = vmatprep.subr.mxu0 0.0
        %2085 = vmatpush1.xpose.msra.mxu0 0.0
        %2086 = vmatprep.subr.mxu0 0.0
        %2087 = vmatpush1.xpose.msra.mxu0 0.0
        %2088 = vmatprep.subr.mxu0 0.0
        %2089 = vmatpush1.xpose.msra.mxu0 0.0
        %2090 = vmatprep.subr.mxu0 0.0
        %2091 = vmatpush1.xpose.msra.mxu0 0.0
        %2092 = vmatprep.subr.mxu0 0.0
        %2093 = vmatpush1.xpose.msra.mxu0 0.0
        %2094 = vmatprep.subr.mxu0 0.0
        %2095 = vmatpush1.xpose.msra.mxu0 0.0
        %2096 = vmatprep.subr.mxu0 0.0
        %2097 = vmatpush1.xpose.msra.mxu0 0.0
        %2098 = vmatprep.subr.mxu0 0.0
        %2099 = vmatpush1.xpose.msra.mxu0 0.0
        %2100 = vmatprep.subr.mxu0 0.0
        %2101 = vmatpush1.xpose.msra.mxu0 0.0
        %2102 = vmatprep.subr.mxu0 0.0
        %2103 = vmatpush1.xpose.msra.mxu0 0.0
        %2104 = vmatprep.subr.mxu0 0.0
        %2105 = vmatpush1.xpose.msra.mxu0 0.0
        %2106 = vmatprep.subr.mxu0 0.0
        %2107 = vmatpush1.xpose.msra.mxu0 0.0
        %2108 = vmatprep.subr.mxu0 0.0
        %2109 = vmatpush1.xpose.msra.mxu0 0.0
        %2110 = vmatprep.subr.mxu0 0.0
        %2111 = vmatpush1.xpose.msra.mxu0 0.0
        %2112 = vmatprep.subr.mxu0 0.0
        %2113 = vmatpush1.xpose.msra.mxu0 0.0
        %2114 = vmatprep.subr.mxu0 0.0
        %2115 = vmatpush1.xpose.msra.mxu0 0.0
        %2116 = vmatprep.subr.mxu0 0.0
        %2117 = vmatpush1.xpose.msra.mxu0 0.0
        %2118 = vmatprep.subr.mxu0 0.0
        %2119 = vmatpush1.xpose.msra.mxu0 0.0
        %2120 = vmatprep.subr.mxu0 0.0
        %2121 = vmatpush1.xpose.msra.mxu0 0.0
        %2122 = vmatprep.subr.mxu0 0.0
        %2123 = vmatpush1.xpose.msra.mxu0 0.0
        %2124 = vmatprep.subr.mxu0 0.0
        %2125 = vmatpush1.xpose.msra.mxu0 0.0
        %2126 = vmatprep.subr.mxu0 0.0
        %2127 = vmatpush1.xpose.msra.mxu0 0.0
        %2128 = vmatprep.subr.mxu0 0.0
        %2129 = vmatpush1.xpose.msra.mxu0 0.0
        %2130 = vmatprep.mubr.f32.mxu0 0.0
        %2131 = vmatmul.mubr.f32.gmra.mrb[0].mxu0 %v2061
        %v2132 = vpop.f32.mrb[0].mxu0
        %v2133 = vadd.f32 %v2053, %v2132
        %v2134 = vpop.f32.mrb[0].mxu0
        %2135 = vdwg.mxu0
        %v2136 = vsel %vm894, %v2133, -inf
        %2137 = vmax.xlane.f32.xlu0 %v2136
        %v2138 = vpop.xlane.xlu0 %2137
        %v2139 = vsub.f32 %v2133, %v2138
        %v2140 = vmul.f32 %v2139, 1.442695
        %v2141 = vpow.pop %v2140
        %v2142 = vsel %vm894, %v2141, 0.0
        %2143 = vadd.xlane.f32.xlu0 %v2142
        %v2144 = vpop.xlane.xlu0 %2143
        %v2145 = vrcp.pop %v2144
        %v2146 = vmul.f32 %v2141, %v2145
        %2147 = vrot.lane.b32.xlu0 %v2050, 96
        %v2148 = vpop.permute.xlu0 %2147
        %v2151 = vsel %vm894, %v2146, 0
        %2153 = vmatprep.subr.mxu0 0.0
        %2154 = vmatpush1.msra.mxu0 %v2148
        %2155 = vmatprep.subr.mxu0 0.0
        %2156 = vmatpush1.msra.mxu0 0.0
        %2157 = vmatprep.subr.mxu0 0.0
        %2158 = vmatpush1.msra.mxu0 0.0
        %2159 = vmatprep.subr.mxu0 0.0
        %2160 = vmatpush1.msra.mxu0 0.0
        %2161 = vmatprep.subr.mxu0 0.0
        %2162 = vmatpush1.msra.mxu0 0.0
        %2163 = vmatprep.subr.mxu0 0.0
        %2164 = vmatpush1.msra.mxu0 0.0
        %2165 = vmatprep.subr.mxu0 0.0
        %2166 = vmatpush1.msra.mxu0 0.0
        %2167 = vmatprep.subr.mxu0 0.0
        %2168 = vmatpush1.msra.mxu0 0.0
        %2169 = vmatprep.subr.mxu0 0.0
        %2170 = vmatpush1.msra.mxu0 0.0
        %2171 = vmatprep.subr.mxu0 0.0
        %2172 = vmatpush1.msra.mxu0 0.0
        %2173 = vmatprep.subr.mxu0 0.0
        %2174 = vmatpush1.msra.mxu0 0.0
        %2175 = vmatprep.subr.mxu0 0.0
        %2176 = vmatpush1.msra.mxu0 0.0
        %2177 = vmatprep.subr.mxu0 0.0
        %2178 = vmatpush1.msra.mxu0 0.0
        %2179 = vmatprep.subr.mxu0 0.0
        %2180 = vmatpush1.msra.mxu0 0.0
        %2181 = vmatprep.subr.mxu0 0.0
        %2182 = vmatpush1.msra.mxu0 0.0
        %2183 = vmatprep.subr.mxu0 0.0
        %2184 = vmatpush1.msra.mxu0 0.0
        %2185 = vmatprep.subr.mxu0 0.0
        %2186 = vmatpush1.msra.mxu0 0.0
        %2187 = vmatprep.subr.mxu0 0.0
        %2188 = vmatpush1.msra.mxu0 0.0
        %2189 = vmatprep.subr.mxu0 0.0
        %2190 = vmatpush1.msra.mxu0 0.0
        %2191 = vmatprep.subr.mxu0 0.0
        %2192 = vmatpush1.msra.mxu0 0.0
        %2193 = vmatprep.subr.mxu0 0.0
        %2194 = vmatpush1.msra.mxu0 0.0
        %2195 = vmatprep.subr.mxu0 0.0
        %2196 = vmatpush1.msra.mxu0 0.0
        %2197 = vmatprep.subr.mxu0 0.0
        %2198 = vmatpush1.msra.mxu0 0.0
        %2199 = vmatprep.subr.mxu0 0.0
        %2200 = vmatpush1.msra.mxu0 0.0
        %2201 = vmatprep.subr.mxu0 0.0
        %2202 = vmatpush1.msra.mxu0 0.0
        %2203 = vmatprep.subr.mxu0 0.0
        %2204 = vmatpush1.msra.mxu0 0.0
        %2205 = vmatprep.subr.mxu0 0.0
        %2206 = vmatpush1.msra.mxu0 0.0
        %2207 = vmatprep.subr.mxu0 0.0
        %2208 = vmatpush1.msra.mxu0 0.0
        %2209 = vmatprep.subr.mxu0 0.0
        %2210 = vmatpush1.msra.mxu0 0.0
        %2211 = vmatprep.subr.mxu0 0.0
        %2212 = vmatpush1.msra.mxu0 0.0
        %2213 = vmatprep.subr.mxu0 0.0
        %2214 = vmatpush1.msra.mxu0 0.0
        %2215 = vmatprep.subr.mxu0 0.0
        %2216 = vmatpush1.msra.mxu0 0.0
        %2217 = vmatprep.mubr.f32.mxu0 0.0
        %2218 = vmatmul.mubr.f32.gmra.mrb[0].mxu0 %v2151
        %v2219 = vpop.f32.mrb[0].mxu0
        %v2220 = vadd.f32 0.0, %v2219
        %v2221 = vpop.f32.mrb[0].mxu0
        %2222 = vdwg.mxu0
        %v2224 = vsel %vm894, %v2220, 0
        %2226 = vmatprep.subr.mxu0 0.0
        %2227 = vmatpush1.msra.mxu0 %v2054
        %2228 = vmatprep.subr.mxu0 0.0
        %2229 = vmatpush1.msra.mxu0 0.0
        %2230 = vmatprep.subr.mxu0 0.0
        %2231 = vmatpush1.msra.mxu0 0.0
        %2232 = vmatprep.subr.mxu0 0.0
        %2233 = vmatpush1.msra.mxu0 0.0
        %2234 = vmatprep.subr.mxu0 0.0
        %2235 = vmatpush1.msra.mxu0 0.0
        %2236 = vmatprep.subr.mxu0 0.0
        %2237 = vmatpush1.msra.mxu0 0.0
        %2238 = vmatprep.subr.mxu0 0.0
        %2239 = vmatpush1.msra.mxu0 0.0
        %2240 = vmatprep.subr.mxu0 0.0
        %2241 = vmatpush1.msra.mxu0 0.0
        %2242 = vmatprep.subr.mxu0 0.0
        %2243 = vmatpush1.msra.mxu0 0.0
        %2244 = vmatprep.subr.mxu0 0.0
        %2245 = vmatpush1.msra.mxu0 0.0
        %2246 = vmatprep.subr.mxu0 0.0
        %2247 = vmatpush1.msra.mxu0 0.0
        %2248 = vmatprep.subr.mxu0 0.0
        %2249 = vmatpush1.msra.mxu0 0.0
        %2250 = vmatprep.subr.mxu0 0.0
        %2251 = vmatpush1.msra.mxu0 0.0
        %2252 = vmatprep.subr.mxu0 0.0
        %2253 = vmatpush1.msra.mxu0 0.0
        %2254 = vmatprep.subr.mxu0 0.0
        %2255 = vmatpush1.msra.mxu0 0.0
        %2256 = vmatprep.subr.mxu0 0.0
        %2257 = vmatpush1.msra.mxu0 0.0
        %2258 = vmatprep.subr.mxu0 0.0
        %2259 = vmatpush1.msra.mxu0 0.0
        %2260 = vmatprep.subr.mxu0 0.0
        %2261 = vmatpush1.msra.mxu0 0.0
        %2262 = vmatprep.subr.mxu0 0.0
        %2263 = vmatpush1.msra.mxu0 0.0
        %2264 = vmatprep.subr.mxu0 0.0
        %2265 = vmatpush1.msra.mxu0 0.0
        %2266 = vmatprep.subr.mxu0 0.0
        %2267 = vmatpush1.msra.mxu0 0.0
        %2268 = vmatprep.subr.mxu0 0.0
        %2269 = vmatpush1.msra.mxu0 0.0
        %2270 = vmatprep.subr.mxu0 0.0
        %2271 = vmatpush1.msra.mxu0 0.0
        %2272 = vmatprep.subr.mxu0 0.0
        %2273 = vmatpush1.msra.mxu0 0.0
        %2274 = vmatprep.subr.mxu0 0.0
        %2275 = vmatpush1.msra.mxu0 0.0
        %2276 = vmatprep.subr.mxu0 0.0
        %2277 = vmatpush1.msra.mxu0 0.0
        %2278 = vmatprep.subr.mxu0 0.0
        %2279 = vmatpush1.msra.mxu0 0.0
        %2280 = vmatprep.subr.mxu0 0.0
        %2281 = vmatpush1.msra.mxu0 0.0
        %2282 = vmatprep.subr.mxu0 0.0
        %2283 = vmatpush1.msra.mxu0 0.0
        %2284 = vmatprep.subr.mxu0 0.0
        %2285 = vmatpush1.msra.mxu0 0.0
        %2286 = vmatprep.subr.mxu0 0.0
        %2287 = vmatpush1.msra.mxu0 0.0
        %2288 = vmatprep.subr.mxu0 0.0
        %2289 = vmatpush1.msra.mxu0 0.0
        %2290 = vmatprep.mubr.f32.mxu0 0.0
        %2291 = vmatmul.mubr.f32.gmra.mrb[0].mxu0 %v2224
        %v2292 = vpop.f32.mrb[0].mxu0
        %v2293 = vadd.f32 0.0, %v2292
        %v2294 = vpop.f32.mrb[0].mxu0
        %2295 = vdwg.mxu0
        %v2297 = vlaneseq
        %v2298 = vshrl.u32 %v2297, 7
        %v2299 = vsub.s32 0, %v2298
        %v2300 = vrot.slane %v2058, %v2299
        %v2302 = vadd.f32 %v2300, %v2293
        %2303 = vrot.lane.b32.xlu0 %v2059, 120
        %v2304 = vpop.permute.xlu0 %2303
        %2305 = vrot.lane.b32.xlu0 %v2050, 120
        %v2306 = vpop.permute.xlu0 %2305
        %v2307 = vsel %vm894, %v2304, 0
        %v2309 = vsel %vm894, %v2306, 0
        %2311 = vmatprep.subr.mxu0 0.0
        %2312 = vmatpush1.xpose.msra.mxu0 %v2309
        %2313 = vmatprep.subr.mxu0 0.0
        %2314 = vmatpush1.xpose.msra.mxu0 0.0
        %2315 = vmatprep.subr.mxu0 0.0
        %2316 = vmatpush1.xpose.msra.mxu0 0.0
        %2317 = vmatprep.subr.mxu0 0.0
        %2318 = vmatpush1.xpose.msra.mxu0 0.0
        %2319 = vmatprep.subr.mxu0 0.0
        %2320 = vmatpush1.xpose.msra.mxu0 0.0
        %2321 = vmatprep.subr.mxu0 0.0
        %2322 = vmatpush1.xpose.msra.mxu0 0.0
        %2323 = vmatprep.subr.mxu0 0.0
        %2324 = vmatpush1.xpose.msra.mxu0 0.0
        %2325 = vmatprep.subr.mxu0 0.0
        %2326 = vmatpush1.xpose.msra.mxu0 0.0
        %2327 = vmatprep.subr.mxu0 0.0
        %2328 = vmatpush1.xpose.msra.mxu0 0.0
        %2329 = vmatprep.subr.mxu0 0.0
        %2330 = vmatpush1.xpose.msra.mxu0 0.0
        %2331 = vmatprep.subr.mxu0 0.0
        %2332 = vmatpush1.xpose.msra.mxu0 0.0
        %2333 = vmatprep.subr.mxu0 0.0
        %2334 = vmatpush1.xpose.msra.mxu0 0.0
        %2335 = vmatprep.subr.mxu0 0.0
        %2336 = vmatpush1.xpose.msra.mxu0 0.0
        %2337 = vmatprep.subr.mxu0 0.0
        %2338 = vmatpush1.xpose.msra.mxu0 0.0
        %2339 = vmatprep.subr.mxu0 0.0
        %2340 = vmatpush1.xpose.msra.mxu0 0.0
        %2341 = vmatprep.subr.mxu0 0.0
        %2342 = vmatpush1.xpose.msra.mxu0 0.0
        %2343 = vmatprep.subr.mxu0 0.0
        %2344 = vmatpush1.xpose.msra.mxu0 0.0
        %2345 = vmatprep.subr.mxu0 0.0
        %2346 = vmatpush1.xpose.msra.mxu0 0.0
        %2347 = vmatprep.subr.mxu0 0.0
        %2348 = vmatpush1.xpose.msra.mxu0 0.0
        %2349 = vmatprep.subr.mxu0 0.0
        %2350 = vmatpush1.xpose.msra.mxu0 0.0
        %2351 = vmatprep.subr.mxu0 0.0
        %2352 = vmatpush1.xpose.msra.mxu0 0.0
        %2353 = vmatprep.subr.mxu0 0.0
        %2354 = vmatpush1.xpose.msra.mxu0 0.0
        %2355 = vmatprep.subr.mxu0 0.0
        %2356 = vmatpush1.xpose.msra.mxu0 0.0
        %2357 = vmatprep.subr.mxu0 0.0
        %2358 = vmatpush1.xpose.msra.mxu0 0.0
        %2359 = vmatprep.subr.mxu0 0.0
        %2360 = vmatpush1.xpose.msra.mxu0 0.0
        %2361 = vmatprep.subr.mxu0 0.0
        %2362 = vmatpush1.xpose.msra.mxu0 0.0
        %2363 = vmatprep.subr.mxu0 0.0
        %2364 = vmatpush1.xpose.msra.mxu0 0.0
        %2365 = vmatprep.subr.mxu0 0.0
        %2366 = vmatpush1.xpose.msra.mxu0 0.0
        %2367 = vmatprep.subr.mxu0 0.0
        %2368 = vmatpush1.xpose.msra.mxu0 0.0
        %2369 = vmatprep.subr.mxu0 0.0
        %2370 = vmatpush1.xpose.msra.mxu0 0.0
        %2371 = vmatprep.subr.mxu0 0.0
        %2372 = vmatpush1.xpose.msra.mxu0 0.0
        %2373 = vmatprep.subr.mxu0 0.0
        %2374 = vmatpush1.xpose.msra.mxu0 0.0
        %2375 = vmatprep.mubr.f32.mxu0 0.0
        %2376 = vmatmul.mubr.f32.gmra.mrb[0].mxu0 %v2307
        %v2377 = vpop.f32.mrb[0].mxu0
        %v2378 = vadd.f32 %v2053, %v2377
        %v2379 = vpop.f32.mrb[0].mxu0
        %2380 = vdwg.mxu0
        %v2381 = vsel %vm894, %v2378, -inf
        %2382 = vmax.xlane.f32.xlu0 %v2381
        %v2383 = vpop.xlane.xlu0 %2382
        %v2384 = vsub.f32 %v2378, %v2383
        %v2385 = vmul.f32 %v2384, 1.442695
        %v2386 = vpow.pop %v2385
        %v2387 = vsel %vm894, %v2386, 0.0
        %2388 = vadd.xlane.f32.xlu0 %v2387
        %v2389 = vpop.xlane.xlu0 %2388
        %v2390 = vrcp.pop %v2389
        %v2391 = vmul.f32 %v2386, %v2390
        %2392 = vrot.lane.b32.xlu0 %v2050, 88
        %v2393 = vpop.permute.xlu0 %2392
        %v2396 = vsel %vm894, %v2391, 0
        %2398 = vmatprep.subr.mxu0 0.0
        %2399 = vmatpush1.msra.mxu0 %v2393
        %2400 = vmatprep.subr.mxu0 0.0
        %2401 = vmatpush1.msra.mxu0 0.0
        %2402 = vmatprep.subr.mxu0 0.0
        %2403 = vmatpush1.msra.mxu0 0.0
        %2404 = vmatprep.subr.mxu0 0.0
        %2405 = vmatpush1.msra.mxu0 0.0
        %2406 = vmatprep.subr.mxu0 0.0
        %2407 = vmatpush1.msra.mxu0 0.0
        %2408 = vmatprep.subr.mxu0 0.0
        %2409 = vmatpush1.msra.mxu0 0.0
        %2410 = vmatprep.subr.mxu0 0.0
        %2411 = vmatpush1.msra.mxu0 0.0
        %2412 = vmatprep.subr.mxu0 0.0
        %2413 = vmatpush1.msra.mxu0 0.0
        %2414 = vmatprep.subr.mxu0 0.0
        %2415 = vmatpush1.msra.mxu0 0.0
        %2416 = vmatprep.subr.mxu0 0.0
        %2417 = vmatpush1.msra.mxu0 0.0
        %2418 = vmatprep.subr.mxu0 0.0
        %2419 = vmatpush1.msra.mxu0 0.0
        %2420 = vmatprep.subr.mxu0 0.0
        %2421 = vmatpush1.msra.mxu0 0.0
        %2422 = vmatprep.subr.mxu0 0.0
        %2423 = vmatpush1.msra.mxu0 0.0
        %2424 = vmatprep.subr.mxu0 0.0
        %2425 = vmatpush1.msra.mxu0 0.0
        %2426 = vmatprep.subr.mxu0 0.0
        %2427 = vmatpush1.msra.mxu0 0.0
        %2428 = vmatprep.subr.mxu0 0.0
        %2429 = vmatpush1.msra.mxu0 0.0
        %2430 = vmatprep.subr.mxu0 0.0
        %2431 = vmatpush1.msra.mxu0 0.0
        %2432 = vmatprep.subr.mxu0 0.0
        %2433 = vmatpush1.msra.mxu0 0.0
        %2434 = vmatprep.subr.mxu0 0.0
        %2435 = vmatpush1.msra.mxu0 0.0
        %2436 = vmatprep.subr.mxu0 0.0
        %2437 = vmatpush1.msra.mxu0 0.0
        %2438 = vmatprep.subr.mxu0 0.0
        %2439 = vmatpush1.msra.mxu0 0.0
        %2440 = vmatprep.subr.mxu0 0.0
        %2441 = vmatpush1.msra.mxu0 0.0
        %2442 = vmatprep.subr.mxu0 0.0
        %2443 = vmatpush1.msra.mxu0 0.0
        %2444 = vmatprep.subr.mxu0 0.0
        %2445 = vmatpush1.msra.mxu0 0.0
        %2446 = vmatprep.subr.mxu0 0.0
        %2447 = vmatpush1.msra.mxu0 0.0
        %2448 = vmatprep.subr.mxu0 0.0
        %2449 = vmatpush1.msra.mxu0 0.0
        %2450 = vmatprep.subr.mxu0 0.0
        %2451 = vmatpush1.msra.mxu0 0.0
        %2452 = vmatprep.subr.mxu0 0.0
        %2453 = vmatpush1.msra.mxu0 0.0
        %2454 = vmatprep.subr.mxu0 0.0
        %2455 = vmatpush1.msra.mxu0 0.0
        %2456 = vmatprep.subr.mxu0 0.0
        %2457 = vmatpush1.msra.mxu0 0.0
        %2458 = vmatprep.subr.mxu0 0.0
        %2459 = vmatpush1.msra.mxu0 0.0
        %2460 = vmatprep.subr.mxu0 0.0
        %2461 = vmatpush1.msra.mxu0 0.0
        %2462 = vmatprep.mubr.f32.mxu0 0.0
        %2463 = vmatmul.mubr.f32.gmra.mrb[0].mxu0 %v2396
        %v2464 = vpop.f32.mrb[0].mxu0
        %v2465 = vadd.f32 0.0, %v2464
        %v2466 = vpop.f32.mrb[0].mxu0
        %2467 = vdwg.mxu0
        %v2469 = vsel %vm894, %v2465, 0
        %2471 = vmatprep.subr.mxu0 0.0
        %2472 = vmatpush1.msra.mxu0 %v2055
        %2473 = vmatprep.subr.mxu0 0.0
        %2474 = vmatpush1.msra.mxu0 0.0
        %2475 = vmatprep.subr.mxu0 0.0
        %2476 = vmatpush1.msra.mxu0 0.0
        %2477 = vmatprep.subr.mxu0 0.0
        %2478 = vmatpush1.msra.mxu0 0.0
        %2479 = vmatprep.subr.mxu0 0.0
        %2480 = vmatpush1.msra.mxu0 0.0
        %2481 = vmatprep.subr.mxu0 0.0
        %2482 = vmatpush1.msra.mxu0 0.0
        %2483 = vmatprep.subr.mxu0 0.0
        %2484 = vmatpush1.msra.mxu0 0.0
        %2485 = vmatprep.subr.mxu0 0.0
        %2486 = vmatpush1.msra.mxu0 0.0
        %2487 = vmatprep.subr.mxu0 0.0
        %2488 = vmatpush1.msra.mxu0 0.0
        %2489 = vmatprep.subr.mxu0 0.0
        %2490 = vmatpush1.msra.mxu0 0.0
        %2491 = vmatprep.subr.mxu0 0.0
        %2492 = vmatpush1.msra.mxu0 0.0
        %2493 = vmatprep.subr.mxu0 0.0
        %2494 = vmatpush1.msra.mxu0 0.0
        %2495 = vmatprep.subr.mxu0 0.0
        %2496 = vmatpush1.msra.mxu0 0.0
        %2497 = vmatprep.subr.mxu0 0.0
        %2498 = vmatpush1.msra.mxu0 0.0
        %2499 = vmatprep.subr.mxu0 0.0
        %2500 = vmatpush1.msra.mxu0 0.0
        %2501 = vmatprep.subr.mxu0 0.0
        %2502 = vmatpush1.msra.mxu0 0.0
        %2503 = vmatprep.subr.mxu0 0.0
        %2504 = vmatpush1.msra.mxu0 0.0
        %2505 = vmatprep.subr.mxu0 0.0
        %2506 = vmatpush1.msra.mxu0 0.0
        %2507 = vmatprep.subr.mxu0 0.0
        %2508 = vmatpush1.msra.mxu0 0.0
        %2509 = vmatprep.subr.mxu0 0.0
        %2510 = vmatpush1.msra.mxu0 0.0
        %2511 = vmatprep.subr.mxu0 0.0
        %2512 = vmatpush1.msra.mxu0 0.0
        %2513 = vmatprep.subr.mxu0 0.0
        %2514 = vmatpush1.msra.mxu0 0.0
        %2515 = vmatprep.subr.mxu0 0.0
        %2516 = vmatpush1.msra.mxu0 0.0
        %2517 = vmatprep.subr.mxu0 0.0
        %2518 = vmatpush1.msra.mxu0 0.0
        %2519 = vmatprep.subr.mxu0 0.0
        %2520 = vmatpush1.msra.mxu0 0.0
        %2521 = vmatprep.subr.mxu0 0.0
        %2522 = vmatpush1.msra.mxu0 0.0
        %2523 = vmatprep.subr.mxu0 0.0
        %2524 = vmatpush1.msra.mxu0 0.0
        %2525 = vmatprep.subr.mxu0 0.0
        %2526 = vmatpush1.msra.mxu0 0.0
        %2527 = vmatprep.subr.mxu0 0.0
        %2528 = vmatpush1.msra.mxu0 0.0
        %2529 = vmatprep.subr.mxu0 0.0
        %2530 = vmatpush1.msra.mxu0 0.0
        %2531 = vmatprep.subr.mxu0 0.0
        %2532 = vmatpush1.msra.mxu0 0.0
        %2533 = vmatprep.subr.mxu0 0.0
        %2534 = vmatpush1.msra.mxu0 0.0
        %2535 = vmatprep.mubr.f32.mxu0 0.0
        %2536 = vmatmul.mubr.f32.gmra.mrb[0].mxu0 %v2469
        %v2537 = vpop.f32.mrb[0].mxu0
        %v2538 = vadd.f32 0.0, %v2537
        %v2539 = vpop.f32.mrb[0].mxu0
        %2540 = vdwg.mxu0
        %v2541 = vadd.f32 %v2302, %v2538
        %2542 = vrot.lane.b32.xlu0 %v2059, 112
        %v2543 = vpop.permute.xlu0 %2542
        %2544 = vrot.lane.b32.xlu0 %v2050, 112
        %v2545 = vpop.permute.xlu0 %2544
        %v2546 = vsel %vm894, %v2543, 0
        %v2548 = vsel %vm894, %v2545, 0
        %2550 = vmatprep.subr.mxu0 0.0
        %2551 = vmatpush1.xpose.msra.mxu0 %v2548
        %2552 = vmatprep.subr.mxu0 0.0
        %2553 = vmatpush1.xpose.msra.mxu0 0.0
        %2554 = vmatprep.subr.mxu0 0.0
        %2555 = vmatpush1.xpose.msra.mxu0 0.0
        %2556 = vmatprep.subr.mxu0 0.0
        %2557 = vmatpush1.xpose.msra.mxu0 0.0
        %2558 = vmatprep.subr.mxu0 0.0
        %2559 = vmatpush1.xpose.msra.mxu0 0.0
        %2560 = vmatprep.subr.mxu0 0.0
        %2561 = vmatpush1.xpose.msra.mxu0 0.0
        %2562 = vmatprep.subr.mxu0 0.0
        %2563 = vmatpush1.xpose.msra.mxu0 0.0
        %2564 = vmatprep.subr.mxu0 0.0
        %2565 = vmatpush1.xpose.msra.mxu0 0.0
        %2566 = vmatprep.subr.mxu0 0.0
        %2567 = vmatpush1.xpose.msra.mxu0 0.0
        %2568 = vmatprep.subr.mxu0 0.0
        %2569 = vmatpush1.xpose.msra.mxu0 0.0
        %2570 = vmatprep.subr.mxu0 0.0
        %2571 = vmatpush1.xpose.msra.mxu0 0.0
        %2572 = vmatprep.subr.mxu0 0.0
        %2573 = vmatpush1.xpose.msra.mxu0 0.0
        %2574 = vmatprep.subr.mxu0 0.0
        %2575 = vmatpush1.xpose.msra.mxu0 0.0
        %2576 = vmatprep.subr.mxu0 0.0
        %2577 = vmatpush1.xpose.msra.mxu0 0.0
        %2578 = vmatprep.subr.mxu0 0.0
        %2579 = vmatpush1.xpose.msra.mxu0 0.0
        %2580 = vmatprep.subr.mxu0 0.0
        %2581 = vmatpush1.xpose.msra.mxu0 0.0
        %2582 = vmatprep.subr.mxu0 0.0
        %2583 = vmatpush1.xpose.msra.mxu0 0.0
        %2584 = vmatprep.subr.mxu0 0.0
        %2585 = vmatpush1.xpose.msra.mxu0 0.0
        %2586 = vmatprep.subr.mxu0 0.0
        %2587 = vmatpush1.xpose.msra.mxu0 0.0
        %2588 = vmatprep.subr.mxu0 0.0
        %2589 = vmatpush1.xpose.msra.mxu0 0.0
        %2590 = vmatprep.subr.mxu0 0.0
        %2591 = vmatpush1.xpose.msra.mxu0 0.0
        %2592 = vmatprep.subr.mxu0 0.0
        %2593 = vmatpush1.xpose.msra.mxu0 0.0
        %2594 = vmatprep.subr.mxu0 0.0
        %2595 = vmatpush1.xpose.msra.mxu0 0.0
        %2596 = vmatprep.subr.mxu0 0.0
        %2597 = vmatpush1.xpose.msra.mxu0 0.0
        %2598 = vmatprep.subr.mxu0 0.0
        %2599 = vmatpush1.xpose.msra.mxu0 0.0
        %2600 = vmatprep.subr.mxu0 0.0
        %2601 = vmatpush1.xpose.msra.mxu0 0.0
        %2602 = vmatprep.subr.mxu0 0.0
        %2603 = vmatpush1.xpose.msra.mxu0 0.0
        %2604 = vmatprep.subr.mxu0 0.0
        %2605 = vmatpush1.xpose.msra.mxu0 0.0
        %2606 = vmatprep.subr.mxu0 0.0
        %2607 = vmatpush1.xpose.msra.mxu0 0.0
        %2608 = vmatprep.subr.mxu0 0.0
        %2609 = vmatpush1.xpose.msra.mxu0 0.0
        %2610 = vmatprep.subr.mxu0 0.0
        %2611 = vmatpush1.xpose.msra.mxu0 0.0
        %2612 = vmatprep.subr.mxu0 0.0
        %2613 = vmatpush1.xpose.msra.mxu0 0.0
        %2614 = vmatprep.mubr.f32.mxu0 0.0
        %2615 = vmatmul.mubr.f32.gmra.mrb[0].mxu0 %v2546
        %v2616 = vpop.f32.mrb[0].mxu0
        %v2617 = vadd.f32 %v2053, %v2616
        %v2618 = vpop.f32.mrb[0].mxu0
        %2619 = vdwg.mxu0
        %v2620 = vsel %vm894, %v2617, -inf
        %2621 = vmax.xlane.f32.xlu0 %v2620
        %v2622 = vpop.xlane.xlu0 %2621
        %v2623 = vsub.f32 %v2617, %v2622
        %v2624 = vmul.f32 %v2623, 1.442695
        %v2625 = vpow.pop %v2624
        %v2626 = vsel %vm894, %v2625, 0.0
        %2627 = vadd.xlane.f32.xlu0 %v2626
        %v2628 = vpop.xlane.xlu0 %2627
        %v2629 = vrcp.pop %v2628
        %v2630 = vmul.f32 %v2625, %v2629
        %2631 = vrot.lane.b32.xlu0 %v2050, 80
        %v2632 = vpop.permute.xlu0 %2631
        %v2635 = vsel %vm894, %v2630, 0
        %2637 = vmatprep.subr.mxu0 0.0
        %2638 = vmatpush1.msra.mxu0 %v2632
        %2639 = vmatprep.subr.mxu0 0.0
        %2640 = vmatpush1.msra.mxu0 0.0
        %2641 = vmatprep.subr.mxu0 0.0
        %2642 = vmatpush1.msra.mxu0 0.0
        %2643 = vmatprep.subr.mxu0 0.0
        %2644 = vmatpush1.msra.mxu0 0.0
        %2645 = vmatprep.subr.mxu0 0.0
        %2646 = vmatpush1.msra.mxu0 0.0
        %2647 = vmatprep.subr.mxu0 0.0
        %2648 = vmatpush1.msra.mxu0 0.0
        %2649 = vmatprep.subr.mxu0 0.0
        %2650 = vmatpush1.msra.mxu0 0.0
        %2651 = vmatprep.subr.mxu0 0.0
        %2652 = vmatpush1.msra.mxu0 0.0
        %2653 = vmatprep.subr.mxu0 0.0
        %2654 = vmatpush1.msra.mxu0 0.0
        %2655 = vmatprep.subr.mxu0 0.0
        %2656 = vmatpush1.msra.mxu0 0.0
        %2657 = vmatprep.subr.mxu0 0.0
        %2658 = vmatpush1.msra.mxu0 0.0
        %2659 = vmatprep.subr.mxu0 0.0
        %2660 = vmatpush1.msra.mxu0 0.0
        %2661 = vmatprep.subr.mxu0 0.0
        %2662 = vmatpush1.msra.mxu0 0.0
        %2663 = vmatprep.subr.mxu0 0.0
        %2664 = vmatpush1.msra.mxu0 0.0
        %2665 = vmatprep.subr.mxu0 0.0
        %2666 = vmatpush1.msra.mxu0 0.0
        %2667 = vmatprep.subr.mxu0 0.0
        %2668 = vmatpush1.msra.mxu0 0.0
        %2669 = vmatprep.subr.mxu0 0.0
        %2670 = vmatpush1.msra.mxu0 0.0
        %2671 = vmatprep.subr.mxu0 0.0
        %2672 = vmatpush1.msra.mxu0 0.0
        %2673 = vmatprep.subr.mxu0 0.0
        %2674 = vmatpush1.msra.mxu0 0.0
        %2675 = vmatprep.subr.mxu0 0.0
        %2676 = vmatpush1.msra.mxu0 0.0
        %2677 = vmatprep.subr.mxu0 0.0
        %2678 = vmatpush1.msra.mxu0 0.0
        %2679 = vmatprep.subr.mxu0 0.0
        %2680 = vmatpush1.msra.mxu0 0.0
        %2681 = vmatprep.subr.mxu0 0.0
        %2682 = vmatpush1.msra.mxu0 0.0
        %2683 = vmatprep.subr.mxu0 0.0
        %2684 = vmatpush1.msra.mxu0 0.0
        %2685 = vmatprep.subr.mxu0 0.0
        %2686 = vmatpush1.msra.mxu0 0.0
        %2687 = vmatprep.subr.mxu0 0.0
        %2688 = vmatpush1.msra.mxu0 0.0
        %2689 = vmatprep.subr.mxu0 0.0
        %2690 = vmatpush1.msra.mxu0 0.0
        %2691 = vmatprep.subr.mxu0 0.0
        %2692 = vmatpush1.msra.mxu0 0.0
        %2693 = vmatprep.subr.mxu0 0.0
        %2694 = vmatpush1.msra.mxu0 0.0
        %2695 = vmatprep.subr.mxu0 0.0
        %2696 = vmatpush1.msra.mxu0 0.0
        %2697 = vmatprep.subr.mxu0 0.0
        %2698 = vmatpush1.msra.mxu0 0.0
        %2699 = vmatprep.subr.mxu0 0.0
        %2700 = vmatpush1.msra.mxu0 0.0
        %2701 = vmatprep.mubr.f32.mxu0 0.0
        %2702 = vmatmul.mubr.f32.gmra.mrb[0].mxu0 %v2635
        %v2703 = vpop.f32.mrb[0].mxu0
        %v2704 = vadd.f32 0.0, %v2703
        %v2705 = vpop.f32.mrb[0].mxu0
        %2706 = vdwg.mxu0
        %v2708 = vsel %vm894, %v2704, 0
        %2710 = vmatprep.subr.mxu0 0.0
        %2711 = vmatpush1.msra.mxu0 %v2056
        %2712 = vmatprep.subr.mxu0 0.0
        %2713 = vmatpush1.msra.mxu0 0.0
        %2714 = vmatprep.subr.mxu0 0.0
        %2715 = vmatpush1.msra.mxu0 0.0
        %2716 = vmatprep.subr.mxu0 0.0
        %2717 = vmatpush1.msra.mxu0 0.0
        %2718 = vmatprep.subr.mxu0 0.0
        %2719 = vmatpush1.msra.mxu0 0.0
        %2720 = vmatprep.subr.mxu0 0.0
        %2721 = vmatpush1.msra.mxu0 0.0
        %2722 = vmatprep.subr.mxu0 0.0
        %2723 = vmatpush1.msra.mxu0 0.0
        %2724 = vmatprep.subr.mxu0 0.0
        %2725 = vmatpush1.msra.mxu0 0.0
        %2726 = vmatprep.subr.mxu0 0.0
        %2727 = vmatpush1.msra.mxu0 0.0
        %2728 = vmatprep.subr.mxu0 0.0
        %2729 = vmatpush1.msra.mxu0 0.0
        %2730 = vmatprep.subr.mxu0 0.0
        %2731 = vmatpush1.msra.mxu0 0.0
        %2732 = vmatprep.subr.mxu0 0.0
        %2733 = vmatpush1.msra.mxu0 0.0
        %2734 = vmatprep.subr.mxu0 0.0
        %2735 = vmatpush1.msra.mxu0 0.0
        %2736 = vmatprep.subr.mxu0 0.0
        %2737 = vmatpush1.msra.mxu0 0.0
        %2738 = vmatprep.subr.mxu0 0.0
        %2739 = vmatpush1.msra.mxu0 0.0
        %2740 = vmatprep.subr.mxu0 0.0
        %2741 = vmatpush1.msra.mxu0 0.0
        %2742 = vmatprep.subr.mxu0 0.0
        %2743 = vmatpush1.msra.mxu0 0.0
        %2744 = vmatprep.subr.mxu0 0.0
        %2745 = vmatpush1.msra.mxu0 0.0
        %2746 = vmatprep.subr.mxu0 0.0
        %2747 = vmatpush1.msra.mxu0 0.0
        %2748 = vmatprep.subr.mxu0 0.0
        %2749 = vmatpush1.msra.mxu0 0.0
        %2750 = vmatprep.subr.mxu0 0.0
        %2751 = vmatpush1.msra.mxu0 0.0
        %2752 = vmatprep.subr.mxu0 0.0
        %2753 = vmatpush1.msra.mxu0 0.0
        %2754 = vmatprep.subr.mxu0 0.0
        %2755 = vmatpush1.msra.mxu0 0.0
        %2756 = vmatprep.subr.mxu0 0.0
        %2757 = vmatpush1.msra.mxu0 0.0
        %2758 = vmatprep.subr.mxu0 0.0
        %2759 = vmatpush1.msra.mxu0 0.0
        %2760 = vmatprep.subr.mxu0 0.0
        %2761 = vmatpush1.msra.mxu0 0.0
        %2762 = vmatprep.subr.mxu0 0.0
        %2763 = vmatpush1.msra.mxu0 0.0
        %2764 = vmatprep.subr.mxu0 0.0
        %2765 = vmatpush1.msra.mxu0 0.0
        %2766 = vmatprep.subr.mxu0 0.0
        %2767 = vmatpush1.msra.mxu0 0.0
        %2768 = vmatprep.subr.mxu0 0.0
        %2769 = vmatpush1.msra.mxu0 0.0
        %2770 = vmatprep.subr.mxu0 0.0
        %2771 = vmatpush1.msra.mxu0 0.0
        %2772 = vmatprep.subr.mxu0 0.0
        %2773 = vmatpush1.msra.mxu0 0.0
        %2774 = vmatprep.mubr.f32.mxu0 0.0
        %2775 = vmatmul.mubr.f32.gmra.mrb[0].mxu0 %v2708
        %v2776 = vpop.f32.mrb[0].mxu0
        %v2777 = vadd.f32 0.0, %v2776
        %v2778 = vpop.f32.mrb[0].mxu0
        %2779 = vdwg.mxu0
        %v2780 = vadd.f32 %v2541, %v2777
        %2781 = vrot.lane.b32.xlu0 %v2059, 104
        %v2782 = vpop.permute.xlu0 %2781
        %2783 = vrot.lane.b32.xlu0 %v2050, 104
        %v2784 = vpop.permute.xlu0 %2783
        %v2785 = vsel %vm894, %v2782, 0
        %v2787 = vsel %vm894, %v2784, 0
        %2789 = vmatprep.subr.mxu0 0.0
        %2790 = vmatpush1.xpose.msra.mxu0 %v2787
        %2791 = vmatprep.subr.mxu0 0.0
        %2792 = vmatpush1.xpose.msra.mxu0 0.0
        %2793 = vmatprep.subr.mxu0 0.0
        %2794 = vmatpush1.xpose.msra.mxu0 0.0
        %2795 = vmatprep.subr.mxu0 0.0
        %2796 = vmatpush1.xpose.msra.mxu0 0.0
        %2797 = vmatprep.subr.mxu0 0.0
        %2798 = vmatpush1.xpose.msra.mxu0 0.0
        %2799 = vmatprep.subr.mxu0 0.0
        %2800 = vmatpush1.xpose.msra.mxu0 0.0
        %2801 = vmatprep.subr.mxu0 0.0
        %2802 = vmatpush1.xpose.msra.mxu0 0.0
        %2803 = vmatprep.subr.mxu0 0.0
        %2804 = vmatpush1.xpose.msra.mxu0 0.0
        %2805 = vmatprep.subr.mxu0 0.0
        %2806 = vmatpush1.xpose.msra.mxu0 0.0
        %2807 = vmatprep.subr.mxu0 0.0
        %2808 = vmatpush1.xpose.msra.mxu0 0.0
        %2809 = vmatprep.subr.mxu0 0.0
        %2810 = vmatpush1.xpose.msra.mxu0 0.0
        %2811 = vmatprep.subr.mxu0 0.0
        %2812 = vmatpush1.xpose.msra.mxu0 0.0
        %2813 = vmatprep.subr.mxu0 0.0
        %2814 = vmatpush1.xpose.msra.mxu0 0.0
        %2815 = vmatprep.subr.mxu0 0.0
        %2816 = vmatpush1.xpose.msra.mxu0 0.0
        %2817 = vmatprep.subr.mxu0 0.0
        %2818 = vmatpush1.xpose.msra.mxu0 0.0
        %2819 = vmatprep.subr.mxu0 0.0
        %2820 = vmatpush1.xpose.msra.mxu0 0.0
        %2821 = vmatprep.subr.mxu0 0.0
        %2822 = vmatpush1.xpose.msra.mxu0 0.0
        %2823 = vmatprep.subr.mxu0 0.0
        %2824 = vmatpush1.xpose.msra.mxu0 0.0
        %2825 = vmatprep.subr.mxu0 0.0
        %2826 = vmatpush1.xpose.msra.mxu0 0.0
        %2827 = vmatprep.subr.mxu0 0.0
        %2828 = vmatpush1.xpose.msra.mxu0 0.0
        %2829 = vmatprep.subr.mxu0 0.0
        %2830 = vmatpush1.xpose.msra.mxu0 0.0
        %2831 = vmatprep.subr.mxu0 0.0
        %2832 = vmatpush1.xpose.msra.mxu0 0.0
        %2833 = vmatprep.subr.mxu0 0.0
        %2834 = vmatpush1.xpose.msra.mxu0 0.0
        %2835 = vmatprep.subr.mxu0 0.0
        %2836 = vmatpush1.xpose.msra.mxu0 0.0
        %2837 = vmatprep.subr.mxu0 0.0
        %2838 = vmatpush1.xpose.msra.mxu0 0.0
        %2839 = vmatprep.subr.mxu0 0.0
        %2840 = vmatpush1.xpose.msra.mxu0 0.0
        %2841 = vmatprep.subr.mxu0 0.0
        %2842 = vmatpush1.xpose.msra.mxu0 0.0
        %2843 = vmatprep.subr.mxu0 0.0
        %2844 = vmatpush1.xpose.msra.mxu0 0.0
        %2845 = vmatprep.subr.mxu0 0.0
        %2846 = vmatpush1.xpose.msra.mxu0 0.0
        %2847 = vmatprep.subr.mxu0 0.0
        %2848 = vmatpush1.xpose.msra.mxu0 0.0
        %2849 = vmatprep.subr.mxu0 0.0
        %2850 = vmatpush1.xpose.msra.mxu0 0.0
        %2851 = vmatprep.subr.mxu0 0.0
        %2852 = vmatpush1.xpose.msra.mxu0 0.0
        %2853 = vmatprep.mubr.f32.mxu0 0.0
        %2854 = vmatmul.mubr.f32.gmra.mrb[0].mxu0 %v2785
        %v2855 = vpop.f32.mrb[0].mxu0
        %v2856 = vadd.f32 %v2053, %v2855
        %v2857 = vpop.f32.mrb[0].mxu0
        %2858 = vdwg.mxu0
        %v2859 = vsel %vm894, %v2856, -inf
        %2860 = vmax.xlane.f32.xlu0 %v2859
        %v2861 = vpop.xlane.xlu0 %2860
        %v2862 = vsub.f32 %v2856, %v2861
        %v2863 = vmul.f32 %v2862, 1.442695
        %v2864 = vpow.pop %v2863
        %v2865 = vsel %vm894, %v2864, 0.0
        %2866 = vadd.xlane.f32.xlu0 %v2865
        %v2867 = vpop.xlane.xlu0 %2866
        %v2868 = vrcp.pop %v2867
        %v2869 = vmul.f32 %v2864, %v2868
        %2870 = vrot.lane.b32.xlu0 %v2050, 72
        %v2871 = vpop.permute.xlu0 %2870
        %v2874 = vsel %vm894, %v2869, 0
        %2876 = vmatprep.subr.mxu0 0.0
        %2877 = vmatpush1.msra.mxu0 %v2871
        %2878 = vmatprep.subr.mxu0 0.0
        %2879 = vmatpush1.msra.mxu0 0.0
        %2880 = vmatprep.subr.mxu0 0.0
        %2881 = vmatpush1.msra.mxu0 0.0
        %2882 = vmatprep.subr.mxu0 0.0
        %2883 = vmatpush1.msra.mxu0 0.0
        %2884 = vmatprep.subr.mxu0 0.0
        %2885 = vmatpush1.msra.mxu0 0.0
        %2886 = vmatprep.subr.mxu0 0.0
        %2887 = vmatpush1.msra.mxu0 0.0
        %2888 = vmatprep.subr.mxu0 0.0
        %2889 = vmatpush1.msra.mxu0 0.0
        %2890 = vmatprep.subr.mxu0 0.0
        %2891 = vmatpush1.msra.mxu0 0.0
        %2892 = vmatprep.subr.mxu0 0.0
        %2893 = vmatpush1.msra.mxu0 0.0
        %2894 = vmatprep.subr.mxu0 0.0
        %2895 = vmatpush1.msra.mxu0 0.0
        %2896 = vmatprep.subr.mxu0 0.0
        %2897 = vmatpush1.msra.mxu0 0.0
        %2898 = vmatprep.subr.mxu0 0.0
        %2899 = vmatpush1.msra.mxu0 0.0
        %2900 = vmatprep.subr.mxu0 0.0
        %2901 = vmatpush1.msra.mxu0 0.0
        %2902 = vmatprep.subr.mxu0 0.0
        %2903 = vmatpush1.msra.mxu0 0.0
        %2904 = vmatprep.subr.mxu0 0.0
        %2905 = vmatpush1.msra.mxu0 0.0
        %2906 = vmatprep.subr.mxu0 0.0
        %2907 = vmatpush1.msra.mxu0 0.0
        %2908 = vmatprep.subr.mxu0 0.0
        %2909 = vmatpush1.msra.mxu0 0.0
        %2910 = vmatprep.subr.mxu0 0.0
        %2911 = vmatpush1.msra.mxu0 0.0
        %2912 = vmatprep.subr.mxu0 0.0
        %2913 = vmatpush1.msra.mxu0 0.0
        %2914 = vmatprep.subr.mxu0 0.0
        %2915 = vmatpush1.msra.mxu0 0.0
        %2916 = vmatprep.subr.mxu0 0.0
        %2917 = vmatpush1.msra.mxu0 0.0
        %2918 = vmatprep.subr.mxu0 0.0
        %2919 = vmatpush1.msra.mxu0 0.0
        %2920 = vmatprep.subr.mxu0 0.0
        %2921 = vmatpush1.msra.mxu0 0.0
        %2922 = vmatprep.subr.mxu0 0.0
        %2923 = vmatpush1.msra.mxu0 0.0
        %2924 = vmatprep.subr.mxu0 0.0
        %2925 = vmatpush1.msra.mxu0 0.0
        %2926 = vmatprep.subr.mxu0 0.0
        %2927 = vmatpush1.msra.mxu0 0.0
        %2928 = vmatprep.subr.mxu0 0.0
        %2929 = vmatpush1.msra.mxu0 0.0
        %2930 = vmatprep.subr.mxu0 0.0
        %2931 = vmatpush1.msra.mxu0 0.0
        %2932 = vmatprep.subr.mxu0 0.0
        %2933 = vmatpush1.msra.mxu0 0.0
        %2934 = vmatprep.subr.mxu0 0.0
        %2935 = vmatpush1.msra.mxu0 0.0
        %2936 = vmatprep.subr.mxu0 0.0
        %2937 = vmatpush1.msra.mxu0 0.0
        %2938 = vmatprep.subr.mxu0 0.0
        %2939 = vmatpush1.msra.mxu0 0.0
        %2940 = vmatprep.mubr.f32.mxu0 0.0
        %2941 = vmatmul.mubr.f32.gmra.mrb[0].mxu0 %v2874
        %v2942 = vpop.f32.mrb[0].mxu0
        %v2943 = vadd.f32 0.0, %v2942
        %v2944 = vpop.f32.mrb[0].mxu0
        %2945 = vdwg.mxu0
        %v2947 = vsel %vm894, %v2943, 0
        %2949 = vmatprep.subr.mxu0 0.0
        %2950 = vmatpush1.msra.mxu0 %v2057
        %2951 = vmatprep.subr.mxu0 0.0
        %2952 = vmatpush1.msra.mxu0 0.0
        %2953 = vmatprep.subr.mxu0 0.0
        %2954 = vmatpush1.msra.mxu0 0.0
        %2955 = vmatprep.subr.mxu0 0.0
        %2956 = vmatpush1.msra.mxu0 0.0
        %2957 = vmatprep.subr.mxu0 0.0
        %2958 = vmatpush1.msra.mxu0 0.0
        %2959 = vmatprep.subr.mxu0 0.0
        %2960 = vmatpush1.msra.mxu0 0.0
        %2961 = vmatprep.subr.mxu0 0.0
        %2962 = vmatpush1.msra.mxu0 0.0
        %2963 = vmatprep.subr.mxu0 0.0
        %2964 = vmatpush1.msra.mxu0 0.0
        %2965 = vmatprep.subr.mxu0 0.0
        %2966 = vmatpush1.msra.mxu0 0.0
        %2967 = vmatprep.subr.mxu0 0.0
        %2968 = vmatpush1.msra.mxu0 0.0
        %2969 = vmatprep.subr.mxu0 0.0
        %2970 = vmatpush1.msra.mxu0 0.0
        %2971 = vmatprep.subr.mxu0 0.0
        %2972 = vmatpush1.msra.mxu0 0.0
        %2973 = vmatprep.subr.mxu0 0.0
        %2974 = vmatpush1.msra.mxu0 0.0
        %2975 = vmatprep.subr.mxu0 0.0
        %2976 = vmatpush1.msra.mxu0 0.0
        %2977 = vmatprep.subr.mxu0 0.0
        %2978 = vmatpush1.msra.mxu0 0.0
        %2979 = vmatprep.subr.mxu0 0.0
        %2980 = vmatpush1.msra.mxu0 0.0
        %2981 = vmatprep.subr.mxu0 0.0
        %2982 = vmatpush1.msra.mxu0 0.0
        %2983 = vmatprep.subr.mxu0 0.0
        %2984 = vmatpush1.msra.mxu0 0.0
        %2985 = vmatprep.subr.mxu0 0.0
        %2986 = vmatpush1.msra.mxu0 0.0
        %2987 = vmatprep.subr.mxu0 0.0
        %2988 = vmatpush1.msra.mxu0 0.0
        %2989 = vmatprep.subr.mxu0 0.0
        %2990 = vmatpush1.msra.mxu0 0.0
        %2991 = vmatprep.subr.mxu0 0.0
        %2992 = vmatpush1.msra.mxu0 0.0
        %2993 = vmatprep.subr.mxu0 0.0
        %2994 = vmatpush1.msra.mxu0 0.0
        %2995 = vmatprep.subr.mxu0 0.0
        %2996 = vmatpush1.msra.mxu0 0.0
        %2997 = vmatprep.subr.mxu0 0.0
        %2998 = vmatpush1.msra.mxu0 0.0
        %2999 = vmatprep.subr.mxu0 0.0
        %3000 = vmatpush1.msra.mxu0 0.0
        %3001 = vmatprep.subr.mxu0 0.0
        %3002 = vmatpush1.msra.mxu0 0.0
        %3003 = vmatprep.subr.mxu0 0.0
        %3004 = vmatpush1.msra.mxu0 0.0
        %3005 = vmatprep.subr.mxu0 0.0
        %3006 = vmatpush1.msra.mxu0 0.0
        %3007 = vmatprep.subr.mxu0 0.0
        %3008 = vmatpush1.msra.mxu0 0.0
        %3009 = vmatprep.subr.mxu0 0.0
        %3010 = vmatpush1.msra.mxu0 0.0
        %3011 = vmatprep.subr.mxu0 0.0
        %3012 = vmatpush1.msra.mxu0 0.0
        %3013 = vmatprep.mubr.f32.mxu0 0.0
        %3014 = vmatmul.mubr.f32.gmra.mrb[0].mxu0 %v2947
        %v3015 = vpop.f32.mrb[0].mxu0
        %v3016 = vadd.f32 0.0, %v3015
        %v3017 = vpop.f32.mrb[0].mxu0
        %3018 = vdwg.mxu0
        %v3019 = vadd.f32 %v2780, %v3016
        %v3020 = vld [vmem:[%s16] sm:$0x1]
        %v3021 = vld [vmem:[%s17] sm:$0x1]
        %v3022 = vadd.f32 %v1884, %v3019
        %v3023 = vsel %vm810, %v3022, 0.0
        %3024 = vadd.xlane.f32.xlu0 %v3023
        %v3025 = vpop.xlane.xlu0 %3024
        %v3026 = vmul.f32 %v3025, %v1860
        %v3027 = vsub.f32 %v3022, %v3026
        %v3028 = vmul.f32 %v3027, %v3027
        %v3029 = vsel %vm810, %v3028, 0.0
        %3030 = vadd.xlane.f32.xlu0 %v3029
        %v3031 = vpop.xlane.xlu0 %3030
        %v3032 = vmul.f32 %v3031, %v1860
        %v3033 = vadd.f32 %v3032, 1e-06
        %v3034 = vrsqrt.pop %v3033
        %v3035 = vmul.f32 %v3027, %v3034
        %v3037 = vlaneseq
        %v3038 = vshrl.u32 %v3037, 7
        %v3039 = vsub.s32 0, %v3038
        %v3040 = vrot.slane %v3020, %v3039
        %v3042 = vmul.f32 %v3035, %v3040
        %v3044 = vlaneseq
        %v3045 = vshrl.u32 %v3044, 7
        %v3046 = vsub.s32 0, %v3045
        %v3047 = vrot.slane %v3021, %v3046
        %v3049 = vadd.f32 %v3042, %v3047
        %v3050 = vld [vmem:[%s18] sm:$0xff]
        %v3051 = vld [vmem:[%s18 + $0x8] sm:$0xff]
        %v3052 = vld [vmem:[%s18 + $0x10] sm:$0xff]
        %v3053 = vld [vmem:[%s18 + $0x18] sm:$0xff]
        %v3054 = vld [vmem:[%s19] sm:$0x1]
        %v3056 = vlaneseq
        %v3057 = vshrl.u32 %v3056, 7
        %v3058 = vsub.s32 0, %v3057
        %v3059 = vrot.slane %v3054, %v3058
        %v3062 = vsel %vm810, %v3049, 0
        %3064 = vmatprep.subr.mxu0 0.0
        %3065 = vmatpush1.msra.mxu0 %v3050
        %3066 = vmatprep.subr.mxu0 0.0
        %3067 = vmatpush1.msra.mxu0 %v3051
        %3068 = vmatprep.subr.mxu0 0.0
        %3069 = vmatpush1.msra.mxu0 %v3052
        %3070 = vmatprep.subr.mxu0 0.0
        %3071 = vmatpush1.msra.mxu0 %v3053
        %3072 = vmatprep.subr.mxu0 0.0
        %3073 = vmatpush1.msra.mxu0 0.0
        %3074 = vmatprep.subr.mxu0 0.0
        %3075 = vmatpush1.msra.mxu0 0.0
        %3076 = vmatprep.subr.mxu0 0.0
        %3077 = vmatpush1.msra.mxu0 0.0
        %3078 = vmatprep.subr.mxu0 0.0
        %3079 = vmatpush1.msra.mxu0 0.0
        %3080 = vmatprep.subr.mxu0 0.0
        %3081 = vmatpush1.msra.mxu0 0.0
        %3082 = vmatprep.subr.mxu0 0.0
        %3083 = vmatpush1.msra.mxu0 0.0
        %3084 = vmatprep.subr.mxu0 0.0
        %3085 = vmatpush1.msra.mxu0 0.0
        %3086 = vmatprep.subr.mxu0 0.0
        %3087 = vmatpush1.msra.mxu0 0.0
        %3088 = vmatprep.subr.mxu0 0.0
        %3089 = vmatpush1.msra.mxu0 0.0
        %3090 = vmatprep.subr.mxu0 0.0
        %3091 = vmatpush1.msra.mxu0 0.0
        %3092 = vmatprep.subr.mxu0 0.0
        %3093 = vmatpush1.msra.mxu0 0.0
        %3094 = vmatprep.subr.mxu0 0.0
        %3095 = vmatpush1.msra.mxu0 0.0
        %3096 = vmatprep.subr.mxu0 0.0
        %3097 = vmatpush1.msra.mxu0 0.0
        %3098 = vmatprep.subr.mxu0 0.0
        %3099 = vmatpush1.msra.mxu0 0.0
        %3100 = vmatprep.subr.mxu0 0.0
        %3101 = vmatpush1.msra.mxu0 0.0
        %3102 = vmatprep.subr.mxu0 0.0
        %3103 = vmatpush1.msra.mxu0 0.0
        %3104 = vmatprep.subr.mxu0 0.0
        %3105 = vmatpush1.msra.mxu0 0.0
        %3106 = vmatprep.subr.mxu0 0.0
        %3107 = vmatpush1.msra.mxu0 0.0
        %3108 = vmatprep.subr.mxu0 0.0
        %3109 = vmatpush1.msra.mxu0 0.0
        %3110 = vmatprep.subr.mxu0 0.0
        %3111 = vmatpush1.msra.mxu0 0.0
        %3112 = vmatprep.subr.mxu0 0.0
        %3113 = vmatpush1.msra.mxu0 0.0
        %3114 = vmatprep.subr.mxu0 0.0
        %3115 = vmatpush1.msra.mxu0 0.0
        %3116 = vmatprep.subr.mxu0 0.0
        %3117 = vmatpush1.msra.mxu0 0.0
        %3118 = vmatprep.subr.mxu0 0.0
        %3119 = vmatpush1.msra.mxu0 0.0
        %3120 = vmatprep.subr.mxu0 0.0
        %3121 = vmatpush1.msra.mxu0 0.0
        %3122 = vmatprep.subr.mxu0 0.0
        %3123 = vmatpush1.msra.mxu0 0.0
        %3124 = vmatprep.subr.mxu0 0.0
        %3125 = vmatpush1.msra.mxu0 0.0
        %3126 = vmatprep.subr.mxu0 0.0
        %3127 = vmatpush1.msra.mxu0 0.0
        %3128 = vmatprep.mubr.f32.mxu0 0.0
        %3129 = vmatmul.mubr.f32.gmra.mrb[0].mxu0 %v3062
        %v3130 = vpop.f32.mrb[0].mxu0
        %v3131 = vadd.f32 %v3059, %v3130
        %v3132 = vpop.f32.mrb[0].mxu0
        %3133 = vdwg.mxu0
        %v3134 = vmax.f32 %v3131, 0.0
        %v3135 = vld [vmem:[%s20] sm:$0xff]
        %v3136 = vld [vmem:[%s20 + $0x8] sm:$0xff]
        %v3137 = vld [vmem:[%s20 + $0x10] sm:$0xff]
        %v3138 = vld [vmem:[%s20 + $0x18] sm:$0xff]
        %v3139 = vld [vmem:[%s20 + $0x20] sm:$0xff]
        %v3140 = vld [vmem:[%s20 + $0x28] sm:$0xff]
        %v3141 = vld [vmem:[%s20 + $0x30] sm:$0xff]
        %v3142 = vld [vmem:[%s20 + $0x38] sm:$0xff]
        %v3143 = vld [vmem:[%s21] sm:$0x1]
        %v3145 = vlaneseq
        %v3146 = vshrl.u32 %v3145, 7
        %v3147 = vsub.s32 0, %v3146
        %v3148 = vrot.slane %v3143, %v3147
        %vm3150 = vcmask 523264
        %v3152 = vsel %vm3150, %v3134, 0
        %3154 = vmatprep.subr.mxu0 0.0
        %3155 = vmatpush1.msra.mxu0 %v3135
        %3156 = vmatprep.subr.mxu0 0.0
        %3157 = vmatpush1.msra.mxu0 %v3136
        %3158 = vmatprep.subr.mxu0 0.0
        %3159 = vmatpush1.msra.mxu0 %v3137
        %3160 = vmatprep.subr.mxu0 0.0
        %3161 = vmatpush1.msra.mxu0 %v3138
        %3162 = vmatprep.subr.mxu0 0.0
        %3163 = vmatpush1.msra.mxu0 %v3139
        %3164 = vmatprep.subr.mxu0 0.0
        %3165 = vmatpush1.msra.mxu0 %v3140
        %3166 = vmatprep.subr.mxu0 0.0
        %3167 = vmatpush1.msra.mxu0 %v3141
        %3168 = vmatprep.subr.mxu0 0.0
        %3169 = vmatpush1.msra.mxu0 %v3142
        %3170 = vmatprep.subr.mxu0 0.0
        %3171 = vmatpush1.msra.mxu0 0.0
        %3172 = vmatprep.subr.mxu0 0.0
        %3173 = vmatpush1.msra.mxu0 0.0
        %3174 = vmatprep.subr.mxu0 0.0
        %3175 = vmatpush1.msra.mxu0 0.0
        %3176 = vmatprep.subr.mxu0 0.0
        %3177 = vmatpush1.msra.mxu0 0.0
        %3178 = vmatprep.subr.mxu0 0.0
        %3179 = vmatpush1.msra.mxu0 0.0
        %3180 = vmatprep.subr.mxu0 0.0
        %3181 = vmatpush1.msra.mxu0 0.0
        %3182 = vmatprep.subr.mxu0 0.0
        %3183 = vmatpush1.msra.mxu0 0.0
        %3184 = vmatprep.subr.mxu0 0.0
        %3185 = vmatpush1.msra.mxu0 0.0
        %3186 = vmatprep.subr.mxu0 0.0
        %3187 = vmatpush1.msra.mxu0 0.0
        %3188 = vmatprep.subr.mxu0 0.0
        %3189 = vmatpush1.msra.mxu0 0.0
        %3190 = vmatprep.subr.mxu0 0.0
        %3191 = vmatpush1.msra.mxu0 0.0
        %3192 = vmatprep.subr.mxu0 0.0
        %3193 = vmatpush1.msra.mxu0 0.0
        %3194 = vmatprep.subr.mxu0 0.0
        %3195 = vmatpush1.msra.mxu0 0.0
        %3196 = vmatprep.subr.mxu0 0.0
        %3197 = vmatpush1.msra.mxu0 0.0
        %3198 = vmatprep.subr.mxu0 0.0
        %3199 = vmatpush1.msra.mxu0 0.0
        %3200 = vmatprep.subr.mxu0 0.0
        %3201 = vmatpush1.msra.mxu0 0.0
        %3202 = vmatprep.subr.mxu0 0.0
        %3203 = vmatpush1.msra.mxu0 0.0
        %3204 = vmatprep.subr.mxu0 0.0
        %3205 = vmatpush1.msra.mxu0 0.0
        %3206 = vmatprep.subr.mxu0 0.0
        %3207 = vmatpush1.msra.mxu0 0.0
        %3208 = vmatprep.subr.mxu0 0.0
        %3209 = vmatpush1.msra.mxu0 0.0
        %3210 = vmatprep.subr.mxu0 0.0
        %3211 = vmatpush1.msra.mxu0 0.0
        %3212 = vmatprep.subr.mxu0 0.0
        %3213 = vmatpush1.msra.mxu0 0.0
        %3214 = vmatprep.subr.mxu0 0.0
        %3215 = vmatpush1.msra.mxu0 0.0
        %3216 = vmatprep.subr.mxu0 0.0
        %3217 = vmatpush1.msra.mxu0 0.0
        %3218 = vmatprep.mubr.f32.mxu0 0.0
        %3219 = vmatmul.mubr.f32.gmra.mrb[0].mxu0 %v3152
        %v3220 = vpop.f32.mrb[0].mxu0
        %v3221 = vadd.f32 %v3148, %v3220
        %v3222 = vpop.f32.mrb[0].mxu0
        %3223 = vdwg.mxu0
        %v3224 = vld [vmem:[%s22] sm:$0x1]
        %v3225 = vld [vmem:[#allocation2] sm:$0x1]
        %v3226 = vadd.f32 %v3049, %v3221
        %v3227 = vsel %vm810, %v3226, 0.0
        %3228 = vadd.xlane.f32.xlu0 %v3227
        %v3229 = vpop.xlane.xlu0 %3228
        %v3230 = vmul.f32 %v3229, %v1860
        %v3231 = vsub.f32 %v3226, %v3230
        %v3232 = vmul.f32 %v3231, %v3231
        %v3233 = vsel %vm810, %v3232, 0.0
        %3234 = vadd.xlane.f32.xlu0 %v3233
        %v3235 = vpop.xlane.xlu0 %3234
        %v3236 = vmul.f32 %v3235, %v1860
        %v3237 = vadd.f32 %v3236, 1e-06
        %v3238 = vrsqrt.pop %v3237
        %v3239 = vmul.f32 %v3231, %v3238
        %v3241 = vlaneseq
        %v3242 = vshrl.u32 %v3241, 7
        %v3243 = vsub.s32 0, %v3242
        %v3244 = vrot.slane %v3224, %v3243
        %v3246 = vmul.f32 %v3239, %v3244
        %v3248 = vlaneseq
        %v3249 = vshrl.u32 %v3248, 7
        %v3250 = vsub.s32 0, %v3249
        %v3251 = vrot.slane %v3225, %v3250
        %v3253 = vadd.f32 %v3246, %v3251
        %3254 = vst.msk [vmem:[%s780] sm:$0xff] %vm810, %v3253
        %s3255 = sand.u32 %s571, 1
        %s3256 = scalar_lea.sflag [#allocation4], %s3255
        %s3257 = sand.u32 %s571, 1
        %s3258 = smul.addr %s3257, 8
        %s3259 = scalar_lea.vmem [#allocation5], %s3258
        // Predicated region
        $region121: #{decoder_forward.3} parent=115 // pred_check
          %p3260 = pneg %p581
        $region122: #{decoder_forward.3} parent=115 // pred_check_branch
          %3262 = sbr.rel (%p3260) target = $region124
        $region123: #{decoder_forward.3} parent=115 // pred_region
          %s3264 = ssub.s32 128, 128
          %3265 = vsyncadd %s3256, %s3264
          %s3266 = smul.addr %s39, 128
          %s3267 = scalar_lea.hbm %s24, %s3266
          %s3269 = sshll.u32 %s3259, 4
          %s3270 = int_to_ptr.vmem [resolvable:$true] %s3269
          %3272 = dma.vmem_to_hbm [thread:$0]  %s3270, 128, %s3267, %s3256
        $region124: #{decoder_forward.3} parent=115 // pred_fallthru
          _
      $region116: #{decoder_forward.3} parent=5 // pred_fallthru
        _
      %p3273 = scmp.le.s32.totalorder 2, %s34
      // Predicated region
      $region125: #{decoder_forward.3} parent=5 // pred_check
        %p3274 = pneg %p3273
      $region126: #{decoder_forward.3} parent=5 // pred_check_branch
        %3276 = sbr.rel (%p3274) target = $region128
      $region127: #{decoder_forward.3} parent=5 // pred_region
        %s3277 = ssub.s32 %s34, 2
        // Predicated region
        $region129: #{decoder_forward.3} parent=127 // pred_check
          %p3278 = pneg %p587
        $region130: #{decoder_forward.3} parent=127 // pred_check_branch
          %3280 = sbr.rel (%p3278) target = $region132
        $region131: #{decoder_forward.3} parent=127 // pred_region
          %s3281 = sand.u32 %s572, 1
          %s3282 = scalar_lea.sflag [#allocation4], %s3281
          %s3283 = sand.u32 %s572, 1
          %s3284 = smul.addr %s3283, 8
          %s3285 = scalar_lea.vmem [#allocation5], %s3284
          %3286 = dma.done %s3282, 128
        $region132: #{decoder_forward.3} parent=127 // pred_fallthru
          _
      $region128: #{decoder_forward.3} parent=5 // pred_fallthru
        _
    $region6: #{decoder_forward.3} parent=1 // loop_footer
      %s38 = sadd.s32 1, %s34
    $region7: #{decoder_forward.3} parent=1 // loop_footer_branch
      %33 = sbr.rel target = $region3
    $region8: #{decoder_forward.3} parent=1 // loop_exit
      _
    %3287 = vsyncpa [#allocation3], 1
    %s3288 = scalar_lea.sflag [#allocation3], 1
    %3289 = vsyncpa %s3288, 1
    %3290 = vsyncpa [#allocation4], 1
    %s3291 = scalar_lea.sflag [#allocation4], 1
    %3292 = vsyncpa %s3291, 1

</llo_original>
